<compile_context>
chip_gen: v5e
topology: v5e:2x2
jax: 0.10.0
libtpu: 0.0.40
codegen_flags: <defaults>
</compile_context>

<pallas_src>
import functools

import jax
import jax.numpy as jnp
from jax.experimental import pallas as pl
from jax.experimental.pallas import tpu as pltpu

INPUT_SIZE = 2048
H1, H2, H3, OUT = 1024, 512, 256, 1


def _round_up(v, m):
    return ((v + m - 1) // m) * m


def _mlp_kernel(x_ref, w1_ref, b1_ref, w2_ref, b2_ref, w3_ref, b3_ref,
                w4r_ref, b4_ref, o_ref):
    """Fused 4-layer MLP: relu(x@W1+b1) -> relu(@W2+b2) -> relu(@W3+b3) -> @W4+b4."""
    # x arrives f32 straight from HBM; cast to bf16 in-register for the MXU
    # (avoids a wrapper-side cast + extra HBM round trip).
    x = x_ref[...].astype(jnp.bfloat16)
    # Layer 1: (bb, 2048) @ (2048, 1024) -- bf16 MXU inputs, f32 accumulate.
    a = jnp.dot(x, w1_ref[...],
                preferred_element_type=jnp.float32) + b1_ref[...]
    h = jnp.maximum(a, 0.0).astype(jnp.bfloat16)   # f32 epilogue, bf16 for next MXU
    # Layer 2: (bb, 1024) @ (1024, 512)
    a = jnp.dot(h, w2_ref[...],
                preferred_element_type=jnp.float32) + b2_ref[...]
    h = jnp.maximum(a, 0.0).astype(jnp.bfloat16)
    # Layer 3: (bb, 512) @ (512, 256) -- keep the result f32 for the reduction.
    a = jnp.dot(h, w3_ref[...],
                preferred_element_type=jnp.float32) + b3_ref[...]
    h = jnp.maximum(a, 0.0)
    # Layer 4: out_features == 1 -> VPU multiply + lane reduction instead of a
    # single-column MXU matmul.
    o_ref[...] = (jnp.sum(h * w4r_ref[...], axis=-1, keepdims=True)
                  + b4_ref[...]).astype(o_ref.dtype)


def prepare_params(params):
    """One-time conversion: bf16 weights for the MXU, f32 biases / final row.

    `params` is [(w, b), ...] with w laid out (in_features, out_features).
    (PyTorch nn.Linear stores (out, in) -- transpose when importing.)
    """
    (w1, b1), (w2, b2), (w3, b3), (w4, b4) = params
    assert w1.shape == (INPUT_SIZE, H1), w1.shape
    assert w2.shape == (H1, H2), w2.shape
    assert w3.shape == (H2, H3), w3.shape
    assert w4.shape == (H3, OUT), w4.shape
    return (
        jnp.asarray(w1, jnp.bfloat16), jnp.asarray(b1, jnp.float32).reshape(1, H1),
        jnp.asarray(w2, jnp.bfloat16), jnp.asarray(b2, jnp.float32).reshape(1, H2),
        jnp.asarray(w3, jnp.bfloat16), jnp.asarray(b3, jnp.float32).reshape(1, H3),
        jnp.asarray(w4, jnp.float32).reshape(1, H3),   # final layer stays f32 (VPU)
        jnp.asarray(b4, jnp.float32).reshape(1, OUT),
    )


@functools.partial(jax.jit, static_argnames=("block_b",))
def solubility_predictor(x, prepared, *, block_b=512):
    """x: (B, 2048) float32 -> (B, 1) float32.  Inference path (dropout = identity)."""
    w1b, b1, w2b, b2, w3b, b3, w4_row, b4 = prepared
    B, F = x.shape
    assert F == INPUT_SIZE

    # Batch tile: big enough to fill the MXU / amortize the ~0.35us grid-step
    # overhead, but never larger than the sublane-rounded batch.
    bb = min(_round_up(block_b, 8), _round_up(B, 8))
    b_pad = _round_up(B, bb)

    x = x.astype(jnp.float32)
    if b_pad != B:
        x = jnp.pad(x, ((0, b_pad - B), (0, 0)))

    def full(shape):
        # Grid-invariant operand: fully resident in VMEM, fetched once
        # (constant index_map => no re-DMA across grid steps).
        return pl.BlockSpec(shape, lambda i: (0,) * len(shape))

    n_tiles = b_pad // bb
    flops = 2 * b_pad * (INPUT_SIZE * H1 + H1 * H2 + H2 * H3 + H3 * OUT)
    weight_bytes = 2 * (INPUT_SIZE * H1 + H1 * H2 + H2 * H3) + 4 * (H3 + H1 + H2 + H3 + OUT)
    bytes_accessed = b_pad * F * 4 + weight_bytes + b_pad * OUT * 4

    out = pl.pallas_call(
        _mlp_kernel,
        out_shape=jax.ShapeDtypeStruct((b_pad, OUT), jnp.float32),
        grid=(n_tiles,),
        in_specs=[
            pl.BlockSpec((bb, F), lambda i: (i, 0)),   # x tile (batch rows), f32
            full((F, H1)), full((1, H1)),
            full((H1, H2)), full((1, H2)),
            full((H2, H3)), full((1, H3)),
            full((1, H3)), full((1, OUT)),
        ],
        out_specs=pl.BlockSpec((bb, OUT), lambda i: (i, 0)),
        compiler_params=pltpu.CompilerParams(
            # "parallel": megacore-shardable on v7x.  Note: for mid-size
            # batches on v7x each TC re-DMAs its own 5.25 MiB weight copy;
            # for large batches (the case where >1 tile exists) this is the
            # right trade.
            dimension_semantics=("parallel",),
            vmem_limit_bytes=48 << 20,      # v7x has only 64 MiB VMEM/TC
        ),
        cost_estimate=pl.CostEstimate(flops=flops, transcendentals=0,
                                      bytes_accessed=bytes_accessed),
    )(x, w1b, b1, w2b, b2, w3b, b3, w4_row, b4)

    return out[:B]


def init_params(key):
    """Deterministic synthetic init (PyTorch-Linear-like uniform scaling),
    weights laid out (in_features, out_features)."""
    dims = [(INPUT_SIZE, H1), (H1, H2), (H2, H3), (H3, OUT)]
    params = []
    for i, (fan_in, fan_out) in enumerate(dims):
        kw, kb = jax.random.split(jax.random.fold_in(key, i))
        bound = 1.0 / (fan_in ** 0.5)
        w = jax.random.uniform(kw, (fan_in, fan_out), jnp.float32, -bound, bound)
        b = jax.random.uniform(kb, (1, fan_out), jnp.float32, -bound, bound)
        params.append((w, b))
    return params


def reference_forward_f32(x, params):
    """Pure f32 reference (matches the PyTorch eval-mode forward)."""
    h = x
    for i, (w, b) in enumerate(params):
        h = h @ w + b
        if i < len(params) - 1:
            h = jnp.maximum(h, 0.0)
    return h


def reference_forward_matched(x, params):
    """Reference using the same precision recipe as the kernel
    (bf16 matmul inputs, f32 accumulation, f32 epilogue, f32 last layer)."""
    (w1, b1), (w2, b2), (w3, b3), (w4, b4) = params
    h = x.astype(jnp.bfloat16)
    a = jnp.dot(h, w1.astype(jnp.bfloat16),
                preferred_element_type=jnp.float32) + b1
    h = jnp.maximum(a, 0.0).astype(jnp.bfloat16)
    a = jnp.dot(h, w2.astype(jnp.bfloat16),
                preferred_element_type=jnp.float32) + b2
    h = jnp.maximum(a, 0.0).astype(jnp.bfloat16)
    a = jnp.dot(h, w3.astype(jnp.bfloat16),
                preferred_element_type=jnp.float32) + b3
    h = jnp.maximum(a, 0.0)
    return jnp.sum(h * w4.reshape(1, -1), axis=-1, keepdims=True) + b4


if __name__ == "__main__":
    key = jax.random.PRNGKey(0)
    k_x, k_p = jax.random.split(key)
    params = init_params(k_p)
    prepared = prepare_params(params)          # one-time bf16 weight conversion

    # Small latency-style batch (adaptive 8-row tile, grid=(1,)).
    B = 4
    x = jax.random.normal(k_x, (B, INPUT_SIZE), jnp.float32)
    out = jax.block_until_ready(solubility_predictor(x, prepared))
    assert out.shape == (B, 1), out.shape

    ref_m = reference_forward_matched(x, params)
    ref_f = reference_forward_f32(x, params)
    assert jnp.allclose(out, ref_m, atol=1e-2, rtol=1e-2), \
        float(jnp.max(jnp.abs(out - ref_m)))
    assert jnp.allclose(out, ref_f, atol=1e-1, rtol=1e-1), \
        float(jnp.max(jnp.abs(out - ref_f)))

    print("KERNEL_OK")
</pallas_src>

<mosaic_0001>
module attributes {stable_mosaic.version = 11 : i64} {
  func.func @_mlp_kernel(%arg0: i32, %arg1: memref<8x2048xf32, #tpu.memory_space<vmem>>, %arg2: memref<2048x1024xbf16, #tpu.memory_space<vmem>>, %arg3: memref<1x1024xf32, #tpu.memory_space<vmem>>, %arg4: memref<1024x512xbf16, #tpu.memory_space<vmem>>, %arg5: memref<1x512xf32, #tpu.memory_space<vmem>>, %arg6: memref<512x256xbf16, #tpu.memory_space<vmem>>, %arg7: memref<1x256xf32, #tpu.memory_space<vmem>>, %arg8: memref<1x256xf32, #tpu.memory_space<vmem>>, %arg9: memref<1x1xf32, #tpu.memory_space<vmem>>, %arg10: memref<8x1xf32, #tpu.memory_space<vmem>>) attributes {dimension_semantics = [#tpu.dimension_semantics<parallel>], iteration_bounds = array<i64: 1>, scalar_prefetch = 0 : i64, scratch_operands = 0 : i64, tpu.core_type = #tpu.core_type<tc>, window_params = [{transform_indices = @transform_0, window_bounds = array<i64: 8, 2048>}, {pipeline_mode = #tpu.pipeline_mode<synchronous>, transform_indices = @transform_1, window_bounds = array<i64: 2048, 1024>}, {pipeline_mode = #tpu.pipeline_mode<synchronous>, transform_indices = @transform_2, window_bounds = array<i64: 1, 1024>}, {pipeline_mode = #tpu.pipeline_mode<synchronous>, transform_indices = @transform_3, window_bounds = array<i64: 1024, 512>}, {pipeline_mode = #tpu.pipeline_mode<synchronous>, transform_indices = @transform_4, window_bounds = array<i64: 1, 512>}, {pipeline_mode = #tpu.pipeline_mode<synchronous>, transform_indices = @transform_5, window_bounds = array<i64: 512, 256>}, {pipeline_mode = #tpu.pipeline_mode<synchronous>, transform_indices = @transform_6, window_bounds = array<i64: 1, 256>}, {pipeline_mode = #tpu.pipeline_mode<synchronous>, transform_indices = @transform_7, window_bounds = array<i64: 1, 256>}, {pipeline_mode = #tpu.pipeline_mode<synchronous>, transform_indices = @transform_8, window_bounds = array<i64: 1, 1>}, {transform_indices = @transform_9, window_bounds = array<i64: 8, 1>}]} {
    %c0 = arith.constant 0 : index
    %c0_0 = arith.constant 0 : index
    %0 = vector.load %arg1[%c0, %c0_0] : memref<8x2048xf32, #tpu.memory_space<vmem>>, vector<8x2048xf32>
    %1 = arith.truncf %0 : vector<8x2048xf32> to vector<8x2048xbf16>
    %c0_1 = arith.constant 0 : index
    %c0_2 = arith.constant 0 : index
    %2 = vector.load %arg2[%c0_1, %c0_2] : memref<2048x1024xbf16, #tpu.memory_space<vmem>>, vector<2048x1024xbf16>
    %cst = arith.constant dense<0.000000e+00> : vector<8x1024xf32>
    %3 = tpu.matmul %1, %2, %cst {dimension_numbers = #tpu.dot_dimension_numbers<[1], [0], [0], [1], [0, 0, 1, 1], [], []>} : vector<8x2048xbf16>, vector<2048x1024xbf16>, vector<8x1024xf32> -> vector<8x1024xf32>
    %c0_3 = arith.constant 0 : index
    %c0_4 = arith.constant 0 : index
    %4 = vector.load %arg3[%c0_3, %c0_4] : memref<1x1024xf32, #tpu.memory_space<vmem>>, vector<1x1024xf32>
    %5 = vector.broadcast %4 : vector<1x1024xf32> to vector<8x1024xf32>
    %6 = arith.addf %3, %5 : vector<8x1024xf32>
    %cst_5 = arith.constant 0.000000e+00 : f32
    %7 = vector.broadcast %cst_5 : f32 to vector<8x1024xf32>
    %8 = arith.maximumf %6, %7 : vector<8x1024xf32>
    %9 = arith.truncf %8 : vector<8x1024xf32> to vector<8x1024xbf16>
    %c0_6 = arith.constant 0 : index
    %c0_7 = arith.constant 0 : index
    %10 = vector.load %arg4[%c0_6, %c0_7] : memref<1024x512xbf16, #tpu.memory_space<vmem>>, vector<1024x512xbf16>
    %cst_8 = arith.constant dense<0.000000e+00> : vector<8x512xf32>
    %11 = tpu.matmul %9, %10, %cst_8 {dimension_numbers = #tpu.dot_dimension_numbers<[1], [0], [0], [1], [0, 0, 1, 1], [], []>} : vector<8x1024xbf16>, vector<1024x512xbf16>, vector<8x512xf32> -> vector<8x512xf32>
    %c0_9 = arith.constant 0 : index
    %c0_10 = arith.constant 0 : index
    %12 = vector.load %arg5[%c0_9, %c0_10] : memref<1x512xf32, #tpu.memory_space<vmem>>, vector<1x512xf32>
    %13 = vector.broadcast %12 : vector<1x512xf32> to vector<8x512xf32>
    %14 = arith.addf %11, %13 : vector<8x512xf32>
    %cst_11 = arith.constant 0.000000e+00 : f32
    %15 = vector.broadcast %cst_11 : f32 to vector<8x512xf32>
    %16 = arith.maximumf %14, %15 : vector<8x512xf32>
    %17 = arith.truncf %16 : vector<8x512xf32> to vector<8x512xbf16>
    %c0_12 = arith.constant 0 : index
    %c0_13 = arith.constant 0 : index
    %18 = vector.load %arg6[%c0_12, %c0_13] : memref<512x256xbf16, #tpu.memory_space<vmem>>, vector<512x256xbf16>
    %cst_14 = arith.constant dense<0.000000e+00> : vector<8x256xf32>
    %19 = tpu.matmul %17, %18, %cst_14 {dimension_numbers = #tpu.dot_dimension_numbers<[1], [0], [0], [1], [0, 0, 1, 1], [], []>} : vector<8x512xbf16>, vector<512x256xbf16>, vector<8x256xf32> -> vector<8x256xf32>
    %c0_15 = arith.constant 0 : index
    %c0_16 = arith.constant 0 : index
    %20 = vector.load %arg7[%c0_15, %c0_16] : memref<1x256xf32, #tpu.memory_space<vmem>>, vector<1x256xf32>
    %21 = vector.broadcast %20 : vector<1x256xf32> to vector<8x256xf32>
    %22 = arith.addf %19, %21 : vector<8x256xf32>
    %cst_17 = arith.constant 0.000000e+00 : f32
    %23 = vector.broadcast %cst_17 : f32 to vector<8x256xf32>
    %24 = arith.maximumf %22, %23 : vector<8x256xf32>
    %c0_18 = arith.constant 0 : index
    %c0_19 = arith.constant 0 : index
    %25 = vector.load %arg8[%c0_18, %c0_19] : memref<1x256xf32, #tpu.memory_space<vmem>>, vector<1x256xf32>
    %26 = vector.broadcast %25 : vector<1x256xf32> to vector<8x256xf32>
    %27 = arith.mulf %24, %26 : vector<8x256xf32>
    %cst_20 = arith.constant dense<0.000000e+00> : vector<8xf32>
    %28 = vector.multi_reduction <add>, %27, %cst_20 [1] : vector<8x256xf32> to vector<8xf32>
    %29 = vector.shape_cast %28 : vector<8xf32> to vector<8x1xf32>
    %c0_21 = arith.constant 0 : index
    %c0_22 = arith.constant 0 : index
    %30 = vector.load %arg9[%c0_21, %c0_22] : memref<1x1xf32, #tpu.memory_space<vmem>>, vector<1x1xf32>
    %31 = vector.broadcast %30 : vector<1x1xf32> to vector<8x1xf32>
    %32 = arith.addf %29, %31 : vector<8x1xf32>
    %c0_23 = arith.constant 0 : index
    %c0_24 = arith.constant 0 : index
    %33 = vector.load %arg10[%c0_23, %c0_24] : memref<8x1xf32, #tpu.memory_space<vmem>>, vector<8x1xf32>
    tpu.vector_store %arg10[%c0_23, %c0_24], %32 {strides = array<i32>} : memref<8x1xf32, #tpu.memory_space<vmem>>, vector<8x1xf32>,
    return
  }
  func.func @transform_0(%arg0: i32) -> (i32, i32) {
    %c0_i32 = arith.constant 0 : i32
    %c0_i32_0 = arith.constant 0 : i32
    return %arg0, %c0_i32 : i32, i32
  }
  func.func @transform_1(%arg0: i32) -> (i32, i32) {
    %c0_i32 = arith.constant 0 : i32
    %c0_i32_0 = arith.constant 0 : i32
    %c0_i32_1 = arith.constant 0 : i32
    return %c0_i32, %c0_i32_0 : i32, i32
  }
  func.func @transform_2(%arg0: i32) -> (i32, i32) {
    %c0_i32 = arith.constant 0 : i32
    %c0_i32_0 = arith.constant 0 : i32
    %c0_i32_1 = arith.constant 0 : i32
    return %c0_i32, %c0_i32_0 : i32, i32
  }
  func.func @transform_3(%arg0: i32) -> (i32, i32) {
    %c0_i32 = arith.constant 0 : i32
    %c0_i32_0 = arith.constant 0 : i32
    %c0_i32_1 = arith.constant 0 : i32
    return %c0_i32, %c0_i32_0 : i32, i32
  }
  func.func @transform_4(%arg0: i32) -> (i32, i32) {
    %c0_i32 = arith.constant 0 : i32
    %c0_i32_0 = arith.constant 0 : i32
    %c0_i32_1 = arith.constant 0 : i32
    return %c0_i32, %c0_i32_0 : i32, i32
  }
  func.func @transform_5(%arg0: i32) -> (i32, i32) {
    %c0_i32 = arith.constant 0 : i32
    %c0_i32_0 = arith.constant 0 : i32
    %c0_i32_1 = arith.constant 0 : i32
    return %c0_i32, %c0_i32_0 : i32, i32
  }
  func.func @transform_6(%arg0: i32) -> (i32, i32) {
    %c0_i32 = arith.constant 0 : i32
    %c0_i32_0 = arith.constant 0 : i32
    %c0_i32_1 = arith.constant 0 : i32
    return %c0_i32, %c0_i32_0 : i32, i32
  }
  func.func @transform_7(%arg0: i32) -> (i32, i32) {
    %c0_i32 = arith.constant 0 : i32
    %c0_i32_0 = arith.constant 0 : i32
    %c0_i32_1 = arith.constant 0 : i32
    return %c0_i32, %c0_i32_0 : i32, i32
  }
  func.func @transform_8(%arg0: i32) -> (i32, i32) {
    %c0_i32 = arith.constant 0 : i32
    %c0_i32_0 = arith.constant 0 : i32
    %c0_i32_1 = arith.constant 0 : i32
    return %c0_i32, %c0_i32_0 : i32, i32
  }
  func.func @transform_9(%arg0: i32) -> (i32, i32) {
    %c0_i32 = arith.constant 0 : i32
    %c0_i32_0 = arith.constant 0 : i32
    return %arg0, %c0_i32 : i32, i32
  }
}

</mosaic_0001>

<llo_original>
// kernel: solubility_predictor.1
$region0: #{solubility_predictor.1}
  #allocation0 [shape = 'u32[]', space=smem, size = 0x4, offset = 0x4, fixed_abs, tag = 'smem constant byte address 0x4 - core index']
  #allocation1 [shape = 'u32[72,128]{1,0:T(1,128)}', space=vmem, size = 0x9000, scoped, tag = 'internal scratch']
  #allocation2 [shape = 'f32[1,1]{1,0:T(1,128)S(1)}', space=vmem, size = 0x200, scoped, tag = 'scoped memory for solubility_predictor.1']
  %s0 = inlined_call_operand.vmem [shape: f32[8,2048], index: 0, kind: input, shape index: {}]
  %s1 = inlined_call_operand.hbm [shape: bf16[2048,1024], index: 1, kind: input, shape index: {}]
  %s2 = inlined_call_operand.hbm [shape: f32[1,1024], index: 2, kind: input, shape index: {}]
  %s3 = inlined_call_operand.hbm [shape: bf16[1024,512], index: 3, kind: input, shape index: {}]
  %s4 = inlined_call_operand.hbm [shape: f32[1,512], index: 4, kind: input, shape index: {}]
  %s5 = inlined_call_operand.hbm [shape: bf16[512,256], index: 5, kind: input, shape index: {}]
  %s6 = inlined_call_operand.hbm [shape: f32[1,256], index: 6, kind: input, shape index: {}]
  %s7 = inlined_call_operand.hbm [shape: f32[1,256], index: 7, kind: input, shape index: {}]
  %s8 = inlined_call_operand.<no memory space> [shape: f32[1,1], index: 8, kind: input, shape index: {}]
  %s9 = inlined_call_operand.vmem [shape: f32[8,1], index: 9, kind: output, shape index: {}]
  %s10 = sld [smem:[#allocation0]]
  $region74: #{solubility_predictor.1} parent=0
    _
  %s12 = ssub.s32 1, %s10
  %s13 = scalar_select 0, %s12, %s10
  %v14 = vstv %s8
  %15 = vst [vmem:[#allocation2] sm:$0x1] %v14
  $region1: #{solubility_predictor.1} parent=0
    #allocation3 [shape = 'u8[4194304]{0}', space=vmem, size = 0x400000, scoped, tag = 'input window, operand 1, single buffered']
    #allocation4 [shape = 's32[1]{0}', space=sflag, size = 0x4, scoped, tag = 'scoped memory for solubility_predictor.1']
    #allocation5 [shape = 'u8[4096]{0}', space=vmem, size = 0x1000, scoped, tag = 'input window, operand 2, single buffered']
    #allocation6 [shape = 's32[1]{0}', space=sflag, size = 0x4, scoped, tag = 'scoped memory for solubility_predictor.1']
    #allocation7 [shape = 'u8[1048576]{0}', space=vmem, size = 0x100000, scoped, tag = 'input window, operand 3, single buffered']
    #allocation8 [shape = 'u8[2048]{0}', space=vmem, size = 0x800, scoped, tag = 'input window, operand 4, single buffered']
    #allocation9 [shape = 's32[1]{0}', space=sflag, size = 0x4, scoped, tag = 'scoped memory for solubility_predictor.1']
    #allocation10 [shape = 'u8[262144]{0}', space=vmem, size = 0x40000, scoped, tag = 'input window, operand 5, single buffered']
    #allocation11 [shape = 'u8[1024]{0}', space=vmem, size = 0x400, scoped, tag = 'input window, operand 6, single buffered']
    #allocation12 [shape = 's32[1]{0}', space=sflag, size = 0x4, scoped, tag = 'scoped memory for solubility_predictor.1']
    #allocation13 [shape = 'u8[1024]{0}', space=vmem, size = 0x400, scoped, tag = 'input window, operand 7, single buffered']
    %16 = vsyncpa [#allocation4], 0
    %17 = vsyncpa [#allocation6], 0
    %18 = vsyncpa [#allocation9], 0
    %19 = vsyncpa [#allocation12], 0
    // Predicated region
    $region2: #{solubility_predictor.1} parent=1 // pred_check
      _
    $region3: #{solubility_predictor.1} parent=1 // pred_check_branch
      %21 = sbr.rel (0) target = $region5
    $region4: #{solubility_predictor.1} parent=1 // pred_region
      _
    $region5: #{solubility_predictor.1} parent=1 // pred_fallthru
      _
    // Predicated region
    $region6: #{solubility_predictor.1} parent=1 // pred_check
      _
    $region7: #{solubility_predictor.1} parent=1 // pred_check_branch
      %23 = sbr.rel (0) target = $region9
    $region8: #{solubility_predictor.1} parent=1 // pred_region
      %25 = vsyncadd [#allocation4], 0
      %s26 = sshll.u32 %s1, 4
      %s27 = int_to_ptr.hbm [resolvable:$true] %s26
      %s28 = sshll.u32 [#allocation3], 4
      %s29 = int_to_ptr.vmem [resolvable:$true] %s28
      %34 = dma.hbm_to_vmem [thread:$0]  %s27, 131072, %s29, [#allocation4], 512, 512, 32
    $region9: #{solubility_predictor.1} parent=1 // pred_fallthru
      _
    // Predicated region
    $region10: #{solubility_predictor.1} parent=1 // pred_check
      _
    $region11: #{solubility_predictor.1} parent=1 // pred_check_branch
      %36 = sbr.rel (0) target = $region13
    $region12: #{solubility_predictor.1} parent=1 // pred_region
      %38 = vsyncadd [#allocation6], 0
      %s40 = sshll.u32 %s2, 4
      %s41 = int_to_ptr.hbm [resolvable:$true] %s40
      %s42 = sshll.u32 [#allocation5], 4
      %s43 = int_to_ptr.vmem [resolvable:$true] %s42
      %45 = dma.hbm_to_vmem [thread:$0]  %s41, 128, %s43, [#allocation6]
    $region13: #{solubility_predictor.1} parent=1 // pred_fallthru
      _
    // Predicated region
    $region14: #{solubility_predictor.1} parent=1 // pred_check
      _
    $region15: #{solubility_predictor.1} parent=1 // pred_check_branch
      %47 = sbr.rel (0) target = $region17
    $region16: #{solubility_predictor.1} parent=1 // pred_region
      %49 = vsyncadd [#allocation6], 0
      %s50 = sshll.u32 %s3, 4
      %s51 = int_to_ptr.hbm [resolvable:$true] %s50
      %s52 = sshll.u32 [#allocation7], 4
      %s53 = int_to_ptr.vmem [resolvable:$true] %s52
      %58 = dma.hbm_to_vmem [thread:$0]  %s51, 32768, %s53, [#allocation6], 256, 256, 16
    $region17: #{solubility_predictor.1} parent=1 // pred_fallthru
      _
    // Predicated region
    $region18: #{solubility_predictor.1} parent=1 // pred_check
      _
    $region19: #{solubility_predictor.1} parent=1 // pred_check_branch
      %60 = sbr.rel (0) target = $region21
    $region20: #{solubility_predictor.1} parent=1 // pred_region
      %62 = vsyncadd [#allocation9], 0
      %s64 = sshll.u32 %s4, 4
      %s65 = int_to_ptr.hbm [resolvable:$true] %s64
      %s66 = sshll.u32 [#allocation8], 4
      %s67 = int_to_ptr.vmem [resolvable:$true] %s66
      %69 = dma.hbm_to_vmem [thread:$0]  %s65, 64, %s67, [#allocation9]
    $region21: #{solubility_predictor.1} parent=1 // pred_fallthru
      _
    // Predicated region
    $region22: #{solubility_predictor.1} parent=1 // pred_check
      _
    $region23: #{solubility_predictor.1} parent=1 // pred_check_branch
      %71 = sbr.rel (0) target = $region25
    $region24: #{solubility_predictor.1} parent=1 // pred_region
      %73 = vsyncadd [#allocation9], 0
      %s74 = sshll.u32 %s5, 4
      %s75 = int_to_ptr.hbm [resolvable:$true] %s74
      %s76 = sshll.u32 [#allocation10], 4
      %s77 = int_to_ptr.vmem [resolvable:$true] %s76
      %82 = dma.hbm_to_vmem [thread:$0]  %s75, 8192, %s77, [#allocation9], 128, 128, 8
    $region25: #{solubility_predictor.1} parent=1 // pred_fallthru
      _
    // Predicated region
    $region26: #{solubility_predictor.1} parent=1 // pred_check
      _
    $region27: #{solubility_predictor.1} parent=1 // pred_check_branch
      %84 = sbr.rel (0) target = $region29
    $region28: #{solubility_predictor.1} parent=1 // pred_region
      %86 = vsyncadd [#allocation12], 0
      %s88 = sshll.u32 %s6, 4
      %s89 = int_to_ptr.hbm [resolvable:$true] %s88
      %s90 = sshll.u32 [#allocation11], 4
      %s91 = int_to_ptr.vmem [resolvable:$true] %s90
      %93 = dma.hbm_to_vmem [thread:$0]  %s89, 32, %s91, [#allocation12]
    $region29: #{solubility_predictor.1} parent=1 // pred_fallthru
      _
    // Predicated region
    $region30: #{solubility_predictor.1} parent=1 // pred_check
      _
    $region31: #{solubility_predictor.1} parent=1 // pred_check_branch
      %95 = sbr.rel (0) target = $region33
    $region32: #{solubility_predictor.1} parent=1 // pred_region
      %97 = vsyncadd [#allocation12], 0
      %s99 = sshll.u32 %s7, 4
      %s100 = int_to_ptr.hbm [resolvable:$true] %s99
      %s101 = sshll.u32 [#allocation13], 4
      %s102 = int_to_ptr.vmem [resolvable:$true] %s101
      %104 = dma.hbm_to_vmem [thread:$0]  %s100, 32, %s102, [#allocation12]
    $region33: #{solubility_predictor.1} parent=1 // pred_fallthru
      _
    // Predicated region
    $region34: #{solubility_predictor.1} parent=1 // pred_check
      _
    $region35: #{solubility_predictor.1} parent=1 // pred_check_branch
      %106 = sbr.rel (0) target = $region37
    $region36: #{solubility_predictor.1} parent=1 // pred_region
      _
    $region37: #{solubility_predictor.1} parent=1 // pred_fallthru
      _
    // Predicated region
    $region38: #{solubility_predictor.1} parent=1 // pred_check
      _
    $region39: #{solubility_predictor.1} parent=1 // pred_check_branch
      %108 = sbr.rel (0) target = $region41
    $region40: #{solubility_predictor.1} parent=1 // pred_region
      %110 = dma.done [#allocation4], 131072
    $region41: #{solubility_predictor.1} parent=1 // pred_fallthru
      _
    // Predicated region
    $region42: #{solubility_predictor.1} parent=1 // pred_check
      _
    $region43: #{solubility_predictor.1} parent=1 // pred_check_branch
      %112 = sbr.rel (0) target = $region45
    $region44: #{solubility_predictor.1} parent=1 // pred_region
      %114 = dma.done [#allocation6], 128
    $region45: #{solubility_predictor.1} parent=1 // pred_fallthru
      _
    // Predicated region
    $region46: #{solubility_predictor.1} parent=1 // pred_check
      _
    $region47: #{solubility_predictor.1} parent=1 // pred_check_branch
      %116 = sbr.rel (0) target = $region49
    $region48: #{solubility_predictor.1} parent=1 // pred_region
      %118 = dma.done [#allocation6], 32768
    $region49: #{solubility_predictor.1} parent=1 // pred_fallthru
      _
    // Predicated region
    $region50: #{solubility_predictor.1} parent=1 // pred_check
      _
    $region51: #{solubility_predictor.1} parent=1 // pred_check_branch
      %120 = sbr.rel (0) target = $region53
    $region52: #{solubility_predictor.1} parent=1 // pred_region
      %122 = dma.done [#allocation9], 64
    $region53: #{solubility_predictor.1} parent=1 // pred_fallthru
      _
    // Predicated region
    $region54: #{solubility_predictor.1} parent=1 // pred_check
      _
    $region55: #{solubility_predictor.1} parent=1 // pred_check_branch
      %124 = sbr.rel (0) target = $region57
    $region56: #{solubility_predictor.1} parent=1 // pred_region
      %126 = dma.done [#allocation9], 8192
    $region57: #{solubility_predictor.1} parent=1 // pred_fallthru
      _
    // Predicated region
    $region58: #{solubility_predictor.1} parent=1 // pred_check
      _
    $region59: #{solubility_predictor.1} parent=1 // pred_check_branch
      %128 = sbr.rel (0) target = $region61
    $region60: #{solubility_predictor.1} parent=1 // pred_region
      %130 = dma.done [#allocation12], 32
    $region61: #{solubility_predictor.1} parent=1 // pred_fallthru
      _
    // Predicated region
    $region62: #{solubility_predictor.1} parent=1 // pred_check
      _
    $region63: #{solubility_predictor.1} parent=1 // pred_check_branch
      %132 = sbr.rel (0) target = $region65
    $region64: #{solubility_predictor.1} parent=1 // pred_region
      %134 = dma.done [#allocation12], 32
    $region65: #{solubility_predictor.1} parent=1 // pred_fallthru
      _
    %v135 = vld [vmem:[%s0] sm:$0xff]
    %v136 = vld [vmem:[%s0 + $0x8] sm:$0xff]
    %v137 = vld [vmem:[%s0 + $0x10] sm:$0xff]
    %v138 = vld [vmem:[%s0 + $0x18] sm:$0xff]
    %v139 = vld [vmem:[%s0 + $0x20] sm:$0xff]
    %v140 = vld [vmem:[%s0 + $0x28] sm:$0xff]
    %v141 = vld [vmem:[%s0 + $0x30] sm:$0xff]
    %v142 = vld [vmem:[%s0 + $0x38] sm:$0xff]
    %v143 = vld [vmem:[%s0 + $0x40] sm:$0xff]
    %v144 = vld [vmem:[%s0 + $0x48] sm:$0xff]
    %v145 = vld [vmem:[%s0 + $0x50] sm:$0xff]
    %v146 = vld [vmem:[%s0 + $0x58] sm:$0xff]
    %v147 = vld [vmem:[%s0 + $0x60] sm:$0xff]
    %v148 = vld [vmem:[%s0 + $0x68] sm:$0xff]
    %v149 = vld [vmem:[%s0 + $0x70] sm:$0xff]
    %v150 = vld [vmem:[%s0 + $0x78] sm:$0xff]
    %v151 = vpack.c.bf16 %v135, %v135
    %v152 = vpack.c.bf16 %v136, %v136
    %v153 = vpack.c.bf16 %v137, %v137
    %v154 = vpack.c.bf16 %v138, %v138
    %v155 = vpack.c.bf16 %v139, %v139
    %v156 = vpack.c.bf16 %v140, %v140
    %v157 = vpack.c.bf16 %v141, %v141
    %v158 = vpack.c.bf16 %v142, %v142
    %v159 = vpack.c.bf16 %v143, %v143
    %v160 = vpack.c.bf16 %v144, %v144
    %v161 = vpack.c.bf16 %v145, %v145
    %v162 = vpack.c.bf16 %v146, %v146
    %v163 = vpack.c.bf16 %v147, %v147
    %v164 = vpack.c.bf16 %v148, %v148
    %v165 = vpack.c.bf16 %v149, %v149
    %v166 = vpack.c.bf16 %v150, %v150
    %v167 = vld [vmem:[#allocation3] sm:$0xff]
    %v168 = vld [vmem:[#allocation3 + $0x8] sm:$0xff]
    %v169 = vld [vmem:[#allocation3 + $0x10] sm:$0xff]
    %v170 = vld [vmem:[#allocation3 + $0x18] sm:$0xff]
    %v171 = vld [vmem:[#allocation3 + $0x20] sm:$0xff]
    %v172 = vld [vmem:[#allocation3 + $0x28] sm:$0xff]
    %v173 = vld [vmem:[#allocation3 + $0x30] sm:$0xff]
    %v174 = vld [vmem:[#allocation3 + $0x38] sm:$0xff]
    %v175 = vld [vmem:[#allocation3 + $0x40] sm:$0xff]
    %v176 = vld [vmem:[#allocation3 + $0x48] sm:$0xff]
    %v177 = vld [vmem:[#allocation3 + $0x50] sm:$0xff]
    %v178 = vld [vmem:[#allocation3 + $0x58] sm:$0xff]
    %v179 = vld [vmem:[#allocation3 + $0x60] sm:$0xff]
    %v180 = vld [vmem:[#allocation3 + $0x68] sm:$0xff]
    %v181 = vld [vmem:[#allocation3 + $0x70] sm:$0xff]
    %v182 = vld [vmem:[#allocation3 + $0x78] sm:$0xff]
    %v183 = vld [vmem:[#allocation3 + $0x80] sm:$0xff]
    %v184 = vld [vmem:[#allocation3 + $0x88] sm:$0xff]
    %v185 = vld [vmem:[#allocation3 + $0x90] sm:$0xff]
    %v186 = vld [vmem:[#allocation3 + $0x98] sm:$0xff]
    %v187 = vld [vmem:[#allocation3 + $0xa0] sm:$0xff]
    %v188 = vld [vmem:[#allocation3 + $0xa8] sm:$0xff]
    %v189 = vld [vmem:[#allocation3 + $0xb0] sm:$0xff]
    %v190 = vld [vmem:[#allocation3 + $0xb8] sm:$0xff]
    %v191 = vld [vmem:[#allocation3 + $0xc0] sm:$0xff]
    %v192 = vld [vmem:[#allocation3 + $0xc8] sm:$0xff]
    %v193 = vld [vmem:[#allocation3 + $0xd0] sm:$0xff]
    %v194 = vld [vmem:[#allocation3 + $0xd8] sm:$0xff]
    %v195 = vld [vmem:[#allocation3 + $0xe0] sm:$0xff]
    %v196 = vld [vmem:[#allocation3 + $0xe8] sm:$0xff]
    %v197 = vld [vmem:[#allocation3 + $0xf0] sm:$0xff]
    %v198 = vld [vmem:[#allocation3 + $0xf8] sm:$0xff]
    %v199 = vld [vmem:[#allocation3 + $0x100] sm:$0xff]
    %v200 = vld [vmem:[#allocation3 + $0x108] sm:$0xff]
    %v201 = vld [vmem:[#allocation3 + $0x110] sm:$0xff]
    %v202 = vld [vmem:[#allocation3 + $0x118] sm:$0xff]
    %v203 = vld [vmem:[#allocation3 + $0x120] sm:$0xff]
    %v204 = vld [vmem:[#allocation3 + $0x128] sm:$0xff]
    %v205 = vld [vmem:[#allocation3 + $0x130] sm:$0xff]
    %v206 = vld [vmem:[#allocation3 + $0x138] sm:$0xff]
    %v207 = vld [vmem:[#allocation3 + $0x140] sm:$0xff]
    %v208 = vld [vmem:[#allocation3 + $0x148] sm:$0xff]
    %v209 = vld [vmem:[#allocation3 + $0x150] sm:$0xff]
    %v210 = vld [vmem:[#allocation3 + $0x158] sm:$0xff]
    %v211 = vld [vmem:[#allocation3 + $0x160] sm:$0xff]
    %v212 = vld [vmem:[#allocation3 + $0x168] sm:$0xff]
    %v213 = vld [vmem:[#allocation3 + $0x170] sm:$0xff]
    %v214 = vld [vmem:[#allocation3 + $0x178] sm:$0xff]
    %v215 = vld [vmem:[#allocation3 + $0x180] sm:$0xff]
    %v216 = vld [vmem:[#allocation3 + $0x188] sm:$0xff]
    %v217 = vld [vmem:[#allocation3 + $0x190] sm:$0xff]
    %v218 = vld [vmem:[#allocation3 + $0x198] sm:$0xff]
    %v219 = vld [vmem:[#allocation3 + $0x1a0] sm:$0xff]
    %v220 = vld [vmem:[#allocation3 + $0x1a8] sm:$0xff]
    %v221 = vld [vmem:[#allocation3 + $0x1b0] sm:$0xff]
    %v222 = vld [vmem:[#allocation3 + $0x1b8] sm:$0xff]
    %v223 = vld [vmem:[#allocation3 + $0x1c0] sm:$0xff]
    %v224 = vld [vmem:[#allocation3 + $0x1c8] sm:$0xff]
    %v225 = vld [vmem:[#allocation3 + $0x1d0] sm:$0xff]
    %v226 = vld [vmem:[#allocation3 + $0x1d8] sm:$0xff]
    %v227 = vld [vmem:[#allocation3 + $0x1e0] sm:$0xff]
    %v228 = vld [vmem:[#allocation3 + $0x1e8] sm:$0xff]
    %v229 = vld [vmem:[#allocation3 + $0x1f0] sm:$0xff]
    %v230 = vld [vmem:[#allocation3 + $0x1f8] sm:$0xff]
    %v231 = vld [vmem:[#allocation3 + $0x200] sm:$0xff]
    %v232 = vld [vmem:[#allocation3 + $0x208] sm:$0xff]
    %v233 = vld [vmem:[#allocation3 + $0x210] sm:$0xff]
    %v234 = vld [vmem:[#allocation3 + $0x218] sm:$0xff]
    %v235 = vld [vmem:[#allocation3 + $0x220] sm:$0xff]
    %v236 = vld [vmem:[#allocation3 + $0x228] sm:$0xff]
    %v237 = vld [vmem:[#allocation3 + $0x230] sm:$0xff]
    %v238 = vld [vmem:[#allocation3 + $0x238] sm:$0xff]
    %v239 = vld [vmem:[#allocation3 + $0x240] sm:$0xff]
    %v240 = vld [vmem:[#allocation3 + $0x248] sm:$0xff]
    %v241 = vld [vmem:[#allocation3 + $0x250] sm:$0xff]
    %v242 = vld [vmem:[#allocation3 + $0x258] sm:$0xff]
    %v243 = vld [vmem:[#allocation3 + $0x260] sm:$0xff]
    %v244 = vld [vmem:[#allocation3 + $0x268] sm:$0xff]
    %v245 = vld [vmem:[#allocation3 + $0x270] sm:$0xff]
    %v246 = vld [vmem:[#allocation3 + $0x278] sm:$0xff]
    %v247 = vld [vmem:[#allocation3 + $0x280] sm:$0xff]
    %v248 = vld [vmem:[#allocation3 + $0x288] sm:$0xff]
    %v249 = vld [vmem:[#allocation3 + $0x290] sm:$0xff]
    %v250 = vld [vmem:[#allocation3 + $0x298] sm:$0xff]
    %v251 = vld [vmem:[#allocation3 + $0x2a0] sm:$0xff]
    %v252 = vld [vmem:[#allocation3 + $0x2a8] sm:$0xff]
    %v253 = vld [vmem:[#allocation3 + $0x2b0] sm:$0xff]
    %v254 = vld [vmem:[#allocation3 + $0x2b8] sm:$0xff]
    %v255 = vld [vmem:[#allocation3 + $0x2c0] sm:$0xff]
    %v256 = vld [vmem:[#allocation3 + $0x2c8] sm:$0xff]
    %v257 = vld [vmem:[#allocation3 + $0x2d0] sm:$0xff]
    %v258 = vld [vmem:[#allocation3 + $0x2d8] sm:$0xff]
    %v259 = vld [vmem:[#allocation3 + $0x2e0] sm:$0xff]
    %v260 = vld [vmem:[#allocation3 + $0x2e8] sm:$0xff]
    %v261 = vld [vmem:[#allocation3 + $0x2f0] sm:$0xff]
    %v262 = vld [vmem:[#allocation3 + $0x2f8] sm:$0xff]
    %v263 = vld [vmem:[#allocation3 + $0x300] sm:$0xff]
    %v264 = vld [vmem:[#allocation3 + $0x308] sm:$0xff]
    %v265 = vld [vmem:[#allocation3 + $0x310] sm:$0xff]
    %v266 = vld [vmem:[#allocation3 + $0x318] sm:$0xff]
    %v267 = vld [vmem:[#allocation3 + $0x320] sm:$0xff]
    %v268 = vld [vmem:[#allocation3 + $0x328] sm:$0xff]
    %v269 = vld [vmem:[#allocation3 + $0x330] sm:$0xff]
    %v270 = vld [vmem:[#allocation3 + $0x338] sm:$0xff]
    %v271 = vld [vmem:[#allocation3 + $0x340] sm:$0xff]
    %v272 = vld [vmem:[#allocation3 + $0x348] sm:$0xff]
    %v273 = vld [vmem:[#allocation3 + $0x350] sm:$0xff]
    %v274 = vld [vmem:[#allocation3 + $0x358] sm:$0xff]
    %v275 = vld [vmem:[#allocation3 + $0x360] sm:$0xff]
    %v276 = vld [vmem:[#allocation3 + $0x368] sm:$0xff]
    %v277 = vld [vmem:[#allocation3 + $0x370] sm:$0xff]
    %v278 = vld [vmem:[#allocation3 + $0x378] sm:$0xff]
    %v279 = vld [vmem:[#allocation3 + $0x380] sm:$0xff]
    %v280 = vld [vmem:[#allocation3 + $0x388] sm:$0xff]
    %v281 = vld [vmem:[#allocation3 + $0x390] sm:$0xff]
    %v282 = vld [vmem:[#allocation3 + $0x398] sm:$0xff]
    %v283 = vld [vmem:[#allocation3 + $0x3a0] sm:$0xff]
    %v284 = vld [vmem:[#allocation3 + $0x3a8] sm:$0xff]
    %v285 = vld [vmem:[#allocation3 + $0x3b0] sm:$0xff]
    %v286 = vld [vmem:[#allocation3 + $0x3b8] sm:$0xff]
    %v287 = vld [vmem:[#allocation3 + $0x3c0] sm:$0xff]
    %v288 = vld [vmem:[#allocation3 + $0x3c8] sm:$0xff]
    %v289 = vld [vmem:[#allocation3 + $0x3d0] sm:$0xff]
    %v290 = vld [vmem:[#allocation3 + $0x3d8] sm:$0xff]
    %v291 = vld [vmem:[#allocation3 + $0x3e0] sm:$0xff]
    %v292 = vld [vmem:[#allocation3 + $0x3e8] sm:$0xff]
    %v293 = vld [vmem:[#allocation3 + $0x3f0] sm:$0xff]
    %v294 = vld [vmem:[#allocation3 + $0x3f8] sm:$0xff]
    %v295 = vld [vmem:[#allocation3 + $0x400] sm:$0xff]
    %v296 = vld [vmem:[#allocation3 + $0x408] sm:$0xff]
    %v297 = vld [vmem:[#allocation3 + $0x410] sm:$0xff]
    %v298 = vld [vmem:[#allocation3 + $0x418] sm:$0xff]
    %v299 = vld [vmem:[#allocation3 + $0x420] sm:$0xff]
    %v300 = vld [vmem:[#allocation3 + $0x428] sm:$0xff]
    %v301 = vld [vmem:[#allocation3 + $0x430] sm:$0xff]
    %v302 = vld [vmem:[#allocation3 + $0x438] sm:$0xff]
    %v303 = vld [vmem:[#allocation3 + $0x440] sm:$0xff]
    %v304 = vld [vmem:[#allocation3 + $0x448] sm:$0xff]
    %v305 = vld [vmem:[#allocation3 + $0x450] sm:$0xff]
    %v306 = vld [vmem:[#allocation3 + $0x458] sm:$0xff]
    %v307 = vld [vmem:[#allocation3 + $0x460] sm:$0xff]
    %v308 = vld [vmem:[#allocation3 + $0x468] sm:$0xff]
    %v309 = vld [vmem:[#allocation3 + $0x470] sm:$0xff]
    %v310 = vld [vmem:[#allocation3 + $0x478] sm:$0xff]
    %v311 = vld [vmem:[#allocation3 + $0x480] sm:$0xff]
    %v312 = vld [vmem:[#allocation3 + $0x488] sm:$0xff]
    %v313 = vld [vmem:[#allocation3 + $0x490] sm:$0xff]
    %v314 = vld [vmem:[#allocation3 + $0x498] sm:$0xff]
    %v315 = vld [vmem:[#allocation3 + $0x4a0] sm:$0xff]
    %v316 = vld [vmem:[#allocation3 + $0x4a8] sm:$0xff]
    %v317 = vld [vmem:[#allocation3 + $0x4b0] sm:$0xff]
    %v318 = vld [vmem:[#allocation3 + $0x4b8] sm:$0xff]
    %v319 = vld [vmem:[#allocation3 + $0x4c0] sm:$0xff]
    %v320 = vld [vmem:[#allocation3 + $0x4c8] sm:$0xff]
    %v321 = vld [vmem:[#allocation3 + $0x4d0] sm:$0xff]
    %v322 = vld [vmem:[#allocation3 + $0x4d8] sm:$0xff]
    %v323 = vld [vmem:[#allocation3 + $0x4e0] sm:$0xff]
    %v324 = vld [vmem:[#allocation3 + $0x4e8] sm:$0xff]
    %v325 = vld [vmem:[#allocation3 + $0x4f0] sm:$0xff]
    %v326 = vld [vmem:[#allocation3 + $0x4f8] sm:$0xff]
    %v327 = vld [vmem:[#allocation3 + $0x500] sm:$0xff]
    %v328 = vld [vmem:[#allocation3 + $0x508] sm:$0xff]
    %v329 = vld [vmem:[#allocation3 + $0x510] sm:$0xff]
    %v330 = vld [vmem:[#allocation3 + $0x518] sm:$0xff]
    %v331 = vld [vmem:[#allocation3 + $0x520] sm:$0xff]
    %v332 = vld [vmem:[#allocation3 + $0x528] sm:$0xff]
    %v333 = vld [vmem:[#allocation3 + $0x530] sm:$0xff]
    %v334 = vld [vmem:[#allocation3 + $0x538] sm:$0xff]
    %v335 = vld [vmem:[#allocation3 + $0x540] sm:$0xff]
    %v336 = vld [vmem:[#allocation3 + $0x548] sm:$0xff]
    %v337 = vld [vmem:[#allocation3 + $0x550] sm:$0xff]
    %v338 = vld [vmem:[#allocation3 + $0x558] sm:$0xff]
    %v339 = vld [vmem:[#allocation3 + $0x560] sm:$0xff]
    %v340 = vld [vmem:[#allocation3 + $0x568] sm:$0xff]
    %v341 = vld [vmem:[#allocation3 + $0x570] sm:$0xff]
    %v342 = vld [vmem:[#allocation3 + $0x578] sm:$0xff]
    %v343 = vld [vmem:[#allocation3 + $0x580] sm:$0xff]
    %v344 = vld [vmem:[#allocation3 + $0x588] sm:$0xff]
    %v345 = vld [vmem:[#allocation3 + $0x590] sm:$0xff]
    %v346 = vld [vmem:[#allocation3 + $0x598] sm:$0xff]
    %v347 = vld [vmem:[#allocation3 + $0x5a0] sm:$0xff]
    %v348 = vld [vmem:[#allocation3 + $0x5a8] sm:$0xff]
    %v349 = vld [vmem:[#allocation3 + $0x5b0] sm:$0xff]
    %v350 = vld [vmem:[#allocation3 + $0x5b8] sm:$0xff]
    %v351 = vld [vmem:[#allocation3 + $0x5c0] sm:$0xff]
    %v352 = vld [vmem:[#allocation3 + $0x5c8] sm:$0xff]
    %v353 = vld [vmem:[#allocation3 + $0x5d0] sm:$0xff]
    %v354 = vld [vmem:[#allocation3 + $0x5d8] sm:$0xff]
    %v355 = vld [vmem:[#allocation3 + $0x5e0] sm:$0xff]
    %v356 = vld [vmem:[#allocation3 + $0x5e8] sm:$0xff]
    %v357 = vld [vmem:[#allocation3 + $0x5f0] sm:$0xff]
    %v358 = vld [vmem:[#allocation3 + $0x5f8] sm:$0xff]
    %v359 = vld [vmem:[#allocation3 + $0x600] sm:$0xff]
    %v360 = vld [vmem:[#allocation3 + $0x608] sm:$0xff]
    %v361 = vld [vmem:[#allocation3 + $0x610] sm:$0xff]
    %v362 = vld [vmem:[#allocation3 + $0x618] sm:$0xff]
    %v363 = vld [vmem:[#allocation3 + $0x620] sm:$0xff]
    %v364 = vld [vmem:[#allocation3 + $0x628] sm:$0xff]
    %v365 = vld [vmem:[#allocation3 + $0x630] sm:$0xff]
    %v366 = vld [vmem:[#allocation3 + $0x638] sm:$0xff]
    %v367 = vld [vmem:[#allocation3 + $0x640] sm:$0xff]
    %v368 = vld [vmem:[#allocation3 + $0x648] sm:$0xff]
    %v369 = vld [vmem:[#allocation3 + $0x650] sm:$0xff]
    %v370 = vld [vmem:[#allocation3 + $0x658] sm:$0xff]
    %v371 = vld [vmem:[#allocation3 + $0x660] sm:$0xff]
    %v372 = vld [vmem:[#allocation3 + $0x668] sm:$0xff]
    %v373 = vld [vmem:[#allocation3 + $0x670] sm:$0xff]
    %v374 = vld [vmem:[#allocation3 + $0x678] sm:$0xff]
    %v375 = vld [vmem:[#allocation3 + $0x680] sm:$0xff]
    %v376 = vld [vmem:[#allocation3 + $0x688] sm:$0xff]
    %v377 = vld [vmem:[#allocation3 + $0x690] sm:$0xff]
    %v378 = vld [vmem:[#allocation3 + $0x698] sm:$0xff]
    %v379 = vld [vmem:[#allocation3 + $0x6a0] sm:$0xff]
    %v380 = vld [vmem:[#allocation3 + $0x6a8] sm:$0xff]
    %v381 = vld [vmem:[#allocation3 + $0x6b0] sm:$0xff]
    %v382 = vld [vmem:[#allocation3 + $0x6b8] sm:$0xff]
    %v383 = vld [vmem:[#allocation3 + $0x6c0] sm:$0xff]
    %v384 = vld [vmem:[#allocation3 + $0x6c8] sm:$0xff]
    %v385 = vld [vmem:[#allocation3 + $0x6d0] sm:$0xff]
    %v386 = vld [vmem:[#allocation3 + $0x6d8] sm:$0xff]
    %v387 = vld [vmem:[#allocation3 + $0x6e0] sm:$0xff]
    %v388 = vld [vmem:[#allocation3 + $0x6e8] sm:$0xff]
    %v389 = vld [vmem:[#allocation3 + $0x6f0] sm:$0xff]
    %v390 = vld [vmem:[#allocation3 + $0x6f8] sm:$0xff]
    %v391 = vld [vmem:[#allocation3 + $0x700] sm:$0xff]
    %v392 = vld [vmem:[#allocation3 + $0x708] sm:$0xff]
    %v393 = vld [vmem:[#allocation3 + $0x710] sm:$0xff]
    %v394 = vld [vmem:[#allocation3 + $0x718] sm:$0xff]
    %v395 = vld [vmem:[#allocation3 + $0x720] sm:$0xff]
    %v396 = vld [vmem:[#allocation3 + $0x728] sm:$0xff]
    %v397 = vld [vmem:[#allocation3 + $0x730] sm:$0xff]
    %v398 = vld [vmem:[#allocation3 + $0x738] sm:$0xff]
    %v399 = vld [vmem:[#allocation3 + $0x740] sm:$0xff]
    %v400 = vld [vmem:[#allocation3 + $0x748] sm:$0xff]
    %v401 = vld [vmem:[#allocation3 + $0x750] sm:$0xff]
    %v402 = vld [vmem:[#allocation3 + $0x758] sm:$0xff]
    %v403 = vld [vmem:[#allocation3 + $0x760] sm:$0xff]
    %v404 = vld [vmem:[#allocation3 + $0x768] sm:$0xff]
    %v405 = vld [vmem:[#allocation3 + $0x770] sm:$0xff]
    %v406 = vld [vmem:[#allocation3 + $0x778] sm:$0xff]
    %v407 = vld [vmem:[#allocation3 + $0x780] sm:$0xff]
    %v408 = vld [vmem:[#allocation3 + $0x788] sm:$0xff]
    %v409 = vld [vmem:[#allocation3 + $0x790] sm:$0xff]
    %v410 = vld [vmem:[#allocation3 + $0x798] sm:$0xff]
    %v411 = vld [vmem:[#allocation3 + $0x7a0] sm:$0xff]
    %v412 = vld [vmem:[#allocation3 + $0x7a8] sm:$0xff]
    %v413 = vld [vmem:[#allocation3 + $0x7b0] sm:$0xff]
    %v414 = vld [vmem:[#allocation3 + $0x7b8] sm:$0xff]
    %v415 = vld [vmem:[#allocation3 + $0x7c0] sm:$0xff]
    %v416 = vld [vmem:[#allocation3 + $0x7c8] sm:$0xff]
    %v417 = vld [vmem:[#allocation3 + $0x7d0] sm:$0xff]
    %v418 = vld [vmem:[#allocation3 + $0x7d8] sm:$0xff]
    %v419 = vld [vmem:[#allocation3 + $0x7e0] sm:$0xff]
    %v420 = vld [vmem:[#allocation3 + $0x7e8] sm:$0xff]
    %v421 = vld [vmem:[#allocation3 + $0x7f0] sm:$0xff]
    %v422 = vld [vmem:[#allocation3 + $0x7f8] sm:$0xff]
    %v423 = vld [vmem:[#allocation3 + $0x800] sm:$0xff]
    %v424 = vld [vmem:[#allocation3 + $0x808] sm:$0xff]
    %v425 = vld [vmem:[#allocation3 + $0x810] sm:$0xff]
    %v426 = vld [vmem:[#allocation3 + $0x818] sm:$0xff]
    %v427 = vld [vmem:[#allocation3 + $0x820] sm:$0xff]
    %v428 = vld [vmem:[#allocation3 + $0x828] sm:$0xff]
    %v429 = vld [vmem:[#allocation3 + $0x830] sm:$0xff]
    %v430 = vld [vmem:[#allocation3 + $0x838] sm:$0xff]
    %v431 = vld [vmem:[#allocation3 + $0x840] sm:$0xff]
    %v432 = vld [vmem:[#allocation3 + $0x848] sm:$0xff]
    %v433 = vld [vmem:[#allocation3 + $0x850] sm:$0xff]
    %v434 = vld [vmem:[#allocation3 + $0x858] sm:$0xff]
    %v435 = vld [vmem:[#allocation3 + $0x860] sm:$0xff]
    %v436 = vld [vmem:[#allocation3 + $0x868] sm:$0xff]
    %v437 = vld [vmem:[#allocation3 + $0x870] sm:$0xff]
    %v438 = vld [vmem:[#allocation3 + $0x878] sm:$0xff]
    %v439 = vld [vmem:[#allocation3 + $0x880] sm:$0xff]
    %v440 = vld [vmem:[#allocation3 + $0x888] sm:$0xff]
    %v441 = vld [vmem:[#allocation3 + $0x890] sm:$0xff]
    %v442 = vld [vmem:[#allocation3 + $0x898] sm:$0xff]
    %v443 = vld [vmem:[#allocation3 + $0x8a0] sm:$0xff]
    %v444 = vld [vmem:[#allocation3 + $0x8a8] sm:$0xff]
    %v445 = vld [vmem:[#allocation3 + $0x8b0] sm:$0xff]
    %v446 = vld [vmem:[#allocation3 + $0x8b8] sm:$0xff]
    %v447 = vld [vmem:[#allocation3 + $0x8c0] sm:$0xff]
    %v448 = vld [vmem:[#allocation3 + $0x8c8] sm:$0xff]
    %v449 = vld [vmem:[#allocation3 + $0x8d0] sm:$0xff]
    %v450 = vld [vmem:[#allocation3 + $0x8d8] sm:$0xff]
    %v451 = vld [vmem:[#allocation3 + $0x8e0] sm:$0xff]
    %v452 = vld [vmem:[#allocation3 + $0x8e8] sm:$0xff]
    %v453 = vld [vmem:[#allocation3 + $0x8f0] sm:$0xff]
    %v454 = vld [vmem:[#allocation3 + $0x8f8] sm:$0xff]
    %v455 = vld [vmem:[#allocation3 + $0x900] sm:$0xff]
    %v456 = vld [vmem:[#allocation3 + $0x908] sm:$0xff]
    %v457 = vld [vmem:[#allocation3 + $0x910] sm:$0xff]
    %v458 = vld [vmem:[#allocation3 + $0x918] sm:$0xff]
    %v459 = vld [vmem:[#allocation3 + $0x920] sm:$0xff]
    %v460 = vld [vmem:[#allocation3 + $0x928] sm:$0xff]
    %v461 = vld [vmem:[#allocation3 + $0x930] sm:$0xff]
    %v462 = vld [vmem:[#allocation3 + $0x938] sm:$0xff]
    %v463 = vld [vmem:[#allocation3 + $0x940] sm:$0xff]
    %v464 = vld [vmem:[#allocation3 + $0x948] sm:$0xff]
    %v465 = vld [vmem:[#allocation3 + $0x950] sm:$0xff]
    %v466 = vld [vmem:[#allocation3 + $0x958] sm:$0xff]
    %v467 = vld [vmem:[#allocation3 + $0x960] sm:$0xff]
    %v468 = vld [vmem:[#allocation3 + $0x968] sm:$0xff]
    %v469 = vld [vmem:[#allocation3 + $0x970] sm:$0xff]
    %v470 = vld [vmem:[#allocation3 + $0x978] sm:$0xff]
    %v471 = vld [vmem:[#allocation3 + $0x980] sm:$0xff]
    %v472 = vld [vmem:[#allocation3 + $0x988] sm:$0xff]
    %v473 = vld [vmem:[#allocation3 + $0x990] sm:$0xff]
    %v474 = vld [vmem:[#allocation3 + $0x998] sm:$0xff]
    %v475 = vld [vmem:[#allocation3 + $0x9a0] sm:$0xff]
    %v476 = vld [vmem:[#allocation3 + $0x9a8] sm:$0xff]
    %v477 = vld [vmem:[#allocation3 + $0x9b0] sm:$0xff]
    %v478 = vld [vmem:[#allocation3 + $0x9b8] sm:$0xff]
    %v479 = vld [vmem:[#allocation3 + $0x9c0] sm:$0xff]
    %v480 = vld [vmem:[#allocation3 + $0x9c8] sm:$0xff]
    %v481 = vld [vmem:[#allocation3 + $0x9d0] sm:$0xff]
    %v482 = vld [vmem:[#allocation3 + $0x9d8] sm:$0xff]
    %v483 = vld [vmem:[#allocation3 + $0x9e0] sm:$0xff]
    %v484 = vld [vmem:[#allocation3 + $0x9e8] sm:$0xff]
    %v485 = vld [vmem:[#allocation3 + $0x9f0] sm:$0xff]
    %v486 = vld [vmem:[#allocation3 + $0x9f8] sm:$0xff]
    %v487 = vld [vmem:[#allocation3 + $0xa00] sm:$0xff]
    %v488 = vld [vmem:[#allocation3 + $0xa08] sm:$0xff]
    %v489 = vld [vmem:[#allocation3 + $0xa10] sm:$0xff]
    %v490 = vld [vmem:[#allocation3 + $0xa18] sm:$0xff]
    %v491 = vld [vmem:[#allocation3 + $0xa20] sm:$0xff]
    %v492 = vld [vmem:[#allocation3 + $0xa28] sm:$0xff]
    %v493 = vld [vmem:[#allocation3 + $0xa30] sm:$0xff]
    %v494 = vld [vmem:[#allocation3 + $0xa38] sm:$0xff]
    %v495 = vld [vmem:[#allocation3 + $0xa40] sm:$0xff]
    %v496 = vld [vmem:[#allocation3 + $0xa48] sm:$0xff]
    %v497 = vld [vmem:[#allocation3 + $0xa50] sm:$0xff]
    %v498 = vld [vmem:[#allocation3 + $0xa58] sm:$0xff]
    %v499 = vld [vmem:[#allocation3 + $0xa60] sm:$0xff]
    %v500 = vld [vmem:[#allocation3 + $0xa68] sm:$0xff]
    %v501 = vld [vmem:[#allocation3 + $0xa70] sm:$0xff]
    %v502 = vld [vmem:[#allocation3 + $0xa78] sm:$0xff]
    %v503 = vld [vmem:[#allocation3 + $0xa80] sm:$0xff]
    %v504 = vld [vmem:[#allocation3 + $0xa88] sm:$0xff]
    %v505 = vld [vmem:[#allocation3 + $0xa90] sm:$0xff]
    %v506 = vld [vmem:[#allocation3 + $0xa98] sm:$0xff]
    %v507 = vld [vmem:[#allocation3 + $0xaa0] sm:$0xff]
    %v508 = vld [vmem:[#allocation3 + $0xaa8] sm:$0xff]
    %v509 = vld [vmem:[#allocation3 + $0xab0] sm:$0xff]
    %v510 = vld [vmem:[#allocation3 + $0xab8] sm:$0xff]
    %v511 = vld [vmem:[#allocation3 + $0xac0] sm:$0xff]
    %v512 = vld [vmem:[#allocation3 + $0xac8] sm:$0xff]
    %v513 = vld [vmem:[#allocation3 + $0xad0] sm:$0xff]
    %v514 = vld [vmem:[#allocation3 + $0xad8] sm:$0xff]
    %v515 = vld [vmem:[#allocation3 + $0xae0] sm:$0xff]
    %v516 = vld [vmem:[#allocation3 + $0xae8] sm:$0xff]
    %v517 = vld [vmem:[#allocation3 + $0xaf0] sm:$0xff]
    %v518 = vld [vmem:[#allocation3 + $0xaf8] sm:$0xff]
    %v519 = vld [vmem:[#allocation3 + $0xb00] sm:$0xff]
    %v520 = vld [vmem:[#allocation3 + $0xb08] sm:$0xff]
    %v521 = vld [vmem:[#allocation3 + $0xb10] sm:$0xff]
    %v522 = vld [vmem:[#allocation3 + $0xb18] sm:$0xff]
    %v523 = vld [vmem:[#allocation3 + $0xb20] sm:$0xff]
    %v524 = vld [vmem:[#allocation3 + $0xb28] sm:$0xff]
    %v525 = vld [vmem:[#allocation3 + $0xb30] sm:$0xff]
    %v526 = vld [vmem:[#allocation3 + $0xb38] sm:$0xff]
    %v527 = vld [vmem:[#allocation3 + $0xb40] sm:$0xff]
    %v528 = vld [vmem:[#allocation3 + $0xb48] sm:$0xff]
    %v529 = vld [vmem:[#allocation3 + $0xb50] sm:$0xff]
    %v530 = vld [vmem:[#allocation3 + $0xb58] sm:$0xff]
    %v531 = vld [vmem:[#allocation3 + $0xb60] sm:$0xff]
    %v532 = vld [vmem:[#allocation3 + $0xb68] sm:$0xff]
    %v533 = vld [vmem:[#allocation3 + $0xb70] sm:$0xff]
    %v534 = vld [vmem:[#allocation3 + $0xb78] sm:$0xff]
    %v535 = vld [vmem:[#allocation3 + $0xb80] sm:$0xff]
    %v536 = vld [vmem:[#allocation3 + $0xb88] sm:$0xff]
    %v537 = vld [vmem:[#allocation3 + $0xb90] sm:$0xff]
    %v538 = vld [vmem:[#allocation3 + $0xb98] sm:$0xff]
    %v539 = vld [vmem:[#allocation3 + $0xba0] sm:$0xff]
    %v540 = vld [vmem:[#allocation3 + $0xba8] sm:$0xff]
    %v541 = vld [vmem:[#allocation3 + $0xbb0] sm:$0xff]
    %v542 = vld [vmem:[#allocation3 + $0xbb8] sm:$0xff]
    %v543 = vld [vmem:[#allocation3 + $0xbc0] sm:$0xff]
    %v544 = vld [vmem:[#allocation3 + $0xbc8] sm:$0xff]
    %v545 = vld [vmem:[#allocation3 + $0xbd0] sm:$0xff]
    %v546 = vld [vmem:[#allocation3 + $0xbd8] sm:$0xff]
    %v547 = vld [vmem:[#allocation3 + $0xbe0] sm:$0xff]
    %v548 = vld [vmem:[#allocation3 + $0xbe8] sm:$0xff]
    %v549 = vld [vmem:[#allocation3 + $0xbf0] sm:$0xff]
    %v550 = vld [vmem:[#allocation3 + $0xbf8] sm:$0xff]
    %v551 = vld [vmem:[#allocation3 + $0xc00] sm:$0xff]
    %v552 = vld [vmem:[#allocation3 + $0xc08] sm:$0xff]
    %v553 = vld [vmem:[#allocation3 + $0xc10] sm:$0xff]
    %v554 = vld [vmem:[#allocation3 + $0xc18] sm:$0xff]
    %v555 = vld [vmem:[#allocation3 + $0xc20] sm:$0xff]
    %v556 = vld [vmem:[#allocation3 + $0xc28] sm:$0xff]
    %v557 = vld [vmem:[#allocation3 + $0xc30] sm:$0xff]
    %v558 = vld [vmem:[#allocation3 + $0xc38] sm:$0xff]
    %v559 = vld [vmem:[#allocation3 + $0xc40] sm:$0xff]
    %v560 = vld [vmem:[#allocation3 + $0xc48] sm:$0xff]
    %v561 = vld [vmem:[#allocation3 + $0xc50] sm:$0xff]
    %v562 = vld [vmem:[#allocation3 + $0xc58] sm:$0xff]
    %v563 = vld [vmem:[#allocation3 + $0xc60] sm:$0xff]
    %v564 = vld [vmem:[#allocation3 + $0xc68] sm:$0xff]
    %v565 = vld [vmem:[#allocation3 + $0xc70] sm:$0xff]
    %v566 = vld [vmem:[#allocation3 + $0xc78] sm:$0xff]
    %v567 = vld [vmem:[#allocation3 + $0xc80] sm:$0xff]
    %v568 = vld [vmem:[#allocation3 + $0xc88] sm:$0xff]
    %v569 = vld [vmem:[#allocation3 + $0xc90] sm:$0xff]
    %v570 = vld [vmem:[#allocation3 + $0xc98] sm:$0xff]
    %v571 = vld [vmem:[#allocation3 + $0xca0] sm:$0xff]
    %v572 = vld [vmem:[#allocation3 + $0xca8] sm:$0xff]
    %v573 = vld [vmem:[#allocation3 + $0xcb0] sm:$0xff]
    %v574 = vld [vmem:[#allocation3 + $0xcb8] sm:$0xff]
    %v575 = vld [vmem:[#allocation3 + $0xcc0] sm:$0xff]
    %v576 = vld [vmem:[#allocation3 + $0xcc8] sm:$0xff]
    %v577 = vld [vmem:[#allocation3 + $0xcd0] sm:$0xff]
    %v578 = vld [vmem:[#allocation3 + $0xcd8] sm:$0xff]
    %v579 = vld [vmem:[#allocation3 + $0xce0] sm:$0xff]
    %v580 = vld [vmem:[#allocation3 + $0xce8] sm:$0xff]
    %v581 = vld [vmem:[#allocation3 + $0xcf0] sm:$0xff]
    %v582 = vld [vmem:[#allocation3 + $0xcf8] sm:$0xff]
    %v583 = vld [vmem:[#allocation3 + $0xd00] sm:$0xff]
    %v584 = vld [vmem:[#allocation3 + $0xd08] sm:$0xff]
    %v585 = vld [vmem:[#allocation3 + $0xd10] sm:$0xff]
    %v586 = vld [vmem:[#allocation3 + $0xd18] sm:$0xff]
    %v587 = vld [vmem:[#allocation3 + $0xd20] sm:$0xff]
    %v588 = vld [vmem:[#allocation3 + $0xd28] sm:$0xff]
    %v589 = vld [vmem:[#allocation3 + $0xd30] sm:$0xff]
    %v590 = vld [vmem:[#allocation3 + $0xd38] sm:$0xff]
    %v591 = vld [vmem:[#allocation3 + $0xd40] sm:$0xff]
    %v592 = vld [vmem:[#allocation3 + $0xd48] sm:$0xff]
    %v593 = vld [vmem:[#allocation3 + $0xd50] sm:$0xff]
    %v594 = vld [vmem:[#allocation3 + $0xd58] sm:$0xff]
    %v595 = vld [vmem:[#allocation3 + $0xd60] sm:$0xff]
    %v596 = vld [vmem:[#allocation3 + $0xd68] sm:$0xff]
    %v597 = vld [vmem:[#allocation3 + $0xd70] sm:$0xff]
    %v598 = vld [vmem:[#allocation3 + $0xd78] sm:$0xff]
    %v599 = vld [vmem:[#allocation3 + $0xd80] sm:$0xff]
    %v600 = vld [vmem:[#allocation3 + $0xd88] sm:$0xff]
    %v601 = vld [vmem:[#allocation3 + $0xd90] sm:$0xff]
    %v602 = vld [vmem:[#allocation3 + $0xd98] sm:$0xff]
    %v603 = vld [vmem:[#allocation3 + $0xda0] sm:$0xff]
    %v604 = vld [vmem:[#allocation3 + $0xda8] sm:$0xff]
    %v605 = vld [vmem:[#allocation3 + $0xdb0] sm:$0xff]
    %v606 = vld [vmem:[#allocation3 + $0xdb8] sm:$0xff]
    %v607 = vld [vmem:[#allocation3 + $0xdc0] sm:$0xff]
    %v608 = vld [vmem:[#allocation3 + $0xdc8] sm:$0xff]
    %v609 = vld [vmem:[#allocation3 + $0xdd0] sm:$0xff]
    %v610 = vld [vmem:[#allocation3 + $0xdd8] sm:$0xff]
    %v611 = vld [vmem:[#allocation3 + $0xde0] sm:$0xff]
    %v612 = vld [vmem:[#allocation3 + $0xde8] sm:$0xff]
    %v613 = vld [vmem:[#allocation3 + $0xdf0] sm:$0xff]
    %v614 = vld [vmem:[#allocation3 + $0xdf8] sm:$0xff]
    %v615 = vld [vmem:[#allocation3 + $0xe00] sm:$0xff]
    %v616 = vld [vmem:[#allocation3 + $0xe08] sm:$0xff]
    %v617 = vld [vmem:[#allocation3 + $0xe10] sm:$0xff]
    %v618 = vld [vmem:[#allocation3 + $0xe18] sm:$0xff]
    %v619 = vld [vmem:[#allocation3 + $0xe20] sm:$0xff]
    %v620 = vld [vmem:[#allocation3 + $0xe28] sm:$0xff]
    %v621 = vld [vmem:[#allocation3 + $0xe30] sm:$0xff]
    %v622 = vld [vmem:[#allocation3 + $0xe38] sm:$0xff]
    %v623 = vld [vmem:[#allocation3 + $0xe40] sm:$0xff]
    %v624 = vld [vmem:[#allocation3 + $0xe48] sm:$0xff]
    %v625 = vld [vmem:[#allocation3 + $0xe50] sm:$0xff]
    %v626 = vld [vmem:[#allocation3 + $0xe58] sm:$0xff]
    %v627 = vld [vmem:[#allocation3 + $0xe60] sm:$0xff]
    %v628 = vld [vmem:[#allocation3 + $0xe68] sm:$0xff]
    %v629 = vld [vmem:[#allocation3 + $0xe70] sm:$0xff]
    %v630 = vld [vmem:[#allocation3 + $0xe78] sm:$0xff]
    %v631 = vld [vmem:[#allocation3 + $0xe80] sm:$0xff]
    %v632 = vld [vmem:[#allocation3 + $0xe88] sm:$0xff]
    %v633 = vld [vmem:[#allocation3 + $0xe90] sm:$0xff]
    %v634 = vld [vmem:[#allocation3 + $0xe98] sm:$0xff]
    %v635 = vld [vmem:[#allocation3 + $0xea0] sm:$0xff]
    %v636 = vld [vmem:[#allocation3 + $0xea8] sm:$0xff]
    %v637 = vld [vmem:[#allocation3 + $0xeb0] sm:$0xff]
    %v638 = vld [vmem:[#allocation3 + $0xeb8] sm:$0xff]
    %v639 = vld [vmem:[#allocation3 + $0xec0] sm:$0xff]
    %v640 = vld [vmem:[#allocation3 + $0xec8] sm:$0xff]
    %v641 = vld [vmem:[#allocation3 + $0xed0] sm:$0xff]
    %v642 = vld [vmem:[#allocation3 + $0xed8] sm:$0xff]
    %v643 = vld [vmem:[#allocation3 + $0xee0] sm:$0xff]
    %v644 = vld [vmem:[#allocation3 + $0xee8] sm:$0xff]
    %v645 = vld [vmem:[#allocation3 + $0xef0] sm:$0xff]
    %v646 = vld [vmem:[#allocation3 + $0xef8] sm:$0xff]
    %v647 = vld [vmem:[#allocation3 + $0xf00] sm:$0xff]
    %v648 = vld [vmem:[#allocation3 + $0xf08] sm:$0xff]
    %v649 = vld [vmem:[#allocation3 + $0xf10] sm:$0xff]
    %v650 = vld [vmem:[#allocation3 + $0xf18] sm:$0xff]
    %v651 = vld [vmem:[#allocation3 + $0xf20] sm:$0xff]
    %v652 = vld [vmem:[#allocation3 + $0xf28] sm:$0xff]
    %v653 = vld [vmem:[#allocation3 + $0xf30] sm:$0xff]
    %v654 = vld [vmem:[#allocation3 + $0xf38] sm:$0xff]
    %v655 = vld [vmem:[#allocation3 + $0xf40] sm:$0xff]
    %v656 = vld [vmem:[#allocation3 + $0xf48] sm:$0xff]
    %v657 = vld [vmem:[#allocation3 + $0xf50] sm:$0xff]
    %v658 = vld [vmem:[#allocation3 + $0xf58] sm:$0xff]
    %v659 = vld [vmem:[#allocation3 + $0xf60] sm:$0xff]
    %v660 = vld [vmem:[#allocation3 + $0xf68] sm:$0xff]
    %v661 = vld [vmem:[#allocation3 + $0xf70] sm:$0xff]
    %v662 = vld [vmem:[#allocation3 + $0xf78] sm:$0xff]
    %v663 = vld [vmem:[#allocation3 + $0xf80] sm:$0xff]
    %v664 = vld [vmem:[#allocation3 + $0xf88] sm:$0xff]
    %v665 = vld [vmem:[#allocation3 + $0xf90] sm:$0xff]
    %v666 = vld [vmem:[#allocation3 + $0xf98] sm:$0xff]
    %v667 = vld [vmem:[#allocation3 + $0xfa0] sm:$0xff]
    %v668 = vld [vmem:[#allocation3 + $0xfa8] sm:$0xff]
    %v669 = vld [vmem:[#allocation3 + $0xfb0] sm:$0xff]
    %v670 = vld [vmem:[#allocation3 + $0xfb8] sm:$0xff]
    %v671 = vld [vmem:[#allocation3 + $0xfc0] sm:$0xff]
    %v672 = vld [vmem:[#allocation3 + $0xfc8] sm:$0xff]
    %v673 = vld [vmem:[#allocation3 + $0xfd0] sm:$0xff]
    %v674 = vld [vmem:[#allocation3 + $0xfd8] sm:$0xff]
    %v675 = vld [vmem:[#allocation3 + $0xfe0] sm:$0xff]
    %v676 = vld [vmem:[#allocation3 + $0xfe8] sm:$0xff]
    %v677 = vld [vmem:[#allocation3 + $0xff0] sm:$0xff]
    %v678 = vld [vmem:[#allocation3 + $0xff8] sm:$0xff]
    %v679 = vld [vmem:[#allocation3 + $0x1000] sm:$0xff]
    %v680 = vld [vmem:[#allocation3 + $0x1008] sm:$0xff]
    %v681 = vld [vmem:[#allocation3 + $0x1010] sm:$0xff]
    %v682 = vld [vmem:[#allocation3 + $0x1018] sm:$0xff]
    %v683 = vld [vmem:[#allocation3 + $0x1020] sm:$0xff]
    %v684 = vld [vmem:[#allocation3 + $0x1028] sm:$0xff]
    %v685 = vld [vmem:[#allocation3 + $0x1030] sm:$0xff]
    %v686 = vld [vmem:[#allocation3 + $0x1038] sm:$0xff]
    %v687 = vld [vmem:[#allocation3 + $0x1040] sm:$0xff]
    %v688 = vld [vmem:[#allocation3 + $0x1048] sm:$0xff]
    %v689 = vld [vmem:[#allocation3 + $0x1050] sm:$0xff]
    %v690 = vld [vmem:[#allocation3 + $0x1058] sm:$0xff]
    %v691 = vld [vmem:[#allocation3 + $0x1060] sm:$0xff]
    %v692 = vld [vmem:[#allocation3 + $0x1068] sm:$0xff]
    %v693 = vld [vmem:[#allocation3 + $0x1070] sm:$0xff]
    %v694 = vld [vmem:[#allocation3 + $0x1078] sm:$0xff]
    %v695 = vld [vmem:[#allocation3 + $0x1080] sm:$0xff]
    %v696 = vld [vmem:[#allocation3 + $0x1088] sm:$0xff]
    %v697 = vld [vmem:[#allocation3 + $0x1090] sm:$0xff]
    %v698 = vld [vmem:[#allocation3 + $0x1098] sm:$0xff]
    %v699 = vld [vmem:[#allocation3 + $0x10a0] sm:$0xff]
    %v700 = vld [vmem:[#allocation3 + $0x10a8] sm:$0xff]
    %v701 = vld [vmem:[#allocation3 + $0x10b0] sm:$0xff]
    %v702 = vld [vmem:[#allocation3 + $0x10b8] sm:$0xff]
    %v703 = vld [vmem:[#allocation3 + $0x10c0] sm:$0xff]
    %v704 = vld [vmem:[#allocation3 + $0x10c8] sm:$0xff]
    %v705 = vld [vmem:[#allocation3 + $0x10d0] sm:$0xff]
    %v706 = vld [vmem:[#allocation3 + $0x10d8] sm:$0xff]
    %v707 = vld [vmem:[#allocation3 + $0x10e0] sm:$0xff]
    %v708 = vld [vmem:[#allocation3 + $0x10e8] sm:$0xff]
    %v709 = vld [vmem:[#allocation3 + $0x10f0] sm:$0xff]
    %v710 = vld [vmem:[#allocation3 + $0x10f8] sm:$0xff]
    %v711 = vld [vmem:[#allocation3 + $0x1100] sm:$0xff]
    %v712 = vld [vmem:[#allocation3 + $0x1108] sm:$0xff]
    %v713 = vld [vmem:[#allocation3 + $0x1110] sm:$0xff]
    %v714 = vld [vmem:[#allocation3 + $0x1118] sm:$0xff]
    %v715 = vld [vmem:[#allocation3 + $0x1120] sm:$0xff]
    %v716 = vld [vmem:[#allocation3 + $0x1128] sm:$0xff]
    %v717 = vld [vmem:[#allocation3 + $0x1130] sm:$0xff]
    %v718 = vld [vmem:[#allocation3 + $0x1138] sm:$0xff]
    %v719 = vld [vmem:[#allocation3 + $0x1140] sm:$0xff]
    %v720 = vld [vmem:[#allocation3 + $0x1148] sm:$0xff]
    %v721 = vld [vmem:[#allocation3 + $0x1150] sm:$0xff]
    %v722 = vld [vmem:[#allocation3 + $0x1158] sm:$0xff]
    %v723 = vld [vmem:[#allocation3 + $0x1160] sm:$0xff]
    %v724 = vld [vmem:[#allocation3 + $0x1168] sm:$0xff]
    %v725 = vld [vmem:[#allocation3 + $0x1170] sm:$0xff]
    %v726 = vld [vmem:[#allocation3 + $0x1178] sm:$0xff]
    %v727 = vld [vmem:[#allocation3 + $0x1180] sm:$0xff]
    %v728 = vld [vmem:[#allocation3 + $0x1188] sm:$0xff]
    %v729 = vld [vmem:[#allocation3 + $0x1190] sm:$0xff]
    %v730 = vld [vmem:[#allocation3 + $0x1198] sm:$0xff]
    %v731 = vld [vmem:[#allocation3 + $0x11a0] sm:$0xff]
    %v732 = vld [vmem:[#allocation3 + $0x11a8] sm:$0xff]
    %v733 = vld [vmem:[#allocation3 + $0x11b0] sm:$0xff]
    %v734 = vld [vmem:[#allocation3 + $0x11b8] sm:$0xff]
    %v735 = vld [vmem:[#allocation3 + $0x11c0] sm:$0xff]
    %v736 = vld [vmem:[#allocation3 + $0x11c8] sm:$0xff]
    %v737 = vld [vmem:[#allocation3 + $0x11d0] sm:$0xff]
    %v738 = vld [vmem:[#allocation3 + $0x11d8] sm:$0xff]
    %v739 = vld [vmem:[#allocation3 + $0x11e0] sm:$0xff]
    %v740 = vld [vmem:[#allocation3 + $0x11e8] sm:$0xff]
    %v741 = vld [vmem:[#allocation3 + $0x11f0] sm:$0xff]
    %v742 = vld [vmem:[#allocation3 + $0x11f8] sm:$0xff]
    %v743 = vld [vmem:[#allocation3 + $0x1200] sm:$0xff]
    %v744 = vld [vmem:[#allocation3 + $0x1208] sm:$0xff]
    %v745 = vld [vmem:[#allocation3 + $0x1210] sm:$0xff]
    %v746 = vld [vmem:[#allocation3 + $0x1218] sm:$0xff]
    %v747 = vld [vmem:[#allocation3 + $0x1220] sm:$0xff]
    %v748 = vld [vmem:[#allocation3 + $0x1228] sm:$0xff]
    %v749 = vld [vmem:[#allocation3 + $0x1230] sm:$0xff]
    %v750 = vld [vmem:[#allocation3 + $0x1238] sm:$0xff]
    %v751 = vld [vmem:[#allocation3 + $0x1240] sm:$0xff]
    %v752 = vld [vmem:[#allocation3 + $0x1248] sm:$0xff]
    %v753 = vld [vmem:[#allocation3 + $0x1250] sm:$0xff]
    %v754 = vld [vmem:[#allocation3 + $0x1258] sm:$0xff]
    %v755 = vld [vmem:[#allocation3 + $0x1260] sm:$0xff]
    %v756 = vld [vmem:[#allocation3 + $0x1268] sm:$0xff]
    %v757 = vld [vmem:[#allocation3 + $0x1270] sm:$0xff]
    %v758 = vld [vmem:[#allocation3 + $0x1278] sm:$0xff]
    %v759 = vld [vmem:[#allocation3 + $0x1280] sm:$0xff]
    %v760 = vld [vmem:[#allocation3 + $0x1288] sm:$0xff]
    %v761 = vld [vmem:[#allocation3 + $0x1290] sm:$0xff]
    %v762 = vld [vmem:[#allocation3 + $0x1298] sm:$0xff]
    %v763 = vld [vmem:[#allocation3 + $0x12a0] sm:$0xff]
    %v764 = vld [vmem:[#allocation3 + $0x12a8] sm:$0xff]
    %v765 = vld [vmem:[#allocation3 + $0x12b0] sm:$0xff]
    %v766 = vld [vmem:[#allocation3 + $0x12b8] sm:$0xff]
    %v767 = vld [vmem:[#allocation3 + $0x12c0] sm:$0xff]
    %v768 = vld [vmem:[#allocation3 + $0x12c8] sm:$0xff]
    %v769 = vld [vmem:[#allocation3 + $0x12d0] sm:$0xff]
    %v770 = vld [vmem:[#allocation3 + $0x12d8] sm:$0xff]
    %v771 = vld [vmem:[#allocation3 + $0x12e0] sm:$0xff]
    %v772 = vld [vmem:[#allocation3 + $0x12e8] sm:$0xff]
    %v773 = vld [vmem:[#allocation3 + $0x12f0] sm:$0xff]
    %v774 = vld [vmem:[#allocation3 + $0x12f8] sm:$0xff]
    %v775 = vld [vmem:[#allocation3 + $0x1300] sm:$0xff]
    %v776 = vld [vmem:[#allocation3 + $0x1308] sm:$0xff]
    %v777 = vld [vmem:[#allocation3 + $0x1310] sm:$0xff]
    %v778 = vld [vmem:[#allocation3 + $0x1318] sm:$0xff]
    %v779 = vld [vmem:[#allocation3 + $0x1320] sm:$0xff]
    %v780 = vld [vmem:[#allocation3 + $0x1328] sm:$0xff]
    %v781 = vld [vmem:[#allocation3 + $0x1330] sm:$0xff]
    %v782 = vld [vmem:[#allocation3 + $0x1338] sm:$0xff]
    %v783 = vld [vmem:[#allocation3 + $0x1340] sm:$0xff]
    %v784 = vld [vmem:[#allocation3 + $0x1348] sm:$0xff]
    %v785 = vld [vmem:[#allocation3 + $0x1350] sm:$0xff]
    %v786 = vld [vmem:[#allocation3 + $0x1358] sm:$0xff]
    %v787 = vld [vmem:[#allocation3 + $0x1360] sm:$0xff]
    %v788 = vld [vmem:[#allocation3 + $0x1368] sm:$0xff]
    %v789 = vld [vmem:[#allocation3 + $0x1370] sm:$0xff]
    %v790 = vld [vmem:[#allocation3 + $0x1378] sm:$0xff]
    %v791 = vld [vmem:[#allocation3 + $0x1380] sm:$0xff]
    %v792 = vld [vmem:[#allocation3 + $0x1388] sm:$0xff]
    %v793 = vld [vmem:[#allocation3 + $0x1390] sm:$0xff]
    %v794 = vld [vmem:[#allocation3 + $0x1398] sm:$0xff]
    %v795 = vld [vmem:[#allocation3 + $0x13a0] sm:$0xff]
    %v796 = vld [vmem:[#allocation3 + $0x13a8] sm:$0xff]
    %v797 = vld [vmem:[#allocation3 + $0x13b0] sm:$0xff]
    %v798 = vld [vmem:[#allocation3 + $0x13b8] sm:$0xff]
    %v799 = vld [vmem:[#allocation3 + $0x13c0] sm:$0xff]
    %v800 = vld [vmem:[#allocation3 + $0x13c8] sm:$0xff]
    %v801 = vld [vmem:[#allocation3 + $0x13d0] sm:$0xff]
    %v802 = vld [vmem:[#allocation3 + $0x13d8] sm:$0xff]
    %v803 = vld [vmem:[#allocation3 + $0x13e0] sm:$0xff]
    %v804 = vld [vmem:[#allocation3 + $0x13e8] sm:$0xff]
    %v805 = vld [vmem:[#allocation3 + $0x13f0] sm:$0xff]
    %v806 = vld [vmem:[#allocation3 + $0x13f8] sm:$0xff]
    %v807 = vld [vmem:[#allocation3 + $0x1400] sm:$0xff]
    %v808 = vld [vmem:[#allocation3 + $0x1408] sm:$0xff]
    %v809 = vld [vmem:[#allocation3 + $0x1410] sm:$0xff]
    %v810 = vld [vmem:[#allocation3 + $0x1418] sm:$0xff]
    %v811 = vld [vmem:[#allocation3 + $0x1420] sm:$0xff]
    %v812 = vld [vmem:[#allocation3 + $0x1428] sm:$0xff]
    %v813 = vld [vmem:[#allocation3 + $0x1430] sm:$0xff]
    %v814 = vld [vmem:[#allocation3 + $0x1438] sm:$0xff]
    %v815 = vld [vmem:[#allocation3 + $0x1440] sm:$0xff]
    %v816 = vld [vmem:[#allocation3 + $0x1448] sm:$0xff]
    %v817 = vld [vmem:[#allocation3 + $0x1450] sm:$0xff]
    %v818 = vld [vmem:[#allocation3 + $0x1458] sm:$0xff]
    %v819 = vld [vmem:[#allocation3 + $0x1460] sm:$0xff]
    %v820 = vld [vmem:[#allocation3 + $0x1468] sm:$0xff]
    %v821 = vld [vmem:[#allocation3 + $0x1470] sm:$0xff]
    %v822 = vld [vmem:[#allocation3 + $0x1478] sm:$0xff]
    %v823 = vld [vmem:[#allocation3 + $0x1480] sm:$0xff]
    %v824 = vld [vmem:[#allocation3 + $0x1488] sm:$0xff]
    %v825 = vld [vmem:[#allocation3 + $0x1490] sm:$0xff]
    %v826 = vld [vmem:[#allocation3 + $0x1498] sm:$0xff]
    %v827 = vld [vmem:[#allocation3 + $0x14a0] sm:$0xff]
    %v828 = vld [vmem:[#allocation3 + $0x14a8] sm:$0xff]
    %v829 = vld [vmem:[#allocation3 + $0x14b0] sm:$0xff]
    %v830 = vld [vmem:[#allocation3 + $0x14b8] sm:$0xff]
    %v831 = vld [vmem:[#allocation3 + $0x14c0] sm:$0xff]
    %v832 = vld [vmem:[#allocation3 + $0x14c8] sm:$0xff]
    %v833 = vld [vmem:[#allocation3 + $0x14d0] sm:$0xff]
    %v834 = vld [vmem:[#allocation3 + $0x14d8] sm:$0xff]
    %v835 = vld [vmem:[#allocation3 + $0x14e0] sm:$0xff]
    %v836 = vld [vmem:[#allocation3 + $0x14e8] sm:$0xff]
    %v837 = vld [vmem:[#allocation3 + $0x14f0] sm:$0xff]
    %v838 = vld [vmem:[#allocation3 + $0x14f8] sm:$0xff]
    %v839 = vld [vmem:[#allocation3 + $0x1500] sm:$0xff]
    %v840 = vld [vmem:[#allocation3 + $0x1508] sm:$0xff]
    %v841 = vld [vmem:[#allocation3 + $0x1510] sm:$0xff]
    %v842 = vld [vmem:[#allocation3 + $0x1518] sm:$0xff]
    %v843 = vld [vmem:[#allocation3 + $0x1520] sm:$0xff]
    %v844 = vld [vmem:[#allocation3 + $0x1528] sm:$0xff]
    %v845 = vld [vmem:[#allocation3 + $0x1530] sm:$0xff]
    %v846 = vld [vmem:[#allocation3 + $0x1538] sm:$0xff]
    %v847 = vld [vmem:[#allocation3 + $0x1540] sm:$0xff]
    %v848 = vld [vmem:[#allocation3 + $0x1548] sm:$0xff]
    %v849 = vld [vmem:[#allocation3 + $0x1550] sm:$0xff]
    %v850 = vld [vmem:[#allocation3 + $0x1558] sm:$0xff]
    %v851 = vld [vmem:[#allocation3 + $0x1560] sm:$0xff]
    %v852 = vld [vmem:[#allocation3 + $0x1568] sm:$0xff]
    %v853 = vld [vmem:[#allocation3 + $0x1570] sm:$0xff]
    %v854 = vld [vmem:[#allocation3 + $0x1578] sm:$0xff]
    %v855 = vld [vmem:[#allocation3 + $0x1580] sm:$0xff]
    %v856 = vld [vmem:[#allocation3 + $0x1588] sm:$0xff]
    %v857 = vld [vmem:[#allocation3 + $0x1590] sm:$0xff]
    %v858 = vld [vmem:[#allocation3 + $0x1598] sm:$0xff]
    %v859 = vld [vmem:[#allocation3 + $0x15a0] sm:$0xff]
    %v860 = vld [vmem:[#allocation3 + $0x15a8] sm:$0xff]
    %v861 = vld [vmem:[#allocation3 + $0x15b0] sm:$0xff]
    %v862 = vld [vmem:[#allocation3 + $0x15b8] sm:$0xff]
    %v863 = vld [vmem:[#allocation3 + $0x15c0] sm:$0xff]
    %v864 = vld [vmem:[#allocation3 + $0x15c8] sm:$0xff]
    %v865 = vld [vmem:[#allocation3 + $0x15d0] sm:$0xff]
    %v866 = vld [vmem:[#allocation3 + $0x15d8] sm:$0xff]
    %v867 = vld [vmem:[#allocation3 + $0x15e0] sm:$0xff]
    %v868 = vld [vmem:[#allocation3 + $0x15e8] sm:$0xff]
    %v869 = vld [vmem:[#allocation3 + $0x15f0] sm:$0xff]
    %v870 = vld [vmem:[#allocation3 + $0x15f8] sm:$0xff]
    %v871 = vld [vmem:[#allocation3 + $0x1600] sm:$0xff]
    %v872 = vld [vmem:[#allocation3 + $0x1608] sm:$0xff]
    %v873 = vld [vmem:[#allocation3 + $0x1610] sm:$0xff]
    %v874 = vld [vmem:[#allocation3 + $0x1618] sm:$0xff]
    %v875 = vld [vmem:[#allocation3 + $0x1620] sm:$0xff]
    %v876 = vld [vmem:[#allocation3 + $0x1628] sm:$0xff]
    %v877 = vld [vmem:[#allocation3 + $0x1630] sm:$0xff]
    %v878 = vld [vmem:[#allocation3 + $0x1638] sm:$0xff]
    %v879 = vld [vmem:[#allocation3 + $0x1640] sm:$0xff]
    %v880 = vld [vmem:[#allocation3 + $0x1648] sm:$0xff]
    %v881 = vld [vmem:[#allocation3 + $0x1650] sm:$0xff]
    %v882 = vld [vmem:[#allocation3 + $0x1658] sm:$0xff]
    %v883 = vld [vmem:[#allocation3 + $0x1660] sm:$0xff]
    %v884 = vld [vmem:[#allocation3 + $0x1668] sm:$0xff]
    %v885 = vld [vmem:[#allocation3 + $0x1670] sm:$0xff]
    %v886 = vld [vmem:[#allocation3 + $0x1678] sm:$0xff]
    %v887 = vld [vmem:[#allocation3 + $0x1680] sm:$0xff]
    %v888 = vld [vmem:[#allocation3 + $0x1688] sm:$0xff]
    %v889 = vld [vmem:[#allocation3 + $0x1690] sm:$0xff]
    %v890 = vld [vmem:[#allocation3 + $0x1698] sm:$0xff]
    %v891 = vld [vmem:[#allocation3 + $0x16a0] sm:$0xff]
    %v892 = vld [vmem:[#allocation3 + $0x16a8] sm:$0xff]
    %v893 = vld [vmem:[#allocation3 + $0x16b0] sm:$0xff]
    %v894 = vld [vmem:[#allocation3 + $0x16b8] sm:$0xff]
    %v895 = vld [vmem:[#allocation3 + $0x16c0] sm:$0xff]
    %v896 = vld [vmem:[#allocation3 + $0x16c8] sm:$0xff]
    %v897 = vld [vmem:[#allocation3 + $0x16d0] sm:$0xff]
    %v898 = vld [vmem:[#allocation3 + $0x16d8] sm:$0xff]
    %v899 = vld [vmem:[#allocation3 + $0x16e0] sm:$0xff]
    %v900 = vld [vmem:[#allocation3 + $0x16e8] sm:$0xff]
    %v901 = vld [vmem:[#allocation3 + $0x16f0] sm:$0xff]
    %v902 = vld [vmem:[#allocation3 + $0x16f8] sm:$0xff]
    %v903 = vld [vmem:[#allocation3 + $0x1700] sm:$0xff]
    %v904 = vld [vmem:[#allocation3 + $0x1708] sm:$0xff]
    %v905 = vld [vmem:[#allocation3 + $0x1710] sm:$0xff]
    %v906 = vld [vmem:[#allocation3 + $0x1718] sm:$0xff]
    %v907 = vld [vmem:[#allocation3 + $0x1720] sm:$0xff]
    %v908 = vld [vmem:[#allocation3 + $0x1728] sm:$0xff]
    %v909 = vld [vmem:[#allocation3 + $0x1730] sm:$0xff]
    %v910 = vld [vmem:[#allocation3 + $0x1738] sm:$0xff]
    %v911 = vld [vmem:[#allocation3 + $0x1740] sm:$0xff]
    %v912 = vld [vmem:[#allocation3 + $0x1748] sm:$0xff]
    %v913 = vld [vmem:[#allocation3 + $0x1750] sm:$0xff]
    %v914 = vld [vmem:[#allocation3 + $0x1758] sm:$0xff]
    %v915 = vld [vmem:[#allocation3 + $0x1760] sm:$0xff]
    %v916 = vld [vmem:[#allocation3 + $0x1768] sm:$0xff]
    %v917 = vld [vmem:[#allocation3 + $0x1770] sm:$0xff]
    %v918 = vld [vmem:[#allocation3 + $0x1778] sm:$0xff]
    %v919 = vld [vmem:[#allocation3 + $0x1780] sm:$0xff]
    %v920 = vld [vmem:[#allocation3 + $0x1788] sm:$0xff]
    %v921 = vld [vmem:[#allocation3 + $0x1790] sm:$0xff]
    %v922 = vld [vmem:[#allocation3 + $0x1798] sm:$0xff]
    %v923 = vld [vmem:[#allocation3 + $0x17a0] sm:$0xff]
    %v924 = vld [vmem:[#allocation3 + $0x17a8] sm:$0xff]
    %v925 = vld [vmem:[#allocation3 + $0x17b0] sm:$0xff]
    %v926 = vld [vmem:[#allocation3 + $0x17b8] sm:$0xff]
    %v927 = vld [vmem:[#allocation3 + $0x17c0] sm:$0xff]
    %v928 = vld [vmem:[#allocation3 + $0x17c8] sm:$0xff]
    %v929 = vld [vmem:[#allocation3 + $0x17d0] sm:$0xff]
    %v930 = vld [vmem:[#allocation3 + $0x17d8] sm:$0xff]
    %v931 = vld [vmem:[#allocation3 + $0x17e0] sm:$0xff]
    %v932 = vld [vmem:[#allocation3 + $0x17e8] sm:$0xff]
    %v933 = vld [vmem:[#allocation3 + $0x17f0] sm:$0xff]
    %v934 = vld [vmem:[#allocation3 + $0x17f8] sm:$0xff]
    %v935 = vld [vmem:[#allocation3 + $0x1800] sm:$0xff]
    %v936 = vld [vmem:[#allocation3 + $0x1808] sm:$0xff]
    %v937 = vld [vmem:[#allocation3 + $0x1810] sm:$0xff]
    %v938 = vld [vmem:[#allocation3 + $0x1818] sm:$0xff]
    %v939 = vld [vmem:[#allocation3 + $0x1820] sm:$0xff]
    %v940 = vld [vmem:[#allocation3 + $0x1828] sm:$0xff]
    %v941 = vld [vmem:[#allocation3 + $0x1830] sm:$0xff]
    %v942 = vld [vmem:[#allocation3 + $0x1838] sm:$0xff]
    %v943 = vld [vmem:[#allocation3 + $0x1840] sm:$0xff]
    %v944 = vld [vmem:[#allocation3 + $0x1848] sm:$0xff]
    %v945 = vld [vmem:[#allocation3 + $0x1850] sm:$0xff]
    %v946 = vld [vmem:[#allocation3 + $0x1858] sm:$0xff]
    %v947 = vld [vmem:[#allocation3 + $0x1860] sm:$0xff]
    %v948 = vld [vmem:[#allocation3 + $0x1868] sm:$0xff]
    %v949 = vld [vmem:[#allocation3 + $0x1870] sm:$0xff]
    %v950 = vld [vmem:[#allocation3 + $0x1878] sm:$0xff]
    %v951 = vld [vmem:[#allocation3 + $0x1880] sm:$0xff]
    %v952 = vld [vmem:[#allocation3 + $0x1888] sm:$0xff]
    %v953 = vld [vmem:[#allocation3 + $0x1890] sm:$0xff]
    %v954 = vld [vmem:[#allocation3 + $0x1898] sm:$0xff]
    %v955 = vld [vmem:[#allocation3 + $0x18a0] sm:$0xff]
    %v956 = vld [vmem:[#allocation3 + $0x18a8] sm:$0xff]
    %v957 = vld [vmem:[#allocation3 + $0x18b0] sm:$0xff]
    %v958 = vld [vmem:[#allocation3 + $0x18b8] sm:$0xff]
    %v959 = vld [vmem:[#allocation3 + $0x18c0] sm:$0xff]
    %v960 = vld [vmem:[#allocation3 + $0x18c8] sm:$0xff]
    %v961 = vld [vmem:[#allocation3 + $0x18d0] sm:$0xff]
    %v962 = vld [vmem:[#allocation3 + $0x18d8] sm:$0xff]
    %v963 = vld [vmem:[#allocation3 + $0x18e0] sm:$0xff]
    %v964 = vld [vmem:[#allocation3 + $0x18e8] sm:$0xff]
    %v965 = vld [vmem:[#allocation3 + $0x18f0] sm:$0xff]
    %v966 = vld [vmem:[#allocation3 + $0x18f8] sm:$0xff]
    %v967 = vld [vmem:[#allocation3 + $0x1900] sm:$0xff]
    %v968 = vld [vmem:[#allocation3 + $0x1908] sm:$0xff]
    %v969 = vld [vmem:[#allocation3 + $0x1910] sm:$0xff]
    %v970 = vld [vmem:[#allocation3 + $0x1918] sm:$0xff]
    %v971 = vld [vmem:[#allocation3 + $0x1920] sm:$0xff]
    %v972 = vld [vmem:[#allocation3 + $0x1928] sm:$0xff]
    %v973 = vld [vmem:[#allocation3 + $0x1930] sm:$0xff]
    %v974 = vld [vmem:[#allocation3 + $0x1938] sm:$0xff]
    %v975 = vld [vmem:[#allocation3 + $0x1940] sm:$0xff]
    %v976 = vld [vmem:[#allocation3 + $0x1948] sm:$0xff]
    %v977 = vld [vmem:[#allocation3 + $0x1950] sm:$0xff]
    %v978 = vld [vmem:[#allocation3 + $0x1958] sm:$0xff]
    %v979 = vld [vmem:[#allocation3 + $0x1960] sm:$0xff]
    %v980 = vld [vmem:[#allocation3 + $0x1968] sm:$0xff]
    %v981 = vld [vmem:[#allocation3 + $0x1970] sm:$0xff]
    %v982 = vld [vmem:[#allocation3 + $0x1978] sm:$0xff]
    %v983 = vld [vmem:[#allocation3 + $0x1980] sm:$0xff]
    %v984 = vld [vmem:[#allocation3 + $0x1988] sm:$0xff]
    %v985 = vld [vmem:[#allocation3 + $0x1990] sm:$0xff]
    %v986 = vld [vmem:[#allocation3 + $0x1998] sm:$0xff]
    %v987 = vld [vmem:[#allocation3 + $0x19a0] sm:$0xff]
    %v988 = vld [vmem:[#allocation3 + $0x19a8] sm:$0xff]
    %v989 = vld [vmem:[#allocation3 + $0x19b0] sm:$0xff]
    %v990 = vld [vmem:[#allocation3 + $0x19b8] sm:$0xff]
    %v991 = vld [vmem:[#allocation3 + $0x19c0] sm:$0xff]
    %v992 = vld [vmem:[#allocation3 + $0x19c8] sm:$0xff]
    %v993 = vld [vmem:[#allocation3 + $0x19d0] sm:$0xff]
    %v994 = vld [vmem:[#allocation3 + $0x19d8] sm:$0xff]
    %v995 = vld [vmem:[#allocation3 + $0x19e0] sm:$0xff]
    %v996 = vld [vmem:[#allocation3 + $0x19e8] sm:$0xff]
    %v997 = vld [vmem:[#allocation3 + $0x19f0] sm:$0xff]
    %v998 = vld [vmem:[#allocation3 + $0x19f8] sm:$0xff]
    %v999 = vld [vmem:[#allocation3 + $0x1a00] sm:$0xff]
    %v1000 = vld [vmem:[#allocation3 + $0x1a08] sm:$0xff]
    %v1001 = vld [vmem:[#allocation3 + $0x1a10] sm:$0xff]
    %v1002 = vld [vmem:[#allocation3 + $0x1a18] sm:$0xff]
    %v1003 = vld [vmem:[#allocation3 + $0x1a20] sm:$0xff]
    %v1004 = vld [vmem:[#allocation3 + $0x1a28] sm:$0xff]
    %v1005 = vld [vmem:[#allocation3 + $0x1a30] sm:$0xff]
    %v1006 = vld [vmem:[#allocation3 + $0x1a38] sm:$0xff]
    %v1007 = vld [vmem:[#allocation3 + $0x1a40] sm:$0xff]
    %v1008 = vld [vmem:[#allocation3 + $0x1a48] sm:$0xff]
    %v1009 = vld [vmem:[#allocation3 + $0x1a50] sm:$0xff]
    %v1010 = vld [vmem:[#allocation3 + $0x1a58] sm:$0xff]
    %v1011 = vld [vmem:[#allocation3 + $0x1a60] sm:$0xff]
    %v1012 = vld [vmem:[#allocation3 + $0x1a68] sm:$0xff]
    %v1013 = vld [vmem:[#allocation3 + $0x1a70] sm:$0xff]
    %v1014 = vld [vmem:[#allocation3 + $0x1a78] sm:$0xff]
    %v1015 = vld [vmem:[#allocation3 + $0x1a80] sm:$0xff]
    %v1016 = vld [vmem:[#allocation3 + $0x1a88] sm:$0xff]
    %v1017 = vld [vmem:[#allocation3 + $0x1a90] sm:$0xff]
    %v1018 = vld [vmem:[#allocation3 + $0x1a98] sm:$0xff]
    %v1019 = vld [vmem:[#allocation3 + $0x1aa0] sm:$0xff]
    %v1020 = vld [vmem:[#allocation3 + $0x1aa8] sm:$0xff]
    %v1021 = vld [vmem:[#allocation3 + $0x1ab0] sm:$0xff]
    %v1022 = vld [vmem:[#allocation3 + $0x1ab8] sm:$0xff]
    %v1023 = vld [vmem:[#allocation3 + $0x1ac0] sm:$0xff]
    %v1024 = vld [vmem:[#allocation3 + $0x1ac8] sm:$0xff]
    %v1025 = vld [vmem:[#allocation3 + $0x1ad0] sm:$0xff]
    %v1026 = vld [vmem:[#allocation3 + $0x1ad8] sm:$0xff]
    %v1027 = vld [vmem:[#allocation3 + $0x1ae0] sm:$0xff]
    %v1028 = vld [vmem:[#allocation3 + $0x1ae8] sm:$0xff]
    %v1029 = vld [vmem:[#allocation3 + $0x1af0] sm:$0xff]
    %v1030 = vld [vmem:[#allocation3 + $0x1af8] sm:$0xff]
    %v1031 = vld [vmem:[#allocation3 + $0x1b00] sm:$0xff]
    %v1032 = vld [vmem:[#allocation3 + $0x1b08] sm:$0xff]
    %v1033 = vld [vmem:[#allocation3 + $0x1b10] sm:$0xff]
    %v1034 = vld [vmem:[#allocation3 + $0x1b18] sm:$0xff]
    %v1035 = vld [vmem:[#allocation3 + $0x1b20] sm:$0xff]
    %v1036 = vld [vmem:[#allocation3 + $0x1b28] sm:$0xff]
    %v1037 = vld [vmem:[#allocation3 + $0x1b30] sm:$0xff]
    %v1038 = vld [vmem:[#allocation3 + $0x1b38] sm:$0xff]
    %v1039 = vld [vmem:[#allocation3 + $0x1b40] sm:$0xff]
    %v1040 = vld [vmem:[#allocation3 + $0x1b48] sm:$0xff]
    %v1041 = vld [vmem:[#allocation3 + $0x1b50] sm:$0xff]
    %v1042 = vld [vmem:[#allocation3 + $0x1b58] sm:$0xff]
    %v1043 = vld [vmem:[#allocation3 + $0x1b60] sm:$0xff]
    %v1044 = vld [vmem:[#allocation3 + $0x1b68] sm:$0xff]
    %v1045 = vld [vmem:[#allocation3 + $0x1b70] sm:$0xff]
    %v1046 = vld [vmem:[#allocation3 + $0x1b78] sm:$0xff]
    %v1047 = vld [vmem:[#allocation3 + $0x1b80] sm:$0xff]
    %v1048 = vld [vmem:[#allocation3 + $0x1b88] sm:$0xff]
    %v1049 = vld [vmem:[#allocation3 + $0x1b90] sm:$0xff]
    %v1050 = vld [vmem:[#allocation3 + $0x1b98] sm:$0xff]
    %v1051 = vld [vmem:[#allocation3 + $0x1ba0] sm:$0xff]
    %v1052 = vld [vmem:[#allocation3 + $0x1ba8] sm:$0xff]
    %v1053 = vld [vmem:[#allocation3 + $0x1bb0] sm:$0xff]
    %v1054 = vld [vmem:[#allocation3 + $0x1bb8] sm:$0xff]
    %v1055 = vld [vmem:[#allocation3 + $0x1bc0] sm:$0xff]
    %v1056 = vld [vmem:[#allocation3 + $0x1bc8] sm:$0xff]
    %v1057 = vld [vmem:[#allocation3 + $0x1bd0] sm:$0xff]
    %v1058 = vld [vmem:[#allocation3 + $0x1bd8] sm:$0xff]
    %v1059 = vld [vmem:[#allocation3 + $0x1be0] sm:$0xff]
    %v1060 = vld [vmem:[#allocation3 + $0x1be8] sm:$0xff]
    %v1061 = vld [vmem:[#allocation3 + $0x1bf0] sm:$0xff]
    %v1062 = vld [vmem:[#allocation3 + $0x1bf8] sm:$0xff]
    %v1063 = vld [vmem:[#allocation3 + $0x1c00] sm:$0xff]
    %v1064 = vld [vmem:[#allocation3 + $0x1c08] sm:$0xff]
    %v1065 = vld [vmem:[#allocation3 + $0x1c10] sm:$0xff]
    %v1066 = vld [vmem:[#allocation3 + $0x1c18] sm:$0xff]
    %v1067 = vld [vmem:[#allocation3 + $0x1c20] sm:$0xff]
    %v1068 = vld [vmem:[#allocation3 + $0x1c28] sm:$0xff]
    %v1069 = vld [vmem:[#allocation3 + $0x1c30] sm:$0xff]
    %v1070 = vld [vmem:[#allocation3 + $0x1c38] sm:$0xff]
    %v1071 = vld [vmem:[#allocation3 + $0x1c40] sm:$0xff]
    %v1072 = vld [vmem:[#allocation3 + $0x1c48] sm:$0xff]
    %v1073 = vld [vmem:[#allocation3 + $0x1c50] sm:$0xff]
    %v1074 = vld [vmem:[#allocation3 + $0x1c58] sm:$0xff]
    %v1075 = vld [vmem:[#allocation3 + $0x1c60] sm:$0xff]
    %v1076 = vld [vmem:[#allocation3 + $0x1c68] sm:$0xff]
    %v1077 = vld [vmem:[#allocation3 + $0x1c70] sm:$0xff]
    %v1078 = vld [vmem:[#allocation3 + $0x1c78] sm:$0xff]
    %v1079 = vld [vmem:[#allocation3 + $0x1c80] sm:$0xff]
    %v1080 = vld [vmem:[#allocation3 + $0x1c88] sm:$0xff]
    %v1081 = vld [vmem:[#allocation3 + $0x1c90] sm:$0xff]
    %v1082 = vld [vmem:[#allocation3 + $0x1c98] sm:$0xff]
    %v1083 = vld [vmem:[#allocation3 + $0x1ca0] sm:$0xff]
    %v1084 = vld [vmem:[#allocation3 + $0x1ca8] sm:$0xff]
    %v1085 = vld [vmem:[#allocation3 + $0x1cb0] sm:$0xff]
    %v1086 = vld [vmem:[#allocation3 + $0x1cb8] sm:$0xff]
    %v1087 = vld [vmem:[#allocation3 + $0x1cc0] sm:$0xff]
    %v1088 = vld [vmem:[#allocation3 + $0x1cc8] sm:$0xff]
    %v1089 = vld [vmem:[#allocation3 + $0x1cd0] sm:$0xff]
    %v1090 = vld [vmem:[#allocation3 + $0x1cd8] sm:$0xff]
    %v1091 = vld [vmem:[#allocation3 + $0x1ce0] sm:$0xff]
    %v1092 = vld [vmem:[#allocation3 + $0x1ce8] sm:$0xff]
    %v1093 = vld [vmem:[#allocation3 + $0x1cf0] sm:$0xff]
    %v1094 = vld [vmem:[#allocation3 + $0x1cf8] sm:$0xff]
    %v1095 = vld [vmem:[#allocation3 + $0x1d00] sm:$0xff]
    %v1096 = vld [vmem:[#allocation3 + $0x1d08] sm:$0xff]
    %v1097 = vld [vmem:[#allocation3 + $0x1d10] sm:$0xff]
    %v1098 = vld [vmem:[#allocation3 + $0x1d18] sm:$0xff]
    %v1099 = vld [vmem:[#allocation3 + $0x1d20] sm:$0xff]
    %v1100 = vld [vmem:[#allocation3 + $0x1d28] sm:$0xff]
    %v1101 = vld [vmem:[#allocation3 + $0x1d30] sm:$0xff]
    %v1102 = vld [vmem:[#allocation3 + $0x1d38] sm:$0xff]
    %v1103 = vld [vmem:[#allocation3 + $0x1d40] sm:$0xff]
    %v1104 = vld [vmem:[#allocation3 + $0x1d48] sm:$0xff]
    %v1105 = vld [vmem:[#allocation3 + $0x1d50] sm:$0xff]
    %v1106 = vld [vmem:[#allocation3 + $0x1d58] sm:$0xff]
    %v1107 = vld [vmem:[#allocation3 + $0x1d60] sm:$0xff]
    %v1108 = vld [vmem:[#allocation3 + $0x1d68] sm:$0xff]
    %v1109 = vld [vmem:[#allocation3 + $0x1d70] sm:$0xff]
    %v1110 = vld [vmem:[#allocation3 + $0x1d78] sm:$0xff]
    %v1111 = vld [vmem:[#allocation3 + $0x1d80] sm:$0xff]
    %v1112 = vld [vmem:[#allocation3 + $0x1d88] sm:$0xff]
    %v1113 = vld [vmem:[#allocation3 + $0x1d90] sm:$0xff]
    %v1114 = vld [vmem:[#allocation3 + $0x1d98] sm:$0xff]
    %v1115 = vld [vmem:[#allocation3 + $0x1da0] sm:$0xff]
    %v1116 = vld [vmem:[#allocation3 + $0x1da8] sm:$0xff]
    %v1117 = vld [vmem:[#allocation3 + $0x1db0] sm:$0xff]
    %v1118 = vld [vmem:[#allocation3 + $0x1db8] sm:$0xff]
    %v1119 = vld [vmem:[#allocation3 + $0x1dc0] sm:$0xff]
    %v1120 = vld [vmem:[#allocation3 + $0x1dc8] sm:$0xff]
    %v1121 = vld [vmem:[#allocation3 + $0x1dd0] sm:$0xff]
    %v1122 = vld [vmem:[#allocation3 + $0x1dd8] sm:$0xff]
    %v1123 = vld [vmem:[#allocation3 + $0x1de0] sm:$0xff]
    %v1124 = vld [vmem:[#allocation3 + $0x1de8] sm:$0xff]
    %v1125 = vld [vmem:[#allocation3 + $0x1df0] sm:$0xff]
    %v1126 = vld [vmem:[#allocation3 + $0x1df8] sm:$0xff]
    %v1127 = vld [vmem:[#allocation3 + $0x1e00] sm:$0xff]
    %v1128 = vld [vmem:[#allocation3 + $0x1e08] sm:$0xff]
    %v1129 = vld [vmem:[#allocation3 + $0x1e10] sm:$0xff]
    %v1130 = vld [vmem:[#allocation3 + $0x1e18] sm:$0xff]
    %v1131 = vld [vmem:[#allocation3 + $0x1e20] sm:$0xff]
    %v1132 = vld [vmem:[#allocation3 + $0x1e28] sm:$0xff]
    %v1133 = vld [vmem:[#allocation3 + $0x1e30] sm:$0xff]
    %v1134 = vld [vmem:[#allocation3 + $0x1e38] sm:$0xff]
    %v1135 = vld [vmem:[#allocation3 + $0x1e40] sm:$0xff]
    %v1136 = vld [vmem:[#allocation3 + $0x1e48] sm:$0xff]
    %v1137 = vld [vmem:[#allocation3 + $0x1e50] sm:$0xff]
    %v1138 = vld [vmem:[#allocation3 + $0x1e58] sm:$0xff]
    %v1139 = vld [vmem:[#allocation3 + $0x1e60] sm:$0xff]
    %v1140 = vld [vmem:[#allocation3 + $0x1e68] sm:$0xff]
    %v1141 = vld [vmem:[#allocation3 + $0x1e70] sm:$0xff]
    %v1142 = vld [vmem:[#allocation3 + $0x1e78] sm:$0xff]
    %v1143 = vld [vmem:[#allocation3 + $0x1e80] sm:$0xff]
    %v1144 = vld [vmem:[#allocation3 + $0x1e88] sm:$0xff]
    %v1145 = vld [vmem:[#allocation3 + $0x1e90] sm:$0xff]
    %v1146 = vld [vmem:[#allocation3 + $0x1e98] sm:$0xff]
    %v1147 = vld [vmem:[#allocation3 + $0x1ea0] sm:$0xff]
    %v1148 = vld [vmem:[#allocation3 + $0x1ea8] sm:$0xff]
    %v1149 = vld [vmem:[#allocation3 + $0x1eb0] sm:$0xff]
    %v1150 = vld [vmem:[#allocation3 + $0x1eb8] sm:$0xff]
    %v1151 = vld [vmem:[#allocation3 + $0x1ec0] sm:$0xff]
    %v1152 = vld [vmem:[#allocation3 + $0x1ec8] sm:$0xff]
    %v1153 = vld [vmem:[#allocation3 + $0x1ed0] sm:$0xff]
    %v1154 = vld [vmem:[#allocation3 + $0x1ed8] sm:$0xff]
    %v1155 = vld [vmem:[#allocation3 + $0x1ee0] sm:$0xff]
    %v1156 = vld [vmem:[#allocation3 + $0x1ee8] sm:$0xff]
    %v1157 = vld [vmem:[#allocation3 + $0x1ef0] sm:$0xff]
    %v1158 = vld [vmem:[#allocation3 + $0x1ef8] sm:$0xff]
    %v1159 = vld [vmem:[#allocation3 + $0x1f00] sm:$0xff]
    %v1160 = vld [vmem:[#allocation3 + $0x1f08] sm:$0xff]
    %v1161 = vld [vmem:[#allocation3 + $0x1f10] sm:$0xff]
    %v1162 = vld [vmem:[#allocation3 + $0x1f18] sm:$0xff]
    %v1163 = vld [vmem:[#allocation3 + $0x1f20] sm:$0xff]
    %v1164 = vld [vmem:[#allocation3 + $0x1f28] sm:$0xff]
    %v1165 = vld [vmem:[#allocation3 + $0x1f30] sm:$0xff]
    %v1166 = vld [vmem:[#allocation3 + $0x1f38] sm:$0xff]
    %v1167 = vld [vmem:[#allocation3 + $0x1f40] sm:$0xff]
    %v1168 = vld [vmem:[#allocation3 + $0x1f48] sm:$0xff]
    %v1169 = vld [vmem:[#allocation3 + $0x1f50] sm:$0xff]
    %v1170 = vld [vmem:[#allocation3 + $0x1f58] sm:$0xff]
    %v1171 = vld [vmem:[#allocation3 + $0x1f60] sm:$0xff]
    %v1172 = vld [vmem:[#allocation3 + $0x1f68] sm:$0xff]
    %v1173 = vld [vmem:[#allocation3 + $0x1f70] sm:$0xff]
    %v1174 = vld [vmem:[#allocation3 + $0x1f78] sm:$0xff]
    %v1175 = vld [vmem:[#allocation3 + $0x1f80] sm:$0xff]
    %v1176 = vld [vmem:[#allocation3 + $0x1f88] sm:$0xff]
    %v1177 = vld [vmem:[#allocation3 + $0x1f90] sm:$0xff]
    %v1178 = vld [vmem:[#allocation3 + $0x1f98] sm:$0xff]
    %v1179 = vld [vmem:[#allocation3 + $0x1fa0] sm:$0xff]
    %v1180 = vld [vmem:[#allocation3 + $0x1fa8] sm:$0xff]
    %v1181 = vld [vmem:[#allocation3 + $0x1fb0] sm:$0xff]
    %v1182 = vld [vmem:[#allocation3 + $0x1fb8] sm:$0xff]
    %v1183 = vld [vmem:[#allocation3 + $0x1fc0] sm:$0xff]
    %v1184 = vld [vmem:[#allocation3 + $0x1fc8] sm:$0xff]
    %v1185 = vld [vmem:[#allocation3 + $0x1fd0] sm:$0xff]
    %v1186 = vld [vmem:[#allocation3 + $0x1fd8] sm:$0xff]
    %v1187 = vld [vmem:[#allocation3 + $0x1fe0] sm:$0xff]
    %v1188 = vld [vmem:[#allocation3 + $0x1fe8] sm:$0xff]
    %v1189 = vld [vmem:[#allocation3 + $0x1ff0] sm:$0xff]
    %v1190 = vld [vmem:[#allocation3 + $0x1ff8] sm:$0xff]
    %v1191 = vld [vmem:[#allocation5] sm:$0xff]
    %v1193 = vperm.slane %v1191, 0
    %v1194 = vperm.slane %v1191, 1
    %v1195 = vperm.slane %v1191, 2
    %v1196 = vperm.slane %v1191, 3
    %v1197 = vperm.slane %v1191, 4
    %v1198 = vperm.slane %v1191, 5
    %v1199 = vperm.slane %v1191, 6
    %v1200 = vperm.slane %v1191, 7
    %v2233 = vunpack.c.l.b16 %v167
    %v2234 = vunpack.c.h.b16 %v167
    %v2235 = vunpack.c.l.b16 %v168
    %v2236 = vunpack.c.h.b16 %v168
    %v2237 = vunpack.c.l.b16 %v169
    %v2238 = vunpack.c.h.b16 %v169
    %v2239 = vunpack.c.l.b16 %v170
    %v2240 = vunpack.c.h.b16 %v170
    %v2241 = vunpack.c.l.b16 %v171
    %v2242 = vunpack.c.h.b16 %v171
    %v2243 = vunpack.c.l.b16 %v172
    %v2244 = vunpack.c.h.b16 %v172
    %v2245 = vunpack.c.l.b16 %v173
    %v2246 = vunpack.c.h.b16 %v173
    %v2247 = vunpack.c.l.b16 %v174
    %v2248 = vunpack.c.h.b16 %v174
    %v2249 = vunpack.c.l.b16 %v175
    %v2250 = vunpack.c.h.b16 %v175
    %v2251 = vunpack.c.l.b16 %v176
    %v2252 = vunpack.c.h.b16 %v176
    %v2253 = vunpack.c.l.b16 %v177
    %v2254 = vunpack.c.h.b16 %v177
    %v2255 = vunpack.c.l.b16 %v178
    %v2256 = vunpack.c.h.b16 %v178
    %v2257 = vunpack.c.l.b16 %v179
    %v2258 = vunpack.c.h.b16 %v179
    %v2259 = vunpack.c.l.b16 %v180
    %v2260 = vunpack.c.h.b16 %v180
    %v2261 = vunpack.c.l.b16 %v181
    %v2262 = vunpack.c.h.b16 %v181
    %v2263 = vunpack.c.l.b16 %v182
    %v2264 = vunpack.c.h.b16 %v182
    %v2265 = vunpack.c.l.b16 %v183
    %v2266 = vunpack.c.h.b16 %v183
    %v2267 = vunpack.c.l.b16 %v184
    %v2268 = vunpack.c.h.b16 %v184
    %v2269 = vunpack.c.l.b16 %v185
    %v2270 = vunpack.c.h.b16 %v185
    %v2271 = vunpack.c.l.b16 %v186
    %v2272 = vunpack.c.h.b16 %v186
    %v2273 = vunpack.c.l.b16 %v187
    %v2274 = vunpack.c.h.b16 %v187
    %v2275 = vunpack.c.l.b16 %v188
    %v2276 = vunpack.c.h.b16 %v188
    %v2277 = vunpack.c.l.b16 %v189
    %v2278 = vunpack.c.h.b16 %v189
    %v2279 = vunpack.c.l.b16 %v190
    %v2280 = vunpack.c.h.b16 %v190
    %v2281 = vunpack.c.l.b16 %v191
    %v2282 = vunpack.c.h.b16 %v191
    %v2283 = vunpack.c.l.b16 %v192
    %v2284 = vunpack.c.h.b16 %v192
    %v2285 = vunpack.c.l.b16 %v193
    %v2286 = vunpack.c.h.b16 %v193
    %v2287 = vunpack.c.l.b16 %v194
    %v2288 = vunpack.c.h.b16 %v194
    %v2289 = vunpack.c.l.b16 %v195
    %v2290 = vunpack.c.h.b16 %v195
    %v2291 = vunpack.c.l.b16 %v196
    %v2292 = vunpack.c.h.b16 %v196
    %v2293 = vunpack.c.l.b16 %v197
    %v2294 = vunpack.c.h.b16 %v197
    %v2295 = vunpack.c.l.b16 %v198
    %v2296 = vunpack.c.h.b16 %v198
    %v2297 = vunpack.c.l.b16 %v199
    %v2298 = vunpack.c.h.b16 %v199
    %v2299 = vunpack.c.l.b16 %v200
    %v2300 = vunpack.c.h.b16 %v200
    %v2301 = vunpack.c.l.b16 %v201
    %v2302 = vunpack.c.h.b16 %v201
    %v2303 = vunpack.c.l.b16 %v202
    %v2304 = vunpack.c.h.b16 %v202
    %v2305 = vunpack.c.l.b16 %v203
    %v2306 = vunpack.c.h.b16 %v203
    %v2307 = vunpack.c.l.b16 %v204
    %v2308 = vunpack.c.h.b16 %v204
    %v2309 = vunpack.c.l.b16 %v205
    %v2310 = vunpack.c.h.b16 %v205
    %v2311 = vunpack.c.l.b16 %v206
    %v2312 = vunpack.c.h.b16 %v206
    %v2313 = vunpack.c.l.b16 %v207
    %v2314 = vunpack.c.h.b16 %v207
    %v2315 = vunpack.c.l.b16 %v208
    %v2316 = vunpack.c.h.b16 %v208
    %v2317 = vunpack.c.l.b16 %v209
    %v2318 = vunpack.c.h.b16 %v209
    %v2319 = vunpack.c.l.b16 %v210
    %v2320 = vunpack.c.h.b16 %v210
    %v2321 = vunpack.c.l.b16 %v211
    %v2322 = vunpack.c.h.b16 %v211
    %v2323 = vunpack.c.l.b16 %v212
    %v2324 = vunpack.c.h.b16 %v212
    %v2325 = vunpack.c.l.b16 %v213
    %v2326 = vunpack.c.h.b16 %v213
    %v2327 = vunpack.c.l.b16 %v214
    %v2328 = vunpack.c.h.b16 %v214
    %v2329 = vunpack.c.l.b16 %v215
    %v2330 = vunpack.c.h.b16 %v215
    %v2331 = vunpack.c.l.b16 %v216
    %v2332 = vunpack.c.h.b16 %v216
    %v2333 = vunpack.c.l.b16 %v217
    %v2334 = vunpack.c.h.b16 %v217
    %v2335 = vunpack.c.l.b16 %v218
    %v2336 = vunpack.c.h.b16 %v218
    %v2337 = vunpack.c.l.b16 %v219
    %v2338 = vunpack.c.h.b16 %v219
    %v2339 = vunpack.c.l.b16 %v220
    %v2340 = vunpack.c.h.b16 %v220
    %v2341 = vunpack.c.l.b16 %v221
    %v2342 = vunpack.c.h.b16 %v221
    %v2343 = vunpack.c.l.b16 %v222
    %v2344 = vunpack.c.h.b16 %v222
    %v2345 = vunpack.c.l.b16 %v223
    %v2346 = vunpack.c.h.b16 %v223
    %v2347 = vunpack.c.l.b16 %v224
    %v2348 = vunpack.c.h.b16 %v224
    %v2349 = vunpack.c.l.b16 %v225
    %v2350 = vunpack.c.h.b16 %v225
    %v2351 = vunpack.c.l.b16 %v226
    %v2352 = vunpack.c.h.b16 %v226
    %v2353 = vunpack.c.l.b16 %v227
    %v2354 = vunpack.c.h.b16 %v227
    %v2355 = vunpack.c.l.b16 %v228
    %v2356 = vunpack.c.h.b16 %v228
    %v2357 = vunpack.c.l.b16 %v229
    %v2358 = vunpack.c.h.b16 %v229
    %v2359 = vunpack.c.l.b16 %v230
    %v2360 = vunpack.c.h.b16 %v230
    %v2361 = vunpack.c.l.b16 %v231
    %v2362 = vunpack.c.h.b16 %v231
    %v2363 = vunpack.c.l.b16 %v232
    %v2364 = vunpack.c.h.b16 %v232
    %v2365 = vunpack.c.l.b16 %v233
    %v2366 = vunpack.c.h.b16 %v233
    %v2367 = vunpack.c.l.b16 %v234
    %v2368 = vunpack.c.h.b16 %v234
    %v2369 = vunpack.c.l.b16 %v235
    %v2370 = vunpack.c.h.b16 %v235
    %v2371 = vunpack.c.l.b16 %v236
    %v2372 = vunpack.c.h.b16 %v236
    %v2373 = vunpack.c.l.b16 %v237
    %v2374 = vunpack.c.h.b16 %v237
    %v2375 = vunpack.c.l.b16 %v238
    %v2376 = vunpack.c.h.b16 %v238
    %v2377 = vunpack.c.l.b16 %v239
    %v2378 = vunpack.c.h.b16 %v239
    %v2379 = vunpack.c.l.b16 %v240
    %v2380 = vunpack.c.h.b16 %v240
    %v2381 = vunpack.c.l.b16 %v241
    %v2382 = vunpack.c.h.b16 %v241
    %v2383 = vunpack.c.l.b16 %v242
    %v2384 = vunpack.c.h.b16 %v242
    %v2385 = vunpack.c.l.b16 %v243
    %v2386 = vunpack.c.h.b16 %v243
    %v2387 = vunpack.c.l.b16 %v244
    %v2388 = vunpack.c.h.b16 %v244
    %v2389 = vunpack.c.l.b16 %v245
    %v2390 = vunpack.c.h.b16 %v245
    %v2391 = vunpack.c.l.b16 %v246
    %v2392 = vunpack.c.h.b16 %v246
    %v2393 = vunpack.c.l.b16 %v247
    %v2394 = vunpack.c.h.b16 %v247
    %v2395 = vunpack.c.l.b16 %v248
    %v2396 = vunpack.c.h.b16 %v248
    %v2397 = vunpack.c.l.b16 %v249
    %v2398 = vunpack.c.h.b16 %v249
    %v2399 = vunpack.c.l.b16 %v250
    %v2400 = vunpack.c.h.b16 %v250
    %v2401 = vunpack.c.l.b16 %v251
    %v2402 = vunpack.c.h.b16 %v251
    %v2403 = vunpack.c.l.b16 %v252
    %v2404 = vunpack.c.h.b16 %v252
    %v2405 = vunpack.c.l.b16 %v253
    %v2406 = vunpack.c.h.b16 %v253
    %v2407 = vunpack.c.l.b16 %v254
    %v2408 = vunpack.c.h.b16 %v254
    %v2409 = vunpack.c.l.b16 %v255
    %v2410 = vunpack.c.h.b16 %v255
    %v2411 = vunpack.c.l.b16 %v256
    %v2412 = vunpack.c.h.b16 %v256
    %v2413 = vunpack.c.l.b16 %v257
    %v2414 = vunpack.c.h.b16 %v257
    %v2415 = vunpack.c.l.b16 %v258
    %v2416 = vunpack.c.h.b16 %v258
    %v2417 = vunpack.c.l.b16 %v259
    %v2418 = vunpack.c.h.b16 %v259
    %v2419 = vunpack.c.l.b16 %v260
    %v2420 = vunpack.c.h.b16 %v260
    %v2421 = vunpack.c.l.b16 %v261
    %v2422 = vunpack.c.h.b16 %v261
    %v2423 = vunpack.c.l.b16 %v262
    %v2424 = vunpack.c.h.b16 %v262
    %v2425 = vunpack.c.l.b16 %v263
    %v2426 = vunpack.c.h.b16 %v263
    %v2427 = vunpack.c.l.b16 %v264
    %v2428 = vunpack.c.h.b16 %v264
    %v2429 = vunpack.c.l.b16 %v265
    %v2430 = vunpack.c.h.b16 %v265
    %v2431 = vunpack.c.l.b16 %v266
    %v2432 = vunpack.c.h.b16 %v266
    %v2433 = vunpack.c.l.b16 %v267
    %v2434 = vunpack.c.h.b16 %v267
    %v2435 = vunpack.c.l.b16 %v268
    %v2436 = vunpack.c.h.b16 %v268
    %v2437 = vunpack.c.l.b16 %v269
    %v2438 = vunpack.c.h.b16 %v269
    %v2439 = vunpack.c.l.b16 %v270
    %v2440 = vunpack.c.h.b16 %v270
    %v2441 = vunpack.c.l.b16 %v271
    %v2442 = vunpack.c.h.b16 %v271
    %v2443 = vunpack.c.l.b16 %v272
    %v2444 = vunpack.c.h.b16 %v272
    %v2445 = vunpack.c.l.b16 %v273
    %v2446 = vunpack.c.h.b16 %v273
    %v2447 = vunpack.c.l.b16 %v274
    %v2448 = vunpack.c.h.b16 %v274
    %v2449 = vunpack.c.l.b16 %v275
    %v2450 = vunpack.c.h.b16 %v275
    %v2451 = vunpack.c.l.b16 %v276
    %v2452 = vunpack.c.h.b16 %v276
    %v2453 = vunpack.c.l.b16 %v277
    %v2454 = vunpack.c.h.b16 %v277
    %v2455 = vunpack.c.l.b16 %v278
    %v2456 = vunpack.c.h.b16 %v278
    %v2457 = vunpack.c.l.b16 %v279
    %v2458 = vunpack.c.h.b16 %v279
    %v2459 = vunpack.c.l.b16 %v280
    %v2460 = vunpack.c.h.b16 %v280
    %v2461 = vunpack.c.l.b16 %v281
    %v2462 = vunpack.c.h.b16 %v281
    %v2463 = vunpack.c.l.b16 %v282
    %v2464 = vunpack.c.h.b16 %v282
    %v2465 = vunpack.c.l.b16 %v283
    %v2466 = vunpack.c.h.b16 %v283
    %v2467 = vunpack.c.l.b16 %v284
    %v2468 = vunpack.c.h.b16 %v284
    %v2469 = vunpack.c.l.b16 %v285
    %v2470 = vunpack.c.h.b16 %v285
    %v2471 = vunpack.c.l.b16 %v286
    %v2472 = vunpack.c.h.b16 %v286
    %v2473 = vunpack.c.l.b16 %v287
    %v2474 = vunpack.c.h.b16 %v287
    %v2475 = vunpack.c.l.b16 %v288
    %v2476 = vunpack.c.h.b16 %v288
    %v2477 = vunpack.c.l.b16 %v289
    %v2478 = vunpack.c.h.b16 %v289
    %v2479 = vunpack.c.l.b16 %v290
    %v2480 = vunpack.c.h.b16 %v290
    %v2481 = vunpack.c.l.b16 %v291
    %v2482 = vunpack.c.h.b16 %v291
    %v2483 = vunpack.c.l.b16 %v292
    %v2484 = vunpack.c.h.b16 %v292
    %v2485 = vunpack.c.l.b16 %v293
    %v2486 = vunpack.c.h.b16 %v293
    %v2487 = vunpack.c.l.b16 %v294
    %v2488 = vunpack.c.h.b16 %v294
    %v2489 = vunpack.c.l.b16 %v295
    %v2490 = vunpack.c.h.b16 %v295
    %v2491 = vunpack.c.l.b16 %v296
    %v2492 = vunpack.c.h.b16 %v296
    %v2493 = vunpack.c.l.b16 %v297
    %v2494 = vunpack.c.h.b16 %v297
    %v2495 = vunpack.c.l.b16 %v298
    %v2496 = vunpack.c.h.b16 %v298
    %v2497 = vunpack.c.l.b16 %v299
    %v2498 = vunpack.c.h.b16 %v299
    %v2499 = vunpack.c.l.b16 %v300
    %v2500 = vunpack.c.h.b16 %v300
    %v2501 = vunpack.c.l.b16 %v301
    %v2502 = vunpack.c.h.b16 %v301
    %v2503 = vunpack.c.l.b16 %v302
    %v2504 = vunpack.c.h.b16 %v302
    %v2505 = vunpack.c.l.b16 %v303
    %v2506 = vunpack.c.h.b16 %v303
    %v2507 = vunpack.c.l.b16 %v304
    %v2508 = vunpack.c.h.b16 %v304
    %v2509 = vunpack.c.l.b16 %v305
    %v2510 = vunpack.c.h.b16 %v305
    %v2511 = vunpack.c.l.b16 %v306
    %v2512 = vunpack.c.h.b16 %v306
    %v2513 = vunpack.c.l.b16 %v307
    %v2514 = vunpack.c.h.b16 %v307
    %v2515 = vunpack.c.l.b16 %v308
    %v2516 = vunpack.c.h.b16 %v308
    %v2517 = vunpack.c.l.b16 %v309
    %v2518 = vunpack.c.h.b16 %v309
    %v2519 = vunpack.c.l.b16 %v310
    %v2520 = vunpack.c.h.b16 %v310
    %v2521 = vunpack.c.l.b16 %v311
    %v2522 = vunpack.c.h.b16 %v311
    %v2523 = vunpack.c.l.b16 %v312
    %v2524 = vunpack.c.h.b16 %v312
    %v2525 = vunpack.c.l.b16 %v313
    %v2526 = vunpack.c.h.b16 %v313
    %v2527 = vunpack.c.l.b16 %v314
    %v2528 = vunpack.c.h.b16 %v314
    %v2529 = vunpack.c.l.b16 %v315
    %v2530 = vunpack.c.h.b16 %v315
    %v2531 = vunpack.c.l.b16 %v316
    %v2532 = vunpack.c.h.b16 %v316
    %v2533 = vunpack.c.l.b16 %v317
    %v2534 = vunpack.c.h.b16 %v317
    %v2535 = vunpack.c.l.b16 %v318
    %v2536 = vunpack.c.h.b16 %v318
    %v2537 = vunpack.c.l.b16 %v319
    %v2538 = vunpack.c.h.b16 %v319
    %v2539 = vunpack.c.l.b16 %v320
    %v2540 = vunpack.c.h.b16 %v320
    %v2541 = vunpack.c.l.b16 %v321
    %v2542 = vunpack.c.h.b16 %v321
    %v2543 = vunpack.c.l.b16 %v322
    %v2544 = vunpack.c.h.b16 %v322
    %v2545 = vunpack.c.l.b16 %v323
    %v2546 = vunpack.c.h.b16 %v323
    %v2547 = vunpack.c.l.b16 %v324
    %v2548 = vunpack.c.h.b16 %v324
    %v2549 = vunpack.c.l.b16 %v325
    %v2550 = vunpack.c.h.b16 %v325
    %v2551 = vunpack.c.l.b16 %v326
    %v2552 = vunpack.c.h.b16 %v326
    %v2553 = vunpack.c.l.b16 %v327
    %v2554 = vunpack.c.h.b16 %v327
    %v2555 = vunpack.c.l.b16 %v328
    %v2556 = vunpack.c.h.b16 %v328
    %v2557 = vunpack.c.l.b16 %v329
    %v2558 = vunpack.c.h.b16 %v329
    %v2559 = vunpack.c.l.b16 %v330
    %v2560 = vunpack.c.h.b16 %v330
    %v2561 = vunpack.c.l.b16 %v331
    %v2562 = vunpack.c.h.b16 %v331
    %v2563 = vunpack.c.l.b16 %v332
    %v2564 = vunpack.c.h.b16 %v332
    %v2565 = vunpack.c.l.b16 %v333
    %v2566 = vunpack.c.h.b16 %v333
    %v2567 = vunpack.c.l.b16 %v334
    %v2568 = vunpack.c.h.b16 %v334
    %v2569 = vunpack.c.l.b16 %v335
    %v2570 = vunpack.c.h.b16 %v335
    %v2571 = vunpack.c.l.b16 %v336
    %v2572 = vunpack.c.h.b16 %v336
    %v2573 = vunpack.c.l.b16 %v337
    %v2574 = vunpack.c.h.b16 %v337
    %v2575 = vunpack.c.l.b16 %v338
    %v2576 = vunpack.c.h.b16 %v338
    %v2577 = vunpack.c.l.b16 %v339
    %v2578 = vunpack.c.h.b16 %v339
    %v2579 = vunpack.c.l.b16 %v340
    %v2580 = vunpack.c.h.b16 %v340
    %v2581 = vunpack.c.l.b16 %v341
    %v2582 = vunpack.c.h.b16 %v341
    %v2583 = vunpack.c.l.b16 %v342
    %v2584 = vunpack.c.h.b16 %v342
    %v2585 = vunpack.c.l.b16 %v343
    %v2586 = vunpack.c.h.b16 %v343
    %v2587 = vunpack.c.l.b16 %v344
    %v2588 = vunpack.c.h.b16 %v344
    %v2589 = vunpack.c.l.b16 %v345
    %v2590 = vunpack.c.h.b16 %v345
    %v2591 = vunpack.c.l.b16 %v346
    %v2592 = vunpack.c.h.b16 %v346
    %v2593 = vunpack.c.l.b16 %v347
    %v2594 = vunpack.c.h.b16 %v347
    %v2595 = vunpack.c.l.b16 %v348
    %v2596 = vunpack.c.h.b16 %v348
    %v2597 = vunpack.c.l.b16 %v349
    %v2598 = vunpack.c.h.b16 %v349
    %v2599 = vunpack.c.l.b16 %v350
    %v2600 = vunpack.c.h.b16 %v350
    %v2601 = vunpack.c.l.b16 %v351
    %v2602 = vunpack.c.h.b16 %v351
    %v2603 = vunpack.c.l.b16 %v352
    %v2604 = vunpack.c.h.b16 %v352
    %v2605 = vunpack.c.l.b16 %v353
    %v2606 = vunpack.c.h.b16 %v353
    %v2607 = vunpack.c.l.b16 %v354
    %v2608 = vunpack.c.h.b16 %v354
    %v2609 = vunpack.c.l.b16 %v355
    %v2610 = vunpack.c.h.b16 %v355
    %v2611 = vunpack.c.l.b16 %v356
    %v2612 = vunpack.c.h.b16 %v356
    %v2613 = vunpack.c.l.b16 %v357
    %v2614 = vunpack.c.h.b16 %v357
    %v2615 = vunpack.c.l.b16 %v358
    %v2616 = vunpack.c.h.b16 %v358
    %v2617 = vunpack.c.l.b16 %v359
    %v2618 = vunpack.c.h.b16 %v359
    %v2619 = vunpack.c.l.b16 %v360
    %v2620 = vunpack.c.h.b16 %v360
    %v2621 = vunpack.c.l.b16 %v361
    %v2622 = vunpack.c.h.b16 %v361
    %v2623 = vunpack.c.l.b16 %v362
    %v2624 = vunpack.c.h.b16 %v362
    %v2625 = vunpack.c.l.b16 %v363
    %v2626 = vunpack.c.h.b16 %v363
    %v2627 = vunpack.c.l.b16 %v364
    %v2628 = vunpack.c.h.b16 %v364
    %v2629 = vunpack.c.l.b16 %v365
    %v2630 = vunpack.c.h.b16 %v365
    %v2631 = vunpack.c.l.b16 %v366
    %v2632 = vunpack.c.h.b16 %v366
    %v2633 = vunpack.c.l.b16 %v367
    %v2634 = vunpack.c.h.b16 %v367
    %v2635 = vunpack.c.l.b16 %v368
    %v2636 = vunpack.c.h.b16 %v368
    %v2637 = vunpack.c.l.b16 %v369
    %v2638 = vunpack.c.h.b16 %v369
    %v2639 = vunpack.c.l.b16 %v370
    %v2640 = vunpack.c.h.b16 %v370
    %v2641 = vunpack.c.l.b16 %v371
    %v2642 = vunpack.c.h.b16 %v371
    %v2643 = vunpack.c.l.b16 %v372
    %v2644 = vunpack.c.h.b16 %v372
    %v2645 = vunpack.c.l.b16 %v373
    %v2646 = vunpack.c.h.b16 %v373
    %v2647 = vunpack.c.l.b16 %v374
    %v2648 = vunpack.c.h.b16 %v374
    %v2649 = vunpack.c.l.b16 %v375
    %v2650 = vunpack.c.h.b16 %v375
    %v2651 = vunpack.c.l.b16 %v376
    %v2652 = vunpack.c.h.b16 %v376
    %v2653 = vunpack.c.l.b16 %v377
    %v2654 = vunpack.c.h.b16 %v377
    %v2655 = vunpack.c.l.b16 %v378
    %v2656 = vunpack.c.h.b16 %v378
    %v2657 = vunpack.c.l.b16 %v379
    %v2658 = vunpack.c.h.b16 %v379
    %v2659 = vunpack.c.l.b16 %v380
    %v2660 = vunpack.c.h.b16 %v380
    %v2661 = vunpack.c.l.b16 %v381
    %v2662 = vunpack.c.h.b16 %v381
    %v2663 = vunpack.c.l.b16 %v382
    %v2664 = vunpack.c.h.b16 %v382
    %v2665 = vunpack.c.l.b16 %v383
    %v2666 = vunpack.c.h.b16 %v383
    %v2667 = vunpack.c.l.b16 %v384
    %v2668 = vunpack.c.h.b16 %v384
    %v2669 = vunpack.c.l.b16 %v385
    %v2670 = vunpack.c.h.b16 %v385
    %v2671 = vunpack.c.l.b16 %v386
    %v2672 = vunpack.c.h.b16 %v386
    %v2673 = vunpack.c.l.b16 %v387
    %v2674 = vunpack.c.h.b16 %v387
    %v2675 = vunpack.c.l.b16 %v388
    %v2676 = vunpack.c.h.b16 %v388
    %v2677 = vunpack.c.l.b16 %v389
    %v2678 = vunpack.c.h.b16 %v389
    %v2679 = vunpack.c.l.b16 %v390
    %v2680 = vunpack.c.h.b16 %v390
    %v2681 = vunpack.c.l.b16 %v391
    %v2682 = vunpack.c.h.b16 %v391
    %v2683 = vunpack.c.l.b16 %v392
    %v2684 = vunpack.c.h.b16 %v392
    %v2685 = vunpack.c.l.b16 %v393
    %v2686 = vunpack.c.h.b16 %v393
    %v2687 = vunpack.c.l.b16 %v394
    %v2688 = vunpack.c.h.b16 %v394
    %v2689 = vunpack.c.l.b16 %v395
    %v2690 = vunpack.c.h.b16 %v395
    %v2691 = vunpack.c.l.b16 %v396
    %v2692 = vunpack.c.h.b16 %v396
    %v2693 = vunpack.c.l.b16 %v397
    %v2694 = vunpack.c.h.b16 %v397
    %v2695 = vunpack.c.l.b16 %v398
    %v2696 = vunpack.c.h.b16 %v398
    %v2697 = vunpack.c.l.b16 %v399
    %v2698 = vunpack.c.h.b16 %v399
    %v2699 = vunpack.c.l.b16 %v400
    %v2700 = vunpack.c.h.b16 %v400
    %v2701 = vunpack.c.l.b16 %v401
    %v2702 = vunpack.c.h.b16 %v401
    %v2703 = vunpack.c.l.b16 %v402
    %v2704 = vunpack.c.h.b16 %v402
    %v2705 = vunpack.c.l.b16 %v403
    %v2706 = vunpack.c.h.b16 %v403
    %v2707 = vunpack.c.l.b16 %v404
    %v2708 = vunpack.c.h.b16 %v404
    %v2709 = vunpack.c.l.b16 %v405
    %v2710 = vunpack.c.h.b16 %v405
    %v2711 = vunpack.c.l.b16 %v406
    %v2712 = vunpack.c.h.b16 %v406
    %v2713 = vunpack.c.l.b16 %v407
    %v2714 = vunpack.c.h.b16 %v407
    %v2715 = vunpack.c.l.b16 %v408
    %v2716 = vunpack.c.h.b16 %v408
    %v2717 = vunpack.c.l.b16 %v409
    %v2718 = vunpack.c.h.b16 %v409
    %v2719 = vunpack.c.l.b16 %v410
    %v2720 = vunpack.c.h.b16 %v410
    %v2721 = vunpack.c.l.b16 %v411
    %v2722 = vunpack.c.h.b16 %v411
    %v2723 = vunpack.c.l.b16 %v412
    %v2724 = vunpack.c.h.b16 %v412
    %v2725 = vunpack.c.l.b16 %v413
    %v2726 = vunpack.c.h.b16 %v413
    %v2727 = vunpack.c.l.b16 %v414
    %v2728 = vunpack.c.h.b16 %v414
    %v2729 = vunpack.c.l.b16 %v415
    %v2730 = vunpack.c.h.b16 %v415
    %v2731 = vunpack.c.l.b16 %v416
    %v2732 = vunpack.c.h.b16 %v416
    %v2733 = vunpack.c.l.b16 %v417
    %v2734 = vunpack.c.h.b16 %v417
    %v2735 = vunpack.c.l.b16 %v418
    %v2736 = vunpack.c.h.b16 %v418
    %v2737 = vunpack.c.l.b16 %v419
    %v2738 = vunpack.c.h.b16 %v419
    %v2739 = vunpack.c.l.b16 %v420
    %v2740 = vunpack.c.h.b16 %v420
    %v2741 = vunpack.c.l.b16 %v421
    %v2742 = vunpack.c.h.b16 %v421
    %v2743 = vunpack.c.l.b16 %v422
    %v2744 = vunpack.c.h.b16 %v422
    %v2745 = vunpack.c.l.b16 %v423
    %v2746 = vunpack.c.h.b16 %v423
    %v2747 = vunpack.c.l.b16 %v424
    %v2748 = vunpack.c.h.b16 %v424
    %v2749 = vunpack.c.l.b16 %v425
    %v2750 = vunpack.c.h.b16 %v425
    %v2751 = vunpack.c.l.b16 %v426
    %v2752 = vunpack.c.h.b16 %v426
    %v2753 = vunpack.c.l.b16 %v427
    %v2754 = vunpack.c.h.b16 %v427
    %v2755 = vunpack.c.l.b16 %v428
    %v2756 = vunpack.c.h.b16 %v428
    %v2757 = vunpack.c.l.b16 %v429
    %v2758 = vunpack.c.h.b16 %v429
    %v2759 = vunpack.c.l.b16 %v430
    %v2760 = vunpack.c.h.b16 %v430
    %v2761 = vunpack.c.l.b16 %v431
    %v2762 = vunpack.c.h.b16 %v431
    %v2763 = vunpack.c.l.b16 %v432
    %v2764 = vunpack.c.h.b16 %v432
    %v2765 = vunpack.c.l.b16 %v433
    %v2766 = vunpack.c.h.b16 %v433
    %v2767 = vunpack.c.l.b16 %v434
    %v2768 = vunpack.c.h.b16 %v434
    %v2769 = vunpack.c.l.b16 %v435
    %v2770 = vunpack.c.h.b16 %v435
    %v2771 = vunpack.c.l.b16 %v436
    %v2772 = vunpack.c.h.b16 %v436
    %v2773 = vunpack.c.l.b16 %v437
    %v2774 = vunpack.c.h.b16 %v437
    %v2775 = vunpack.c.l.b16 %v438
    %v2776 = vunpack.c.h.b16 %v438
    %v2777 = vunpack.c.l.b16 %v439
    %v2778 = vunpack.c.h.b16 %v439
    %v2779 = vunpack.c.l.b16 %v440
    %v2780 = vunpack.c.h.b16 %v440
    %v2781 = vunpack.c.l.b16 %v441
    %v2782 = vunpack.c.h.b16 %v441
    %v2783 = vunpack.c.l.b16 %v442
    %v2784 = vunpack.c.h.b16 %v442
    %v2785 = vunpack.c.l.b16 %v443
    %v2786 = vunpack.c.h.b16 %v443
    %v2787 = vunpack.c.l.b16 %v444
    %v2788 = vunpack.c.h.b16 %v444
    %v2789 = vunpack.c.l.b16 %v445
    %v2790 = vunpack.c.h.b16 %v445
    %v2791 = vunpack.c.l.b16 %v446
    %v2792 = vunpack.c.h.b16 %v446
    %v2793 = vunpack.c.l.b16 %v447
    %v2794 = vunpack.c.h.b16 %v447
    %v2795 = vunpack.c.l.b16 %v448
    %v2796 = vunpack.c.h.b16 %v448
    %v2797 = vunpack.c.l.b16 %v449
    %v2798 = vunpack.c.h.b16 %v449
    %v2799 = vunpack.c.l.b16 %v450
    %v2800 = vunpack.c.h.b16 %v450
    %v2801 = vunpack.c.l.b16 %v451
    %v2802 = vunpack.c.h.b16 %v451
    %v2803 = vunpack.c.l.b16 %v452
    %v2804 = vunpack.c.h.b16 %v452
    %v2805 = vunpack.c.l.b16 %v453
    %v2806 = vunpack.c.h.b16 %v453
    %v2807 = vunpack.c.l.b16 %v454
    %v2808 = vunpack.c.h.b16 %v454
    %v2809 = vunpack.c.l.b16 %v455
    %v2810 = vunpack.c.h.b16 %v455
    %v2811 = vunpack.c.l.b16 %v456
    %v2812 = vunpack.c.h.b16 %v456
    %v2813 = vunpack.c.l.b16 %v457
    %v2814 = vunpack.c.h.b16 %v457
    %v2815 = vunpack.c.l.b16 %v458
    %v2816 = vunpack.c.h.b16 %v458
    %v2817 = vunpack.c.l.b16 %v459
    %v2818 = vunpack.c.h.b16 %v459
    %v2819 = vunpack.c.l.b16 %v460
    %v2820 = vunpack.c.h.b16 %v460
    %v2821 = vunpack.c.l.b16 %v461
    %v2822 = vunpack.c.h.b16 %v461
    %v2823 = vunpack.c.l.b16 %v462
    %v2824 = vunpack.c.h.b16 %v462
    %v2825 = vunpack.c.l.b16 %v463
    %v2826 = vunpack.c.h.b16 %v463
    %v2827 = vunpack.c.l.b16 %v464
    %v2828 = vunpack.c.h.b16 %v464
    %v2829 = vunpack.c.l.b16 %v465
    %v2830 = vunpack.c.h.b16 %v465
    %v2831 = vunpack.c.l.b16 %v466
    %v2832 = vunpack.c.h.b16 %v466
    %v2833 = vunpack.c.l.b16 %v467
    %v2834 = vunpack.c.h.b16 %v467
    %v2835 = vunpack.c.l.b16 %v468
    %v2836 = vunpack.c.h.b16 %v468
    %v2837 = vunpack.c.l.b16 %v469
    %v2838 = vunpack.c.h.b16 %v469
    %v2839 = vunpack.c.l.b16 %v470
    %v2840 = vunpack.c.h.b16 %v470
    %v2841 = vunpack.c.l.b16 %v471
    %v2842 = vunpack.c.h.b16 %v471
    %v2843 = vunpack.c.l.b16 %v472
    %v2844 = vunpack.c.h.b16 %v472
    %v2845 = vunpack.c.l.b16 %v473
    %v2846 = vunpack.c.h.b16 %v473
    %v2847 = vunpack.c.l.b16 %v474
    %v2848 = vunpack.c.h.b16 %v474
    %v2849 = vunpack.c.l.b16 %v475
    %v2850 = vunpack.c.h.b16 %v475
    %v2851 = vunpack.c.l.b16 %v476
    %v2852 = vunpack.c.h.b16 %v476
    %v2853 = vunpack.c.l.b16 %v477
    %v2854 = vunpack.c.h.b16 %v477
    %v2855 = vunpack.c.l.b16 %v478
    %v2856 = vunpack.c.h.b16 %v478
    %v2857 = vunpack.c.l.b16 %v479
    %v2858 = vunpack.c.h.b16 %v479
    %v2859 = vunpack.c.l.b16 %v480
    %v2860 = vunpack.c.h.b16 %v480
    %v2861 = vunpack.c.l.b16 %v481
    %v2862 = vunpack.c.h.b16 %v481
    %v2863 = vunpack.c.l.b16 %v482
    %v2864 = vunpack.c.h.b16 %v482
    %v2865 = vunpack.c.l.b16 %v483
    %v2866 = vunpack.c.h.b16 %v483
    %v2867 = vunpack.c.l.b16 %v484
    %v2868 = vunpack.c.h.b16 %v484
    %v2869 = vunpack.c.l.b16 %v485
    %v2870 = vunpack.c.h.b16 %v485
    %v2871 = vunpack.c.l.b16 %v486
    %v2872 = vunpack.c.h.b16 %v486
    %v2873 = vunpack.c.l.b16 %v487
    %v2874 = vunpack.c.h.b16 %v487
    %v2875 = vunpack.c.l.b16 %v488
    %v2876 = vunpack.c.h.b16 %v488
    %v2877 = vunpack.c.l.b16 %v489
    %v2878 = vunpack.c.h.b16 %v489
    %v2879 = vunpack.c.l.b16 %v490
    %v2880 = vunpack.c.h.b16 %v490
    %v2881 = vunpack.c.l.b16 %v491
    %v2882 = vunpack.c.h.b16 %v491
    %v2883 = vunpack.c.l.b16 %v492
    %v2884 = vunpack.c.h.b16 %v492
    %v2885 = vunpack.c.l.b16 %v493
    %v2886 = vunpack.c.h.b16 %v493
    %v2887 = vunpack.c.l.b16 %v494
    %v2888 = vunpack.c.h.b16 %v494
    %v2889 = vunpack.c.l.b16 %v495
    %v2890 = vunpack.c.h.b16 %v495
    %v2891 = vunpack.c.l.b16 %v496
    %v2892 = vunpack.c.h.b16 %v496
    %v2893 = vunpack.c.l.b16 %v497
    %v2894 = vunpack.c.h.b16 %v497
    %v2895 = vunpack.c.l.b16 %v498
    %v2896 = vunpack.c.h.b16 %v498
    %v2897 = vunpack.c.l.b16 %v499
    %v2898 = vunpack.c.h.b16 %v499
    %v2899 = vunpack.c.l.b16 %v500
    %v2900 = vunpack.c.h.b16 %v500
    %v2901 = vunpack.c.l.b16 %v501
    %v2902 = vunpack.c.h.b16 %v501
    %v2903 = vunpack.c.l.b16 %v502
    %v2904 = vunpack.c.h.b16 %v502
    %v2905 = vunpack.c.l.b16 %v503
    %v2906 = vunpack.c.h.b16 %v503
    %v2907 = vunpack.c.l.b16 %v504
    %v2908 = vunpack.c.h.b16 %v504
    %v2909 = vunpack.c.l.b16 %v505
    %v2910 = vunpack.c.h.b16 %v505
    %v2911 = vunpack.c.l.b16 %v506
    %v2912 = vunpack.c.h.b16 %v506
    %v2913 = vunpack.c.l.b16 %v507
    %v2914 = vunpack.c.h.b16 %v507
    %v2915 = vunpack.c.l.b16 %v508
    %v2916 = vunpack.c.h.b16 %v508
    %v2917 = vunpack.c.l.b16 %v509
    %v2918 = vunpack.c.h.b16 %v509
    %v2919 = vunpack.c.l.b16 %v510
    %v2920 = vunpack.c.h.b16 %v510
    %v2921 = vunpack.c.l.b16 %v511
    %v2922 = vunpack.c.h.b16 %v511
    %v2923 = vunpack.c.l.b16 %v512
    %v2924 = vunpack.c.h.b16 %v512
    %v2925 = vunpack.c.l.b16 %v513
    %v2926 = vunpack.c.h.b16 %v513
    %v2927 = vunpack.c.l.b16 %v514
    %v2928 = vunpack.c.h.b16 %v514
    %v2929 = vunpack.c.l.b16 %v515
    %v2930 = vunpack.c.h.b16 %v515
    %v2931 = vunpack.c.l.b16 %v516
    %v2932 = vunpack.c.h.b16 %v516
    %v2933 = vunpack.c.l.b16 %v517
    %v2934 = vunpack.c.h.b16 %v517
    %v2935 = vunpack.c.l.b16 %v518
    %v2936 = vunpack.c.h.b16 %v518
    %v2937 = vunpack.c.l.b16 %v519
    %v2938 = vunpack.c.h.b16 %v519
    %v2939 = vunpack.c.l.b16 %v520
    %v2940 = vunpack.c.h.b16 %v520
    %v2941 = vunpack.c.l.b16 %v521
    %v2942 = vunpack.c.h.b16 %v521
    %v2943 = vunpack.c.l.b16 %v522
    %v2944 = vunpack.c.h.b16 %v522
    %v2945 = vunpack.c.l.b16 %v523
    %v2946 = vunpack.c.h.b16 %v523
    %v2947 = vunpack.c.l.b16 %v524
    %v2948 = vunpack.c.h.b16 %v524
    %v2949 = vunpack.c.l.b16 %v525
    %v2950 = vunpack.c.h.b16 %v525
    %v2951 = vunpack.c.l.b16 %v526
    %v2952 = vunpack.c.h.b16 %v526
    %v2953 = vunpack.c.l.b16 %v527
    %v2954 = vunpack.c.h.b16 %v527
    %v2955 = vunpack.c.l.b16 %v528
    %v2956 = vunpack.c.h.b16 %v528
    %v2957 = vunpack.c.l.b16 %v529
    %v2958 = vunpack.c.h.b16 %v529
    %v2959 = vunpack.c.l.b16 %v530
    %v2960 = vunpack.c.h.b16 %v530
    %v2961 = vunpack.c.l.b16 %v531
    %v2962 = vunpack.c.h.b16 %v531
    %v2963 = vunpack.c.l.b16 %v532
    %v2964 = vunpack.c.h.b16 %v532
    %v2965 = vunpack.c.l.b16 %v533
    %v2966 = vunpack.c.h.b16 %v533
    %v2967 = vunpack.c.l.b16 %v534
    %v2968 = vunpack.c.h.b16 %v534
    %v2969 = vunpack.c.l.b16 %v535
    %v2970 = vunpack.c.h.b16 %v535
    %v2971 = vunpack.c.l.b16 %v536
    %v2972 = vunpack.c.h.b16 %v536
    %v2973 = vunpack.c.l.b16 %v537
    %v2974 = vunpack.c.h.b16 %v537
    %v2975 = vunpack.c.l.b16 %v538
    %v2976 = vunpack.c.h.b16 %v538
    %v2977 = vunpack.c.l.b16 %v539
    %v2978 = vunpack.c.h.b16 %v539
    %v2979 = vunpack.c.l.b16 %v540
    %v2980 = vunpack.c.h.b16 %v540
    %v2981 = vunpack.c.l.b16 %v541
    %v2982 = vunpack.c.h.b16 %v541
    %v2983 = vunpack.c.l.b16 %v542
    %v2984 = vunpack.c.h.b16 %v542
    %v2985 = vunpack.c.l.b16 %v543
    %v2986 = vunpack.c.h.b16 %v543
    %v2987 = vunpack.c.l.b16 %v544
    %v2988 = vunpack.c.h.b16 %v544
    %v2989 = vunpack.c.l.b16 %v545
    %v2990 = vunpack.c.h.b16 %v545
    %v2991 = vunpack.c.l.b16 %v546
    %v2992 = vunpack.c.h.b16 %v546
    %v2993 = vunpack.c.l.b16 %v547
    %v2994 = vunpack.c.h.b16 %v547
    %v2995 = vunpack.c.l.b16 %v548
    %v2996 = vunpack.c.h.b16 %v548
    %v2997 = vunpack.c.l.b16 %v549
    %v2998 = vunpack.c.h.b16 %v549
    %v2999 = vunpack.c.l.b16 %v550
    %v3000 = vunpack.c.h.b16 %v550
    %v3001 = vunpack.c.l.b16 %v551
    %v3002 = vunpack.c.h.b16 %v551
    %v3003 = vunpack.c.l.b16 %v552
    %v3004 = vunpack.c.h.b16 %v552
    %v3005 = vunpack.c.l.b16 %v553
    %v3006 = vunpack.c.h.b16 %v553
    %v3007 = vunpack.c.l.b16 %v554
    %v3008 = vunpack.c.h.b16 %v554
    %v3009 = vunpack.c.l.b16 %v555
    %v3010 = vunpack.c.h.b16 %v555
    %v3011 = vunpack.c.l.b16 %v556
    %v3012 = vunpack.c.h.b16 %v556
    %v3013 = vunpack.c.l.b16 %v557
    %v3014 = vunpack.c.h.b16 %v557
    %v3015 = vunpack.c.l.b16 %v558
    %v3016 = vunpack.c.h.b16 %v558
    %v3017 = vunpack.c.l.b16 %v559
    %v3018 = vunpack.c.h.b16 %v559
    %v3019 = vunpack.c.l.b16 %v560
    %v3020 = vunpack.c.h.b16 %v560
    %v3021 = vunpack.c.l.b16 %v561
    %v3022 = vunpack.c.h.b16 %v561
    %v3023 = vunpack.c.l.b16 %v562
    %v3024 = vunpack.c.h.b16 %v562
    %v3025 = vunpack.c.l.b16 %v563
    %v3026 = vunpack.c.h.b16 %v563
    %v3027 = vunpack.c.l.b16 %v564
    %v3028 = vunpack.c.h.b16 %v564
    %v3029 = vunpack.c.l.b16 %v565
    %v3030 = vunpack.c.h.b16 %v565
    %v3031 = vunpack.c.l.b16 %v566
    %v3032 = vunpack.c.h.b16 %v566
    %v3033 = vunpack.c.l.b16 %v567
    %v3034 = vunpack.c.h.b16 %v567
    %v3035 = vunpack.c.l.b16 %v568
    %v3036 = vunpack.c.h.b16 %v568
    %v3037 = vunpack.c.l.b16 %v569
    %v3038 = vunpack.c.h.b16 %v569
    %v3039 = vunpack.c.l.b16 %v570
    %v3040 = vunpack.c.h.b16 %v570
    %v3041 = vunpack.c.l.b16 %v571
    %v3042 = vunpack.c.h.b16 %v571
    %v3043 = vunpack.c.l.b16 %v572
    %v3044 = vunpack.c.h.b16 %v572
    %v3045 = vunpack.c.l.b16 %v573
    %v3046 = vunpack.c.h.b16 %v573
    %v3047 = vunpack.c.l.b16 %v574
    %v3048 = vunpack.c.h.b16 %v574
    %v3049 = vunpack.c.l.b16 %v575
    %v3050 = vunpack.c.h.b16 %v575
    %v3051 = vunpack.c.l.b16 %v576
    %v3052 = vunpack.c.h.b16 %v576
    %v3053 = vunpack.c.l.b16 %v577
    %v3054 = vunpack.c.h.b16 %v577
    %v3055 = vunpack.c.l.b16 %v578
    %v3056 = vunpack.c.h.b16 %v578
    %v3057 = vunpack.c.l.b16 %v579
    %v3058 = vunpack.c.h.b16 %v579
    %v3059 = vunpack.c.l.b16 %v580
    %v3060 = vunpack.c.h.b16 %v580
    %v3061 = vunpack.c.l.b16 %v581
    %v3062 = vunpack.c.h.b16 %v581
    %v3063 = vunpack.c.l.b16 %v582
    %v3064 = vunpack.c.h.b16 %v582
    %v3065 = vunpack.c.l.b16 %v583
    %v3066 = vunpack.c.h.b16 %v583
    %v3067 = vunpack.c.l.b16 %v584
    %v3068 = vunpack.c.h.b16 %v584
    %v3069 = vunpack.c.l.b16 %v585
    %v3070 = vunpack.c.h.b16 %v585
    %v3071 = vunpack.c.l.b16 %v586
    %v3072 = vunpack.c.h.b16 %v586
    %v3073 = vunpack.c.l.b16 %v587
    %v3074 = vunpack.c.h.b16 %v587
    %v3075 = vunpack.c.l.b16 %v588
    %v3076 = vunpack.c.h.b16 %v588
    %v3077 = vunpack.c.l.b16 %v589
    %v3078 = vunpack.c.h.b16 %v589
    %v3079 = vunpack.c.l.b16 %v590
    %v3080 = vunpack.c.h.b16 %v590
    %v3081 = vunpack.c.l.b16 %v591
    %v3082 = vunpack.c.h.b16 %v591
    %v3083 = vunpack.c.l.b16 %v592
    %v3084 = vunpack.c.h.b16 %v592
    %v3085 = vunpack.c.l.b16 %v593
    %v3086 = vunpack.c.h.b16 %v593
    %v3087 = vunpack.c.l.b16 %v594
    %v3088 = vunpack.c.h.b16 %v594
    %v3089 = vunpack.c.l.b16 %v595
    %v3090 = vunpack.c.h.b16 %v595
    %v3091 = vunpack.c.l.b16 %v596
    %v3092 = vunpack.c.h.b16 %v596
    %v3093 = vunpack.c.l.b16 %v597
    %v3094 = vunpack.c.h.b16 %v597
    %v3095 = vunpack.c.l.b16 %v598
    %v3096 = vunpack.c.h.b16 %v598
    %v3097 = vunpack.c.l.b16 %v599
    %v3098 = vunpack.c.h.b16 %v599
    %v3099 = vunpack.c.l.b16 %v600
    %v3100 = vunpack.c.h.b16 %v600
    %v3101 = vunpack.c.l.b16 %v601
    %v3102 = vunpack.c.h.b16 %v601
    %v3103 = vunpack.c.l.b16 %v602
    %v3104 = vunpack.c.h.b16 %v602
    %v3105 = vunpack.c.l.b16 %v603
    %v3106 = vunpack.c.h.b16 %v603
    %v3107 = vunpack.c.l.b16 %v604
    %v3108 = vunpack.c.h.b16 %v604
    %v3109 = vunpack.c.l.b16 %v605
    %v3110 = vunpack.c.h.b16 %v605
    %v3111 = vunpack.c.l.b16 %v606
    %v3112 = vunpack.c.h.b16 %v606
    %v3113 = vunpack.c.l.b16 %v607
    %v3114 = vunpack.c.h.b16 %v607
    %v3115 = vunpack.c.l.b16 %v608
    %v3116 = vunpack.c.h.b16 %v608
    %v3117 = vunpack.c.l.b16 %v609
    %v3118 = vunpack.c.h.b16 %v609
    %v3119 = vunpack.c.l.b16 %v610
    %v3120 = vunpack.c.h.b16 %v610
    %v3121 = vunpack.c.l.b16 %v611
    %v3122 = vunpack.c.h.b16 %v611
    %v3123 = vunpack.c.l.b16 %v612
    %v3124 = vunpack.c.h.b16 %v612
    %v3125 = vunpack.c.l.b16 %v613
    %v3126 = vunpack.c.h.b16 %v613
    %v3127 = vunpack.c.l.b16 %v614
    %v3128 = vunpack.c.h.b16 %v614
    %v3129 = vunpack.c.l.b16 %v615
    %v3130 = vunpack.c.h.b16 %v615
    %v3131 = vunpack.c.l.b16 %v616
    %v3132 = vunpack.c.h.b16 %v616
    %v3133 = vunpack.c.l.b16 %v617
    %v3134 = vunpack.c.h.b16 %v617
    %v3135 = vunpack.c.l.b16 %v618
    %v3136 = vunpack.c.h.b16 %v618
    %v3137 = vunpack.c.l.b16 %v619
    %v3138 = vunpack.c.h.b16 %v619
    %v3139 = vunpack.c.l.b16 %v620
    %v3140 = vunpack.c.h.b16 %v620
    %v3141 = vunpack.c.l.b16 %v621
    %v3142 = vunpack.c.h.b16 %v621
    %v3143 = vunpack.c.l.b16 %v622
    %v3144 = vunpack.c.h.b16 %v622
    %v3145 = vunpack.c.l.b16 %v623
    %v3146 = vunpack.c.h.b16 %v623
    %v3147 = vunpack.c.l.b16 %v624
    %v3148 = vunpack.c.h.b16 %v624
    %v3149 = vunpack.c.l.b16 %v625
    %v3150 = vunpack.c.h.b16 %v625
    %v3151 = vunpack.c.l.b16 %v626
    %v3152 = vunpack.c.h.b16 %v626
    %v3153 = vunpack.c.l.b16 %v627
    %v3154 = vunpack.c.h.b16 %v627
    %v3155 = vunpack.c.l.b16 %v628
    %v3156 = vunpack.c.h.b16 %v628
    %v3157 = vunpack.c.l.b16 %v629
    %v3158 = vunpack.c.h.b16 %v629
    %v3159 = vunpack.c.l.b16 %v630
    %v3160 = vunpack.c.h.b16 %v630
    %v3161 = vunpack.c.l.b16 %v631
    %v3162 = vunpack.c.h.b16 %v631
    %v3163 = vunpack.c.l.b16 %v632
    %v3164 = vunpack.c.h.b16 %v632
    %v3165 = vunpack.c.l.b16 %v633
    %v3166 = vunpack.c.h.b16 %v633
    %v3167 = vunpack.c.l.b16 %v634
    %v3168 = vunpack.c.h.b16 %v634
    %v3169 = vunpack.c.l.b16 %v635
    %v3170 = vunpack.c.h.b16 %v635
    %v3171 = vunpack.c.l.b16 %v636
    %v3172 = vunpack.c.h.b16 %v636
    %v3173 = vunpack.c.l.b16 %v637
    %v3174 = vunpack.c.h.b16 %v637
    %v3175 = vunpack.c.l.b16 %v638
    %v3176 = vunpack.c.h.b16 %v638
    %v3177 = vunpack.c.l.b16 %v639
    %v3178 = vunpack.c.h.b16 %v639
    %v3179 = vunpack.c.l.b16 %v640
    %v3180 = vunpack.c.h.b16 %v640
    %v3181 = vunpack.c.l.b16 %v641
    %v3182 = vunpack.c.h.b16 %v641
    %v3183 = vunpack.c.l.b16 %v642
    %v3184 = vunpack.c.h.b16 %v642
    %v3185 = vunpack.c.l.b16 %v643
    %v3186 = vunpack.c.h.b16 %v643
    %v3187 = vunpack.c.l.b16 %v644
    %v3188 = vunpack.c.h.b16 %v644
    %v3189 = vunpack.c.l.b16 %v645
    %v3190 = vunpack.c.h.b16 %v645
    %v3191 = vunpack.c.l.b16 %v646
    %v3192 = vunpack.c.h.b16 %v646
    %v3193 = vunpack.c.l.b16 %v647
    %v3194 = vunpack.c.h.b16 %v647
    %v3195 = vunpack.c.l.b16 %v648
    %v3196 = vunpack.c.h.b16 %v648
    %v3197 = vunpack.c.l.b16 %v649
    %v3198 = vunpack.c.h.b16 %v649
    %v3199 = vunpack.c.l.b16 %v650
    %v3200 = vunpack.c.h.b16 %v650
    %v3201 = vunpack.c.l.b16 %v651
    %v3202 = vunpack.c.h.b16 %v651
    %v3203 = vunpack.c.l.b16 %v652
    %v3204 = vunpack.c.h.b16 %v652
    %v3205 = vunpack.c.l.b16 %v653
    %v3206 = vunpack.c.h.b16 %v653
    %v3207 = vunpack.c.l.b16 %v654
    %v3208 = vunpack.c.h.b16 %v654
    %v3209 = vunpack.c.l.b16 %v655
    %v3210 = vunpack.c.h.b16 %v655
    %v3211 = vunpack.c.l.b16 %v656
    %v3212 = vunpack.c.h.b16 %v656
    %v3213 = vunpack.c.l.b16 %v657
    %v3214 = vunpack.c.h.b16 %v657
    %v3215 = vunpack.c.l.b16 %v658
    %v3216 = vunpack.c.h.b16 %v658
    %v3217 = vunpack.c.l.b16 %v659
    %v3218 = vunpack.c.h.b16 %v659
    %v3219 = vunpack.c.l.b16 %v660
    %v3220 = vunpack.c.h.b16 %v660
    %v3221 = vunpack.c.l.b16 %v661
    %v3222 = vunpack.c.h.b16 %v661
    %v3223 = vunpack.c.l.b16 %v662
    %v3224 = vunpack.c.h.b16 %v662
    %v3225 = vunpack.c.l.b16 %v663
    %v3226 = vunpack.c.h.b16 %v663
    %v3227 = vunpack.c.l.b16 %v664
    %v3228 = vunpack.c.h.b16 %v664
    %v3229 = vunpack.c.l.b16 %v665
    %v3230 = vunpack.c.h.b16 %v665
    %v3231 = vunpack.c.l.b16 %v666
    %v3232 = vunpack.c.h.b16 %v666
    %v3233 = vunpack.c.l.b16 %v667
    %v3234 = vunpack.c.h.b16 %v667
    %v3235 = vunpack.c.l.b16 %v668
    %v3236 = vunpack.c.h.b16 %v668
    %v3237 = vunpack.c.l.b16 %v669
    %v3238 = vunpack.c.h.b16 %v669
    %v3239 = vunpack.c.l.b16 %v670
    %v3240 = vunpack.c.h.b16 %v670
    %v3241 = vunpack.c.l.b16 %v671
    %v3242 = vunpack.c.h.b16 %v671
    %v3243 = vunpack.c.l.b16 %v672
    %v3244 = vunpack.c.h.b16 %v672
    %v3245 = vunpack.c.l.b16 %v673
    %v3246 = vunpack.c.h.b16 %v673
    %v3247 = vunpack.c.l.b16 %v674
    %v3248 = vunpack.c.h.b16 %v674
    %v3249 = vunpack.c.l.b16 %v675
    %v3250 = vunpack.c.h.b16 %v675
    %v3251 = vunpack.c.l.b16 %v676
    %v3252 = vunpack.c.h.b16 %v676
    %v3253 = vunpack.c.l.b16 %v677
    %v3254 = vunpack.c.h.b16 %v677
    %v3255 = vunpack.c.l.b16 %v678
    %v3256 = vunpack.c.h.b16 %v678
    %v3257 = vunpack.c.l.b16 %v679
    %v3258 = vunpack.c.h.b16 %v679
    %v3259 = vunpack.c.l.b16 %v680
    %v3260 = vunpack.c.h.b16 %v680
    %v3261 = vunpack.c.l.b16 %v681
    %v3262 = vunpack.c.h.b16 %v681
    %v3263 = vunpack.c.l.b16 %v682
    %v3264 = vunpack.c.h.b16 %v682
    %v3265 = vunpack.c.l.b16 %v683
    %v3266 = vunpack.c.h.b16 %v683
    %v3267 = vunpack.c.l.b16 %v684
    %v3268 = vunpack.c.h.b16 %v684
    %v3269 = vunpack.c.l.b16 %v685
    %v3270 = vunpack.c.h.b16 %v685
    %v3271 = vunpack.c.l.b16 %v686
    %v3272 = vunpack.c.h.b16 %v686
    %v3273 = vunpack.c.l.b16 %v687
    %v3274 = vunpack.c.h.b16 %v687
    %v3275 = vunpack.c.l.b16 %v688
    %v3276 = vunpack.c.h.b16 %v688
    %v3277 = vunpack.c.l.b16 %v689
    %v3278 = vunpack.c.h.b16 %v689
    %v3279 = vunpack.c.l.b16 %v690
    %v3280 = vunpack.c.h.b16 %v690
    %v3281 = vunpack.c.l.b16 %v691
    %v3282 = vunpack.c.h.b16 %v691
    %v3283 = vunpack.c.l.b16 %v692
    %v3284 = vunpack.c.h.b16 %v692
    %v3285 = vunpack.c.l.b16 %v693
    %v3286 = vunpack.c.h.b16 %v693
    %v3287 = vunpack.c.l.b16 %v694
    %v3288 = vunpack.c.h.b16 %v694
    %v3289 = vunpack.c.l.b16 %v695
    %v3290 = vunpack.c.h.b16 %v695
    %v3291 = vunpack.c.l.b16 %v696
    %v3292 = vunpack.c.h.b16 %v696
    %v3293 = vunpack.c.l.b16 %v697
    %v3294 = vunpack.c.h.b16 %v697
    %v3295 = vunpack.c.l.b16 %v698
    %v3296 = vunpack.c.h.b16 %v698
    %v3297 = vunpack.c.l.b16 %v699
    %v3298 = vunpack.c.h.b16 %v699
    %v3299 = vunpack.c.l.b16 %v700
    %v3300 = vunpack.c.h.b16 %v700
    %v3301 = vunpack.c.l.b16 %v701
    %v3302 = vunpack.c.h.b16 %v701
    %v3303 = vunpack.c.l.b16 %v702
    %v3304 = vunpack.c.h.b16 %v702
    %v3305 = vunpack.c.l.b16 %v703
    %v3306 = vunpack.c.h.b16 %v703
    %v3307 = vunpack.c.l.b16 %v704
    %v3308 = vunpack.c.h.b16 %v704
    %v3309 = vunpack.c.l.b16 %v705
    %v3310 = vunpack.c.h.b16 %v705
    %v3311 = vunpack.c.l.b16 %v706
    %v3312 = vunpack.c.h.b16 %v706
    %v3313 = vunpack.c.l.b16 %v707
    %v3314 = vunpack.c.h.b16 %v707
    %v3315 = vunpack.c.l.b16 %v708
    %v3316 = vunpack.c.h.b16 %v708
    %v3317 = vunpack.c.l.b16 %v709
    %v3318 = vunpack.c.h.b16 %v709
    %v3319 = vunpack.c.l.b16 %v710
    %v3320 = vunpack.c.h.b16 %v710
    %v3321 = vunpack.c.l.b16 %v711
    %v3322 = vunpack.c.h.b16 %v711
    %v3323 = vunpack.c.l.b16 %v712
    %v3324 = vunpack.c.h.b16 %v712
    %v3325 = vunpack.c.l.b16 %v713
    %v3326 = vunpack.c.h.b16 %v713
    %v3327 = vunpack.c.l.b16 %v714
    %v3328 = vunpack.c.h.b16 %v714
    %v3329 = vunpack.c.l.b16 %v715
    %v3330 = vunpack.c.h.b16 %v715
    %v3331 = vunpack.c.l.b16 %v716
    %v3332 = vunpack.c.h.b16 %v716
    %v3333 = vunpack.c.l.b16 %v717
    %v3334 = vunpack.c.h.b16 %v717
    %v3335 = vunpack.c.l.b16 %v718
    %v3336 = vunpack.c.h.b16 %v718
    %v3337 = vunpack.c.l.b16 %v719
    %v3338 = vunpack.c.h.b16 %v719
    %v3339 = vunpack.c.l.b16 %v720
    %v3340 = vunpack.c.h.b16 %v720
    %v3341 = vunpack.c.l.b16 %v721
    %v3342 = vunpack.c.h.b16 %v721
    %v3343 = vunpack.c.l.b16 %v722
    %v3344 = vunpack.c.h.b16 %v722
    %v3345 = vunpack.c.l.b16 %v723
    %v3346 = vunpack.c.h.b16 %v723
    %v3347 = vunpack.c.l.b16 %v724
    %v3348 = vunpack.c.h.b16 %v724
    %v3349 = vunpack.c.l.b16 %v725
    %v3350 = vunpack.c.h.b16 %v725
    %v3351 = vunpack.c.l.b16 %v726
    %v3352 = vunpack.c.h.b16 %v726
    %v3353 = vunpack.c.l.b16 %v727
    %v3354 = vunpack.c.h.b16 %v727
    %v3355 = vunpack.c.l.b16 %v728
    %v3356 = vunpack.c.h.b16 %v728
    %v3357 = vunpack.c.l.b16 %v729
    %v3358 = vunpack.c.h.b16 %v729
    %v3359 = vunpack.c.l.b16 %v730
    %v3360 = vunpack.c.h.b16 %v730
    %v3361 = vunpack.c.l.b16 %v731
    %v3362 = vunpack.c.h.b16 %v731
    %v3363 = vunpack.c.l.b16 %v732
    %v3364 = vunpack.c.h.b16 %v732
    %v3365 = vunpack.c.l.b16 %v733
    %v3366 = vunpack.c.h.b16 %v733
    %v3367 = vunpack.c.l.b16 %v734
    %v3368 = vunpack.c.h.b16 %v734
    %v3369 = vunpack.c.l.b16 %v735
    %v3370 = vunpack.c.h.b16 %v735
    %v3371 = vunpack.c.l.b16 %v736
    %v3372 = vunpack.c.h.b16 %v736
    %v3373 = vunpack.c.l.b16 %v737
    %v3374 = vunpack.c.h.b16 %v737
    %v3375 = vunpack.c.l.b16 %v738
    %v3376 = vunpack.c.h.b16 %v738
    %v3377 = vunpack.c.l.b16 %v739
    %v3378 = vunpack.c.h.b16 %v739
    %v3379 = vunpack.c.l.b16 %v740
    %v3380 = vunpack.c.h.b16 %v740
    %v3381 = vunpack.c.l.b16 %v741
    %v3382 = vunpack.c.h.b16 %v741
    %v3383 = vunpack.c.l.b16 %v742
    %v3384 = vunpack.c.h.b16 %v742
    %v3385 = vunpack.c.l.b16 %v743
    %v3386 = vunpack.c.h.b16 %v743
    %v3387 = vunpack.c.l.b16 %v744
    %v3388 = vunpack.c.h.b16 %v744
    %v3389 = vunpack.c.l.b16 %v745
    %v3390 = vunpack.c.h.b16 %v745
    %v3391 = vunpack.c.l.b16 %v746
    %v3392 = vunpack.c.h.b16 %v746
    %v3393 = vunpack.c.l.b16 %v747
    %v3394 = vunpack.c.h.b16 %v747
    %v3395 = vunpack.c.l.b16 %v748
    %v3396 = vunpack.c.h.b16 %v748
    %v3397 = vunpack.c.l.b16 %v749
    %v3398 = vunpack.c.h.b16 %v749
    %v3399 = vunpack.c.l.b16 %v750
    %v3400 = vunpack.c.h.b16 %v750
    %v3401 = vunpack.c.l.b16 %v751
    %v3402 = vunpack.c.h.b16 %v751
    %v3403 = vunpack.c.l.b16 %v752
    %v3404 = vunpack.c.h.b16 %v752
    %v3405 = vunpack.c.l.b16 %v753
    %v3406 = vunpack.c.h.b16 %v753
    %v3407 = vunpack.c.l.b16 %v754
    %v3408 = vunpack.c.h.b16 %v754
    %v3409 = vunpack.c.l.b16 %v755
    %v3410 = vunpack.c.h.b16 %v755
    %v3411 = vunpack.c.l.b16 %v756
    %v3412 = vunpack.c.h.b16 %v756
    %v3413 = vunpack.c.l.b16 %v757
    %v3414 = vunpack.c.h.b16 %v757
    %v3415 = vunpack.c.l.b16 %v758
    %v3416 = vunpack.c.h.b16 %v758
    %v3417 = vunpack.c.l.b16 %v759
    %v3418 = vunpack.c.h.b16 %v759
    %v3419 = vunpack.c.l.b16 %v760
    %v3420 = vunpack.c.h.b16 %v760
    %v3421 = vunpack.c.l.b16 %v761
    %v3422 = vunpack.c.h.b16 %v761
    %v3423 = vunpack.c.l.b16 %v762
    %v3424 = vunpack.c.h.b16 %v762
    %v3425 = vunpack.c.l.b16 %v763
    %v3426 = vunpack.c.h.b16 %v763
    %v3427 = vunpack.c.l.b16 %v764
    %v3428 = vunpack.c.h.b16 %v764
    %v3429 = vunpack.c.l.b16 %v765
    %v3430 = vunpack.c.h.b16 %v765
    %v3431 = vunpack.c.l.b16 %v766
    %v3432 = vunpack.c.h.b16 %v766
    %v3433 = vunpack.c.l.b16 %v767
    %v3434 = vunpack.c.h.b16 %v767
    %v3435 = vunpack.c.l.b16 %v768
    %v3436 = vunpack.c.h.b16 %v768
    %v3437 = vunpack.c.l.b16 %v769
    %v3438 = vunpack.c.h.b16 %v769
    %v3439 = vunpack.c.l.b16 %v770
    %v3440 = vunpack.c.h.b16 %v770
    %v3441 = vunpack.c.l.b16 %v771
    %v3442 = vunpack.c.h.b16 %v771
    %v3443 = vunpack.c.l.b16 %v772
    %v3444 = vunpack.c.h.b16 %v772
    %v3445 = vunpack.c.l.b16 %v773
    %v3446 = vunpack.c.h.b16 %v773
    %v3447 = vunpack.c.l.b16 %v774
    %v3448 = vunpack.c.h.b16 %v774
    %v3449 = vunpack.c.l.b16 %v775
    %v3450 = vunpack.c.h.b16 %v775
    %v3451 = vunpack.c.l.b16 %v776
    %v3452 = vunpack.c.h.b16 %v776
    %v3453 = vunpack.c.l.b16 %v777
    %v3454 = vunpack.c.h.b16 %v777
    %v3455 = vunpack.c.l.b16 %v778
    %v3456 = vunpack.c.h.b16 %v778
    %v3457 = vunpack.c.l.b16 %v779
    %v3458 = vunpack.c.h.b16 %v779
    %v3459 = vunpack.c.l.b16 %v780
    %v3460 = vunpack.c.h.b16 %v780
    %v3461 = vunpack.c.l.b16 %v781
    %v3462 = vunpack.c.h.b16 %v781
    %v3463 = vunpack.c.l.b16 %v782
    %v3464 = vunpack.c.h.b16 %v782
    %v3465 = vunpack.c.l.b16 %v783
    %v3466 = vunpack.c.h.b16 %v783
    %v3467 = vunpack.c.l.b16 %v784
    %v3468 = vunpack.c.h.b16 %v784
    %v3469 = vunpack.c.l.b16 %v785
    %v3470 = vunpack.c.h.b16 %v785
    %v3471 = vunpack.c.l.b16 %v786
    %v3472 = vunpack.c.h.b16 %v786
    %v3473 = vunpack.c.l.b16 %v787
    %v3474 = vunpack.c.h.b16 %v787
    %v3475 = vunpack.c.l.b16 %v788
    %v3476 = vunpack.c.h.b16 %v788
    %v3477 = vunpack.c.l.b16 %v789
    %v3478 = vunpack.c.h.b16 %v789
    %v3479 = vunpack.c.l.b16 %v790
    %v3480 = vunpack.c.h.b16 %v790
    %v3481 = vunpack.c.l.b16 %v791
    %v3482 = vunpack.c.h.b16 %v791
    %v3483 = vunpack.c.l.b16 %v792
    %v3484 = vunpack.c.h.b16 %v792
    %v3485 = vunpack.c.l.b16 %v793
    %v3486 = vunpack.c.h.b16 %v793
    %v3487 = vunpack.c.l.b16 %v794
    %v3488 = vunpack.c.h.b16 %v794
    %v3489 = vunpack.c.l.b16 %v795
    %v3490 = vunpack.c.h.b16 %v795
    %v3491 = vunpack.c.l.b16 %v796
    %v3492 = vunpack.c.h.b16 %v796
    %v3493 = vunpack.c.l.b16 %v797
    %v3494 = vunpack.c.h.b16 %v797
    %v3495 = vunpack.c.l.b16 %v798
    %v3496 = vunpack.c.h.b16 %v798
    %v3497 = vunpack.c.l.b16 %v799
    %v3498 = vunpack.c.h.b16 %v799
    %v3499 = vunpack.c.l.b16 %v800
    %v3500 = vunpack.c.h.b16 %v800
    %v3501 = vunpack.c.l.b16 %v801
    %v3502 = vunpack.c.h.b16 %v801
    %v3503 = vunpack.c.l.b16 %v802
    %v3504 = vunpack.c.h.b16 %v802
    %v3505 = vunpack.c.l.b16 %v803
    %v3506 = vunpack.c.h.b16 %v803
    %v3507 = vunpack.c.l.b16 %v804
    %v3508 = vunpack.c.h.b16 %v804
    %v3509 = vunpack.c.l.b16 %v805
    %v3510 = vunpack.c.h.b16 %v805
    %v3511 = vunpack.c.l.b16 %v806
    %v3512 = vunpack.c.h.b16 %v806
    %v3513 = vunpack.c.l.b16 %v807
    %v3514 = vunpack.c.h.b16 %v807
    %v3515 = vunpack.c.l.b16 %v808
    %v3516 = vunpack.c.h.b16 %v808
    %v3517 = vunpack.c.l.b16 %v809
    %v3518 = vunpack.c.h.b16 %v809
    %v3519 = vunpack.c.l.b16 %v810
    %v3520 = vunpack.c.h.b16 %v810
    %v3521 = vunpack.c.l.b16 %v811
    %v3522 = vunpack.c.h.b16 %v811
    %v3523 = vunpack.c.l.b16 %v812
    %v3524 = vunpack.c.h.b16 %v812
    %v3525 = vunpack.c.l.b16 %v813
    %v3526 = vunpack.c.h.b16 %v813
    %v3527 = vunpack.c.l.b16 %v814
    %v3528 = vunpack.c.h.b16 %v814
    %v3529 = vunpack.c.l.b16 %v815
    %v3530 = vunpack.c.h.b16 %v815
    %v3531 = vunpack.c.l.b16 %v816
    %v3532 = vunpack.c.h.b16 %v816
    %v3533 = vunpack.c.l.b16 %v817
    %v3534 = vunpack.c.h.b16 %v817
    %v3535 = vunpack.c.l.b16 %v818
    %v3536 = vunpack.c.h.b16 %v818
    %v3537 = vunpack.c.l.b16 %v819
    %v3538 = vunpack.c.h.b16 %v819
    %v3539 = vunpack.c.l.b16 %v820
    %v3540 = vunpack.c.h.b16 %v820
    %v3541 = vunpack.c.l.b16 %v821
    %v3542 = vunpack.c.h.b16 %v821
    %v3543 = vunpack.c.l.b16 %v822
    %v3544 = vunpack.c.h.b16 %v822
    %v3545 = vunpack.c.l.b16 %v823
    %v3546 = vunpack.c.h.b16 %v823
    %v3547 = vunpack.c.l.b16 %v824
    %v3548 = vunpack.c.h.b16 %v824
    %v3549 = vunpack.c.l.b16 %v825
    %v3550 = vunpack.c.h.b16 %v825
    %v3551 = vunpack.c.l.b16 %v826
    %v3552 = vunpack.c.h.b16 %v826
    %v3553 = vunpack.c.l.b16 %v827
    %v3554 = vunpack.c.h.b16 %v827
    %v3555 = vunpack.c.l.b16 %v828
    %v3556 = vunpack.c.h.b16 %v828
    %v3557 = vunpack.c.l.b16 %v829
    %v3558 = vunpack.c.h.b16 %v829
    %v3559 = vunpack.c.l.b16 %v830
    %v3560 = vunpack.c.h.b16 %v830
    %v3561 = vunpack.c.l.b16 %v831
    %v3562 = vunpack.c.h.b16 %v831
    %v3563 = vunpack.c.l.b16 %v832
    %v3564 = vunpack.c.h.b16 %v832
    %v3565 = vunpack.c.l.b16 %v833
    %v3566 = vunpack.c.h.b16 %v833
    %v3567 = vunpack.c.l.b16 %v834
    %v3568 = vunpack.c.h.b16 %v834
    %v3569 = vunpack.c.l.b16 %v835
    %v3570 = vunpack.c.h.b16 %v835
    %v3571 = vunpack.c.l.b16 %v836
    %v3572 = vunpack.c.h.b16 %v836
    %v3573 = vunpack.c.l.b16 %v837
    %v3574 = vunpack.c.h.b16 %v837
    %v3575 = vunpack.c.l.b16 %v838
    %v3576 = vunpack.c.h.b16 %v838
    %v3577 = vunpack.c.l.b16 %v839
    %v3578 = vunpack.c.h.b16 %v839
    %v3579 = vunpack.c.l.b16 %v840
    %v3580 = vunpack.c.h.b16 %v840
    %v3581 = vunpack.c.l.b16 %v841
    %v3582 = vunpack.c.h.b16 %v841
    %v3583 = vunpack.c.l.b16 %v842
    %v3584 = vunpack.c.h.b16 %v842
    %v3585 = vunpack.c.l.b16 %v843
    %v3586 = vunpack.c.h.b16 %v843
    %v3587 = vunpack.c.l.b16 %v844
    %v3588 = vunpack.c.h.b16 %v844
    %v3589 = vunpack.c.l.b16 %v845
    %v3590 = vunpack.c.h.b16 %v845
    %v3591 = vunpack.c.l.b16 %v846
    %v3592 = vunpack.c.h.b16 %v846
    %v3593 = vunpack.c.l.b16 %v847
    %v3594 = vunpack.c.h.b16 %v847
    %v3595 = vunpack.c.l.b16 %v848
    %v3596 = vunpack.c.h.b16 %v848
    %v3597 = vunpack.c.l.b16 %v849
    %v3598 = vunpack.c.h.b16 %v849
    %v3599 = vunpack.c.l.b16 %v850
    %v3600 = vunpack.c.h.b16 %v850
    %v3601 = vunpack.c.l.b16 %v851
    %v3602 = vunpack.c.h.b16 %v851
    %v3603 = vunpack.c.l.b16 %v852
    %v3604 = vunpack.c.h.b16 %v852
    %v3605 = vunpack.c.l.b16 %v853
    %v3606 = vunpack.c.h.b16 %v853
    %v3607 = vunpack.c.l.b16 %v854
    %v3608 = vunpack.c.h.b16 %v854
    %v3609 = vunpack.c.l.b16 %v855
    %v3610 = vunpack.c.h.b16 %v855
    %v3611 = vunpack.c.l.b16 %v856
    %v3612 = vunpack.c.h.b16 %v856
    %v3613 = vunpack.c.l.b16 %v857
    %v3614 = vunpack.c.h.b16 %v857
    %v3615 = vunpack.c.l.b16 %v858
    %v3616 = vunpack.c.h.b16 %v858
    %v3617 = vunpack.c.l.b16 %v859
    %v3618 = vunpack.c.h.b16 %v859
    %v3619 = vunpack.c.l.b16 %v860
    %v3620 = vunpack.c.h.b16 %v860
    %v3621 = vunpack.c.l.b16 %v861
    %v3622 = vunpack.c.h.b16 %v861
    %v3623 = vunpack.c.l.b16 %v862
    %v3624 = vunpack.c.h.b16 %v862
    %v3625 = vunpack.c.l.b16 %v863
    %v3626 = vunpack.c.h.b16 %v863
    %v3627 = vunpack.c.l.b16 %v864
    %v3628 = vunpack.c.h.b16 %v864
    %v3629 = vunpack.c.l.b16 %v865
    %v3630 = vunpack.c.h.b16 %v865
    %v3631 = vunpack.c.l.b16 %v866
    %v3632 = vunpack.c.h.b16 %v866
    %v3633 = vunpack.c.l.b16 %v867
    %v3634 = vunpack.c.h.b16 %v867
    %v3635 = vunpack.c.l.b16 %v868
    %v3636 = vunpack.c.h.b16 %v868
    %v3637 = vunpack.c.l.b16 %v869
    %v3638 = vunpack.c.h.b16 %v869
    %v3639 = vunpack.c.l.b16 %v870
    %v3640 = vunpack.c.h.b16 %v870
    %v3641 = vunpack.c.l.b16 %v871
    %v3642 = vunpack.c.h.b16 %v871
    %v3643 = vunpack.c.l.b16 %v872
    %v3644 = vunpack.c.h.b16 %v872
    %v3645 = vunpack.c.l.b16 %v873
    %v3646 = vunpack.c.h.b16 %v873
    %v3647 = vunpack.c.l.b16 %v874
    %v3648 = vunpack.c.h.b16 %v874
    %v3649 = vunpack.c.l.b16 %v875
    %v3650 = vunpack.c.h.b16 %v875
    %v3651 = vunpack.c.l.b16 %v876
    %v3652 = vunpack.c.h.b16 %v876
    %v3653 = vunpack.c.l.b16 %v877
    %v3654 = vunpack.c.h.b16 %v877
    %v3655 = vunpack.c.l.b16 %v878
    %v3656 = vunpack.c.h.b16 %v878
    %v3657 = vunpack.c.l.b16 %v879
    %v3658 = vunpack.c.h.b16 %v879
    %v3659 = vunpack.c.l.b16 %v880
    %v3660 = vunpack.c.h.b16 %v880
    %v3661 = vunpack.c.l.b16 %v881
    %v3662 = vunpack.c.h.b16 %v881
    %v3663 = vunpack.c.l.b16 %v882
    %v3664 = vunpack.c.h.b16 %v882
    %v3665 = vunpack.c.l.b16 %v883
    %v3666 = vunpack.c.h.b16 %v883
    %v3667 = vunpack.c.l.b16 %v884
    %v3668 = vunpack.c.h.b16 %v884
    %v3669 = vunpack.c.l.b16 %v885
    %v3670 = vunpack.c.h.b16 %v885
    %v3671 = vunpack.c.l.b16 %v886
    %v3672 = vunpack.c.h.b16 %v886
    %v3673 = vunpack.c.l.b16 %v887
    %v3674 = vunpack.c.h.b16 %v887
    %v3675 = vunpack.c.l.b16 %v888
    %v3676 = vunpack.c.h.b16 %v888
    %v3677 = vunpack.c.l.b16 %v889
    %v3678 = vunpack.c.h.b16 %v889
    %v3679 = vunpack.c.l.b16 %v890
    %v3680 = vunpack.c.h.b16 %v890
    %v3681 = vunpack.c.l.b16 %v891
    %v3682 = vunpack.c.h.b16 %v891
    %v3683 = vunpack.c.l.b16 %v892
    %v3684 = vunpack.c.h.b16 %v892
    %v3685 = vunpack.c.l.b16 %v893
    %v3686 = vunpack.c.h.b16 %v893
    %v3687 = vunpack.c.l.b16 %v894
    %v3688 = vunpack.c.h.b16 %v894
    %v3689 = vunpack.c.l.b16 %v895
    %v3690 = vunpack.c.h.b16 %v895
    %v3691 = vunpack.c.l.b16 %v896
    %v3692 = vunpack.c.h.b16 %v896
    %v3693 = vunpack.c.l.b16 %v897
    %v3694 = vunpack.c.h.b16 %v897
    %v3695 = vunpack.c.l.b16 %v898
    %v3696 = vunpack.c.h.b16 %v898
    %v3697 = vunpack.c.l.b16 %v899
    %v3698 = vunpack.c.h.b16 %v899
    %v3699 = vunpack.c.l.b16 %v900
    %v3700 = vunpack.c.h.b16 %v900
    %v3701 = vunpack.c.l.b16 %v901
    %v3702 = vunpack.c.h.b16 %v901
    %v3703 = vunpack.c.l.b16 %v902
    %v3704 = vunpack.c.h.b16 %v902
    %v3705 = vunpack.c.l.b16 %v903
    %v3706 = vunpack.c.h.b16 %v903
    %v3707 = vunpack.c.l.b16 %v904
    %v3708 = vunpack.c.h.b16 %v904
    %v3709 = vunpack.c.l.b16 %v905
    %v3710 = vunpack.c.h.b16 %v905
    %v3711 = vunpack.c.l.b16 %v906
    %v3712 = vunpack.c.h.b16 %v906
    %v3713 = vunpack.c.l.b16 %v907
    %v3714 = vunpack.c.h.b16 %v907
    %v3715 = vunpack.c.l.b16 %v908
    %v3716 = vunpack.c.h.b16 %v908
    %v3717 = vunpack.c.l.b16 %v909
    %v3718 = vunpack.c.h.b16 %v909
    %v3719 = vunpack.c.l.b16 %v910
    %v3720 = vunpack.c.h.b16 %v910
    %v3721 = vunpack.c.l.b16 %v911
    %v3722 = vunpack.c.h.b16 %v911
    %v3723 = vunpack.c.l.b16 %v912
    %v3724 = vunpack.c.h.b16 %v912
    %v3725 = vunpack.c.l.b16 %v913
    %v3726 = vunpack.c.h.b16 %v913
    %v3727 = vunpack.c.l.b16 %v914
    %v3728 = vunpack.c.h.b16 %v914
    %v3729 = vunpack.c.l.b16 %v915
    %v3730 = vunpack.c.h.b16 %v915
    %v3731 = vunpack.c.l.b16 %v916
    %v3732 = vunpack.c.h.b16 %v916
    %v3733 = vunpack.c.l.b16 %v917
    %v3734 = vunpack.c.h.b16 %v917
    %v3735 = vunpack.c.l.b16 %v918
    %v3736 = vunpack.c.h.b16 %v918
    %v3737 = vunpack.c.l.b16 %v919
    %v3738 = vunpack.c.h.b16 %v919
    %v3739 = vunpack.c.l.b16 %v920
    %v3740 = vunpack.c.h.b16 %v920
    %v3741 = vunpack.c.l.b16 %v921
    %v3742 = vunpack.c.h.b16 %v921
    %v3743 = vunpack.c.l.b16 %v922
    %v3744 = vunpack.c.h.b16 %v922
    %v3745 = vunpack.c.l.b16 %v923
    %v3746 = vunpack.c.h.b16 %v923
    %v3747 = vunpack.c.l.b16 %v924
    %v3748 = vunpack.c.h.b16 %v924
    %v3749 = vunpack.c.l.b16 %v925
    %v3750 = vunpack.c.h.b16 %v925
    %v3751 = vunpack.c.l.b16 %v926
    %v3752 = vunpack.c.h.b16 %v926
    %v3753 = vunpack.c.l.b16 %v927
    %v3754 = vunpack.c.h.b16 %v927
    %v3755 = vunpack.c.l.b16 %v928
    %v3756 = vunpack.c.h.b16 %v928
    %v3757 = vunpack.c.l.b16 %v929
    %v3758 = vunpack.c.h.b16 %v929
    %v3759 = vunpack.c.l.b16 %v930
    %v3760 = vunpack.c.h.b16 %v930
    %v3761 = vunpack.c.l.b16 %v931
    %v3762 = vunpack.c.h.b16 %v931
    %v3763 = vunpack.c.l.b16 %v932
    %v3764 = vunpack.c.h.b16 %v932
    %v3765 = vunpack.c.l.b16 %v933
    %v3766 = vunpack.c.h.b16 %v933
    %v3767 = vunpack.c.l.b16 %v934
    %v3768 = vunpack.c.h.b16 %v934
    %v3769 = vunpack.c.l.b16 %v935
    %v3770 = vunpack.c.h.b16 %v935
    %v3771 = vunpack.c.l.b16 %v936
    %v3772 = vunpack.c.h.b16 %v936
    %v3773 = vunpack.c.l.b16 %v937
    %v3774 = vunpack.c.h.b16 %v937
    %v3775 = vunpack.c.l.b16 %v938
    %v3776 = vunpack.c.h.b16 %v938
    %v3777 = vunpack.c.l.b16 %v939
    %v3778 = vunpack.c.h.b16 %v939
    %v3779 = vunpack.c.l.b16 %v940
    %v3780 = vunpack.c.h.b16 %v940
    %v3781 = vunpack.c.l.b16 %v941
    %v3782 = vunpack.c.h.b16 %v941
    %v3783 = vunpack.c.l.b16 %v942
    %v3784 = vunpack.c.h.b16 %v942
    %v3785 = vunpack.c.l.b16 %v943
    %v3786 = vunpack.c.h.b16 %v943
    %v3787 = vunpack.c.l.b16 %v944
    %v3788 = vunpack.c.h.b16 %v944
    %v3789 = vunpack.c.l.b16 %v945
    %v3790 = vunpack.c.h.b16 %v945
    %v3791 = vunpack.c.l.b16 %v946
    %v3792 = vunpack.c.h.b16 %v946
    %v3793 = vunpack.c.l.b16 %v947
    %v3794 = vunpack.c.h.b16 %v947
    %v3795 = vunpack.c.l.b16 %v948
    %v3796 = vunpack.c.h.b16 %v948
    %v3797 = vunpack.c.l.b16 %v949
    %v3798 = vunpack.c.h.b16 %v949
    %v3799 = vunpack.c.l.b16 %v950
    %v3800 = vunpack.c.h.b16 %v950
    %v3801 = vunpack.c.l.b16 %v951
    %v3802 = vunpack.c.h.b16 %v951
    %v3803 = vunpack.c.l.b16 %v952
    %v3804 = vunpack.c.h.b16 %v952
    %v3805 = vunpack.c.l.b16 %v953
    %v3806 = vunpack.c.h.b16 %v953
    %v3807 = vunpack.c.l.b16 %v954
    %v3808 = vunpack.c.h.b16 %v954
    %v3809 = vunpack.c.l.b16 %v955
    %v3810 = vunpack.c.h.b16 %v955
    %v3811 = vunpack.c.l.b16 %v956
    %v3812 = vunpack.c.h.b16 %v956
    %v3813 = vunpack.c.l.b16 %v957
    %v3814 = vunpack.c.h.b16 %v957
    %v3815 = vunpack.c.l.b16 %v958
    %v3816 = vunpack.c.h.b16 %v958
    %v3817 = vunpack.c.l.b16 %v959
    %v3818 = vunpack.c.h.b16 %v959
    %v3819 = vunpack.c.l.b16 %v960
    %v3820 = vunpack.c.h.b16 %v960
    %v3821 = vunpack.c.l.b16 %v961
    %v3822 = vunpack.c.h.b16 %v961
    %v3823 = vunpack.c.l.b16 %v962
    %v3824 = vunpack.c.h.b16 %v962
    %v3825 = vunpack.c.l.b16 %v963
    %v3826 = vunpack.c.h.b16 %v963
    %v3827 = vunpack.c.l.b16 %v964
    %v3828 = vunpack.c.h.b16 %v964
    %v3829 = vunpack.c.l.b16 %v965
    %v3830 = vunpack.c.h.b16 %v965
    %v3831 = vunpack.c.l.b16 %v966
    %v3832 = vunpack.c.h.b16 %v966
    %v3833 = vunpack.c.l.b16 %v967
    %v3834 = vunpack.c.h.b16 %v967
    %v3835 = vunpack.c.l.b16 %v968
    %v3836 = vunpack.c.h.b16 %v968
    %v3837 = vunpack.c.l.b16 %v969
    %v3838 = vunpack.c.h.b16 %v969
    %v3839 = vunpack.c.l.b16 %v970
    %v3840 = vunpack.c.h.b16 %v970
    %v3841 = vunpack.c.l.b16 %v971
    %v3842 = vunpack.c.h.b16 %v971
    %v3843 = vunpack.c.l.b16 %v972
    %v3844 = vunpack.c.h.b16 %v972
    %v3845 = vunpack.c.l.b16 %v973
    %v3846 = vunpack.c.h.b16 %v973
    %v3847 = vunpack.c.l.b16 %v974
    %v3848 = vunpack.c.h.b16 %v974
    %v3849 = vunpack.c.l.b16 %v975
    %v3850 = vunpack.c.h.b16 %v975
    %v3851 = vunpack.c.l.b16 %v976
    %v3852 = vunpack.c.h.b16 %v976
    %v3853 = vunpack.c.l.b16 %v977
    %v3854 = vunpack.c.h.b16 %v977
    %v3855 = vunpack.c.l.b16 %v978
    %v3856 = vunpack.c.h.b16 %v978
    %v3857 = vunpack.c.l.b16 %v979
    %v3858 = vunpack.c.h.b16 %v979
    %v3859 = vunpack.c.l.b16 %v980
    %v3860 = vunpack.c.h.b16 %v980
    %v3861 = vunpack.c.l.b16 %v981
    %v3862 = vunpack.c.h.b16 %v981
    %v3863 = vunpack.c.l.b16 %v982
    %v3864 = vunpack.c.h.b16 %v982
    %v3865 = vunpack.c.l.b16 %v983
    %v3866 = vunpack.c.h.b16 %v983
    %v3867 = vunpack.c.l.b16 %v984
    %v3868 = vunpack.c.h.b16 %v984
    %v3869 = vunpack.c.l.b16 %v985
    %v3870 = vunpack.c.h.b16 %v985
    %v3871 = vunpack.c.l.b16 %v986
    %v3872 = vunpack.c.h.b16 %v986
    %v3873 = vunpack.c.l.b16 %v987
    %v3874 = vunpack.c.h.b16 %v987
    %v3875 = vunpack.c.l.b16 %v988
    %v3876 = vunpack.c.h.b16 %v988
    %v3877 = vunpack.c.l.b16 %v989
    %v3878 = vunpack.c.h.b16 %v989
    %v3879 = vunpack.c.l.b16 %v990
    %v3880 = vunpack.c.h.b16 %v990
    %v3881 = vunpack.c.l.b16 %v991
    %v3882 = vunpack.c.h.b16 %v991
    %v3883 = vunpack.c.l.b16 %v992
    %v3884 = vunpack.c.h.b16 %v992
    %v3885 = vunpack.c.l.b16 %v993
    %v3886 = vunpack.c.h.b16 %v993
    %v3887 = vunpack.c.l.b16 %v994
    %v3888 = vunpack.c.h.b16 %v994
    %v3889 = vunpack.c.l.b16 %v995
    %v3890 = vunpack.c.h.b16 %v995
    %v3891 = vunpack.c.l.b16 %v996
    %v3892 = vunpack.c.h.b16 %v996
    %v3893 = vunpack.c.l.b16 %v997
    %v3894 = vunpack.c.h.b16 %v997
    %v3895 = vunpack.c.l.b16 %v998
    %v3896 = vunpack.c.h.b16 %v998
    %v3897 = vunpack.c.l.b16 %v999
    %v3898 = vunpack.c.h.b16 %v999
    %v3899 = vunpack.c.l.b16 %v1000
    %v3900 = vunpack.c.h.b16 %v1000
    %v3901 = vunpack.c.l.b16 %v1001
    %v3902 = vunpack.c.h.b16 %v1001
    %v3903 = vunpack.c.l.b16 %v1002
    %v3904 = vunpack.c.h.b16 %v1002
    %v3905 = vunpack.c.l.b16 %v1003
    %v3906 = vunpack.c.h.b16 %v1003
    %v3907 = vunpack.c.l.b16 %v1004
    %v3908 = vunpack.c.h.b16 %v1004
    %v3909 = vunpack.c.l.b16 %v1005
    %v3910 = vunpack.c.h.b16 %v1005
    %v3911 = vunpack.c.l.b16 %v1006
    %v3912 = vunpack.c.h.b16 %v1006
    %v3913 = vunpack.c.l.b16 %v1007
    %v3914 = vunpack.c.h.b16 %v1007
    %v3915 = vunpack.c.l.b16 %v1008
    %v3916 = vunpack.c.h.b16 %v1008
    %v3917 = vunpack.c.l.b16 %v1009
    %v3918 = vunpack.c.h.b16 %v1009
    %v3919 = vunpack.c.l.b16 %v1010
    %v3920 = vunpack.c.h.b16 %v1010
    %v3921 = vunpack.c.l.b16 %v1011
    %v3922 = vunpack.c.h.b16 %v1011
    %v3923 = vunpack.c.l.b16 %v1012
    %v3924 = vunpack.c.h.b16 %v1012
    %v3925 = vunpack.c.l.b16 %v1013
    %v3926 = vunpack.c.h.b16 %v1013
    %v3927 = vunpack.c.l.b16 %v1014
    %v3928 = vunpack.c.h.b16 %v1014
    %v3929 = vunpack.c.l.b16 %v1015
    %v3930 = vunpack.c.h.b16 %v1015
    %v3931 = vunpack.c.l.b16 %v1016
    %v3932 = vunpack.c.h.b16 %v1016
    %v3933 = vunpack.c.l.b16 %v1017
    %v3934 = vunpack.c.h.b16 %v1017
    %v3935 = vunpack.c.l.b16 %v1018
    %v3936 = vunpack.c.h.b16 %v1018
    %v3937 = vunpack.c.l.b16 %v1019
    %v3938 = vunpack.c.h.b16 %v1019
    %v3939 = vunpack.c.l.b16 %v1020
    %v3940 = vunpack.c.h.b16 %v1020
    %v3941 = vunpack.c.l.b16 %v1021
    %v3942 = vunpack.c.h.b16 %v1021
    %v3943 = vunpack.c.l.b16 %v1022
    %v3944 = vunpack.c.h.b16 %v1022
    %v3945 = vunpack.c.l.b16 %v1023
    %v3946 = vunpack.c.h.b16 %v1023
    %v3947 = vunpack.c.l.b16 %v1024
    %v3948 = vunpack.c.h.b16 %v1024
    %v3949 = vunpack.c.l.b16 %v1025
    %v3950 = vunpack.c.h.b16 %v1025
    %v3951 = vunpack.c.l.b16 %v1026
    %v3952 = vunpack.c.h.b16 %v1026
    %v3953 = vunpack.c.l.b16 %v1027
    %v3954 = vunpack.c.h.b16 %v1027
    %v3955 = vunpack.c.l.b16 %v1028
    %v3956 = vunpack.c.h.b16 %v1028
    %v3957 = vunpack.c.l.b16 %v1029
    %v3958 = vunpack.c.h.b16 %v1029
    %v3959 = vunpack.c.l.b16 %v1030
    %v3960 = vunpack.c.h.b16 %v1030
    %v3961 = vunpack.c.l.b16 %v1031
    %v3962 = vunpack.c.h.b16 %v1031
    %v3963 = vunpack.c.l.b16 %v1032
    %v3964 = vunpack.c.h.b16 %v1032
    %v3965 = vunpack.c.l.b16 %v1033
    %v3966 = vunpack.c.h.b16 %v1033
    %v3967 = vunpack.c.l.b16 %v1034
    %v3968 = vunpack.c.h.b16 %v1034
    %v3969 = vunpack.c.l.b16 %v1035
    %v3970 = vunpack.c.h.b16 %v1035
    %v3971 = vunpack.c.l.b16 %v1036
    %v3972 = vunpack.c.h.b16 %v1036
    %v3973 = vunpack.c.l.b16 %v1037
    %v3974 = vunpack.c.h.b16 %v1037
    %v3975 = vunpack.c.l.b16 %v1038
    %v3976 = vunpack.c.h.b16 %v1038
    %v3977 = vunpack.c.l.b16 %v1039
    %v3978 = vunpack.c.h.b16 %v1039
    %v3979 = vunpack.c.l.b16 %v1040
    %v3980 = vunpack.c.h.b16 %v1040
    %v3981 = vunpack.c.l.b16 %v1041
    %v3982 = vunpack.c.h.b16 %v1041
    %v3983 = vunpack.c.l.b16 %v1042
    %v3984 = vunpack.c.h.b16 %v1042
    %v3985 = vunpack.c.l.b16 %v1043
    %v3986 = vunpack.c.h.b16 %v1043
    %v3987 = vunpack.c.l.b16 %v1044
    %v3988 = vunpack.c.h.b16 %v1044
    %v3989 = vunpack.c.l.b16 %v1045
    %v3990 = vunpack.c.h.b16 %v1045
    %v3991 = vunpack.c.l.b16 %v1046
    %v3992 = vunpack.c.h.b16 %v1046
    %v3993 = vunpack.c.l.b16 %v1047
    %v3994 = vunpack.c.h.b16 %v1047
    %v3995 = vunpack.c.l.b16 %v1048
    %v3996 = vunpack.c.h.b16 %v1048
    %v3997 = vunpack.c.l.b16 %v1049
    %v3998 = vunpack.c.h.b16 %v1049
    %v3999 = vunpack.c.l.b16 %v1050
    %v4000 = vunpack.c.h.b16 %v1050
    %v4001 = vunpack.c.l.b16 %v1051
    %v4002 = vunpack.c.h.b16 %v1051
    %v4003 = vunpack.c.l.b16 %v1052
    %v4004 = vunpack.c.h.b16 %v1052
    %v4005 = vunpack.c.l.b16 %v1053
    %v4006 = vunpack.c.h.b16 %v1053
    %v4007 = vunpack.c.l.b16 %v1054
    %v4008 = vunpack.c.h.b16 %v1054
    %v4009 = vunpack.c.l.b16 %v1055
    %v4010 = vunpack.c.h.b16 %v1055
    %v4011 = vunpack.c.l.b16 %v1056
    %v4012 = vunpack.c.h.b16 %v1056
    %v4013 = vunpack.c.l.b16 %v1057
    %v4014 = vunpack.c.h.b16 %v1057
    %v4015 = vunpack.c.l.b16 %v1058
    %v4016 = vunpack.c.h.b16 %v1058
    %v4017 = vunpack.c.l.b16 %v1059
    %v4018 = vunpack.c.h.b16 %v1059
    %v4019 = vunpack.c.l.b16 %v1060
    %v4020 = vunpack.c.h.b16 %v1060
    %v4021 = vunpack.c.l.b16 %v1061
    %v4022 = vunpack.c.h.b16 %v1061
    %v4023 = vunpack.c.l.b16 %v1062
    %v4024 = vunpack.c.h.b16 %v1062
    %v4025 = vunpack.c.l.b16 %v1063
    %v4026 = vunpack.c.h.b16 %v1063
    %v4027 = vunpack.c.l.b16 %v1064
    %v4028 = vunpack.c.h.b16 %v1064
    %v4029 = vunpack.c.l.b16 %v1065
    %v4030 = vunpack.c.h.b16 %v1065
    %v4031 = vunpack.c.l.b16 %v1066
    %v4032 = vunpack.c.h.b16 %v1066
    %v4033 = vunpack.c.l.b16 %v1067
    %v4034 = vunpack.c.h.b16 %v1067
    %v4035 = vunpack.c.l.b16 %v1068
    %v4036 = vunpack.c.h.b16 %v1068
    %v4037 = vunpack.c.l.b16 %v1069
    %v4038 = vunpack.c.h.b16 %v1069
    %v4039 = vunpack.c.l.b16 %v1070
    %v4040 = vunpack.c.h.b16 %v1070
    %v4041 = vunpack.c.l.b16 %v1071
    %v4042 = vunpack.c.h.b16 %v1071
    %v4043 = vunpack.c.l.b16 %v1072
    %v4044 = vunpack.c.h.b16 %v1072
    %v4045 = vunpack.c.l.b16 %v1073
    %v4046 = vunpack.c.h.b16 %v1073
    %v4047 = vunpack.c.l.b16 %v1074
    %v4048 = vunpack.c.h.b16 %v1074
    %v4049 = vunpack.c.l.b16 %v1075
    %v4050 = vunpack.c.h.b16 %v1075
    %v4051 = vunpack.c.l.b16 %v1076
    %v4052 = vunpack.c.h.b16 %v1076
    %v4053 = vunpack.c.l.b16 %v1077
    %v4054 = vunpack.c.h.b16 %v1077
    %v4055 = vunpack.c.l.b16 %v1078
    %v4056 = vunpack.c.h.b16 %v1078
    %v4057 = vunpack.c.l.b16 %v1079
    %v4058 = vunpack.c.h.b16 %v1079
    %v4059 = vunpack.c.l.b16 %v1080
    %v4060 = vunpack.c.h.b16 %v1080
    %v4061 = vunpack.c.l.b16 %v1081
    %v4062 = vunpack.c.h.b16 %v1081
    %v4063 = vunpack.c.l.b16 %v1082
    %v4064 = vunpack.c.h.b16 %v1082
    %v4065 = vunpack.c.l.b16 %v1083
    %v4066 = vunpack.c.h.b16 %v1083
    %v4067 = vunpack.c.l.b16 %v1084
    %v4068 = vunpack.c.h.b16 %v1084
    %v4069 = vunpack.c.l.b16 %v1085
    %v4070 = vunpack.c.h.b16 %v1085
    %v4071 = vunpack.c.l.b16 %v1086
    %v4072 = vunpack.c.h.b16 %v1086
    %v4073 = vunpack.c.l.b16 %v1087
    %v4074 = vunpack.c.h.b16 %v1087
    %v4075 = vunpack.c.l.b16 %v1088
    %v4076 = vunpack.c.h.b16 %v1088
    %v4077 = vunpack.c.l.b16 %v1089
    %v4078 = vunpack.c.h.b16 %v1089
    %v4079 = vunpack.c.l.b16 %v1090
    %v4080 = vunpack.c.h.b16 %v1090
    %v4081 = vunpack.c.l.b16 %v1091
    %v4082 = vunpack.c.h.b16 %v1091
    %v4083 = vunpack.c.l.b16 %v1092
    %v4084 = vunpack.c.h.b16 %v1092
    %v4085 = vunpack.c.l.b16 %v1093
    %v4086 = vunpack.c.h.b16 %v1093
    %v4087 = vunpack.c.l.b16 %v1094
    %v4088 = vunpack.c.h.b16 %v1094
    %v4089 = vunpack.c.l.b16 %v1095
    %v4090 = vunpack.c.h.b16 %v1095
    %v4091 = vunpack.c.l.b16 %v1096
    %v4092 = vunpack.c.h.b16 %v1096
    %v4093 = vunpack.c.l.b16 %v1097
    %v4094 = vunpack.c.h.b16 %v1097
    %v4095 = vunpack.c.l.b16 %v1098
    %v4096 = vunpack.c.h.b16 %v1098
    %v4097 = vunpack.c.l.b16 %v1099
    %v4098 = vunpack.c.h.b16 %v1099
    %v4099 = vunpack.c.l.b16 %v1100
    %v4100 = vunpack.c.h.b16 %v1100
    %v4101 = vunpack.c.l.b16 %v1101
    %v4102 = vunpack.c.h.b16 %v1101
    %v4103 = vunpack.c.l.b16 %v1102
    %v4104 = vunpack.c.h.b16 %v1102
    %v4105 = vunpack.c.l.b16 %v1103
    %v4106 = vunpack.c.h.b16 %v1103
    %v4107 = vunpack.c.l.b16 %v1104
    %v4108 = vunpack.c.h.b16 %v1104
    %v4109 = vunpack.c.l.b16 %v1105
    %v4110 = vunpack.c.h.b16 %v1105
    %v4111 = vunpack.c.l.b16 %v1106
    %v4112 = vunpack.c.h.b16 %v1106
    %v4113 = vunpack.c.l.b16 %v1107
    %v4114 = vunpack.c.h.b16 %v1107
    %v4115 = vunpack.c.l.b16 %v1108
    %v4116 = vunpack.c.h.b16 %v1108
    %v4117 = vunpack.c.l.b16 %v1109
    %v4118 = vunpack.c.h.b16 %v1109
    %v4119 = vunpack.c.l.b16 %v1110
    %v4120 = vunpack.c.h.b16 %v1110
    %v4121 = vunpack.c.l.b16 %v1111
    %v4122 = vunpack.c.h.b16 %v1111
    %v4123 = vunpack.c.l.b16 %v1112
    %v4124 = vunpack.c.h.b16 %v1112
    %v4125 = vunpack.c.l.b16 %v1113
    %v4126 = vunpack.c.h.b16 %v1113
    %v4127 = vunpack.c.l.b16 %v1114
    %v4128 = vunpack.c.h.b16 %v1114
    %v4129 = vunpack.c.l.b16 %v1115
    %v4130 = vunpack.c.h.b16 %v1115
    %v4131 = vunpack.c.l.b16 %v1116
    %v4132 = vunpack.c.h.b16 %v1116
    %v4133 = vunpack.c.l.b16 %v1117
    %v4134 = vunpack.c.h.b16 %v1117
    %v4135 = vunpack.c.l.b16 %v1118
    %v4136 = vunpack.c.h.b16 %v1118
    %v4137 = vunpack.c.l.b16 %v1119
    %v4138 = vunpack.c.h.b16 %v1119
    %v4139 = vunpack.c.l.b16 %v1120
    %v4140 = vunpack.c.h.b16 %v1120
    %v4141 = vunpack.c.l.b16 %v1121
    %v4142 = vunpack.c.h.b16 %v1121
    %v4143 = vunpack.c.l.b16 %v1122
    %v4144 = vunpack.c.h.b16 %v1122
    %v4145 = vunpack.c.l.b16 %v1123
    %v4146 = vunpack.c.h.b16 %v1123
    %v4147 = vunpack.c.l.b16 %v1124
    %v4148 = vunpack.c.h.b16 %v1124
    %v4149 = vunpack.c.l.b16 %v1125
    %v4150 = vunpack.c.h.b16 %v1125
    %v4151 = vunpack.c.l.b16 %v1126
    %v4152 = vunpack.c.h.b16 %v1126
    %v4153 = vunpack.c.l.b16 %v1127
    %v4154 = vunpack.c.h.b16 %v1127
    %v4155 = vunpack.c.l.b16 %v1128
    %v4156 = vunpack.c.h.b16 %v1128
    %v4157 = vunpack.c.l.b16 %v1129
    %v4158 = vunpack.c.h.b16 %v1129
    %v4159 = vunpack.c.l.b16 %v1130
    %v4160 = vunpack.c.h.b16 %v1130
    %v4161 = vunpack.c.l.b16 %v1131
    %v4162 = vunpack.c.h.b16 %v1131
    %v4163 = vunpack.c.l.b16 %v1132
    %v4164 = vunpack.c.h.b16 %v1132
    %v4165 = vunpack.c.l.b16 %v1133
    %v4166 = vunpack.c.h.b16 %v1133
    %v4167 = vunpack.c.l.b16 %v1134
    %v4168 = vunpack.c.h.b16 %v1134
    %v4169 = vunpack.c.l.b16 %v1135
    %v4170 = vunpack.c.h.b16 %v1135
    %v4171 = vunpack.c.l.b16 %v1136
    %v4172 = vunpack.c.h.b16 %v1136
    %v4173 = vunpack.c.l.b16 %v1137
    %v4174 = vunpack.c.h.b16 %v1137
    %v4175 = vunpack.c.l.b16 %v1138
    %v4176 = vunpack.c.h.b16 %v1138
    %v4177 = vunpack.c.l.b16 %v1139
    %v4178 = vunpack.c.h.b16 %v1139
    %v4179 = vunpack.c.l.b16 %v1140
    %v4180 = vunpack.c.h.b16 %v1140
    %v4181 = vunpack.c.l.b16 %v1141
    %v4182 = vunpack.c.h.b16 %v1141
    %v4183 = vunpack.c.l.b16 %v1142
    %v4184 = vunpack.c.h.b16 %v1142
    %v4185 = vunpack.c.l.b16 %v1143
    %v4186 = vunpack.c.h.b16 %v1143
    %v4187 = vunpack.c.l.b16 %v1144
    %v4188 = vunpack.c.h.b16 %v1144
    %v4189 = vunpack.c.l.b16 %v1145
    %v4190 = vunpack.c.h.b16 %v1145
    %v4191 = vunpack.c.l.b16 %v1146
    %v4192 = vunpack.c.h.b16 %v1146
    %v4193 = vunpack.c.l.b16 %v1147
    %v4194 = vunpack.c.h.b16 %v1147
    %v4195 = vunpack.c.l.b16 %v1148
    %v4196 = vunpack.c.h.b16 %v1148
    %v4197 = vunpack.c.l.b16 %v1149
    %v4198 = vunpack.c.h.b16 %v1149
    %v4199 = vunpack.c.l.b16 %v1150
    %v4200 = vunpack.c.h.b16 %v1150
    %v4201 = vunpack.c.l.b16 %v1151
    %v4202 = vunpack.c.h.b16 %v1151
    %v4203 = vunpack.c.l.b16 %v1152
    %v4204 = vunpack.c.h.b16 %v1152
    %v4205 = vunpack.c.l.b16 %v1153
    %v4206 = vunpack.c.h.b16 %v1153
    %v4207 = vunpack.c.l.b16 %v1154
    %v4208 = vunpack.c.h.b16 %v1154
    %v4209 = vunpack.c.l.b16 %v1155
    %v4210 = vunpack.c.h.b16 %v1155
    %v4211 = vunpack.c.l.b16 %v1156
    %v4212 = vunpack.c.h.b16 %v1156
    %v4213 = vunpack.c.l.b16 %v1157
    %v4214 = vunpack.c.h.b16 %v1157
    %v4215 = vunpack.c.l.b16 %v1158
    %v4216 = vunpack.c.h.b16 %v1158
    %v4217 = vunpack.c.l.b16 %v1159
    %v4218 = vunpack.c.h.b16 %v1159
    %v4219 = vunpack.c.l.b16 %v1160
    %v4220 = vunpack.c.h.b16 %v1160
    %v4221 = vunpack.c.l.b16 %v1161
    %v4222 = vunpack.c.h.b16 %v1161
    %v4223 = vunpack.c.l.b16 %v1162
    %v4224 = vunpack.c.h.b16 %v1162
    %v4225 = vunpack.c.l.b16 %v1163
    %v4226 = vunpack.c.h.b16 %v1163
    %v4227 = vunpack.c.l.b16 %v1164
    %v4228 = vunpack.c.h.b16 %v1164
    %v4229 = vunpack.c.l.b16 %v1165
    %v4230 = vunpack.c.h.b16 %v1165
    %v4231 = vunpack.c.l.b16 %v1166
    %v4232 = vunpack.c.h.b16 %v1166
    %v4233 = vunpack.c.l.b16 %v1167
    %v4234 = vunpack.c.h.b16 %v1167
    %v4235 = vunpack.c.l.b16 %v1168
    %v4236 = vunpack.c.h.b16 %v1168
    %v4237 = vunpack.c.l.b16 %v1169
    %v4238 = vunpack.c.h.b16 %v1169
    %v4239 = vunpack.c.l.b16 %v1170
    %v4240 = vunpack.c.h.b16 %v1170
    %v4241 = vunpack.c.l.b16 %v1171
    %v4242 = vunpack.c.h.b16 %v1171
    %v4243 = vunpack.c.l.b16 %v1172
    %v4244 = vunpack.c.h.b16 %v1172
    %v4245 = vunpack.c.l.b16 %v1173
    %v4246 = vunpack.c.h.b16 %v1173
    %v4247 = vunpack.c.l.b16 %v1174
    %v4248 = vunpack.c.h.b16 %v1174
    %v4249 = vunpack.c.l.b16 %v1175
    %v4250 = vunpack.c.h.b16 %v1175
    %v4251 = vunpack.c.l.b16 %v1176
    %v4252 = vunpack.c.h.b16 %v1176
    %v4253 = vunpack.c.l.b16 %v1177
    %v4254 = vunpack.c.h.b16 %v1177
    %v4255 = vunpack.c.l.b16 %v1178
    %v4256 = vunpack.c.h.b16 %v1178
    %v4257 = vunpack.c.l.b16 %v1179
    %v4258 = vunpack.c.h.b16 %v1179
    %v4259 = vunpack.c.l.b16 %v1180
    %v4260 = vunpack.c.h.b16 %v1180
    %v4261 = vunpack.c.l.b16 %v1181
    %v4262 = vunpack.c.h.b16 %v1181
    %v4263 = vunpack.c.l.b16 %v1182
    %v4264 = vunpack.c.h.b16 %v1182
    %v4265 = vunpack.c.l.b16 %v1183
    %v4266 = vunpack.c.h.b16 %v1183
    %v4267 = vunpack.c.l.b16 %v1184
    %v4268 = vunpack.c.h.b16 %v1184
    %v4269 = vunpack.c.l.b16 %v1185
    %v4270 = vunpack.c.h.b16 %v1185
    %v4271 = vunpack.c.l.b16 %v1186
    %v4272 = vunpack.c.h.b16 %v1186
    %v4273 = vunpack.c.l.b16 %v1187
    %v4274 = vunpack.c.h.b16 %v1187
    %v4275 = vunpack.c.l.b16 %v1188
    %v4276 = vunpack.c.h.b16 %v1188
    %v4277 = vunpack.c.l.b16 %v1189
    %v4278 = vunpack.c.h.b16 %v1189
    %v4279 = vunpack.c.l.b16 %v1190
    %v4280 = vunpack.c.h.b16 %v1190
    %v4281 = vpack.c.b16 %v2241, %v2233
    %v4282 = vpack.c.b16 %v2242, %v2234
    %v4283 = vpack.c.b16 %v2243, %v2235
    %v4284 = vpack.c.b16 %v2244, %v2236
    %v4285 = vpack.c.b16 %v2245, %v2237
    %v4286 = vpack.c.b16 %v2246, %v2238
    %v4287 = vpack.c.b16 %v2247, %v2239
    %v4288 = vpack.c.b16 %v2248, %v2240
    %v4289 = vpack.c.b16 %v2257, %v2249
    %v4290 = vpack.c.b16 %v2258, %v2250
    %v4291 = vpack.c.b16 %v2259, %v2251
    %v4292 = vpack.c.b16 %v2260, %v2252
    %v4293 = vpack.c.b16 %v2261, %v2253
    %v4294 = vpack.c.b16 %v2262, %v2254
    %v4295 = vpack.c.b16 %v2263, %v2255
    %v4296 = vpack.c.b16 %v2264, %v2256
    %v4297 = vpack.c.b16 %v2273, %v2265
    %v4298 = vpack.c.b16 %v2274, %v2266
    %v4299 = vpack.c.b16 %v2275, %v2267
    %v4300 = vpack.c.b16 %v2276, %v2268
    %v4301 = vpack.c.b16 %v2277, %v2269
    %v4302 = vpack.c.b16 %v2278, %v2270
    %v4303 = vpack.c.b16 %v2279, %v2271
    %v4304 = vpack.c.b16 %v2280, %v2272
    %v4305 = vpack.c.b16 %v2289, %v2281
    %v4306 = vpack.c.b16 %v2290, %v2282
    %v4307 = vpack.c.b16 %v2291, %v2283
    %v4308 = vpack.c.b16 %v2292, %v2284
    %v4309 = vpack.c.b16 %v2293, %v2285
    %v4310 = vpack.c.b16 %v2294, %v2286
    %v4311 = vpack.c.b16 %v2295, %v2287
    %v4312 = vpack.c.b16 %v2296, %v2288
    %v4313 = vpack.c.b16 %v2305, %v2297
    %v4314 = vpack.c.b16 %v2306, %v2298
    %v4315 = vpack.c.b16 %v2307, %v2299
    %v4316 = vpack.c.b16 %v2308, %v2300
    %v4317 = vpack.c.b16 %v2309, %v2301
    %v4318 = vpack.c.b16 %v2310, %v2302
    %v4319 = vpack.c.b16 %v2311, %v2303
    %v4320 = vpack.c.b16 %v2312, %v2304
    %v4321 = vpack.c.b16 %v2321, %v2313
    %v4322 = vpack.c.b16 %v2322, %v2314
    %v4323 = vpack.c.b16 %v2323, %v2315
    %v4324 = vpack.c.b16 %v2324, %v2316
    %v4325 = vpack.c.b16 %v2325, %v2317
    %v4326 = vpack.c.b16 %v2326, %v2318
    %v4327 = vpack.c.b16 %v2327, %v2319
    %v4328 = vpack.c.b16 %v2328, %v2320
    %v4329 = vpack.c.b16 %v2337, %v2329
    %v4330 = vpack.c.b16 %v2338, %v2330
    %v4331 = vpack.c.b16 %v2339, %v2331
    %v4332 = vpack.c.b16 %v2340, %v2332
    %v4333 = vpack.c.b16 %v2341, %v2333
    %v4334 = vpack.c.b16 %v2342, %v2334
    %v4335 = vpack.c.b16 %v2343, %v2335
    %v4336 = vpack.c.b16 %v2344, %v2336
    %v4337 = vpack.c.b16 %v2353, %v2345
    %v4338 = vpack.c.b16 %v2354, %v2346
    %v4339 = vpack.c.b16 %v2355, %v2347
    %v4340 = vpack.c.b16 %v2356, %v2348
    %v4341 = vpack.c.b16 %v2357, %v2349
    %v4342 = vpack.c.b16 %v2358, %v2350
    %v4343 = vpack.c.b16 %v2359, %v2351
    %v4344 = vpack.c.b16 %v2360, %v2352
    %v4345 = vpack.c.b16 %v2369, %v2361
    %v4346 = vpack.c.b16 %v2370, %v2362
    %v4347 = vpack.c.b16 %v2371, %v2363
    %v4348 = vpack.c.b16 %v2372, %v2364
    %v4349 = vpack.c.b16 %v2373, %v2365
    %v4350 = vpack.c.b16 %v2374, %v2366
    %v4351 = vpack.c.b16 %v2375, %v2367
    %v4352 = vpack.c.b16 %v2376, %v2368
    %v4353 = vpack.c.b16 %v2385, %v2377
    %v4354 = vpack.c.b16 %v2386, %v2378
    %v4355 = vpack.c.b16 %v2387, %v2379
    %v4356 = vpack.c.b16 %v2388, %v2380
    %v4357 = vpack.c.b16 %v2389, %v2381
    %v4358 = vpack.c.b16 %v2390, %v2382
    %v4359 = vpack.c.b16 %v2391, %v2383
    %v4360 = vpack.c.b16 %v2392, %v2384
    %v4361 = vpack.c.b16 %v2401, %v2393
    %v4362 = vpack.c.b16 %v2402, %v2394
    %v4363 = vpack.c.b16 %v2403, %v2395
    %v4364 = vpack.c.b16 %v2404, %v2396
    %v4365 = vpack.c.b16 %v2405, %v2397
    %v4366 = vpack.c.b16 %v2406, %v2398
    %v4367 = vpack.c.b16 %v2407, %v2399
    %v4368 = vpack.c.b16 %v2408, %v2400
    %v4369 = vpack.c.b16 %v2417, %v2409
    %v4370 = vpack.c.b16 %v2418, %v2410
    %v4371 = vpack.c.b16 %v2419, %v2411
    %v4372 = vpack.c.b16 %v2420, %v2412
    %v4373 = vpack.c.b16 %v2421, %v2413
    %v4374 = vpack.c.b16 %v2422, %v2414
    %v4375 = vpack.c.b16 %v2423, %v2415
    %v4376 = vpack.c.b16 %v2424, %v2416
    %v4377 = vpack.c.b16 %v2433, %v2425
    %v4378 = vpack.c.b16 %v2434, %v2426
    %v4379 = vpack.c.b16 %v2435, %v2427
    %v4380 = vpack.c.b16 %v2436, %v2428
    %v4381 = vpack.c.b16 %v2437, %v2429
    %v4382 = vpack.c.b16 %v2438, %v2430
    %v4383 = vpack.c.b16 %v2439, %v2431
    %v4384 = vpack.c.b16 %v2440, %v2432
    %v4385 = vpack.c.b16 %v2449, %v2441
    %v4386 = vpack.c.b16 %v2450, %v2442
    %v4387 = vpack.c.b16 %v2451, %v2443
    %v4388 = vpack.c.b16 %v2452, %v2444
    %v4389 = vpack.c.b16 %v2453, %v2445
    %v4390 = vpack.c.b16 %v2454, %v2446
    %v4391 = vpack.c.b16 %v2455, %v2447
    %v4392 = vpack.c.b16 %v2456, %v2448
    %v4393 = vpack.c.b16 %v2465, %v2457
    %v4394 = vpack.c.b16 %v2466, %v2458
    %v4395 = vpack.c.b16 %v2467, %v2459
    %v4396 = vpack.c.b16 %v2468, %v2460
    %v4397 = vpack.c.b16 %v2469, %v2461
    %v4398 = vpack.c.b16 %v2470, %v2462
    %v4399 = vpack.c.b16 %v2471, %v2463
    %v4400 = vpack.c.b16 %v2472, %v2464
    %v4401 = vpack.c.b16 %v2481, %v2473
    %v4402 = vpack.c.b16 %v2482, %v2474
    %v4403 = vpack.c.b16 %v2483, %v2475
    %v4404 = vpack.c.b16 %v2484, %v2476
    %v4405 = vpack.c.b16 %v2485, %v2477
    %v4406 = vpack.c.b16 %v2486, %v2478
    %v4407 = vpack.c.b16 %v2487, %v2479
    %v4408 = vpack.c.b16 %v2488, %v2480
    %v4409 = vpack.c.b16 %v2497, %v2489
    %v4410 = vpack.c.b16 %v2498, %v2490
    %v4411 = vpack.c.b16 %v2499, %v2491
    %v4412 = vpack.c.b16 %v2500, %v2492
    %v4413 = vpack.c.b16 %v2501, %v2493
    %v4414 = vpack.c.b16 %v2502, %v2494
    %v4415 = vpack.c.b16 %v2503, %v2495
    %v4416 = vpack.c.b16 %v2504, %v2496
    %v4417 = vpack.c.b16 %v2513, %v2505
    %v4418 = vpack.c.b16 %v2514, %v2506
    %v4419 = vpack.c.b16 %v2515, %v2507
    %v4420 = vpack.c.b16 %v2516, %v2508
    %v4421 = vpack.c.b16 %v2517, %v2509
    %v4422 = vpack.c.b16 %v2518, %v2510
    %v4423 = vpack.c.b16 %v2519, %v2511
    %v4424 = vpack.c.b16 %v2520, %v2512
    %v4425 = vpack.c.b16 %v2529, %v2521
    %v4426 = vpack.c.b16 %v2530, %v2522
    %v4427 = vpack.c.b16 %v2531, %v2523
    %v4428 = vpack.c.b16 %v2532, %v2524
    %v4429 = vpack.c.b16 %v2533, %v2525
    %v4430 = vpack.c.b16 %v2534, %v2526
    %v4431 = vpack.c.b16 %v2535, %v2527
    %v4432 = vpack.c.b16 %v2536, %v2528
    %v4433 = vpack.c.b16 %v2545, %v2537
    %v4434 = vpack.c.b16 %v2546, %v2538
    %v4435 = vpack.c.b16 %v2547, %v2539
    %v4436 = vpack.c.b16 %v2548, %v2540
    %v4437 = vpack.c.b16 %v2549, %v2541
    %v4438 = vpack.c.b16 %v2550, %v2542
    %v4439 = vpack.c.b16 %v2551, %v2543
    %v4440 = vpack.c.b16 %v2552, %v2544
    %v4441 = vpack.c.b16 %v2561, %v2553
    %v4442 = vpack.c.b16 %v2562, %v2554
    %v4443 = vpack.c.b16 %v2563, %v2555
    %v4444 = vpack.c.b16 %v2564, %v2556
    %v4445 = vpack.c.b16 %v2565, %v2557
    %v4446 = vpack.c.b16 %v2566, %v2558
    %v4447 = vpack.c.b16 %v2567, %v2559
    %v4448 = vpack.c.b16 %v2568, %v2560
    %v4449 = vpack.c.b16 %v2577, %v2569
    %v4450 = vpack.c.b16 %v2578, %v2570
    %v4451 = vpack.c.b16 %v2579, %v2571
    %v4452 = vpack.c.b16 %v2580, %v2572
    %v4453 = vpack.c.b16 %v2581, %v2573
    %v4454 = vpack.c.b16 %v2582, %v2574
    %v4455 = vpack.c.b16 %v2583, %v2575
    %v4456 = vpack.c.b16 %v2584, %v2576
    %v4457 = vpack.c.b16 %v2593, %v2585
    %v4458 = vpack.c.b16 %v2594, %v2586
    %v4459 = vpack.c.b16 %v2595, %v2587
    %v4460 = vpack.c.b16 %v2596, %v2588
    %v4461 = vpack.c.b16 %v2597, %v2589
    %v4462 = vpack.c.b16 %v2598, %v2590
    %v4463 = vpack.c.b16 %v2599, %v2591
    %v4464 = vpack.c.b16 %v2600, %v2592
    %v4465 = vpack.c.b16 %v2609, %v2601
    %v4466 = vpack.c.b16 %v2610, %v2602
    %v4467 = vpack.c.b16 %v2611, %v2603
    %v4468 = vpack.c.b16 %v2612, %v2604
    %v4469 = vpack.c.b16 %v2613, %v2605
    %v4470 = vpack.c.b16 %v2614, %v2606
    %v4471 = vpack.c.b16 %v2615, %v2607
    %v4472 = vpack.c.b16 %v2616, %v2608
    %v4473 = vpack.c.b16 %v2625, %v2617
    %v4474 = vpack.c.b16 %v2626, %v2618
    %v4475 = vpack.c.b16 %v2627, %v2619
    %v4476 = vpack.c.b16 %v2628, %v2620
    %v4477 = vpack.c.b16 %v2629, %v2621
    %v4478 = vpack.c.b16 %v2630, %v2622
    %v4479 = vpack.c.b16 %v2631, %v2623
    %v4480 = vpack.c.b16 %v2632, %v2624
    %v4481 = vpack.c.b16 %v2641, %v2633
    %v4482 = vpack.c.b16 %v2642, %v2634
    %v4483 = vpack.c.b16 %v2643, %v2635
    %v4484 = vpack.c.b16 %v2644, %v2636
    %v4485 = vpack.c.b16 %v2645, %v2637
    %v4486 = vpack.c.b16 %v2646, %v2638
    %v4487 = vpack.c.b16 %v2647, %v2639
    %v4488 = vpack.c.b16 %v2648, %v2640
    %v4489 = vpack.c.b16 %v2657, %v2649
    %v4490 = vpack.c.b16 %v2658, %v2650
    %v4491 = vpack.c.b16 %v2659, %v2651
    %v4492 = vpack.c.b16 %v2660, %v2652
    %v4493 = vpack.c.b16 %v2661, %v2653
    %v4494 = vpack.c.b16 %v2662, %v2654
    %v4495 = vpack.c.b16 %v2663, %v2655
    %v4496 = vpack.c.b16 %v2664, %v2656
    %v4497 = vpack.c.b16 %v2673, %v2665
    %v4498 = vpack.c.b16 %v2674, %v2666
    %v4499 = vpack.c.b16 %v2675, %v2667
    %v4500 = vpack.c.b16 %v2676, %v2668
    %v4501 = vpack.c.b16 %v2677, %v2669
    %v4502 = vpack.c.b16 %v2678, %v2670
    %v4503 = vpack.c.b16 %v2679, %v2671
    %v4504 = vpack.c.b16 %v2680, %v2672
    %v4505 = vpack.c.b16 %v2689, %v2681
    %v4506 = vpack.c.b16 %v2690, %v2682
    %v4507 = vpack.c.b16 %v2691, %v2683
    %v4508 = vpack.c.b16 %v2692, %v2684
    %v4509 = vpack.c.b16 %v2693, %v2685
    %v4510 = vpack.c.b16 %v2694, %v2686
    %v4511 = vpack.c.b16 %v2695, %v2687
    %v4512 = vpack.c.b16 %v2696, %v2688
    %v4513 = vpack.c.b16 %v2705, %v2697
    %v4514 = vpack.c.b16 %v2706, %v2698
    %v4515 = vpack.c.b16 %v2707, %v2699
    %v4516 = vpack.c.b16 %v2708, %v2700
    %v4517 = vpack.c.b16 %v2709, %v2701
    %v4518 = vpack.c.b16 %v2710, %v2702
    %v4519 = vpack.c.b16 %v2711, %v2703
    %v4520 = vpack.c.b16 %v2712, %v2704
    %v4521 = vpack.c.b16 %v2721, %v2713
    %v4522 = vpack.c.b16 %v2722, %v2714
    %v4523 = vpack.c.b16 %v2723, %v2715
    %v4524 = vpack.c.b16 %v2724, %v2716
    %v4525 = vpack.c.b16 %v2725, %v2717
    %v4526 = vpack.c.b16 %v2726, %v2718
    %v4527 = vpack.c.b16 %v2727, %v2719
    %v4528 = vpack.c.b16 %v2728, %v2720
    %v4529 = vpack.c.b16 %v2737, %v2729
    %v4530 = vpack.c.b16 %v2738, %v2730
    %v4531 = vpack.c.b16 %v2739, %v2731
    %v4532 = vpack.c.b16 %v2740, %v2732
    %v4533 = vpack.c.b16 %v2741, %v2733
    %v4534 = vpack.c.b16 %v2742, %v2734
    %v4535 = vpack.c.b16 %v2743, %v2735
    %v4536 = vpack.c.b16 %v2744, %v2736
    %v4537 = vpack.c.b16 %v2753, %v2745
    %v4538 = vpack.c.b16 %v2754, %v2746
    %v4539 = vpack.c.b16 %v2755, %v2747
    %v4540 = vpack.c.b16 %v2756, %v2748
    %v4541 = vpack.c.b16 %v2757, %v2749
    %v4542 = vpack.c.b16 %v2758, %v2750
    %v4543 = vpack.c.b16 %v2759, %v2751
    %v4544 = vpack.c.b16 %v2760, %v2752
    %v4545 = vpack.c.b16 %v2769, %v2761
    %v4546 = vpack.c.b16 %v2770, %v2762
    %v4547 = vpack.c.b16 %v2771, %v2763
    %v4548 = vpack.c.b16 %v2772, %v2764
    %v4549 = vpack.c.b16 %v2773, %v2765
    %v4550 = vpack.c.b16 %v2774, %v2766
    %v4551 = vpack.c.b16 %v2775, %v2767
    %v4552 = vpack.c.b16 %v2776, %v2768
    %v4553 = vpack.c.b16 %v2785, %v2777
    %v4554 = vpack.c.b16 %v2786, %v2778
    %v4555 = vpack.c.b16 %v2787, %v2779
    %v4556 = vpack.c.b16 %v2788, %v2780
    %v4557 = vpack.c.b16 %v2789, %v2781
    %v4558 = vpack.c.b16 %v2790, %v2782
    %v4559 = vpack.c.b16 %v2791, %v2783
    %v4560 = vpack.c.b16 %v2792, %v2784
    %v4561 = vpack.c.b16 %v2801, %v2793
    %v4562 = vpack.c.b16 %v2802, %v2794
    %v4563 = vpack.c.b16 %v2803, %v2795
    %v4564 = vpack.c.b16 %v2804, %v2796
    %v4565 = vpack.c.b16 %v2805, %v2797
    %v4566 = vpack.c.b16 %v2806, %v2798
    %v4567 = vpack.c.b16 %v2807, %v2799
    %v4568 = vpack.c.b16 %v2808, %v2800
    %v4569 = vpack.c.b16 %v2817, %v2809
    %v4570 = vpack.c.b16 %v2818, %v2810
    %v4571 = vpack.c.b16 %v2819, %v2811
    %v4572 = vpack.c.b16 %v2820, %v2812
    %v4573 = vpack.c.b16 %v2821, %v2813
    %v4574 = vpack.c.b16 %v2822, %v2814
    %v4575 = vpack.c.b16 %v2823, %v2815
    %v4576 = vpack.c.b16 %v2824, %v2816
    %v4577 = vpack.c.b16 %v2833, %v2825
    %v4578 = vpack.c.b16 %v2834, %v2826
    %v4579 = vpack.c.b16 %v2835, %v2827
    %v4580 = vpack.c.b16 %v2836, %v2828
    %v4581 = vpack.c.b16 %v2837, %v2829
    %v4582 = vpack.c.b16 %v2838, %v2830
    %v4583 = vpack.c.b16 %v2839, %v2831
    %v4584 = vpack.c.b16 %v2840, %v2832
    %v4585 = vpack.c.b16 %v2849, %v2841
    %v4586 = vpack.c.b16 %v2850, %v2842
    %v4587 = vpack.c.b16 %v2851, %v2843
    %v4588 = vpack.c.b16 %v2852, %v2844
    %v4589 = vpack.c.b16 %v2853, %v2845
    %v4590 = vpack.c.b16 %v2854, %v2846
    %v4591 = vpack.c.b16 %v2855, %v2847
    %v4592 = vpack.c.b16 %v2856, %v2848
    %v4593 = vpack.c.b16 %v2865, %v2857
    %v4594 = vpack.c.b16 %v2866, %v2858
    %v4595 = vpack.c.b16 %v2867, %v2859
    %v4596 = vpack.c.b16 %v2868, %v2860
    %v4597 = vpack.c.b16 %v2869, %v2861
    %v4598 = vpack.c.b16 %v2870, %v2862
    %v4599 = vpack.c.b16 %v2871, %v2863
    %v4600 = vpack.c.b16 %v2872, %v2864
    %v4601 = vpack.c.b16 %v2881, %v2873
    %v4602 = vpack.c.b16 %v2882, %v2874
    %v4603 = vpack.c.b16 %v2883, %v2875
    %v4604 = vpack.c.b16 %v2884, %v2876
    %v4605 = vpack.c.b16 %v2885, %v2877
    %v4606 = vpack.c.b16 %v2886, %v2878
    %v4607 = vpack.c.b16 %v2887, %v2879
    %v4608 = vpack.c.b16 %v2888, %v2880
    %v4609 = vpack.c.b16 %v2897, %v2889
    %v4610 = vpack.c.b16 %v2898, %v2890
    %v4611 = vpack.c.b16 %v2899, %v2891
    %v4612 = vpack.c.b16 %v2900, %v2892
    %v4613 = vpack.c.b16 %v2901, %v2893
    %v4614 = vpack.c.b16 %v2902, %v2894
    %v4615 = vpack.c.b16 %v2903, %v2895
    %v4616 = vpack.c.b16 %v2904, %v2896
    %v4617 = vpack.c.b16 %v2913, %v2905
    %v4618 = vpack.c.b16 %v2914, %v2906
    %v4619 = vpack.c.b16 %v2915, %v2907
    %v4620 = vpack.c.b16 %v2916, %v2908
    %v4621 = vpack.c.b16 %v2917, %v2909
    %v4622 = vpack.c.b16 %v2918, %v2910
    %v4623 = vpack.c.b16 %v2919, %v2911
    %v4624 = vpack.c.b16 %v2920, %v2912
    %v4625 = vpack.c.b16 %v2929, %v2921
    %v4626 = vpack.c.b16 %v2930, %v2922
    %v4627 = vpack.c.b16 %v2931, %v2923
    %v4628 = vpack.c.b16 %v2932, %v2924
    %v4629 = vpack.c.b16 %v2933, %v2925
    %v4630 = vpack.c.b16 %v2934, %v2926
    %v4631 = vpack.c.b16 %v2935, %v2927
    %v4632 = vpack.c.b16 %v2936, %v2928
    %v4633 = vpack.c.b16 %v2945, %v2937
    %v4634 = vpack.c.b16 %v2946, %v2938
    %v4635 = vpack.c.b16 %v2947, %v2939
    %v4636 = vpack.c.b16 %v2948, %v2940
    %v4637 = vpack.c.b16 %v2949, %v2941
    %v4638 = vpack.c.b16 %v2950, %v2942
    %v4639 = vpack.c.b16 %v2951, %v2943
    %v4640 = vpack.c.b16 %v2952, %v2944
    %v4641 = vpack.c.b16 %v2961, %v2953
    %v4642 = vpack.c.b16 %v2962, %v2954
    %v4643 = vpack.c.b16 %v2963, %v2955
    %v4644 = vpack.c.b16 %v2964, %v2956
    %v4645 = vpack.c.b16 %v2965, %v2957
    %v4646 = vpack.c.b16 %v2966, %v2958
    %v4647 = vpack.c.b16 %v2967, %v2959
    %v4648 = vpack.c.b16 %v2968, %v2960
    %v4649 = vpack.c.b16 %v2977, %v2969
    %v4650 = vpack.c.b16 %v2978, %v2970
    %v4651 = vpack.c.b16 %v2979, %v2971
    %v4652 = vpack.c.b16 %v2980, %v2972
    %v4653 = vpack.c.b16 %v2981, %v2973
    %v4654 = vpack.c.b16 %v2982, %v2974
    %v4655 = vpack.c.b16 %v2983, %v2975
    %v4656 = vpack.c.b16 %v2984, %v2976
    %v4657 = vpack.c.b16 %v2993, %v2985
    %v4658 = vpack.c.b16 %v2994, %v2986
    %v4659 = vpack.c.b16 %v2995, %v2987
    %v4660 = vpack.c.b16 %v2996, %v2988
    %v4661 = vpack.c.b16 %v2997, %v2989
    %v4662 = vpack.c.b16 %v2998, %v2990
    %v4663 = vpack.c.b16 %v2999, %v2991
    %v4664 = vpack.c.b16 %v3000, %v2992
    %v4665 = vpack.c.b16 %v3009, %v3001
    %v4666 = vpack.c.b16 %v3010, %v3002
    %v4667 = vpack.c.b16 %v3011, %v3003
    %v4668 = vpack.c.b16 %v3012, %v3004
    %v4669 = vpack.c.b16 %v3013, %v3005
    %v4670 = vpack.c.b16 %v3014, %v3006
    %v4671 = vpack.c.b16 %v3015, %v3007
    %v4672 = vpack.c.b16 %v3016, %v3008
    %v4673 = vpack.c.b16 %v3025, %v3017
    %v4674 = vpack.c.b16 %v3026, %v3018
    %v4675 = vpack.c.b16 %v3027, %v3019
    %v4676 = vpack.c.b16 %v3028, %v3020
    %v4677 = vpack.c.b16 %v3029, %v3021
    %v4678 = vpack.c.b16 %v3030, %v3022
    %v4679 = vpack.c.b16 %v3031, %v3023
    %v4680 = vpack.c.b16 %v3032, %v3024
    %v4681 = vpack.c.b16 %v3041, %v3033
    %v4682 = vpack.c.b16 %v3042, %v3034
    %v4683 = vpack.c.b16 %v3043, %v3035
    %v4684 = vpack.c.b16 %v3044, %v3036
    %v4685 = vpack.c.b16 %v3045, %v3037
    %v4686 = vpack.c.b16 %v3046, %v3038
    %v4687 = vpack.c.b16 %v3047, %v3039
    %v4688 = vpack.c.b16 %v3048, %v3040
    %v4689 = vpack.c.b16 %v3057, %v3049
    %v4690 = vpack.c.b16 %v3058, %v3050
    %v4691 = vpack.c.b16 %v3059, %v3051
    %v4692 = vpack.c.b16 %v3060, %v3052
    %v4693 = vpack.c.b16 %v3061, %v3053
    %v4694 = vpack.c.b16 %v3062, %v3054
    %v4695 = vpack.c.b16 %v3063, %v3055
    %v4696 = vpack.c.b16 %v3064, %v3056
    %v4697 = vpack.c.b16 %v3073, %v3065
    %v4698 = vpack.c.b16 %v3074, %v3066
    %v4699 = vpack.c.b16 %v3075, %v3067
    %v4700 = vpack.c.b16 %v3076, %v3068
    %v4701 = vpack.c.b16 %v3077, %v3069
    %v4702 = vpack.c.b16 %v3078, %v3070
    %v4703 = vpack.c.b16 %v3079, %v3071
    %v4704 = vpack.c.b16 %v3080, %v3072
    %v4705 = vpack.c.b16 %v3089, %v3081
    %v4706 = vpack.c.b16 %v3090, %v3082
    %v4707 = vpack.c.b16 %v3091, %v3083
    %v4708 = vpack.c.b16 %v3092, %v3084
    %v4709 = vpack.c.b16 %v3093, %v3085
    %v4710 = vpack.c.b16 %v3094, %v3086
    %v4711 = vpack.c.b16 %v3095, %v3087
    %v4712 = vpack.c.b16 %v3096, %v3088
    %v4713 = vpack.c.b16 %v3105, %v3097
    %v4714 = vpack.c.b16 %v3106, %v3098
    %v4715 = vpack.c.b16 %v3107, %v3099
    %v4716 = vpack.c.b16 %v3108, %v3100
    %v4717 = vpack.c.b16 %v3109, %v3101
    %v4718 = vpack.c.b16 %v3110, %v3102
    %v4719 = vpack.c.b16 %v3111, %v3103
    %v4720 = vpack.c.b16 %v3112, %v3104
    %v4721 = vpack.c.b16 %v3121, %v3113
    %v4722 = vpack.c.b16 %v3122, %v3114
    %v4723 = vpack.c.b16 %v3123, %v3115
    %v4724 = vpack.c.b16 %v3124, %v3116
    %v4725 = vpack.c.b16 %v3125, %v3117
    %v4726 = vpack.c.b16 %v3126, %v3118
    %v4727 = vpack.c.b16 %v3127, %v3119
    %v4728 = vpack.c.b16 %v3128, %v3120
    %v4729 = vpack.c.b16 %v3137, %v3129
    %v4730 = vpack.c.b16 %v3138, %v3130
    %v4731 = vpack.c.b16 %v3139, %v3131
    %v4732 = vpack.c.b16 %v3140, %v3132
    %v4733 = vpack.c.b16 %v3141, %v3133
    %v4734 = vpack.c.b16 %v3142, %v3134
    %v4735 = vpack.c.b16 %v3143, %v3135
    %v4736 = vpack.c.b16 %v3144, %v3136
    %v4737 = vpack.c.b16 %v3153, %v3145
    %v4738 = vpack.c.b16 %v3154, %v3146
    %v4739 = vpack.c.b16 %v3155, %v3147
    %v4740 = vpack.c.b16 %v3156, %v3148
    %v4741 = vpack.c.b16 %v3157, %v3149
    %v4742 = vpack.c.b16 %v3158, %v3150
    %v4743 = vpack.c.b16 %v3159, %v3151
    %v4744 = vpack.c.b16 %v3160, %v3152
    %v4745 = vpack.c.b16 %v3169, %v3161
    %v4746 = vpack.c.b16 %v3170, %v3162
    %v4747 = vpack.c.b16 %v3171, %v3163
    %v4748 = vpack.c.b16 %v3172, %v3164
    %v4749 = vpack.c.b16 %v3173, %v3165
    %v4750 = vpack.c.b16 %v3174, %v3166
    %v4751 = vpack.c.b16 %v3175, %v3167
    %v4752 = vpack.c.b16 %v3176, %v3168
    %v4753 = vpack.c.b16 %v3185, %v3177
    %v4754 = vpack.c.b16 %v3186, %v3178
    %v4755 = vpack.c.b16 %v3187, %v3179
    %v4756 = vpack.c.b16 %v3188, %v3180
    %v4757 = vpack.c.b16 %v3189, %v3181
    %v4758 = vpack.c.b16 %v3190, %v3182
    %v4759 = vpack.c.b16 %v3191, %v3183
    %v4760 = vpack.c.b16 %v3192, %v3184
    %v4761 = vpack.c.b16 %v3201, %v3193
    %v4762 = vpack.c.b16 %v3202, %v3194
    %v4763 = vpack.c.b16 %v3203, %v3195
    %v4764 = vpack.c.b16 %v3204, %v3196
    %v4765 = vpack.c.b16 %v3205, %v3197
    %v4766 = vpack.c.b16 %v3206, %v3198
    %v4767 = vpack.c.b16 %v3207, %v3199
    %v4768 = vpack.c.b16 %v3208, %v3200
    %v4769 = vpack.c.b16 %v3217, %v3209
    %v4770 = vpack.c.b16 %v3218, %v3210
    %v4771 = vpack.c.b16 %v3219, %v3211
    %v4772 = vpack.c.b16 %v3220, %v3212
    %v4773 = vpack.c.b16 %v3221, %v3213
    %v4774 = vpack.c.b16 %v3222, %v3214
    %v4775 = vpack.c.b16 %v3223, %v3215
    %v4776 = vpack.c.b16 %v3224, %v3216
    %v4777 = vpack.c.b16 %v3233, %v3225
    %v4778 = vpack.c.b16 %v3234, %v3226
    %v4779 = vpack.c.b16 %v3235, %v3227
    %v4780 = vpack.c.b16 %v3236, %v3228
    %v4781 = vpack.c.b16 %v3237, %v3229
    %v4782 = vpack.c.b16 %v3238, %v3230
    %v4783 = vpack.c.b16 %v3239, %v3231
    %v4784 = vpack.c.b16 %v3240, %v3232
    %v4785 = vpack.c.b16 %v3249, %v3241
    %v4786 = vpack.c.b16 %v3250, %v3242
    %v4787 = vpack.c.b16 %v3251, %v3243
    %v4788 = vpack.c.b16 %v3252, %v3244
    %v4789 = vpack.c.b16 %v3253, %v3245
    %v4790 = vpack.c.b16 %v3254, %v3246
    %v4791 = vpack.c.b16 %v3255, %v3247
    %v4792 = vpack.c.b16 %v3256, %v3248
    %v4793 = vpack.c.b16 %v3265, %v3257
    %v4794 = vpack.c.b16 %v3266, %v3258
    %v4795 = vpack.c.b16 %v3267, %v3259
    %v4796 = vpack.c.b16 %v3268, %v3260
    %v4797 = vpack.c.b16 %v3269, %v3261
    %v4798 = vpack.c.b16 %v3270, %v3262
    %v4799 = vpack.c.b16 %v3271, %v3263
    %v4800 = vpack.c.b16 %v3272, %v3264
    %v4801 = vpack.c.b16 %v3281, %v3273
    %v4802 = vpack.c.b16 %v3282, %v3274
    %v4803 = vpack.c.b16 %v3283, %v3275
    %v4804 = vpack.c.b16 %v3284, %v3276
    %v4805 = vpack.c.b16 %v3285, %v3277
    %v4806 = vpack.c.b16 %v3286, %v3278
    %v4807 = vpack.c.b16 %v3287, %v3279
    %v4808 = vpack.c.b16 %v3288, %v3280
    %v4809 = vpack.c.b16 %v3297, %v3289
    %v4810 = vpack.c.b16 %v3298, %v3290
    %v4811 = vpack.c.b16 %v3299, %v3291
    %v4812 = vpack.c.b16 %v3300, %v3292
    %v4813 = vpack.c.b16 %v3301, %v3293
    %v4814 = vpack.c.b16 %v3302, %v3294
    %v4815 = vpack.c.b16 %v3303, %v3295
    %v4816 = vpack.c.b16 %v3304, %v3296
    %v4817 = vpack.c.b16 %v3313, %v3305
    %v4818 = vpack.c.b16 %v3314, %v3306
    %v4819 = vpack.c.b16 %v3315, %v3307
    %v4820 = vpack.c.b16 %v3316, %v3308
    %v4821 = vpack.c.b16 %v3317, %v3309
    %v4822 = vpack.c.b16 %v3318, %v3310
    %v4823 = vpack.c.b16 %v3319, %v3311
    %v4824 = vpack.c.b16 %v3320, %v3312
    %v4825 = vpack.c.b16 %v3329, %v3321
    %v4826 = vpack.c.b16 %v3330, %v3322
    %v4827 = vpack.c.b16 %v3331, %v3323
    %v4828 = vpack.c.b16 %v3332, %v3324
    %v4829 = vpack.c.b16 %v3333, %v3325
    %v4830 = vpack.c.b16 %v3334, %v3326
    %v4831 = vpack.c.b16 %v3335, %v3327
    %v4832 = vpack.c.b16 %v3336, %v3328
    %v4833 = vpack.c.b16 %v3345, %v3337
    %v4834 = vpack.c.b16 %v3346, %v3338
    %v4835 = vpack.c.b16 %v3347, %v3339
    %v4836 = vpack.c.b16 %v3348, %v3340
    %v4837 = vpack.c.b16 %v3349, %v3341
    %v4838 = vpack.c.b16 %v3350, %v3342
    %v4839 = vpack.c.b16 %v3351, %v3343
    %v4840 = vpack.c.b16 %v3352, %v3344
    %v4841 = vpack.c.b16 %v3361, %v3353
    %v4842 = vpack.c.b16 %v3362, %v3354
    %v4843 = vpack.c.b16 %v3363, %v3355
    %v4844 = vpack.c.b16 %v3364, %v3356
    %v4845 = vpack.c.b16 %v3365, %v3357
    %v4846 = vpack.c.b16 %v3366, %v3358
    %v4847 = vpack.c.b16 %v3367, %v3359
    %v4848 = vpack.c.b16 %v3368, %v3360
    %v4849 = vpack.c.b16 %v3377, %v3369
    %v4850 = vpack.c.b16 %v3378, %v3370
    %v4851 = vpack.c.b16 %v3379, %v3371
    %v4852 = vpack.c.b16 %v3380, %v3372
    %v4853 = vpack.c.b16 %v3381, %v3373
    %v4854 = vpack.c.b16 %v3382, %v3374
    %v4855 = vpack.c.b16 %v3383, %v3375
    %v4856 = vpack.c.b16 %v3384, %v3376
    %v4857 = vpack.c.b16 %v3393, %v3385
    %v4858 = vpack.c.b16 %v3394, %v3386
    %v4859 = vpack.c.b16 %v3395, %v3387
    %v4860 = vpack.c.b16 %v3396, %v3388
    %v4861 = vpack.c.b16 %v3397, %v3389
    %v4862 = vpack.c.b16 %v3398, %v3390
    %v4863 = vpack.c.b16 %v3399, %v3391
    %v4864 = vpack.c.b16 %v3400, %v3392
    %v4865 = vpack.c.b16 %v3409, %v3401
    %v4866 = vpack.c.b16 %v3410, %v3402
    %v4867 = vpack.c.b16 %v3411, %v3403
    %v4868 = vpack.c.b16 %v3412, %v3404
    %v4869 = vpack.c.b16 %v3413, %v3405
    %v4870 = vpack.c.b16 %v3414, %v3406
    %v4871 = vpack.c.b16 %v3415, %v3407
    %v4872 = vpack.c.b16 %v3416, %v3408
    %v4873 = vpack.c.b16 %v3425, %v3417
    %v4874 = vpack.c.b16 %v3426, %v3418
    %v4875 = vpack.c.b16 %v3427, %v3419
    %v4876 = vpack.c.b16 %v3428, %v3420
    %v4877 = vpack.c.b16 %v3429, %v3421
    %v4878 = vpack.c.b16 %v3430, %v3422
    %v4879 = vpack.c.b16 %v3431, %v3423
    %v4880 = vpack.c.b16 %v3432, %v3424
    %v4881 = vpack.c.b16 %v3441, %v3433
    %v4882 = vpack.c.b16 %v3442, %v3434
    %v4883 = vpack.c.b16 %v3443, %v3435
    %v4884 = vpack.c.b16 %v3444, %v3436
    %v4885 = vpack.c.b16 %v3445, %v3437
    %v4886 = vpack.c.b16 %v3446, %v3438
    %v4887 = vpack.c.b16 %v3447, %v3439
    %v4888 = vpack.c.b16 %v3448, %v3440
    %v4889 = vpack.c.b16 %v3457, %v3449
    %v4890 = vpack.c.b16 %v3458, %v3450
    %v4891 = vpack.c.b16 %v3459, %v3451
    %v4892 = vpack.c.b16 %v3460, %v3452
    %v4893 = vpack.c.b16 %v3461, %v3453
    %v4894 = vpack.c.b16 %v3462, %v3454
    %v4895 = vpack.c.b16 %v3463, %v3455
    %v4896 = vpack.c.b16 %v3464, %v3456
    %v4897 = vpack.c.b16 %v3473, %v3465
    %v4898 = vpack.c.b16 %v3474, %v3466
    %v4899 = vpack.c.b16 %v3475, %v3467
    %v4900 = vpack.c.b16 %v3476, %v3468
    %v4901 = vpack.c.b16 %v3477, %v3469
    %v4902 = vpack.c.b16 %v3478, %v3470
    %v4903 = vpack.c.b16 %v3479, %v3471
    %v4904 = vpack.c.b16 %v3480, %v3472
    %v4905 = vpack.c.b16 %v3489, %v3481
    %v4906 = vpack.c.b16 %v3490, %v3482
    %v4907 = vpack.c.b16 %v3491, %v3483
    %v4908 = vpack.c.b16 %v3492, %v3484
    %v4909 = vpack.c.b16 %v3493, %v3485
    %v4910 = vpack.c.b16 %v3494, %v3486
    %v4911 = vpack.c.b16 %v3495, %v3487
    %v4912 = vpack.c.b16 %v3496, %v3488
    %v4913 = vpack.c.b16 %v3505, %v3497
    %v4914 = vpack.c.b16 %v3506, %v3498
    %v4915 = vpack.c.b16 %v3507, %v3499
    %v4916 = vpack.c.b16 %v3508, %v3500
    %v4917 = vpack.c.b16 %v3509, %v3501
    %v4918 = vpack.c.b16 %v3510, %v3502
    %v4919 = vpack.c.b16 %v3511, %v3503
    %v4920 = vpack.c.b16 %v3512, %v3504
    %v4921 = vpack.c.b16 %v3521, %v3513
    %v4922 = vpack.c.b16 %v3522, %v3514
    %v4923 = vpack.c.b16 %v3523, %v3515
    %v4924 = vpack.c.b16 %v3524, %v3516
    %v4925 = vpack.c.b16 %v3525, %v3517
    %v4926 = vpack.c.b16 %v3526, %v3518
    %v4927 = vpack.c.b16 %v3527, %v3519
    %v4928 = vpack.c.b16 %v3528, %v3520
    %v4929 = vpack.c.b16 %v3537, %v3529
    %v4930 = vpack.c.b16 %v3538, %v3530
    %v4931 = vpack.c.b16 %v3539, %v3531
    %v4932 = vpack.c.b16 %v3540, %v3532
    %v4933 = vpack.c.b16 %v3541, %v3533
    %v4934 = vpack.c.b16 %v3542, %v3534
    %v4935 = vpack.c.b16 %v3543, %v3535
    %v4936 = vpack.c.b16 %v3544, %v3536
    %v4937 = vpack.c.b16 %v3553, %v3545
    %v4938 = vpack.c.b16 %v3554, %v3546
    %v4939 = vpack.c.b16 %v3555, %v3547
    %v4940 = vpack.c.b16 %v3556, %v3548
    %v4941 = vpack.c.b16 %v3557, %v3549
    %v4942 = vpack.c.b16 %v3558, %v3550
    %v4943 = vpack.c.b16 %v3559, %v3551
    %v4944 = vpack.c.b16 %v3560, %v3552
    %v4945 = vpack.c.b16 %v3569, %v3561
    %v4946 = vpack.c.b16 %v3570, %v3562
    %v4947 = vpack.c.b16 %v3571, %v3563
    %v4948 = vpack.c.b16 %v3572, %v3564
    %v4949 = vpack.c.b16 %v3573, %v3565
    %v4950 = vpack.c.b16 %v3574, %v3566
    %v4951 = vpack.c.b16 %v3575, %v3567
    %v4952 = vpack.c.b16 %v3576, %v3568
    %v4953 = vpack.c.b16 %v3585, %v3577
    %v4954 = vpack.c.b16 %v3586, %v3578
    %v4955 = vpack.c.b16 %v3587, %v3579
    %v4956 = vpack.c.b16 %v3588, %v3580
    %v4957 = vpack.c.b16 %v3589, %v3581
    %v4958 = vpack.c.b16 %v3590, %v3582
    %v4959 = vpack.c.b16 %v3591, %v3583
    %v4960 = vpack.c.b16 %v3592, %v3584
    %v4961 = vpack.c.b16 %v3601, %v3593
    %v4962 = vpack.c.b16 %v3602, %v3594
    %v4963 = vpack.c.b16 %v3603, %v3595
    %v4964 = vpack.c.b16 %v3604, %v3596
    %v4965 = vpack.c.b16 %v3605, %v3597
    %v4966 = vpack.c.b16 %v3606, %v3598
    %v4967 = vpack.c.b16 %v3607, %v3599
    %v4968 = vpack.c.b16 %v3608, %v3600
    %v4969 = vpack.c.b16 %v3617, %v3609
    %v4970 = vpack.c.b16 %v3618, %v3610
    %v4971 = vpack.c.b16 %v3619, %v3611
    %v4972 = vpack.c.b16 %v3620, %v3612
    %v4973 = vpack.c.b16 %v3621, %v3613
    %v4974 = vpack.c.b16 %v3622, %v3614
    %v4975 = vpack.c.b16 %v3623, %v3615
    %v4976 = vpack.c.b16 %v3624, %v3616
    %v4977 = vpack.c.b16 %v3633, %v3625
    %v4978 = vpack.c.b16 %v3634, %v3626
    %v4979 = vpack.c.b16 %v3635, %v3627
    %v4980 = vpack.c.b16 %v3636, %v3628
    %v4981 = vpack.c.b16 %v3637, %v3629
    %v4982 = vpack.c.b16 %v3638, %v3630
    %v4983 = vpack.c.b16 %v3639, %v3631
    %v4984 = vpack.c.b16 %v3640, %v3632
    %v4985 = vpack.c.b16 %v3649, %v3641
    %v4986 = vpack.c.b16 %v3650, %v3642
    %v4987 = vpack.c.b16 %v3651, %v3643
    %v4988 = vpack.c.b16 %v3652, %v3644
    %v4989 = vpack.c.b16 %v3653, %v3645
    %v4990 = vpack.c.b16 %v3654, %v3646
    %v4991 = vpack.c.b16 %v3655, %v3647
    %v4992 = vpack.c.b16 %v3656, %v3648
    %v4993 = vpack.c.b16 %v3665, %v3657
    %v4994 = vpack.c.b16 %v3666, %v3658
    %v4995 = vpack.c.b16 %v3667, %v3659
    %v4996 = vpack.c.b16 %v3668, %v3660
    %v4997 = vpack.c.b16 %v3669, %v3661
    %v4998 = vpack.c.b16 %v3670, %v3662
    %v4999 = vpack.c.b16 %v3671, %v3663
    %v5000 = vpack.c.b16 %v3672, %v3664
    %v5001 = vpack.c.b16 %v3681, %v3673
    %v5002 = vpack.c.b16 %v3682, %v3674
    %v5003 = vpack.c.b16 %v3683, %v3675
    %v5004 = vpack.c.b16 %v3684, %v3676
    %v5005 = vpack.c.b16 %v3685, %v3677
    %v5006 = vpack.c.b16 %v3686, %v3678
    %v5007 = vpack.c.b16 %v3687, %v3679
    %v5008 = vpack.c.b16 %v3688, %v3680
    %v5009 = vpack.c.b16 %v3697, %v3689
    %v5010 = vpack.c.b16 %v3698, %v3690
    %v5011 = vpack.c.b16 %v3699, %v3691
    %v5012 = vpack.c.b16 %v3700, %v3692
    %v5013 = vpack.c.b16 %v3701, %v3693
    %v5014 = vpack.c.b16 %v3702, %v3694
    %v5015 = vpack.c.b16 %v3703, %v3695
    %v5016 = vpack.c.b16 %v3704, %v3696
    %v5017 = vpack.c.b16 %v3713, %v3705
    %v5018 = vpack.c.b16 %v3714, %v3706
    %v5019 = vpack.c.b16 %v3715, %v3707
    %v5020 = vpack.c.b16 %v3716, %v3708
    %v5021 = vpack.c.b16 %v3717, %v3709
    %v5022 = vpack.c.b16 %v3718, %v3710
    %v5023 = vpack.c.b16 %v3719, %v3711
    %v5024 = vpack.c.b16 %v3720, %v3712
    %v5025 = vpack.c.b16 %v3729, %v3721
    %v5026 = vpack.c.b16 %v3730, %v3722
    %v5027 = vpack.c.b16 %v3731, %v3723
    %v5028 = vpack.c.b16 %v3732, %v3724
    %v5029 = vpack.c.b16 %v3733, %v3725
    %v5030 = vpack.c.b16 %v3734, %v3726
    %v5031 = vpack.c.b16 %v3735, %v3727
    %v5032 = vpack.c.b16 %v3736, %v3728
    %v5033 = vpack.c.b16 %v3745, %v3737
    %v5034 = vpack.c.b16 %v3746, %v3738
    %v5035 = vpack.c.b16 %v3747, %v3739
    %v5036 = vpack.c.b16 %v3748, %v3740
    %v5037 = vpack.c.b16 %v3749, %v3741
    %v5038 = vpack.c.b16 %v3750, %v3742
    %v5039 = vpack.c.b16 %v3751, %v3743
    %v5040 = vpack.c.b16 %v3752, %v3744
    %v5041 = vpack.c.b16 %v3761, %v3753
    %v5042 = vpack.c.b16 %v3762, %v3754
    %v5043 = vpack.c.b16 %v3763, %v3755
    %v5044 = vpack.c.b16 %v3764, %v3756
    %v5045 = vpack.c.b16 %v3765, %v3757
    %v5046 = vpack.c.b16 %v3766, %v3758
    %v5047 = vpack.c.b16 %v3767, %v3759
    %v5048 = vpack.c.b16 %v3768, %v3760
    %v5049 = vpack.c.b16 %v3777, %v3769
    %v5050 = vpack.c.b16 %v3778, %v3770
    %v5051 = vpack.c.b16 %v3779, %v3771
    %v5052 = vpack.c.b16 %v3780, %v3772
    %v5053 = vpack.c.b16 %v3781, %v3773
    %v5054 = vpack.c.b16 %v3782, %v3774
    %v5055 = vpack.c.b16 %v3783, %v3775
    %v5056 = vpack.c.b16 %v3784, %v3776
    %v5057 = vpack.c.b16 %v3793, %v3785
    %v5058 = vpack.c.b16 %v3794, %v3786
    %v5059 = vpack.c.b16 %v3795, %v3787
    %v5060 = vpack.c.b16 %v3796, %v3788
    %v5061 = vpack.c.b16 %v3797, %v3789
    %v5062 = vpack.c.b16 %v3798, %v3790
    %v5063 = vpack.c.b16 %v3799, %v3791
    %v5064 = vpack.c.b16 %v3800, %v3792
    %v5065 = vpack.c.b16 %v3809, %v3801
    %v5066 = vpack.c.b16 %v3810, %v3802
    %v5067 = vpack.c.b16 %v3811, %v3803
    %v5068 = vpack.c.b16 %v3812, %v3804
    %v5069 = vpack.c.b16 %v3813, %v3805
    %v5070 = vpack.c.b16 %v3814, %v3806
    %v5071 = vpack.c.b16 %v3815, %v3807
    %v5072 = vpack.c.b16 %v3816, %v3808
    %v5073 = vpack.c.b16 %v3825, %v3817
    %v5074 = vpack.c.b16 %v3826, %v3818
    %v5075 = vpack.c.b16 %v3827, %v3819
    %v5076 = vpack.c.b16 %v3828, %v3820
    %v5077 = vpack.c.b16 %v3829, %v3821
    %v5078 = vpack.c.b16 %v3830, %v3822
    %v5079 = vpack.c.b16 %v3831, %v3823
    %v5080 = vpack.c.b16 %v3832, %v3824
    %v5081 = vpack.c.b16 %v3841, %v3833
    %v5082 = vpack.c.b16 %v3842, %v3834
    %v5083 = vpack.c.b16 %v3843, %v3835
    %v5084 = vpack.c.b16 %v3844, %v3836
    %v5085 = vpack.c.b16 %v3845, %v3837
    %v5086 = vpack.c.b16 %v3846, %v3838
    %v5087 = vpack.c.b16 %v3847, %v3839
    %v5088 = vpack.c.b16 %v3848, %v3840
    %v5089 = vpack.c.b16 %v3857, %v3849
    %v5090 = vpack.c.b16 %v3858, %v3850
    %v5091 = vpack.c.b16 %v3859, %v3851
    %v5092 = vpack.c.b16 %v3860, %v3852
    %v5093 = vpack.c.b16 %v3861, %v3853
    %v5094 = vpack.c.b16 %v3862, %v3854
    %v5095 = vpack.c.b16 %v3863, %v3855
    %v5096 = vpack.c.b16 %v3864, %v3856
    %v5097 = vpack.c.b16 %v3873, %v3865
    %v5098 = vpack.c.b16 %v3874, %v3866
    %v5099 = vpack.c.b16 %v3875, %v3867
    %v5100 = vpack.c.b16 %v3876, %v3868
    %v5101 = vpack.c.b16 %v3877, %v3869
    %v5102 = vpack.c.b16 %v3878, %v3870
    %v5103 = vpack.c.b16 %v3879, %v3871
    %v5104 = vpack.c.b16 %v3880, %v3872
    %v5105 = vpack.c.b16 %v3889, %v3881
    %v5106 = vpack.c.b16 %v3890, %v3882
    %v5107 = vpack.c.b16 %v3891, %v3883
    %v5108 = vpack.c.b16 %v3892, %v3884
    %v5109 = vpack.c.b16 %v3893, %v3885
    %v5110 = vpack.c.b16 %v3894, %v3886
    %v5111 = vpack.c.b16 %v3895, %v3887
    %v5112 = vpack.c.b16 %v3896, %v3888
    %v5113 = vpack.c.b16 %v3905, %v3897
    %v5114 = vpack.c.b16 %v3906, %v3898
    %v5115 = vpack.c.b16 %v3907, %v3899
    %v5116 = vpack.c.b16 %v3908, %v3900
    %v5117 = vpack.c.b16 %v3909, %v3901
    %v5118 = vpack.c.b16 %v3910, %v3902
    %v5119 = vpack.c.b16 %v3911, %v3903
    %v5120 = vpack.c.b16 %v3912, %v3904
    %v5121 = vpack.c.b16 %v3921, %v3913
    %v5122 = vpack.c.b16 %v3922, %v3914
    %v5123 = vpack.c.b16 %v3923, %v3915
    %v5124 = vpack.c.b16 %v3924, %v3916
    %v5125 = vpack.c.b16 %v3925, %v3917
    %v5126 = vpack.c.b16 %v3926, %v3918
    %v5127 = vpack.c.b16 %v3927, %v3919
    %v5128 = vpack.c.b16 %v3928, %v3920
    %v5129 = vpack.c.b16 %v3937, %v3929
    %v5130 = vpack.c.b16 %v3938, %v3930
    %v5131 = vpack.c.b16 %v3939, %v3931
    %v5132 = vpack.c.b16 %v3940, %v3932
    %v5133 = vpack.c.b16 %v3941, %v3933
    %v5134 = vpack.c.b16 %v3942, %v3934
    %v5135 = vpack.c.b16 %v3943, %v3935
    %v5136 = vpack.c.b16 %v3944, %v3936
    %v5137 = vpack.c.b16 %v3953, %v3945
    %v5138 = vpack.c.b16 %v3954, %v3946
    %v5139 = vpack.c.b16 %v3955, %v3947
    %v5140 = vpack.c.b16 %v3956, %v3948
    %v5141 = vpack.c.b16 %v3957, %v3949
    %v5142 = vpack.c.b16 %v3958, %v3950
    %v5143 = vpack.c.b16 %v3959, %v3951
    %v5144 = vpack.c.b16 %v3960, %v3952
    %v5145 = vpack.c.b16 %v3969, %v3961
    %v5146 = vpack.c.b16 %v3970, %v3962
    %v5147 = vpack.c.b16 %v3971, %v3963
    %v5148 = vpack.c.b16 %v3972, %v3964
    %v5149 = vpack.c.b16 %v3973, %v3965
    %v5150 = vpack.c.b16 %v3974, %v3966
    %v5151 = vpack.c.b16 %v3975, %v3967
    %v5152 = vpack.c.b16 %v3976, %v3968
    %v5153 = vpack.c.b16 %v3985, %v3977
    %v5154 = vpack.c.b16 %v3986, %v3978
    %v5155 = vpack.c.b16 %v3987, %v3979
    %v5156 = vpack.c.b16 %v3988, %v3980
    %v5157 = vpack.c.b16 %v3989, %v3981
    %v5158 = vpack.c.b16 %v3990, %v3982
    %v5159 = vpack.c.b16 %v3991, %v3983
    %v5160 = vpack.c.b16 %v3992, %v3984
    %v5161 = vpack.c.b16 %v4001, %v3993
    %v5162 = vpack.c.b16 %v4002, %v3994
    %v5163 = vpack.c.b16 %v4003, %v3995
    %v5164 = vpack.c.b16 %v4004, %v3996
    %v5165 = vpack.c.b16 %v4005, %v3997
    %v5166 = vpack.c.b16 %v4006, %v3998
    %v5167 = vpack.c.b16 %v4007, %v3999
    %v5168 = vpack.c.b16 %v4008, %v4000
    %v5169 = vpack.c.b16 %v4017, %v4009
    %v5170 = vpack.c.b16 %v4018, %v4010
    %v5171 = vpack.c.b16 %v4019, %v4011
    %v5172 = vpack.c.b16 %v4020, %v4012
    %v5173 = vpack.c.b16 %v4021, %v4013
    %v5174 = vpack.c.b16 %v4022, %v4014
    %v5175 = vpack.c.b16 %v4023, %v4015
    %v5176 = vpack.c.b16 %v4024, %v4016
    %v5177 = vpack.c.b16 %v4033, %v4025
    %v5178 = vpack.c.b16 %v4034, %v4026
    %v5179 = vpack.c.b16 %v4035, %v4027
    %v5180 = vpack.c.b16 %v4036, %v4028
    %v5181 = vpack.c.b16 %v4037, %v4029
    %v5182 = vpack.c.b16 %v4038, %v4030
    %v5183 = vpack.c.b16 %v4039, %v4031
    %v5184 = vpack.c.b16 %v4040, %v4032
    %v5185 = vpack.c.b16 %v4049, %v4041
    %v5186 = vpack.c.b16 %v4050, %v4042
    %v5187 = vpack.c.b16 %v4051, %v4043
    %v5188 = vpack.c.b16 %v4052, %v4044
    %v5189 = vpack.c.b16 %v4053, %v4045
    %v5190 = vpack.c.b16 %v4054, %v4046
    %v5191 = vpack.c.b16 %v4055, %v4047
    %v5192 = vpack.c.b16 %v4056, %v4048
    %v5193 = vpack.c.b16 %v4065, %v4057
    %v5194 = vpack.c.b16 %v4066, %v4058
    %v5195 = vpack.c.b16 %v4067, %v4059
    %v5196 = vpack.c.b16 %v4068, %v4060
    %v5197 = vpack.c.b16 %v4069, %v4061
    %v5198 = vpack.c.b16 %v4070, %v4062
    %v5199 = vpack.c.b16 %v4071, %v4063
    %v5200 = vpack.c.b16 %v4072, %v4064
    %v5201 = vpack.c.b16 %v4081, %v4073
    %v5202 = vpack.c.b16 %v4082, %v4074
    %v5203 = vpack.c.b16 %v4083, %v4075
    %v5204 = vpack.c.b16 %v4084, %v4076
    %v5205 = vpack.c.b16 %v4085, %v4077
    %v5206 = vpack.c.b16 %v4086, %v4078
    %v5207 = vpack.c.b16 %v4087, %v4079
    %v5208 = vpack.c.b16 %v4088, %v4080
    %v5209 = vpack.c.b16 %v4097, %v4089
    %v5210 = vpack.c.b16 %v4098, %v4090
    %v5211 = vpack.c.b16 %v4099, %v4091
    %v5212 = vpack.c.b16 %v4100, %v4092
    %v5213 = vpack.c.b16 %v4101, %v4093
    %v5214 = vpack.c.b16 %v4102, %v4094
    %v5215 = vpack.c.b16 %v4103, %v4095
    %v5216 = vpack.c.b16 %v4104, %v4096
    %v5217 = vpack.c.b16 %v4113, %v4105
    %v5218 = vpack.c.b16 %v4114, %v4106
    %v5219 = vpack.c.b16 %v4115, %v4107
    %v5220 = vpack.c.b16 %v4116, %v4108
    %v5221 = vpack.c.b16 %v4117, %v4109
    %v5222 = vpack.c.b16 %v4118, %v4110
    %v5223 = vpack.c.b16 %v4119, %v4111
    %v5224 = vpack.c.b16 %v4120, %v4112
    %v5225 = vpack.c.b16 %v4129, %v4121
    %v5226 = vpack.c.b16 %v4130, %v4122
    %v5227 = vpack.c.b16 %v4131, %v4123
    %v5228 = vpack.c.b16 %v4132, %v4124
    %v5229 = vpack.c.b16 %v4133, %v4125
    %v5230 = vpack.c.b16 %v4134, %v4126
    %v5231 = vpack.c.b16 %v4135, %v4127
    %v5232 = vpack.c.b16 %v4136, %v4128
    %v5233 = vpack.c.b16 %v4145, %v4137
    %v5234 = vpack.c.b16 %v4146, %v4138
    %v5235 = vpack.c.b16 %v4147, %v4139
    %v5236 = vpack.c.b16 %v4148, %v4140
    %v5237 = vpack.c.b16 %v4149, %v4141
    %v5238 = vpack.c.b16 %v4150, %v4142
    %v5239 = vpack.c.b16 %v4151, %v4143
    %v5240 = vpack.c.b16 %v4152, %v4144
    %v5241 = vpack.c.b16 %v4161, %v4153
    %v5242 = vpack.c.b16 %v4162, %v4154
    %v5243 = vpack.c.b16 %v4163, %v4155
    %v5244 = vpack.c.b16 %v4164, %v4156
    %v5245 = vpack.c.b16 %v4165, %v4157
    %v5246 = vpack.c.b16 %v4166, %v4158
    %v5247 = vpack.c.b16 %v4167, %v4159
    %v5248 = vpack.c.b16 %v4168, %v4160
    %v5249 = vpack.c.b16 %v4177, %v4169
    %v5250 = vpack.c.b16 %v4178, %v4170
    %v5251 = vpack.c.b16 %v4179, %v4171
    %v5252 = vpack.c.b16 %v4180, %v4172
    %v5253 = vpack.c.b16 %v4181, %v4173
    %v5254 = vpack.c.b16 %v4182, %v4174
    %v5255 = vpack.c.b16 %v4183, %v4175
    %v5256 = vpack.c.b16 %v4184, %v4176
    %v5257 = vpack.c.b16 %v4193, %v4185
    %v5258 = vpack.c.b16 %v4194, %v4186
    %v5259 = vpack.c.b16 %v4195, %v4187
    %v5260 = vpack.c.b16 %v4196, %v4188
    %v5261 = vpack.c.b16 %v4197, %v4189
    %v5262 = vpack.c.b16 %v4198, %v4190
    %v5263 = vpack.c.b16 %v4199, %v4191
    %v5264 = vpack.c.b16 %v4200, %v4192
    %v5265 = vpack.c.b16 %v4209, %v4201
    %v5266 = vpack.c.b16 %v4210, %v4202
    %v5267 = vpack.c.b16 %v4211, %v4203
    %v5268 = vpack.c.b16 %v4212, %v4204
    %v5269 = vpack.c.b16 %v4213, %v4205
    %v5270 = vpack.c.b16 %v4214, %v4206
    %v5271 = vpack.c.b16 %v4215, %v4207
    %v5272 = vpack.c.b16 %v4216, %v4208
    %v5273 = vpack.c.b16 %v4225, %v4217
    %v5274 = vpack.c.b16 %v4226, %v4218
    %v5275 = vpack.c.b16 %v4227, %v4219
    %v5276 = vpack.c.b16 %v4228, %v4220
    %v5277 = vpack.c.b16 %v4229, %v4221
    %v5278 = vpack.c.b16 %v4230, %v4222
    %v5279 = vpack.c.b16 %v4231, %v4223
    %v5280 = vpack.c.b16 %v4232, %v4224
    %v5281 = vpack.c.b16 %v4241, %v4233
    %v5282 = vpack.c.b16 %v4242, %v4234
    %v5283 = vpack.c.b16 %v4243, %v4235
    %v5284 = vpack.c.b16 %v4244, %v4236
    %v5285 = vpack.c.b16 %v4245, %v4237
    %v5286 = vpack.c.b16 %v4246, %v4238
    %v5287 = vpack.c.b16 %v4247, %v4239
    %v5288 = vpack.c.b16 %v4248, %v4240
    %v5289 = vpack.c.b16 %v4257, %v4249
    %v5290 = vpack.c.b16 %v4258, %v4250
    %v5291 = vpack.c.b16 %v4259, %v4251
    %v5292 = vpack.c.b16 %v4260, %v4252
    %v5293 = vpack.c.b16 %v4261, %v4253
    %v5294 = vpack.c.b16 %v4262, %v4254
    %v5295 = vpack.c.b16 %v4263, %v4255
    %v5296 = vpack.c.b16 %v4264, %v4256
    %v5297 = vpack.c.b16 %v4273, %v4265
    %v5298 = vpack.c.b16 %v4274, %v4266
    %v5299 = vpack.c.b16 %v4275, %v4267
    %v5300 = vpack.c.b16 %v4276, %v4268
    %v5301 = vpack.c.b16 %v4277, %v4269
    %v5302 = vpack.c.b16 %v4278, %v4270
    %v5303 = vpack.c.b16 %v4279, %v4271
    %v5304 = vpack.c.b16 %v4280, %v4272
    %6329 = vmatpush.bf16.msra.mxu0 %v4337
    %6330 = vmatpush.bf16.msra.mxu0 %v4329
    %6331 = vmatpush.bf16.msra.mxu0 %v4321
    %6332 = vmatpush.bf16.msra.mxu0 %v4313
    %6333 = vmatpush.bf16.msra.mxu0 %v4305
    %6334 = vmatpush.bf16.msra.mxu0 %v4297
    %6335 = vmatpush.bf16.msra.mxu0 %v4289
    %6336 = vmatpush.bf16.msra.mxu0 %v4281
    %6337 = vmatmul.bf16.gmra.mxu0 %v151
    %v6338 = vpop.f32.mrf.mxu0
    %v6339 = vadd.f32 %v1193, %v6338
    %v6340 = vpop.f32.mrf.mxu0
    %6341 = vdwg.mxu0
    %6342 = vmatpush.bf16.msra.mxu0 %v4401
    %6343 = vmatpush.bf16.msra.mxu0 %v4393
    %6344 = vmatpush.bf16.msra.mxu0 %v4385
    %6345 = vmatpush.bf16.msra.mxu0 %v4377
    %6346 = vmatpush.bf16.msra.mxu0 %v4369
    %6347 = vmatpush.bf16.msra.mxu0 %v4361
    %6348 = vmatpush.bf16.msra.mxu0 %v4353
    %6349 = vmatpush.bf16.msra.mxu0 %v4345
    %6350 = vmatmul.bf16.gmra.mxu0 %v152
    %v6351 = vpop.f32.mrf.mxu0
    %v6352 = vadd.f32 %v6339, %v6351
    %v6353 = vpop.f32.mrf.mxu0
    %6354 = vdwg.mxu0
    %6355 = vmatpush.bf16.msra.mxu0 %v4465
    %6356 = vmatpush.bf16.msra.mxu0 %v4457
    %6357 = vmatpush.bf16.msra.mxu0 %v4449
    %6358 = vmatpush.bf16.msra.mxu0 %v4441
    %6359 = vmatpush.bf16.msra.mxu0 %v4433
    %6360 = vmatpush.bf16.msra.mxu0 %v4425
    %6361 = vmatpush.bf16.msra.mxu0 %v4417
    %6362 = vmatpush.bf16.msra.mxu0 %v4409
    %6363 = vmatmul.bf16.gmra.mxu0 %v153
    %v6364 = vpop.f32.mrf.mxu0
    %v6365 = vadd.f32 %v6352, %v6364
    %v6366 = vpop.f32.mrf.mxu0
    %6367 = vdwg.mxu0
    %6368 = vmatpush.bf16.msra.mxu0 %v4529
    %6369 = vmatpush.bf16.msra.mxu0 %v4521
    %6370 = vmatpush.bf16.msra.mxu0 %v4513
    %6371 = vmatpush.bf16.msra.mxu0 %v4505
    %6372 = vmatpush.bf16.msra.mxu0 %v4497
    %6373 = vmatpush.bf16.msra.mxu0 %v4489
    %6374 = vmatpush.bf16.msra.mxu0 %v4481
    %6375 = vmatpush.bf16.msra.mxu0 %v4473
    %6376 = vmatmul.bf16.gmra.mxu0 %v154
    %v6377 = vpop.f32.mrf.mxu0
    %v6378 = vadd.f32 %v6365, %v6377
    %v6379 = vpop.f32.mrf.mxu0
    %6380 = vdwg.mxu0
    %6381 = vmatpush.bf16.msra.mxu0 %v4593
    %6382 = vmatpush.bf16.msra.mxu0 %v4585
    %6383 = vmatpush.bf16.msra.mxu0 %v4577
    %6384 = vmatpush.bf16.msra.mxu0 %v4569
    %6385 = vmatpush.bf16.msra.mxu0 %v4561
    %6386 = vmatpush.bf16.msra.mxu0 %v4553
    %6387 = vmatpush.bf16.msra.mxu0 %v4545
    %6388 = vmatpush.bf16.msra.mxu0 %v4537
    %6389 = vmatmul.bf16.gmra.mxu0 %v155
    %v6390 = vpop.f32.mrf.mxu0
    %v6391 = vadd.f32 %v6378, %v6390
    %v6392 = vpop.f32.mrf.mxu0
    %6393 = vdwg.mxu0
    %6394 = vmatpush.bf16.msra.mxu0 %v4657
    %6395 = vmatpush.bf16.msra.mxu0 %v4649
    %6396 = vmatpush.bf16.msra.mxu0 %v4641
    %6397 = vmatpush.bf16.msra.mxu0 %v4633
    %6398 = vmatpush.bf16.msra.mxu0 %v4625
    %6399 = vmatpush.bf16.msra.mxu0 %v4617
    %6400 = vmatpush.bf16.msra.mxu0 %v4609
    %6401 = vmatpush.bf16.msra.mxu0 %v4601
    %6402 = vmatmul.bf16.gmra.mxu0 %v156
    %v6403 = vpop.f32.mrf.mxu0
    %v6404 = vadd.f32 %v6391, %v6403
    %v6405 = vpop.f32.mrf.mxu0
    %6406 = vdwg.mxu0
    %6407 = vmatpush.bf16.msra.mxu0 %v4721
    %6408 = vmatpush.bf16.msra.mxu0 %v4713
    %6409 = vmatpush.bf16.msra.mxu0 %v4705
    %6410 = vmatpush.bf16.msra.mxu0 %v4697
    %6411 = vmatpush.bf16.msra.mxu0 %v4689
    %6412 = vmatpush.bf16.msra.mxu0 %v4681
    %6413 = vmatpush.bf16.msra.mxu0 %v4673
    %6414 = vmatpush.bf16.msra.mxu0 %v4665
    %6415 = vmatmul.bf16.gmra.mxu0 %v157
    %v6416 = vpop.f32.mrf.mxu0
    %v6417 = vadd.f32 %v6404, %v6416
    %v6418 = vpop.f32.mrf.mxu0
    %6419 = vdwg.mxu0
    %6420 = vmatpush.bf16.msra.mxu0 %v4785
    %6421 = vmatpush.bf16.msra.mxu0 %v4777
    %6422 = vmatpush.bf16.msra.mxu0 %v4769
    %6423 = vmatpush.bf16.msra.mxu0 %v4761
    %6424 = vmatpush.bf16.msra.mxu0 %v4753
    %6425 = vmatpush.bf16.msra.mxu0 %v4745
    %6426 = vmatpush.bf16.msra.mxu0 %v4737
    %6427 = vmatpush.bf16.msra.mxu0 %v4729
    %6428 = vmatmul.bf16.gmra.mxu0 %v158
    %v6429 = vpop.f32.mrf.mxu0
    %v6430 = vadd.f32 %v6417, %v6429
    %v6431 = vpop.f32.mrf.mxu0
    %6432 = vdwg.mxu0
    %6433 = vmatpush.bf16.msra.mxu0 %v4849
    %6434 = vmatpush.bf16.msra.mxu0 %v4841
    %6435 = vmatpush.bf16.msra.mxu0 %v4833
    %6436 = vmatpush.bf16.msra.mxu0 %v4825
    %6437 = vmatpush.bf16.msra.mxu0 %v4817
    %6438 = vmatpush.bf16.msra.mxu0 %v4809
    %6439 = vmatpush.bf16.msra.mxu0 %v4801
    %6440 = vmatpush.bf16.msra.mxu0 %v4793
    %6441 = vmatmul.bf16.gmra.mxu0 %v159
    %v6442 = vpop.f32.mrf.mxu0
    %v6443 = vadd.f32 %v6430, %v6442
    %v6444 = vpop.f32.mrf.mxu0
    %6445 = vdwg.mxu0
    %6446 = vmatpush.bf16.msra.mxu0 %v4913
    %6447 = vmatpush.bf16.msra.mxu0 %v4905
    %6448 = vmatpush.bf16.msra.mxu0 %v4897
    %6449 = vmatpush.bf16.msra.mxu0 %v4889
    %6450 = vmatpush.bf16.msra.mxu0 %v4881
    %6451 = vmatpush.bf16.msra.mxu0 %v4873
    %6452 = vmatpush.bf16.msra.mxu0 %v4865
    %6453 = vmatpush.bf16.msra.mxu0 %v4857
    %6454 = vmatmul.bf16.gmra.mxu0 %v160
    %v6455 = vpop.f32.mrf.mxu0
    %v6456 = vadd.f32 %v6443, %v6455
    %v6457 = vpop.f32.mrf.mxu0
    %6458 = vdwg.mxu0
    %6459 = vmatpush.bf16.msra.mxu0 %v4977
    %6460 = vmatpush.bf16.msra.mxu0 %v4969
    %6461 = vmatpush.bf16.msra.mxu0 %v4961
    %6462 = vmatpush.bf16.msra.mxu0 %v4953
    %6463 = vmatpush.bf16.msra.mxu0 %v4945
    %6464 = vmatpush.bf16.msra.mxu0 %v4937
    %6465 = vmatpush.bf16.msra.mxu0 %v4929
    %6466 = vmatpush.bf16.msra.mxu0 %v4921
    %6467 = vmatmul.bf16.gmra.mxu0 %v161
    %v6468 = vpop.f32.mrf.mxu0
    %v6469 = vadd.f32 %v6456, %v6468
    %v6470 = vpop.f32.mrf.mxu0
    %6471 = vdwg.mxu0
    %6472 = vmatpush.bf16.msra.mxu0 %v5041
    %6473 = vmatpush.bf16.msra.mxu0 %v5033
    %6474 = vmatpush.bf16.msra.mxu0 %v5025
    %6475 = vmatpush.bf16.msra.mxu0 %v5017
    %6476 = vmatpush.bf16.msra.mxu0 %v5009
    %6477 = vmatpush.bf16.msra.mxu0 %v5001
    %6478 = vmatpush.bf16.msra.mxu0 %v4993
    %6479 = vmatpush.bf16.msra.mxu0 %v4985
    %6480 = vmatmul.bf16.gmra.mxu0 %v162
    %v6481 = vpop.f32.mrf.mxu0
    %v6482 = vadd.f32 %v6469, %v6481
    %v6483 = vpop.f32.mrf.mxu0
    %6484 = vdwg.mxu0
    %6485 = vmatpush.bf16.msra.mxu0 %v5105
    %6486 = vmatpush.bf16.msra.mxu0 %v5097
    %6487 = vmatpush.bf16.msra.mxu0 %v5089
    %6488 = vmatpush.bf16.msra.mxu0 %v5081
    %6489 = vmatpush.bf16.msra.mxu0 %v5073
    %6490 = vmatpush.bf16.msra.mxu0 %v5065
    %6491 = vmatpush.bf16.msra.mxu0 %v5057
    %6492 = vmatpush.bf16.msra.mxu0 %v5049
    %6493 = vmatmul.bf16.gmra.mxu0 %v163
    %v6494 = vpop.f32.mrf.mxu0
    %v6495 = vadd.f32 %v6482, %v6494
    %v6496 = vpop.f32.mrf.mxu0
    %6497 = vdwg.mxu0
    %6498 = vmatpush.bf16.msra.mxu0 %v5169
    %6499 = vmatpush.bf16.msra.mxu0 %v5161
    %6500 = vmatpush.bf16.msra.mxu0 %v5153
    %6501 = vmatpush.bf16.msra.mxu0 %v5145
    %6502 = vmatpush.bf16.msra.mxu0 %v5137
    %6503 = vmatpush.bf16.msra.mxu0 %v5129
    %6504 = vmatpush.bf16.msra.mxu0 %v5121
    %6505 = vmatpush.bf16.msra.mxu0 %v5113
    %6506 = vmatmul.bf16.gmra.mxu0 %v164
    %v6507 = vpop.f32.mrf.mxu0
    %v6508 = vadd.f32 %v6495, %v6507
    %v6509 = vpop.f32.mrf.mxu0
    %6510 = vdwg.mxu0
    %6511 = vmatpush.bf16.msra.mxu0 %v5233
    %6512 = vmatpush.bf16.msra.mxu0 %v5225
    %6513 = vmatpush.bf16.msra.mxu0 %v5217
    %6514 = vmatpush.bf16.msra.mxu0 %v5209
    %6515 = vmatpush.bf16.msra.mxu0 %v5201
    %6516 = vmatpush.bf16.msra.mxu0 %v5193
    %6517 = vmatpush.bf16.msra.mxu0 %v5185
    %6518 = vmatpush.bf16.msra.mxu0 %v5177
    %6519 = vmatmul.bf16.gmra.mxu0 %v165
    %v6520 = vpop.f32.mrf.mxu0
    %v6521 = vadd.f32 %v6508, %v6520
    %v6522 = vpop.f32.mrf.mxu0
    %6523 = vdwg.mxu0
    %6524 = vmatpush.bf16.msra.mxu0 %v5297
    %6525 = vmatpush.bf16.msra.mxu0 %v5289
    %6526 = vmatpush.bf16.msra.mxu0 %v5281
    %6527 = vmatpush.bf16.msra.mxu0 %v5273
    %6528 = vmatpush.bf16.msra.mxu0 %v5265
    %6529 = vmatpush.bf16.msra.mxu0 %v5257
    %6530 = vmatpush.bf16.msra.mxu0 %v5249
    %6531 = vmatpush.bf16.msra.mxu0 %v5241
    %6532 = vmatmul.bf16.gmra.mxu0 %v166
    %v6533 = vpop.f32.mrf.mxu0
    %v6534 = vadd.f32 %v6521, %v6533
    %v6535 = vpop.f32.mrf.mxu0
    %6536 = vdwg.mxu0
    %6537 = vmatpush.bf16.msra.mxu0 %v4338
    %6538 = vmatpush.bf16.msra.mxu0 %v4330
    %6539 = vmatpush.bf16.msra.mxu0 %v4322
    %6540 = vmatpush.bf16.msra.mxu0 %v4314
    %6541 = vmatpush.bf16.msra.mxu0 %v4306
    %6542 = vmatpush.bf16.msra.mxu0 %v4298
    %6543 = vmatpush.bf16.msra.mxu0 %v4290
    %6544 = vmatpush.bf16.msra.mxu0 %v4282
    %6545 = vmatmul.bf16.gmra.mxu0 %v151
    %v6546 = vpop.f32.mrf.mxu0
    %v6547 = vadd.f32 %v1194, %v6546
    %v6548 = vpop.f32.mrf.mxu0
    %6549 = vdwg.mxu0
    %6550 = vmatpush.bf16.msra.mxu0 %v4402
    %6551 = vmatpush.bf16.msra.mxu0 %v4394
    %6552 = vmatpush.bf16.msra.mxu0 %v4386
    %6553 = vmatpush.bf16.msra.mxu0 %v4378
    %6554 = vmatpush.bf16.msra.mxu0 %v4370
    %6555 = vmatpush.bf16.msra.mxu0 %v4362
    %6556 = vmatpush.bf16.msra.mxu0 %v4354
    %6557 = vmatpush.bf16.msra.mxu0 %v4346
    %6558 = vmatmul.bf16.gmra.mxu0 %v152
    %v6559 = vpop.f32.mrf.mxu0
    %v6560 = vadd.f32 %v6547, %v6559
    %v6561 = vpop.f32.mrf.mxu0
    %6562 = vdwg.mxu0
    %6563 = vmatpush.bf16.msra.mxu0 %v4466
    %6564 = vmatpush.bf16.msra.mxu0 %v4458
    %6565 = vmatpush.bf16.msra.mxu0 %v4450
    %6566 = vmatpush.bf16.msra.mxu0 %v4442
    %6567 = vmatpush.bf16.msra.mxu0 %v4434
    %6568 = vmatpush.bf16.msra.mxu0 %v4426
    %6569 = vmatpush.bf16.msra.mxu0 %v4418
    %6570 = vmatpush.bf16.msra.mxu0 %v4410
    %6571 = vmatmul.bf16.gmra.mxu0 %v153
    %v6572 = vpop.f32.mrf.mxu0
    %v6573 = vadd.f32 %v6560, %v6572
    %v6574 = vpop.f32.mrf.mxu0
    %6575 = vdwg.mxu0
    %6576 = vmatpush.bf16.msra.mxu0 %v4530
    %6577 = vmatpush.bf16.msra.mxu0 %v4522
    %6578 = vmatpush.bf16.msra.mxu0 %v4514
    %6579 = vmatpush.bf16.msra.mxu0 %v4506
    %6580 = vmatpush.bf16.msra.mxu0 %v4498
    %6581 = vmatpush.bf16.msra.mxu0 %v4490
    %6582 = vmatpush.bf16.msra.mxu0 %v4482
    %6583 = vmatpush.bf16.msra.mxu0 %v4474
    %6584 = vmatmul.bf16.gmra.mxu0 %v154
    %v6585 = vpop.f32.mrf.mxu0
    %v6586 = vadd.f32 %v6573, %v6585
    %v6587 = vpop.f32.mrf.mxu0
    %6588 = vdwg.mxu0
    %6589 = vmatpush.bf16.msra.mxu0 %v4594
    %6590 = vmatpush.bf16.msra.mxu0 %v4586
    %6591 = vmatpush.bf16.msra.mxu0 %v4578
    %6592 = vmatpush.bf16.msra.mxu0 %v4570
    %6593 = vmatpush.bf16.msra.mxu0 %v4562
    %6594 = vmatpush.bf16.msra.mxu0 %v4554
    %6595 = vmatpush.bf16.msra.mxu0 %v4546
    %6596 = vmatpush.bf16.msra.mxu0 %v4538
    %6597 = vmatmul.bf16.gmra.mxu0 %v155
    %v6598 = vpop.f32.mrf.mxu0
    %v6599 = vadd.f32 %v6586, %v6598
    %v6600 = vpop.f32.mrf.mxu0
    %6601 = vdwg.mxu0
    %6602 = vmatpush.bf16.msra.mxu0 %v4658
    %6603 = vmatpush.bf16.msra.mxu0 %v4650
    %6604 = vmatpush.bf16.msra.mxu0 %v4642
    %6605 = vmatpush.bf16.msra.mxu0 %v4634
    %6606 = vmatpush.bf16.msra.mxu0 %v4626
    %6607 = vmatpush.bf16.msra.mxu0 %v4618
    %6608 = vmatpush.bf16.msra.mxu0 %v4610
    %6609 = vmatpush.bf16.msra.mxu0 %v4602
    %6610 = vmatmul.bf16.gmra.mxu0 %v156
    %v6611 = vpop.f32.mrf.mxu0
    %v6612 = vadd.f32 %v6599, %v6611
    %v6613 = vpop.f32.mrf.mxu0
    %6614 = vdwg.mxu0
    %6615 = vmatpush.bf16.msra.mxu0 %v4722
    %6616 = vmatpush.bf16.msra.mxu0 %v4714
    %6617 = vmatpush.bf16.msra.mxu0 %v4706
    %6618 = vmatpush.bf16.msra.mxu0 %v4698
    %6619 = vmatpush.bf16.msra.mxu0 %v4690
    %6620 = vmatpush.bf16.msra.mxu0 %v4682
    %6621 = vmatpush.bf16.msra.mxu0 %v4674
    %6622 = vmatpush.bf16.msra.mxu0 %v4666
    %6623 = vmatmul.bf16.gmra.mxu0 %v157
    %v6624 = vpop.f32.mrf.mxu0
    %v6625 = vadd.f32 %v6612, %v6624
    %v6626 = vpop.f32.mrf.mxu0
    %6627 = vdwg.mxu0
    %6628 = vmatpush.bf16.msra.mxu0 %v4786
    %6629 = vmatpush.bf16.msra.mxu0 %v4778
    %6630 = vmatpush.bf16.msra.mxu0 %v4770
    %6631 = vmatpush.bf16.msra.mxu0 %v4762
    %6632 = vmatpush.bf16.msra.mxu0 %v4754
    %6633 = vmatpush.bf16.msra.mxu0 %v4746
    %6634 = vmatpush.bf16.msra.mxu0 %v4738
    %6635 = vmatpush.bf16.msra.mxu0 %v4730
    %6636 = vmatmul.bf16.gmra.mxu0 %v158
    %v6637 = vpop.f32.mrf.mxu0
    %v6638 = vadd.f32 %v6625, %v6637
    %v6639 = vpop.f32.mrf.mxu0
    %6640 = vdwg.mxu0
    %6641 = vmatpush.bf16.msra.mxu0 %v4850
    %6642 = vmatpush.bf16.msra.mxu0 %v4842
    %6643 = vmatpush.bf16.msra.mxu0 %v4834
    %6644 = vmatpush.bf16.msra.mxu0 %v4826
    %6645 = vmatpush.bf16.msra.mxu0 %v4818
    %6646 = vmatpush.bf16.msra.mxu0 %v4810
    %6647 = vmatpush.bf16.msra.mxu0 %v4802
    %6648 = vmatpush.bf16.msra.mxu0 %v4794
    %6649 = vmatmul.bf16.gmra.mxu0 %v159
    %v6650 = vpop.f32.mrf.mxu0
    %v6651 = vadd.f32 %v6638, %v6650
    %v6652 = vpop.f32.mrf.mxu0
    %6653 = vdwg.mxu0
    %6654 = vmatpush.bf16.msra.mxu0 %v4914
    %6655 = vmatpush.bf16.msra.mxu0 %v4906
    %6656 = vmatpush.bf16.msra.mxu0 %v4898
    %6657 = vmatpush.bf16.msra.mxu0 %v4890
    %6658 = vmatpush.bf16.msra.mxu0 %v4882
    %6659 = vmatpush.bf16.msra.mxu0 %v4874
    %6660 = vmatpush.bf16.msra.mxu0 %v4866
    %6661 = vmatpush.bf16.msra.mxu0 %v4858
    %6662 = vmatmul.bf16.gmra.mxu0 %v160
    %v6663 = vpop.f32.mrf.mxu0
    %v6664 = vadd.f32 %v6651, %v6663
    %v6665 = vpop.f32.mrf.mxu0
    %6666 = vdwg.mxu0
    %6667 = vmatpush.bf16.msra.mxu0 %v4978
    %6668 = vmatpush.bf16.msra.mxu0 %v4970
    %6669 = vmatpush.bf16.msra.mxu0 %v4962
    %6670 = vmatpush.bf16.msra.mxu0 %v4954
    %6671 = vmatpush.bf16.msra.mxu0 %v4946
    %6672 = vmatpush.bf16.msra.mxu0 %v4938
    %6673 = vmatpush.bf16.msra.mxu0 %v4930
    %6674 = vmatpush.bf16.msra.mxu0 %v4922
    %6675 = vmatmul.bf16.gmra.mxu0 %v161
    %v6676 = vpop.f32.mrf.mxu0
    %v6677 = vadd.f32 %v6664, %v6676
    %v6678 = vpop.f32.mrf.mxu0
    %6679 = vdwg.mxu0
    %6680 = vmatpush.bf16.msra.mxu0 %v5042
    %6681 = vmatpush.bf16.msra.mxu0 %v5034
    %6682 = vmatpush.bf16.msra.mxu0 %v5026
    %6683 = vmatpush.bf16.msra.mxu0 %v5018
    %6684 = vmatpush.bf16.msra.mxu0 %v5010
    %6685 = vmatpush.bf16.msra.mxu0 %v5002
    %6686 = vmatpush.bf16.msra.mxu0 %v4994
    %6687 = vmatpush.bf16.msra.mxu0 %v4986
    %6688 = vmatmul.bf16.gmra.mxu0 %v162
    %v6689 = vpop.f32.mrf.mxu0
    %v6690 = vadd.f32 %v6677, %v6689
    %v6691 = vpop.f32.mrf.mxu0
    %6692 = vdwg.mxu0
    %6693 = vmatpush.bf16.msra.mxu0 %v5106
    %6694 = vmatpush.bf16.msra.mxu0 %v5098
    %6695 = vmatpush.bf16.msra.mxu0 %v5090
    %6696 = vmatpush.bf16.msra.mxu0 %v5082
    %6697 = vmatpush.bf16.msra.mxu0 %v5074
    %6698 = vmatpush.bf16.msra.mxu0 %v5066
    %6699 = vmatpush.bf16.msra.mxu0 %v5058
    %6700 = vmatpush.bf16.msra.mxu0 %v5050
    %6701 = vmatmul.bf16.gmra.mxu0 %v163
    %v6702 = vpop.f32.mrf.mxu0
    %v6703 = vadd.f32 %v6690, %v6702
    %v6704 = vpop.f32.mrf.mxu0
    %6705 = vdwg.mxu0
    %6706 = vmatpush.bf16.msra.mxu0 %v5170
    %6707 = vmatpush.bf16.msra.mxu0 %v5162
    %6708 = vmatpush.bf16.msra.mxu0 %v5154
    %6709 = vmatpush.bf16.msra.mxu0 %v5146
    %6710 = vmatpush.bf16.msra.mxu0 %v5138
    %6711 = vmatpush.bf16.msra.mxu0 %v5130
    %6712 = vmatpush.bf16.msra.mxu0 %v5122
    %6713 = vmatpush.bf16.msra.mxu0 %v5114
    %6714 = vmatmul.bf16.gmra.mxu0 %v164
    %v6715 = vpop.f32.mrf.mxu0
    %v6716 = vadd.f32 %v6703, %v6715
    %v6717 = vpop.f32.mrf.mxu0
    %6718 = vdwg.mxu0
    %6719 = vmatpush.bf16.msra.mxu0 %v5234
    %6720 = vmatpush.bf16.msra.mxu0 %v5226
    %6721 = vmatpush.bf16.msra.mxu0 %v5218
    %6722 = vmatpush.bf16.msra.mxu0 %v5210
    %6723 = vmatpush.bf16.msra.mxu0 %v5202
    %6724 = vmatpush.bf16.msra.mxu0 %v5194
    %6725 = vmatpush.bf16.msra.mxu0 %v5186
    %6726 = vmatpush.bf16.msra.mxu0 %v5178
    %6727 = vmatmul.bf16.gmra.mxu0 %v165
    %v6728 = vpop.f32.mrf.mxu0
    %v6729 = vadd.f32 %v6716, %v6728
    %v6730 = vpop.f32.mrf.mxu0
    %6731 = vdwg.mxu0
    %6732 = vmatpush.bf16.msra.mxu0 %v5298
    %6733 = vmatpush.bf16.msra.mxu0 %v5290
    %6734 = vmatpush.bf16.msra.mxu0 %v5282
    %6735 = vmatpush.bf16.msra.mxu0 %v5274
    %6736 = vmatpush.bf16.msra.mxu0 %v5266
    %6737 = vmatpush.bf16.msra.mxu0 %v5258
    %6738 = vmatpush.bf16.msra.mxu0 %v5250
    %6739 = vmatpush.bf16.msra.mxu0 %v5242
    %6740 = vmatmul.bf16.gmra.mxu0 %v166
    %v6741 = vpop.f32.mrf.mxu0
    %v6742 = vadd.f32 %v6729, %v6741
    %v6743 = vpop.f32.mrf.mxu0
    %6744 = vdwg.mxu0
    %6745 = vmatpush.bf16.msra.mxu0 %v4339
    %6746 = vmatpush.bf16.msra.mxu0 %v4331
    %6747 = vmatpush.bf16.msra.mxu0 %v4323
    %6748 = vmatpush.bf16.msra.mxu0 %v4315
    %6749 = vmatpush.bf16.msra.mxu0 %v4307
    %6750 = vmatpush.bf16.msra.mxu0 %v4299
    %6751 = vmatpush.bf16.msra.mxu0 %v4291
    %6752 = vmatpush.bf16.msra.mxu0 %v4283
    %6753 = vmatmul.bf16.gmra.mxu0 %v151
    %v6754 = vpop.f32.mrf.mxu0
    %v6755 = vadd.f32 %v1195, %v6754
    %v6756 = vpop.f32.mrf.mxu0
    %6757 = vdwg.mxu0
    %6758 = vmatpush.bf16.msra.mxu0 %v4403
    %6759 = vmatpush.bf16.msra.mxu0 %v4395
    %6760 = vmatpush.bf16.msra.mxu0 %v4387
    %6761 = vmatpush.bf16.msra.mxu0 %v4379
    %6762 = vmatpush.bf16.msra.mxu0 %v4371
    %6763 = vmatpush.bf16.msra.mxu0 %v4363
    %6764 = vmatpush.bf16.msra.mxu0 %v4355
    %6765 = vmatpush.bf16.msra.mxu0 %v4347
    %6766 = vmatmul.bf16.gmra.mxu0 %v152
    %v6767 = vpop.f32.mrf.mxu0
    %v6768 = vadd.f32 %v6755, %v6767
    %v6769 = vpop.f32.mrf.mxu0
    %6770 = vdwg.mxu0
    %6771 = vmatpush.bf16.msra.mxu0 %v4467
    %6772 = vmatpush.bf16.msra.mxu0 %v4459
    %6773 = vmatpush.bf16.msra.mxu0 %v4451
    %6774 = vmatpush.bf16.msra.mxu0 %v4443
    %6775 = vmatpush.bf16.msra.mxu0 %v4435
    %6776 = vmatpush.bf16.msra.mxu0 %v4427
    %6777 = vmatpush.bf16.msra.mxu0 %v4419
    %6778 = vmatpush.bf16.msra.mxu0 %v4411
    %6779 = vmatmul.bf16.gmra.mxu0 %v153
    %v6780 = vpop.f32.mrf.mxu0
    %v6781 = vadd.f32 %v6768, %v6780
    %v6782 = vpop.f32.mrf.mxu0
    %6783 = vdwg.mxu0
    %6784 = vmatpush.bf16.msra.mxu0 %v4531
    %6785 = vmatpush.bf16.msra.mxu0 %v4523
    %6786 = vmatpush.bf16.msra.mxu0 %v4515
    %6787 = vmatpush.bf16.msra.mxu0 %v4507
    %6788 = vmatpush.bf16.msra.mxu0 %v4499
    %6789 = vmatpush.bf16.msra.mxu0 %v4491
    %6790 = vmatpush.bf16.msra.mxu0 %v4483
    %6791 = vmatpush.bf16.msra.mxu0 %v4475
    %6792 = vmatmul.bf16.gmra.mxu0 %v154
    %v6793 = vpop.f32.mrf.mxu0
    %v6794 = vadd.f32 %v6781, %v6793
    %v6795 = vpop.f32.mrf.mxu0
    %6796 = vdwg.mxu0
    %6797 = vmatpush.bf16.msra.mxu0 %v4595
    %6798 = vmatpush.bf16.msra.mxu0 %v4587
    %6799 = vmatpush.bf16.msra.mxu0 %v4579
    %6800 = vmatpush.bf16.msra.mxu0 %v4571
    %6801 = vmatpush.bf16.msra.mxu0 %v4563
    %6802 = vmatpush.bf16.msra.mxu0 %v4555
    %6803 = vmatpush.bf16.msra.mxu0 %v4547
    %6804 = vmatpush.bf16.msra.mxu0 %v4539
    %6805 = vmatmul.bf16.gmra.mxu0 %v155
    %v6806 = vpop.f32.mrf.mxu0
    %v6807 = vadd.f32 %v6794, %v6806
    %v6808 = vpop.f32.mrf.mxu0
    %6809 = vdwg.mxu0
    %6810 = vmatpush.bf16.msra.mxu0 %v4659
    %6811 = vmatpush.bf16.msra.mxu0 %v4651
    %6812 = vmatpush.bf16.msra.mxu0 %v4643
    %6813 = vmatpush.bf16.msra.mxu0 %v4635
    %6814 = vmatpush.bf16.msra.mxu0 %v4627
    %6815 = vmatpush.bf16.msra.mxu0 %v4619
    %6816 = vmatpush.bf16.msra.mxu0 %v4611
    %6817 = vmatpush.bf16.msra.mxu0 %v4603
    %6818 = vmatmul.bf16.gmra.mxu0 %v156
    %v6819 = vpop.f32.mrf.mxu0
    %v6820 = vadd.f32 %v6807, %v6819
    %v6821 = vpop.f32.mrf.mxu0
    %6822 = vdwg.mxu0
    %6823 = vmatpush.bf16.msra.mxu0 %v4723
    %6824 = vmatpush.bf16.msra.mxu0 %v4715
    %6825 = vmatpush.bf16.msra.mxu0 %v4707
    %6826 = vmatpush.bf16.msra.mxu0 %v4699
    %6827 = vmatpush.bf16.msra.mxu0 %v4691
    %6828 = vmatpush.bf16.msra.mxu0 %v4683
    %6829 = vmatpush.bf16.msra.mxu0 %v4675
    %6830 = vmatpush.bf16.msra.mxu0 %v4667
    %6831 = vmatmul.bf16.gmra.mxu0 %v157
    %v6832 = vpop.f32.mrf.mxu0
    %v6833 = vadd.f32 %v6820, %v6832
    %v6834 = vpop.f32.mrf.mxu0
    %6835 = vdwg.mxu0
    %6836 = vmatpush.bf16.msra.mxu0 %v4787
    %6837 = vmatpush.bf16.msra.mxu0 %v4779
    %6838 = vmatpush.bf16.msra.mxu0 %v4771
    %6839 = vmatpush.bf16.msra.mxu0 %v4763
    %6840 = vmatpush.bf16.msra.mxu0 %v4755
    %6841 = vmatpush.bf16.msra.mxu0 %v4747
    %6842 = vmatpush.bf16.msra.mxu0 %v4739
    %6843 = vmatpush.bf16.msra.mxu0 %v4731
    %6844 = vmatmul.bf16.gmra.mxu0 %v158
    %v6845 = vpop.f32.mrf.mxu0
    %v6846 = vadd.f32 %v6833, %v6845
    %v6847 = vpop.f32.mrf.mxu0
    %6848 = vdwg.mxu0
    %6849 = vmatpush.bf16.msra.mxu0 %v4851
    %6850 = vmatpush.bf16.msra.mxu0 %v4843
    %6851 = vmatpush.bf16.msra.mxu0 %v4835
    %6852 = vmatpush.bf16.msra.mxu0 %v4827
    %6853 = vmatpush.bf16.msra.mxu0 %v4819
    %6854 = vmatpush.bf16.msra.mxu0 %v4811
    %6855 = vmatpush.bf16.msra.mxu0 %v4803
    %6856 = vmatpush.bf16.msra.mxu0 %v4795
    %6857 = vmatmul.bf16.gmra.mxu0 %v159
    %v6858 = vpop.f32.mrf.mxu0
    %v6859 = vadd.f32 %v6846, %v6858
    %v6860 = vpop.f32.mrf.mxu0
    %6861 = vdwg.mxu0
    %6862 = vmatpush.bf16.msra.mxu0 %v4915
    %6863 = vmatpush.bf16.msra.mxu0 %v4907
    %6864 = vmatpush.bf16.msra.mxu0 %v4899
    %6865 = vmatpush.bf16.msra.mxu0 %v4891
    %6866 = vmatpush.bf16.msra.mxu0 %v4883
    %6867 = vmatpush.bf16.msra.mxu0 %v4875
    %6868 = vmatpush.bf16.msra.mxu0 %v4867
    %6869 = vmatpush.bf16.msra.mxu0 %v4859
    %6870 = vmatmul.bf16.gmra.mxu0 %v160
    %v6871 = vpop.f32.mrf.mxu0
    %v6872 = vadd.f32 %v6859, %v6871
    %v6873 = vpop.f32.mrf.mxu0
    %6874 = vdwg.mxu0
    %6875 = vmatpush.bf16.msra.mxu0 %v4979
    %6876 = vmatpush.bf16.msra.mxu0 %v4971
    %6877 = vmatpush.bf16.msra.mxu0 %v4963
    %6878 = vmatpush.bf16.msra.mxu0 %v4955
    %6879 = vmatpush.bf16.msra.mxu0 %v4947
    %6880 = vmatpush.bf16.msra.mxu0 %v4939
    %6881 = vmatpush.bf16.msra.mxu0 %v4931
    %6882 = vmatpush.bf16.msra.mxu0 %v4923
    %6883 = vmatmul.bf16.gmra.mxu0 %v161
    %v6884 = vpop.f32.mrf.mxu0
    %v6885 = vadd.f32 %v6872, %v6884
    %v6886 = vpop.f32.mrf.mxu0
    %6887 = vdwg.mxu0
    %6888 = vmatpush.bf16.msra.mxu0 %v5043
    %6889 = vmatpush.bf16.msra.mxu0 %v5035
    %6890 = vmatpush.bf16.msra.mxu0 %v5027
    %6891 = vmatpush.bf16.msra.mxu0 %v5019
    %6892 = vmatpush.bf16.msra.mxu0 %v5011
    %6893 = vmatpush.bf16.msra.mxu0 %v5003
    %6894 = vmatpush.bf16.msra.mxu0 %v4995
    %6895 = vmatpush.bf16.msra.mxu0 %v4987
    %6896 = vmatmul.bf16.gmra.mxu0 %v162
    %v6897 = vpop.f32.mrf.mxu0
    %v6898 = vadd.f32 %v6885, %v6897
    %v6899 = vpop.f32.mrf.mxu0
    %6900 = vdwg.mxu0
    %6901 = vmatpush.bf16.msra.mxu0 %v5107
    %6902 = vmatpush.bf16.msra.mxu0 %v5099
    %6903 = vmatpush.bf16.msra.mxu0 %v5091
    %6904 = vmatpush.bf16.msra.mxu0 %v5083
    %6905 = vmatpush.bf16.msra.mxu0 %v5075
    %6906 = vmatpush.bf16.msra.mxu0 %v5067
    %6907 = vmatpush.bf16.msra.mxu0 %v5059
    %6908 = vmatpush.bf16.msra.mxu0 %v5051
    %6909 = vmatmul.bf16.gmra.mxu0 %v163
    %v6910 = vpop.f32.mrf.mxu0
    %v6911 = vadd.f32 %v6898, %v6910
    %v6912 = vpop.f32.mrf.mxu0
    %6913 = vdwg.mxu0
    %6914 = vmatpush.bf16.msra.mxu0 %v5171
    %6915 = vmatpush.bf16.msra.mxu0 %v5163
    %6916 = vmatpush.bf16.msra.mxu0 %v5155
    %6917 = vmatpush.bf16.msra.mxu0 %v5147
    %6918 = vmatpush.bf16.msra.mxu0 %v5139
    %6919 = vmatpush.bf16.msra.mxu0 %v5131
    %6920 = vmatpush.bf16.msra.mxu0 %v5123
    %6921 = vmatpush.bf16.msra.mxu0 %v5115
    %6922 = vmatmul.bf16.gmra.mxu0 %v164
    %v6923 = vpop.f32.mrf.mxu0
    %v6924 = vadd.f32 %v6911, %v6923
    %v6925 = vpop.f32.mrf.mxu0
    %6926 = vdwg.mxu0
    %6927 = vmatpush.bf16.msra.mxu0 %v5235
    %6928 = vmatpush.bf16.msra.mxu0 %v5227
    %6929 = vmatpush.bf16.msra.mxu0 %v5219
    %6930 = vmatpush.bf16.msra.mxu0 %v5211
    %6931 = vmatpush.bf16.msra.mxu0 %v5203
    %6932 = vmatpush.bf16.msra.mxu0 %v5195
    %6933 = vmatpush.bf16.msra.mxu0 %v5187
    %6934 = vmatpush.bf16.msra.mxu0 %v5179
    %6935 = vmatmul.bf16.gmra.mxu0 %v165
    %v6936 = vpop.f32.mrf.mxu0
    %v6937 = vadd.f32 %v6924, %v6936
    %v6938 = vpop.f32.mrf.mxu0
    %6939 = vdwg.mxu0
    %6940 = vmatpush.bf16.msra.mxu0 %v5299
    %6941 = vmatpush.bf16.msra.mxu0 %v5291
    %6942 = vmatpush.bf16.msra.mxu0 %v5283
    %6943 = vmatpush.bf16.msra.mxu0 %v5275
    %6944 = vmatpush.bf16.msra.mxu0 %v5267
    %6945 = vmatpush.bf16.msra.mxu0 %v5259
    %6946 = vmatpush.bf16.msra.mxu0 %v5251
    %6947 = vmatpush.bf16.msra.mxu0 %v5243
    %6948 = vmatmul.bf16.gmra.mxu0 %v166
    %v6949 = vpop.f32.mrf.mxu0
    %v6950 = vadd.f32 %v6937, %v6949
    %v6951 = vpop.f32.mrf.mxu0
    %6952 = vdwg.mxu0
    %6953 = vmatpush.bf16.msra.mxu0 %v4340
    %6954 = vmatpush.bf16.msra.mxu0 %v4332
    %6955 = vmatpush.bf16.msra.mxu0 %v4324
    %6956 = vmatpush.bf16.msra.mxu0 %v4316
    %6957 = vmatpush.bf16.msra.mxu0 %v4308
    %6958 = vmatpush.bf16.msra.mxu0 %v4300
    %6959 = vmatpush.bf16.msra.mxu0 %v4292
    %6960 = vmatpush.bf16.msra.mxu0 %v4284
    %6961 = vmatmul.bf16.gmra.mxu0 %v151
    %v6962 = vpop.f32.mrf.mxu0
    %v6963 = vadd.f32 %v1196, %v6962
    %v6964 = vpop.f32.mrf.mxu0
    %6965 = vdwg.mxu0
    %6966 = vmatpush.bf16.msra.mxu0 %v4404
    %6967 = vmatpush.bf16.msra.mxu0 %v4396
    %6968 = vmatpush.bf16.msra.mxu0 %v4388
    %6969 = vmatpush.bf16.msra.mxu0 %v4380
    %6970 = vmatpush.bf16.msra.mxu0 %v4372
    %6971 = vmatpush.bf16.msra.mxu0 %v4364
    %6972 = vmatpush.bf16.msra.mxu0 %v4356
    %6973 = vmatpush.bf16.msra.mxu0 %v4348
    %6974 = vmatmul.bf16.gmra.mxu0 %v152
    %v6975 = vpop.f32.mrf.mxu0
    %v6976 = vadd.f32 %v6963, %v6975
    %v6977 = vpop.f32.mrf.mxu0
    %6978 = vdwg.mxu0
    %6979 = vmatpush.bf16.msra.mxu0 %v4468
    %6980 = vmatpush.bf16.msra.mxu0 %v4460
    %6981 = vmatpush.bf16.msra.mxu0 %v4452
    %6982 = vmatpush.bf16.msra.mxu0 %v4444
    %6983 = vmatpush.bf16.msra.mxu0 %v4436
    %6984 = vmatpush.bf16.msra.mxu0 %v4428
    %6985 = vmatpush.bf16.msra.mxu0 %v4420
    %6986 = vmatpush.bf16.msra.mxu0 %v4412
    %6987 = vmatmul.bf16.gmra.mxu0 %v153
    %v6988 = vpop.f32.mrf.mxu0
    %v6989 = vadd.f32 %v6976, %v6988
    %v6990 = vpop.f32.mrf.mxu0
    %6991 = vdwg.mxu0
    %6992 = vmatpush.bf16.msra.mxu0 %v4532
    %6993 = vmatpush.bf16.msra.mxu0 %v4524
    %6994 = vmatpush.bf16.msra.mxu0 %v4516
    %6995 = vmatpush.bf16.msra.mxu0 %v4508
    %6996 = vmatpush.bf16.msra.mxu0 %v4500
    %6997 = vmatpush.bf16.msra.mxu0 %v4492
    %6998 = vmatpush.bf16.msra.mxu0 %v4484
    %6999 = vmatpush.bf16.msra.mxu0 %v4476
    %7000 = vmatmul.bf16.gmra.mxu0 %v154
    %v7001 = vpop.f32.mrf.mxu0
    %v7002 = vadd.f32 %v6989, %v7001
    %v7003 = vpop.f32.mrf.mxu0
    %7004 = vdwg.mxu0
    %7005 = vmatpush.bf16.msra.mxu0 %v4596
    %7006 = vmatpush.bf16.msra.mxu0 %v4588
    %7007 = vmatpush.bf16.msra.mxu0 %v4580
    %7008 = vmatpush.bf16.msra.mxu0 %v4572
    %7009 = vmatpush.bf16.msra.mxu0 %v4564
    %7010 = vmatpush.bf16.msra.mxu0 %v4556
    %7011 = vmatpush.bf16.msra.mxu0 %v4548
    %7012 = vmatpush.bf16.msra.mxu0 %v4540
    %7013 = vmatmul.bf16.gmra.mxu0 %v155
    %v7014 = vpop.f32.mrf.mxu0
    %v7015 = vadd.f32 %v7002, %v7014
    %v7016 = vpop.f32.mrf.mxu0
    %7017 = vdwg.mxu0
    %7018 = vmatpush.bf16.msra.mxu0 %v4660
    %7019 = vmatpush.bf16.msra.mxu0 %v4652
    %7020 = vmatpush.bf16.msra.mxu0 %v4644
    %7021 = vmatpush.bf16.msra.mxu0 %v4636
    %7022 = vmatpush.bf16.msra.mxu0 %v4628
    %7023 = vmatpush.bf16.msra.mxu0 %v4620
    %7024 = vmatpush.bf16.msra.mxu0 %v4612
    %7025 = vmatpush.bf16.msra.mxu0 %v4604
    %7026 = vmatmul.bf16.gmra.mxu0 %v156
    %v7027 = vpop.f32.mrf.mxu0
    %v7028 = vadd.f32 %v7015, %v7027
    %v7029 = vpop.f32.mrf.mxu0
    %7030 = vdwg.mxu0
    %7031 = vmatpush.bf16.msra.mxu0 %v4724
    %7032 = vmatpush.bf16.msra.mxu0 %v4716
    %7033 = vmatpush.bf16.msra.mxu0 %v4708
    %7034 = vmatpush.bf16.msra.mxu0 %v4700
    %7035 = vmatpush.bf16.msra.mxu0 %v4692
    %7036 = vmatpush.bf16.msra.mxu0 %v4684
    %7037 = vmatpush.bf16.msra.mxu0 %v4676
    %7038 = vmatpush.bf16.msra.mxu0 %v4668
    %7039 = vmatmul.bf16.gmra.mxu0 %v157
    %v7040 = vpop.f32.mrf.mxu0
    %v7041 = vadd.f32 %v7028, %v7040
    %v7042 = vpop.f32.mrf.mxu0
    %7043 = vdwg.mxu0
    %7044 = vmatpush.bf16.msra.mxu0 %v4788
    %7045 = vmatpush.bf16.msra.mxu0 %v4780
    %7046 = vmatpush.bf16.msra.mxu0 %v4772
    %7047 = vmatpush.bf16.msra.mxu0 %v4764
    %7048 = vmatpush.bf16.msra.mxu0 %v4756
    %7049 = vmatpush.bf16.msra.mxu0 %v4748
    %7050 = vmatpush.bf16.msra.mxu0 %v4740
    %7051 = vmatpush.bf16.msra.mxu0 %v4732
    %7052 = vmatmul.bf16.gmra.mxu0 %v158
    %v7053 = vpop.f32.mrf.mxu0
    %v7054 = vadd.f32 %v7041, %v7053
    %v7055 = vpop.f32.mrf.mxu0
    %7056 = vdwg.mxu0
    %7057 = vmatpush.bf16.msra.mxu0 %v4852
    %7058 = vmatpush.bf16.msra.mxu0 %v4844
    %7059 = vmatpush.bf16.msra.mxu0 %v4836
    %7060 = vmatpush.bf16.msra.mxu0 %v4828
    %7061 = vmatpush.bf16.msra.mxu0 %v4820
    %7062 = vmatpush.bf16.msra.mxu0 %v4812
    %7063 = vmatpush.bf16.msra.mxu0 %v4804
    %7064 = vmatpush.bf16.msra.mxu0 %v4796
    %7065 = vmatmul.bf16.gmra.mxu0 %v159
    %v7066 = vpop.f32.mrf.mxu0
    %v7067 = vadd.f32 %v7054, %v7066
    %v7068 = vpop.f32.mrf.mxu0
    %7069 = vdwg.mxu0
    %7070 = vmatpush.bf16.msra.mxu0 %v4916
    %7071 = vmatpush.bf16.msra.mxu0 %v4908
    %7072 = vmatpush.bf16.msra.mxu0 %v4900
    %7073 = vmatpush.bf16.msra.mxu0 %v4892
    %7074 = vmatpush.bf16.msra.mxu0 %v4884
    %7075 = vmatpush.bf16.msra.mxu0 %v4876
    %7076 = vmatpush.bf16.msra.mxu0 %v4868
    %7077 = vmatpush.bf16.msra.mxu0 %v4860
    %7078 = vmatmul.bf16.gmra.mxu0 %v160
    %v7079 = vpop.f32.mrf.mxu0
    %v7080 = vadd.f32 %v7067, %v7079
    %v7081 = vpop.f32.mrf.mxu0
    %7082 = vdwg.mxu0
    %7083 = vmatpush.bf16.msra.mxu0 %v4980
    %7084 = vmatpush.bf16.msra.mxu0 %v4972
    %7085 = vmatpush.bf16.msra.mxu0 %v4964
    %7086 = vmatpush.bf16.msra.mxu0 %v4956
    %7087 = vmatpush.bf16.msra.mxu0 %v4948
    %7088 = vmatpush.bf16.msra.mxu0 %v4940
    %7089 = vmatpush.bf16.msra.mxu0 %v4932
    %7090 = vmatpush.bf16.msra.mxu0 %v4924
    %7091 = vmatmul.bf16.gmra.mxu0 %v161
    %v7092 = vpop.f32.mrf.mxu0
    %v7093 = vadd.f32 %v7080, %v7092
    %v7094 = vpop.f32.mrf.mxu0
    %7095 = vdwg.mxu0
    %7096 = vmatpush.bf16.msra.mxu0 %v5044
    %7097 = vmatpush.bf16.msra.mxu0 %v5036
    %7098 = vmatpush.bf16.msra.mxu0 %v5028
    %7099 = vmatpush.bf16.msra.mxu0 %v5020
    %7100 = vmatpush.bf16.msra.mxu0 %v5012
    %7101 = vmatpush.bf16.msra.mxu0 %v5004
    %7102 = vmatpush.bf16.msra.mxu0 %v4996
    %7103 = vmatpush.bf16.msra.mxu0 %v4988
    %7104 = vmatmul.bf16.gmra.mxu0 %v162
    %v7105 = vpop.f32.mrf.mxu0
    %v7106 = vadd.f32 %v7093, %v7105
    %v7107 = vpop.f32.mrf.mxu0
    %7108 = vdwg.mxu0
    %7109 = vmatpush.bf16.msra.mxu0 %v5108
    %7110 = vmatpush.bf16.msra.mxu0 %v5100
    %7111 = vmatpush.bf16.msra.mxu0 %v5092
    %7112 = vmatpush.bf16.msra.mxu0 %v5084
    %7113 = vmatpush.bf16.msra.mxu0 %v5076
    %7114 = vmatpush.bf16.msra.mxu0 %v5068
    %7115 = vmatpush.bf16.msra.mxu0 %v5060
    %7116 = vmatpush.bf16.msra.mxu0 %v5052
    %7117 = vmatmul.bf16.gmra.mxu0 %v163
    %v7118 = vpop.f32.mrf.mxu0
    %v7119 = vadd.f32 %v7106, %v7118
    %v7120 = vpop.f32.mrf.mxu0
    %7121 = vdwg.mxu0
    %7122 = vmatpush.bf16.msra.mxu0 %v5172
    %7123 = vmatpush.bf16.msra.mxu0 %v5164
    %7124 = vmatpush.bf16.msra.mxu0 %v5156
    %7125 = vmatpush.bf16.msra.mxu0 %v5148
    %7126 = vmatpush.bf16.msra.mxu0 %v5140
    %7127 = vmatpush.bf16.msra.mxu0 %v5132
    %7128 = vmatpush.bf16.msra.mxu0 %v5124
    %7129 = vmatpush.bf16.msra.mxu0 %v5116
    %7130 = vmatmul.bf16.gmra.mxu0 %v164
    %v7131 = vpop.f32.mrf.mxu0
    %v7132 = vadd.f32 %v7119, %v7131
    %v7133 = vpop.f32.mrf.mxu0
    %7134 = vdwg.mxu0
    %7135 = vmatpush.bf16.msra.mxu0 %v5236
    %7136 = vmatpush.bf16.msra.mxu0 %v5228
    %7137 = vmatpush.bf16.msra.mxu0 %v5220
    %7138 = vmatpush.bf16.msra.mxu0 %v5212
    %7139 = vmatpush.bf16.msra.mxu0 %v5204
    %7140 = vmatpush.bf16.msra.mxu0 %v5196
    %7141 = vmatpush.bf16.msra.mxu0 %v5188
    %7142 = vmatpush.bf16.msra.mxu0 %v5180
    %7143 = vmatmul.bf16.gmra.mxu0 %v165
    %v7144 = vpop.f32.mrf.mxu0
    %v7145 = vadd.f32 %v7132, %v7144
    %v7146 = vpop.f32.mrf.mxu0
    %7147 = vdwg.mxu0
    %7148 = vmatpush.bf16.msra.mxu0 %v5300
    %7149 = vmatpush.bf16.msra.mxu0 %v5292
    %7150 = vmatpush.bf16.msra.mxu0 %v5284
    %7151 = vmatpush.bf16.msra.mxu0 %v5276
    %7152 = vmatpush.bf16.msra.mxu0 %v5268
    %7153 = vmatpush.bf16.msra.mxu0 %v5260
    %7154 = vmatpush.bf16.msra.mxu0 %v5252
    %7155 = vmatpush.bf16.msra.mxu0 %v5244
    %7156 = vmatmul.bf16.gmra.mxu0 %v166
    %v7157 = vpop.f32.mrf.mxu0
    %v7158 = vadd.f32 %v7145, %v7157
    %v7159 = vpop.f32.mrf.mxu0
    %7160 = vdwg.mxu0
    %7161 = vmatpush.bf16.msra.mxu0 %v4341
    %7162 = vmatpush.bf16.msra.mxu0 %v4333
    %7163 = vmatpush.bf16.msra.mxu0 %v4325
    %7164 = vmatpush.bf16.msra.mxu0 %v4317
    %7165 = vmatpush.bf16.msra.mxu0 %v4309
    %7166 = vmatpush.bf16.msra.mxu0 %v4301
    %7167 = vmatpush.bf16.msra.mxu0 %v4293
    %7168 = vmatpush.bf16.msra.mxu0 %v4285
    %7169 = vmatmul.bf16.gmra.mxu0 %v151
    %v7170 = vpop.f32.mrf.mxu0
    %v7171 = vadd.f32 %v1197, %v7170
    %v7172 = vpop.f32.mrf.mxu0
    %7173 = vdwg.mxu0
    %7174 = vmatpush.bf16.msra.mxu0 %v4405
    %7175 = vmatpush.bf16.msra.mxu0 %v4397
    %7176 = vmatpush.bf16.msra.mxu0 %v4389
    %7177 = vmatpush.bf16.msra.mxu0 %v4381
    %7178 = vmatpush.bf16.msra.mxu0 %v4373
    %7179 = vmatpush.bf16.msra.mxu0 %v4365
    %7180 = vmatpush.bf16.msra.mxu0 %v4357
    %7181 = vmatpush.bf16.msra.mxu0 %v4349
    %7182 = vmatmul.bf16.gmra.mxu0 %v152
    %v7183 = vpop.f32.mrf.mxu0
    %v7184 = vadd.f32 %v7171, %v7183
    %v7185 = vpop.f32.mrf.mxu0
    %7186 = vdwg.mxu0
    %7187 = vmatpush.bf16.msra.mxu0 %v4469
    %7188 = vmatpush.bf16.msra.mxu0 %v4461
    %7189 = vmatpush.bf16.msra.mxu0 %v4453
    %7190 = vmatpush.bf16.msra.mxu0 %v4445
    %7191 = vmatpush.bf16.msra.mxu0 %v4437
    %7192 = vmatpush.bf16.msra.mxu0 %v4429
    %7193 = vmatpush.bf16.msra.mxu0 %v4421
    %7194 = vmatpush.bf16.msra.mxu0 %v4413
    %7195 = vmatmul.bf16.gmra.mxu0 %v153
    %v7196 = vpop.f32.mrf.mxu0
    %v7197 = vadd.f32 %v7184, %v7196
    %v7198 = vpop.f32.mrf.mxu0
    %7199 = vdwg.mxu0
    %7200 = vmatpush.bf16.msra.mxu0 %v4533
    %7201 = vmatpush.bf16.msra.mxu0 %v4525
    %7202 = vmatpush.bf16.msra.mxu0 %v4517
    %7203 = vmatpush.bf16.msra.mxu0 %v4509
    %7204 = vmatpush.bf16.msra.mxu0 %v4501
    %7205 = vmatpush.bf16.msra.mxu0 %v4493
    %7206 = vmatpush.bf16.msra.mxu0 %v4485
    %7207 = vmatpush.bf16.msra.mxu0 %v4477
    %7208 = vmatmul.bf16.gmra.mxu0 %v154
    %v7209 = vpop.f32.mrf.mxu0
    %v7210 = vadd.f32 %v7197, %v7209
    %v7211 = vpop.f32.mrf.mxu0
    %7212 = vdwg.mxu0
    %7213 = vmatpush.bf16.msra.mxu0 %v4597
    %7214 = vmatpush.bf16.msra.mxu0 %v4589
    %7215 = vmatpush.bf16.msra.mxu0 %v4581
    %7216 = vmatpush.bf16.msra.mxu0 %v4573
    %7217 = vmatpush.bf16.msra.mxu0 %v4565
    %7218 = vmatpush.bf16.msra.mxu0 %v4557
    %7219 = vmatpush.bf16.msra.mxu0 %v4549
    %7220 = vmatpush.bf16.msra.mxu0 %v4541
    %7221 = vmatmul.bf16.gmra.mxu0 %v155
    %v7222 = vpop.f32.mrf.mxu0
    %v7223 = vadd.f32 %v7210, %v7222
    %v7224 = vpop.f32.mrf.mxu0
    %7225 = vdwg.mxu0
    %7226 = vmatpush.bf16.msra.mxu0 %v4661
    %7227 = vmatpush.bf16.msra.mxu0 %v4653
    %7228 = vmatpush.bf16.msra.mxu0 %v4645
    %7229 = vmatpush.bf16.msra.mxu0 %v4637
    %7230 = vmatpush.bf16.msra.mxu0 %v4629
    %7231 = vmatpush.bf16.msra.mxu0 %v4621
    %7232 = vmatpush.bf16.msra.mxu0 %v4613
    %7233 = vmatpush.bf16.msra.mxu0 %v4605
    %7234 = vmatmul.bf16.gmra.mxu0 %v156
    %v7235 = vpop.f32.mrf.mxu0
    %v7236 = vadd.f32 %v7223, %v7235
    %v7237 = vpop.f32.mrf.mxu0
    %7238 = vdwg.mxu0
    %7239 = vmatpush.bf16.msra.mxu0 %v4725
    %7240 = vmatpush.bf16.msra.mxu0 %v4717
    %7241 = vmatpush.bf16.msra.mxu0 %v4709
    %7242 = vmatpush.bf16.msra.mxu0 %v4701
    %7243 = vmatpush.bf16.msra.mxu0 %v4693
    %7244 = vmatpush.bf16.msra.mxu0 %v4685
    %7245 = vmatpush.bf16.msra.mxu0 %v4677
    %7246 = vmatpush.bf16.msra.mxu0 %v4669
    %7247 = vmatmul.bf16.gmra.mxu0 %v157
    %v7248 = vpop.f32.mrf.mxu0
    %v7249 = vadd.f32 %v7236, %v7248
    %v7250 = vpop.f32.mrf.mxu0
    %7251 = vdwg.mxu0
    %7252 = vmatpush.bf16.msra.mxu0 %v4789
    %7253 = vmatpush.bf16.msra.mxu0 %v4781
    %7254 = vmatpush.bf16.msra.mxu0 %v4773
    %7255 = vmatpush.bf16.msra.mxu0 %v4765
    %7256 = vmatpush.bf16.msra.mxu0 %v4757
    %7257 = vmatpush.bf16.msra.mxu0 %v4749
    %7258 = vmatpush.bf16.msra.mxu0 %v4741
    %7259 = vmatpush.bf16.msra.mxu0 %v4733
    %7260 = vmatmul.bf16.gmra.mxu0 %v158
    %v7261 = vpop.f32.mrf.mxu0
    %v7262 = vadd.f32 %v7249, %v7261
    %v7263 = vpop.f32.mrf.mxu0
    %7264 = vdwg.mxu0
    %7265 = vmatpush.bf16.msra.mxu0 %v4853
    %7266 = vmatpush.bf16.msra.mxu0 %v4845
    %7267 = vmatpush.bf16.msra.mxu0 %v4837
    %7268 = vmatpush.bf16.msra.mxu0 %v4829
    %7269 = vmatpush.bf16.msra.mxu0 %v4821
    %7270 = vmatpush.bf16.msra.mxu0 %v4813
    %7271 = vmatpush.bf16.msra.mxu0 %v4805
    %7272 = vmatpush.bf16.msra.mxu0 %v4797
    %7273 = vmatmul.bf16.gmra.mxu0 %v159
    %v7274 = vpop.f32.mrf.mxu0
    %v7275 = vadd.f32 %v7262, %v7274
    %v7276 = vpop.f32.mrf.mxu0
    %7277 = vdwg.mxu0
    %7278 = vmatpush.bf16.msra.mxu0 %v4917
    %7279 = vmatpush.bf16.msra.mxu0 %v4909
    %7280 = vmatpush.bf16.msra.mxu0 %v4901
    %7281 = vmatpush.bf16.msra.mxu0 %v4893
    %7282 = vmatpush.bf16.msra.mxu0 %v4885
    %7283 = vmatpush.bf16.msra.mxu0 %v4877
    %7284 = vmatpush.bf16.msra.mxu0 %v4869
    %7285 = vmatpush.bf16.msra.mxu0 %v4861
    %7286 = vmatmul.bf16.gmra.mxu0 %v160
    %v7287 = vpop.f32.mrf.mxu0
    %v7288 = vadd.f32 %v7275, %v7287
    %v7289 = vpop.f32.mrf.mxu0
    %7290 = vdwg.mxu0
    %7291 = vmatpush.bf16.msra.mxu0 %v4981
    %7292 = vmatpush.bf16.msra.mxu0 %v4973
    %7293 = vmatpush.bf16.msra.mxu0 %v4965
    %7294 = vmatpush.bf16.msra.mxu0 %v4957
    %7295 = vmatpush.bf16.msra.mxu0 %v4949
    %7296 = vmatpush.bf16.msra.mxu0 %v4941
    %7297 = vmatpush.bf16.msra.mxu0 %v4933
    %7298 = vmatpush.bf16.msra.mxu0 %v4925
    %7299 = vmatmul.bf16.gmra.mxu0 %v161
    %v7300 = vpop.f32.mrf.mxu0
    %v7301 = vadd.f32 %v7288, %v7300
    %v7302 = vpop.f32.mrf.mxu0
    %7303 = vdwg.mxu0
    %7304 = vmatpush.bf16.msra.mxu0 %v5045
    %7305 = vmatpush.bf16.msra.mxu0 %v5037
    %7306 = vmatpush.bf16.msra.mxu0 %v5029
    %7307 = vmatpush.bf16.msra.mxu0 %v5021
    %7308 = vmatpush.bf16.msra.mxu0 %v5013
    %7309 = vmatpush.bf16.msra.mxu0 %v5005
    %7310 = vmatpush.bf16.msra.mxu0 %v4997
    %7311 = vmatpush.bf16.msra.mxu0 %v4989
    %7312 = vmatmul.bf16.gmra.mxu0 %v162
    %v7313 = vpop.f32.mrf.mxu0
    %v7314 = vadd.f32 %v7301, %v7313
    %v7315 = vpop.f32.mrf.mxu0
    %7316 = vdwg.mxu0
    %7317 = vmatpush.bf16.msra.mxu0 %v5109
    %7318 = vmatpush.bf16.msra.mxu0 %v5101
    %7319 = vmatpush.bf16.msra.mxu0 %v5093
    %7320 = vmatpush.bf16.msra.mxu0 %v5085
    %7321 = vmatpush.bf16.msra.mxu0 %v5077
    %7322 = vmatpush.bf16.msra.mxu0 %v5069
    %7323 = vmatpush.bf16.msra.mxu0 %v5061
    %7324 = vmatpush.bf16.msra.mxu0 %v5053
    %7325 = vmatmul.bf16.gmra.mxu0 %v163
    %v7326 = vpop.f32.mrf.mxu0
    %v7327 = vadd.f32 %v7314, %v7326
    %v7328 = vpop.f32.mrf.mxu0
    %7329 = vdwg.mxu0
    %7330 = vmatpush.bf16.msra.mxu0 %v5173
    %7331 = vmatpush.bf16.msra.mxu0 %v5165
    %7332 = vmatpush.bf16.msra.mxu0 %v5157
    %7333 = vmatpush.bf16.msra.mxu0 %v5149
    %7334 = vmatpush.bf16.msra.mxu0 %v5141
    %7335 = vmatpush.bf16.msra.mxu0 %v5133
    %7336 = vmatpush.bf16.msra.mxu0 %v5125
    %7337 = vmatpush.bf16.msra.mxu0 %v5117
    %7338 = vmatmul.bf16.gmra.mxu0 %v164
    %v7339 = vpop.f32.mrf.mxu0
    %v7340 = vadd.f32 %v7327, %v7339
    %v7341 = vpop.f32.mrf.mxu0
    %7342 = vdwg.mxu0
    %7343 = vmatpush.bf16.msra.mxu0 %v5237
    %7344 = vmatpush.bf16.msra.mxu0 %v5229
    %7345 = vmatpush.bf16.msra.mxu0 %v5221
    %7346 = vmatpush.bf16.msra.mxu0 %v5213
    %7347 = vmatpush.bf16.msra.mxu0 %v5205
    %7348 = vmatpush.bf16.msra.mxu0 %v5197
    %7349 = vmatpush.bf16.msra.mxu0 %v5189
    %7350 = vmatpush.bf16.msra.mxu0 %v5181
    %7351 = vmatmul.bf16.gmra.mxu0 %v165
    %v7352 = vpop.f32.mrf.mxu0
    %v7353 = vadd.f32 %v7340, %v7352
    %v7354 = vpop.f32.mrf.mxu0
    %7355 = vdwg.mxu0
    %7356 = vmatpush.bf16.msra.mxu0 %v5301
    %7357 = vmatpush.bf16.msra.mxu0 %v5293
    %7358 = vmatpush.bf16.msra.mxu0 %v5285
    %7359 = vmatpush.bf16.msra.mxu0 %v5277
    %7360 = vmatpush.bf16.msra.mxu0 %v5269
    %7361 = vmatpush.bf16.msra.mxu0 %v5261
    %7362 = vmatpush.bf16.msra.mxu0 %v5253
    %7363 = vmatpush.bf16.msra.mxu0 %v5245
    %7364 = vmatmul.bf16.gmra.mxu0 %v166
    %v7365 = vpop.f32.mrf.mxu0
    %v7366 = vadd.f32 %v7353, %v7365
    %v7367 = vpop.f32.mrf.mxu0
    %7368 = vdwg.mxu0
    %7369 = vmatpush.bf16.msra.mxu0 %v4342
    %7370 = vmatpush.bf16.msra.mxu0 %v4334
    %7371 = vmatpush.bf16.msra.mxu0 %v4326
    %7372 = vmatpush.bf16.msra.mxu0 %v4318
    %7373 = vmatpush.bf16.msra.mxu0 %v4310
    %7374 = vmatpush.bf16.msra.mxu0 %v4302
    %7375 = vmatpush.bf16.msra.mxu0 %v4294
    %7376 = vmatpush.bf16.msra.mxu0 %v4286
    %7377 = vmatmul.bf16.gmra.mxu0 %v151
    %v7378 = vpop.f32.mrf.mxu0
    %v7379 = vadd.f32 %v1198, %v7378
    %v7380 = vpop.f32.mrf.mxu0
    %7381 = vdwg.mxu0
    %7382 = vmatpush.bf16.msra.mxu0 %v4406
    %7383 = vmatpush.bf16.msra.mxu0 %v4398
    %7384 = vmatpush.bf16.msra.mxu0 %v4390
    %7385 = vmatpush.bf16.msra.mxu0 %v4382
    %7386 = vmatpush.bf16.msra.mxu0 %v4374
    %7387 = vmatpush.bf16.msra.mxu0 %v4366
    %7388 = vmatpush.bf16.msra.mxu0 %v4358
    %7389 = vmatpush.bf16.msra.mxu0 %v4350
    %7390 = vmatmul.bf16.gmra.mxu0 %v152
    %v7391 = vpop.f32.mrf.mxu0
    %v7392 = vadd.f32 %v7379, %v7391
    %v7393 = vpop.f32.mrf.mxu0
    %7394 = vdwg.mxu0
    %7395 = vmatpush.bf16.msra.mxu0 %v4470
    %7396 = vmatpush.bf16.msra.mxu0 %v4462
    %7397 = vmatpush.bf16.msra.mxu0 %v4454
    %7398 = vmatpush.bf16.msra.mxu0 %v4446
    %7399 = vmatpush.bf16.msra.mxu0 %v4438
    %7400 = vmatpush.bf16.msra.mxu0 %v4430
    %7401 = vmatpush.bf16.msra.mxu0 %v4422
    %7402 = vmatpush.bf16.msra.mxu0 %v4414
    %7403 = vmatmul.bf16.gmra.mxu0 %v153
    %v7404 = vpop.f32.mrf.mxu0
    %v7405 = vadd.f32 %v7392, %v7404
    %v7406 = vpop.f32.mrf.mxu0
    %7407 = vdwg.mxu0
    %7408 = vmatpush.bf16.msra.mxu0 %v4534
    %7409 = vmatpush.bf16.msra.mxu0 %v4526
    %7410 = vmatpush.bf16.msra.mxu0 %v4518
    %7411 = vmatpush.bf16.msra.mxu0 %v4510
    %7412 = vmatpush.bf16.msra.mxu0 %v4502
    %7413 = vmatpush.bf16.msra.mxu0 %v4494
    %7414 = vmatpush.bf16.msra.mxu0 %v4486
    %7415 = vmatpush.bf16.msra.mxu0 %v4478
    %7416 = vmatmul.bf16.gmra.mxu0 %v154
    %v7417 = vpop.f32.mrf.mxu0
    %v7418 = vadd.f32 %v7405, %v7417
    %v7419 = vpop.f32.mrf.mxu0
    %7420 = vdwg.mxu0
    %7421 = vmatpush.bf16.msra.mxu0 %v4598
    %7422 = vmatpush.bf16.msra.mxu0 %v4590
    %7423 = vmatpush.bf16.msra.mxu0 %v4582
    %7424 = vmatpush.bf16.msra.mxu0 %v4574
    %7425 = vmatpush.bf16.msra.mxu0 %v4566
    %7426 = vmatpush.bf16.msra.mxu0 %v4558
    %7427 = vmatpush.bf16.msra.mxu0 %v4550
    %7428 = vmatpush.bf16.msra.mxu0 %v4542
    %7429 = vmatmul.bf16.gmra.mxu0 %v155
    %v7430 = vpop.f32.mrf.mxu0
    %v7431 = vadd.f32 %v7418, %v7430
    %v7432 = vpop.f32.mrf.mxu0
    %7433 = vdwg.mxu0
    %7434 = vmatpush.bf16.msra.mxu0 %v4662
    %7435 = vmatpush.bf16.msra.mxu0 %v4654
    %7436 = vmatpush.bf16.msra.mxu0 %v4646
    %7437 = vmatpush.bf16.msra.mxu0 %v4638
    %7438 = vmatpush.bf16.msra.mxu0 %v4630
    %7439 = vmatpush.bf16.msra.mxu0 %v4622
    %7440 = vmatpush.bf16.msra.mxu0 %v4614
    %7441 = vmatpush.bf16.msra.mxu0 %v4606
    %7442 = vmatmul.bf16.gmra.mxu0 %v156
    %v7443 = vpop.f32.mrf.mxu0
    %v7444 = vadd.f32 %v7431, %v7443
    %v7445 = vpop.f32.mrf.mxu0
    %7446 = vdwg.mxu0
    %7447 = vmatpush.bf16.msra.mxu0 %v4726
    %7448 = vmatpush.bf16.msra.mxu0 %v4718
    %7449 = vmatpush.bf16.msra.mxu0 %v4710
    %7450 = vmatpush.bf16.msra.mxu0 %v4702
    %7451 = vmatpush.bf16.msra.mxu0 %v4694
    %7452 = vmatpush.bf16.msra.mxu0 %v4686
    %7453 = vmatpush.bf16.msra.mxu0 %v4678
    %7454 = vmatpush.bf16.msra.mxu0 %v4670
    %7455 = vmatmul.bf16.gmra.mxu0 %v157
    %v7456 = vpop.f32.mrf.mxu0
    %v7457 = vadd.f32 %v7444, %v7456
    %v7458 = vpop.f32.mrf.mxu0
    %7459 = vdwg.mxu0
    %7460 = vmatpush.bf16.msra.mxu0 %v4790
    %7461 = vmatpush.bf16.msra.mxu0 %v4782
    %7462 = vmatpush.bf16.msra.mxu0 %v4774
    %7463 = vmatpush.bf16.msra.mxu0 %v4766
    %7464 = vmatpush.bf16.msra.mxu0 %v4758
    %7465 = vmatpush.bf16.msra.mxu0 %v4750
    %7466 = vmatpush.bf16.msra.mxu0 %v4742
    %7467 = vmatpush.bf16.msra.mxu0 %v4734
    %7468 = vmatmul.bf16.gmra.mxu0 %v158
    %v7469 = vpop.f32.mrf.mxu0
    %v7470 = vadd.f32 %v7457, %v7469
    %v7471 = vpop.f32.mrf.mxu0
    %7472 = vdwg.mxu0
    %7473 = vmatpush.bf16.msra.mxu0 %v4854
    %7474 = vmatpush.bf16.msra.mxu0 %v4846
    %7475 = vmatpush.bf16.msra.mxu0 %v4838
    %7476 = vmatpush.bf16.msra.mxu0 %v4830
    %7477 = vmatpush.bf16.msra.mxu0 %v4822
    %7478 = vmatpush.bf16.msra.mxu0 %v4814
    %7479 = vmatpush.bf16.msra.mxu0 %v4806
    %7480 = vmatpush.bf16.msra.mxu0 %v4798
    %7481 = vmatmul.bf16.gmra.mxu0 %v159
    %v7482 = vpop.f32.mrf.mxu0
    %v7483 = vadd.f32 %v7470, %v7482
    %v7484 = vpop.f32.mrf.mxu0
    %7485 = vdwg.mxu0
    %7486 = vmatpush.bf16.msra.mxu0 %v4918
    %7487 = vmatpush.bf16.msra.mxu0 %v4910
    %7488 = vmatpush.bf16.msra.mxu0 %v4902
    %7489 = vmatpush.bf16.msra.mxu0 %v4894
    %7490 = vmatpush.bf16.msra.mxu0 %v4886
    %7491 = vmatpush.bf16.msra.mxu0 %v4878
    %7492 = vmatpush.bf16.msra.mxu0 %v4870
    %7493 = vmatpush.bf16.msra.mxu0 %v4862
    %7494 = vmatmul.bf16.gmra.mxu0 %v160
    %v7495 = vpop.f32.mrf.mxu0
    %v7496 = vadd.f32 %v7483, %v7495
    %v7497 = vpop.f32.mrf.mxu0
    %7498 = vdwg.mxu0
    %7499 = vmatpush.bf16.msra.mxu0 %v4982
    %7500 = vmatpush.bf16.msra.mxu0 %v4974
    %7501 = vmatpush.bf16.msra.mxu0 %v4966
    %7502 = vmatpush.bf16.msra.mxu0 %v4958
    %7503 = vmatpush.bf16.msra.mxu0 %v4950
    %7504 = vmatpush.bf16.msra.mxu0 %v4942
    %7505 = vmatpush.bf16.msra.mxu0 %v4934
    %7506 = vmatpush.bf16.msra.mxu0 %v4926
    %7507 = vmatmul.bf16.gmra.mxu0 %v161
    %v7508 = vpop.f32.mrf.mxu0
    %v7509 = vadd.f32 %v7496, %v7508
    %v7510 = vpop.f32.mrf.mxu0
    %7511 = vdwg.mxu0
    %7512 = vmatpush.bf16.msra.mxu0 %v5046
    %7513 = vmatpush.bf16.msra.mxu0 %v5038
    %7514 = vmatpush.bf16.msra.mxu0 %v5030
    %7515 = vmatpush.bf16.msra.mxu0 %v5022
    %7516 = vmatpush.bf16.msra.mxu0 %v5014
    %7517 = vmatpush.bf16.msra.mxu0 %v5006
    %7518 = vmatpush.bf16.msra.mxu0 %v4998
    %7519 = vmatpush.bf16.msra.mxu0 %v4990
    %7520 = vmatmul.bf16.gmra.mxu0 %v162
    %v7521 = vpop.f32.mrf.mxu0
    %v7522 = vadd.f32 %v7509, %v7521
    %v7523 = vpop.f32.mrf.mxu0
    %7524 = vdwg.mxu0
    %7525 = vmatpush.bf16.msra.mxu0 %v5110
    %7526 = vmatpush.bf16.msra.mxu0 %v5102
    %7527 = vmatpush.bf16.msra.mxu0 %v5094
    %7528 = vmatpush.bf16.msra.mxu0 %v5086
    %7529 = vmatpush.bf16.msra.mxu0 %v5078
    %7530 = vmatpush.bf16.msra.mxu0 %v5070
    %7531 = vmatpush.bf16.msra.mxu0 %v5062
    %7532 = vmatpush.bf16.msra.mxu0 %v5054
    %7533 = vmatmul.bf16.gmra.mxu0 %v163
    %v7534 = vpop.f32.mrf.mxu0
    %v7535 = vadd.f32 %v7522, %v7534
    %v7536 = vpop.f32.mrf.mxu0
    %7537 = vdwg.mxu0
    %7538 = vmatpush.bf16.msra.mxu0 %v5174
    %7539 = vmatpush.bf16.msra.mxu0 %v5166
    %7540 = vmatpush.bf16.msra.mxu0 %v5158
    %7541 = vmatpush.bf16.msra.mxu0 %v5150
    %7542 = vmatpush.bf16.msra.mxu0 %v5142
    %7543 = vmatpush.bf16.msra.mxu0 %v5134
    %7544 = vmatpush.bf16.msra.mxu0 %v5126
    %7545 = vmatpush.bf16.msra.mxu0 %v5118
    %7546 = vmatmul.bf16.gmra.mxu0 %v164
    %v7547 = vpop.f32.mrf.mxu0
    %v7548 = vadd.f32 %v7535, %v7547
    %v7549 = vpop.f32.mrf.mxu0
    %7550 = vdwg.mxu0
    %7551 = vmatpush.bf16.msra.mxu0 %v5238
    %7552 = vmatpush.bf16.msra.mxu0 %v5230
    %7553 = vmatpush.bf16.msra.mxu0 %v5222
    %7554 = vmatpush.bf16.msra.mxu0 %v5214
    %7555 = vmatpush.bf16.msra.mxu0 %v5206
    %7556 = vmatpush.bf16.msra.mxu0 %v5198
    %7557 = vmatpush.bf16.msra.mxu0 %v5190
    %7558 = vmatpush.bf16.msra.mxu0 %v5182
    %7559 = vmatmul.bf16.gmra.mxu0 %v165
    %v7560 = vpop.f32.mrf.mxu0
    %v7561 = vadd.f32 %v7548, %v7560
    %v7562 = vpop.f32.mrf.mxu0
    %7563 = vdwg.mxu0
    %7564 = vmatpush.bf16.msra.mxu0 %v5302
    %7565 = vmatpush.bf16.msra.mxu0 %v5294
    %7566 = vmatpush.bf16.msra.mxu0 %v5286
    %7567 = vmatpush.bf16.msra.mxu0 %v5278
    %7568 = vmatpush.bf16.msra.mxu0 %v5270
    %7569 = vmatpush.bf16.msra.mxu0 %v5262
    %7570 = vmatpush.bf16.msra.mxu0 %v5254
    %7571 = vmatpush.bf16.msra.mxu0 %v5246
    %7572 = vmatmul.bf16.gmra.mxu0 %v166
    %v7573 = vpop.f32.mrf.mxu0
    %v7574 = vadd.f32 %v7561, %v7573
    %v7575 = vpop.f32.mrf.mxu0
    %7576 = vdwg.mxu0
    %7577 = vmatpush.bf16.msra.mxu0 %v4343
    %7578 = vmatpush.bf16.msra.mxu0 %v4335
    %7579 = vmatpush.bf16.msra.mxu0 %v4327
    %7580 = vmatpush.bf16.msra.mxu0 %v4319
    %7581 = vmatpush.bf16.msra.mxu0 %v4311
    %7582 = vmatpush.bf16.msra.mxu0 %v4303
    %7583 = vmatpush.bf16.msra.mxu0 %v4295
    %7584 = vmatpush.bf16.msra.mxu0 %v4287
    %7585 = vmatmul.bf16.gmra.mxu0 %v151
    %v7586 = vpop.f32.mrf.mxu0
    %v7587 = vadd.f32 %v1199, %v7586
    %v7588 = vpop.f32.mrf.mxu0
    %7589 = vdwg.mxu0
    %7590 = vmatpush.bf16.msra.mxu0 %v4407
    %7591 = vmatpush.bf16.msra.mxu0 %v4399
    %7592 = vmatpush.bf16.msra.mxu0 %v4391
    %7593 = vmatpush.bf16.msra.mxu0 %v4383
    %7594 = vmatpush.bf16.msra.mxu0 %v4375
    %7595 = vmatpush.bf16.msra.mxu0 %v4367
    %7596 = vmatpush.bf16.msra.mxu0 %v4359
    %7597 = vmatpush.bf16.msra.mxu0 %v4351
    %7598 = vmatmul.bf16.gmra.mxu0 %v152
    %v7599 = vpop.f32.mrf.mxu0
    %v7600 = vadd.f32 %v7587, %v7599
    %v7601 = vpop.f32.mrf.mxu0
    %7602 = vdwg.mxu0
    %7603 = vmatpush.bf16.msra.mxu0 %v4471
    %7604 = vmatpush.bf16.msra.mxu0 %v4463
    %7605 = vmatpush.bf16.msra.mxu0 %v4455
    %7606 = vmatpush.bf16.msra.mxu0 %v4447
    %7607 = vmatpush.bf16.msra.mxu0 %v4439
    %7608 = vmatpush.bf16.msra.mxu0 %v4431
    %7609 = vmatpush.bf16.msra.mxu0 %v4423
    %7610 = vmatpush.bf16.msra.mxu0 %v4415
    %7611 = vmatmul.bf16.gmra.mxu0 %v153
    %v7612 = vpop.f32.mrf.mxu0
    %v7613 = vadd.f32 %v7600, %v7612
    %v7614 = vpop.f32.mrf.mxu0
    %7615 = vdwg.mxu0
    %7616 = vmatpush.bf16.msra.mxu0 %v4535
    %7617 = vmatpush.bf16.msra.mxu0 %v4527
    %7618 = vmatpush.bf16.msra.mxu0 %v4519
    %7619 = vmatpush.bf16.msra.mxu0 %v4511
    %7620 = vmatpush.bf16.msra.mxu0 %v4503
    %7621 = vmatpush.bf16.msra.mxu0 %v4495
    %7622 = vmatpush.bf16.msra.mxu0 %v4487
    %7623 = vmatpush.bf16.msra.mxu0 %v4479
    %7624 = vmatmul.bf16.gmra.mxu0 %v154
    %v7625 = vpop.f32.mrf.mxu0
    %v7626 = vadd.f32 %v7613, %v7625
    %v7627 = vpop.f32.mrf.mxu0
    %7628 = vdwg.mxu0
    %7629 = vmatpush.bf16.msra.mxu0 %v4599
    %7630 = vmatpush.bf16.msra.mxu0 %v4591
    %7631 = vmatpush.bf16.msra.mxu0 %v4583
    %7632 = vmatpush.bf16.msra.mxu0 %v4575
    %7633 = vmatpush.bf16.msra.mxu0 %v4567
    %7634 = vmatpush.bf16.msra.mxu0 %v4559
    %7635 = vmatpush.bf16.msra.mxu0 %v4551
    %7636 = vmatpush.bf16.msra.mxu0 %v4543
    %7637 = vmatmul.bf16.gmra.mxu0 %v155
    %v7638 = vpop.f32.mrf.mxu0
    %v7639 = vadd.f32 %v7626, %v7638
    %v7640 = vpop.f32.mrf.mxu0
    %7641 = vdwg.mxu0
    %7642 = vmatpush.bf16.msra.mxu0 %v4663
    %7643 = vmatpush.bf16.msra.mxu0 %v4655
    %7644 = vmatpush.bf16.msra.mxu0 %v4647
    %7645 = vmatpush.bf16.msra.mxu0 %v4639
    %7646 = vmatpush.bf16.msra.mxu0 %v4631
    %7647 = vmatpush.bf16.msra.mxu0 %v4623
    %7648 = vmatpush.bf16.msra.mxu0 %v4615
    %7649 = vmatpush.bf16.msra.mxu0 %v4607
    %7650 = vmatmul.bf16.gmra.mxu0 %v156
    %v7651 = vpop.f32.mrf.mxu0
    %v7652 = vadd.f32 %v7639, %v7651
    %v7653 = vpop.f32.mrf.mxu0
    %7654 = vdwg.mxu0
    %7655 = vmatpush.bf16.msra.mxu0 %v4727
    %7656 = vmatpush.bf16.msra.mxu0 %v4719
    %7657 = vmatpush.bf16.msra.mxu0 %v4711
    %7658 = vmatpush.bf16.msra.mxu0 %v4703
    %7659 = vmatpush.bf16.msra.mxu0 %v4695
    %7660 = vmatpush.bf16.msra.mxu0 %v4687
    %7661 = vmatpush.bf16.msra.mxu0 %v4679
    %7662 = vmatpush.bf16.msra.mxu0 %v4671
    %7663 = vmatmul.bf16.gmra.mxu0 %v157
    %v7664 = vpop.f32.mrf.mxu0
    %v7665 = vadd.f32 %v7652, %v7664
    %v7666 = vpop.f32.mrf.mxu0
    %7667 = vdwg.mxu0
    %7668 = vmatpush.bf16.msra.mxu0 %v4791
    %7669 = vmatpush.bf16.msra.mxu0 %v4783
    %7670 = vmatpush.bf16.msra.mxu0 %v4775
    %7671 = vmatpush.bf16.msra.mxu0 %v4767
    %7672 = vmatpush.bf16.msra.mxu0 %v4759
    %7673 = vmatpush.bf16.msra.mxu0 %v4751
    %7674 = vmatpush.bf16.msra.mxu0 %v4743
    %7675 = vmatpush.bf16.msra.mxu0 %v4735
    %7676 = vmatmul.bf16.gmra.mxu0 %v158
    %v7677 = vpop.f32.mrf.mxu0
    %v7678 = vadd.f32 %v7665, %v7677
    %v7679 = vpop.f32.mrf.mxu0
    %7680 = vdwg.mxu0
    %7681 = vmatpush.bf16.msra.mxu0 %v4855
    %7682 = vmatpush.bf16.msra.mxu0 %v4847
    %7683 = vmatpush.bf16.msra.mxu0 %v4839
    %7684 = vmatpush.bf16.msra.mxu0 %v4831
    %7685 = vmatpush.bf16.msra.mxu0 %v4823
    %7686 = vmatpush.bf16.msra.mxu0 %v4815
    %7687 = vmatpush.bf16.msra.mxu0 %v4807
    %7688 = vmatpush.bf16.msra.mxu0 %v4799
    %7689 = vmatmul.bf16.gmra.mxu0 %v159
    %v7690 = vpop.f32.mrf.mxu0
    %v7691 = vadd.f32 %v7678, %v7690
    %v7692 = vpop.f32.mrf.mxu0
    %7693 = vdwg.mxu0
    %7694 = vmatpush.bf16.msra.mxu0 %v4919
    %7695 = vmatpush.bf16.msra.mxu0 %v4911
    %7696 = vmatpush.bf16.msra.mxu0 %v4903
    %7697 = vmatpush.bf16.msra.mxu0 %v4895
    %7698 = vmatpush.bf16.msra.mxu0 %v4887
    %7699 = vmatpush.bf16.msra.mxu0 %v4879
    %7700 = vmatpush.bf16.msra.mxu0 %v4871
    %7701 = vmatpush.bf16.msra.mxu0 %v4863
    %7702 = vmatmul.bf16.gmra.mxu0 %v160
    %v7703 = vpop.f32.mrf.mxu0
    %v7704 = vadd.f32 %v7691, %v7703
    %v7705 = vpop.f32.mrf.mxu0
    %7706 = vdwg.mxu0
    %7707 = vmatpush.bf16.msra.mxu0 %v4983
    %7708 = vmatpush.bf16.msra.mxu0 %v4975
    %7709 = vmatpush.bf16.msra.mxu0 %v4967
    %7710 = vmatpush.bf16.msra.mxu0 %v4959
    %7711 = vmatpush.bf16.msra.mxu0 %v4951
    %7712 = vmatpush.bf16.msra.mxu0 %v4943
    %7713 = vmatpush.bf16.msra.mxu0 %v4935
    %7714 = vmatpush.bf16.msra.mxu0 %v4927
    %7715 = vmatmul.bf16.gmra.mxu0 %v161
    %v7716 = vpop.f32.mrf.mxu0
    %v7717 = vadd.f32 %v7704, %v7716
    %v7718 = vpop.f32.mrf.mxu0
    %7719 = vdwg.mxu0
    %7720 = vmatpush.bf16.msra.mxu0 %v5047
    %7721 = vmatpush.bf16.msra.mxu0 %v5039
    %7722 = vmatpush.bf16.msra.mxu0 %v5031
    %7723 = vmatpush.bf16.msra.mxu0 %v5023
    %7724 = vmatpush.bf16.msra.mxu0 %v5015
    %7725 = vmatpush.bf16.msra.mxu0 %v5007
    %7726 = vmatpush.bf16.msra.mxu0 %v4999
    %7727 = vmatpush.bf16.msra.mxu0 %v4991
    %7728 = vmatmul.bf16.gmra.mxu0 %v162
    %v7729 = vpop.f32.mrf.mxu0
    %v7730 = vadd.f32 %v7717, %v7729
    %v7731 = vpop.f32.mrf.mxu0
    %7732 = vdwg.mxu0
    %7733 = vmatpush.bf16.msra.mxu0 %v5111
    %7734 = vmatpush.bf16.msra.mxu0 %v5103
    %7735 = vmatpush.bf16.msra.mxu0 %v5095
    %7736 = vmatpush.bf16.msra.mxu0 %v5087
    %7737 = vmatpush.bf16.msra.mxu0 %v5079
    %7738 = vmatpush.bf16.msra.mxu0 %v5071
    %7739 = vmatpush.bf16.msra.mxu0 %v5063
    %7740 = vmatpush.bf16.msra.mxu0 %v5055
    %7741 = vmatmul.bf16.gmra.mxu0 %v163
    %v7742 = vpop.f32.mrf.mxu0
    %v7743 = vadd.f32 %v7730, %v7742
    %v7744 = vpop.f32.mrf.mxu0
    %7745 = vdwg.mxu0
    %7746 = vmatpush.bf16.msra.mxu0 %v5175
    %7747 = vmatpush.bf16.msra.mxu0 %v5167
    %7748 = vmatpush.bf16.msra.mxu0 %v5159
    %7749 = vmatpush.bf16.msra.mxu0 %v5151
    %7750 = vmatpush.bf16.msra.mxu0 %v5143
    %7751 = vmatpush.bf16.msra.mxu0 %v5135
    %7752 = vmatpush.bf16.msra.mxu0 %v5127
    %7753 = vmatpush.bf16.msra.mxu0 %v5119
    %7754 = vmatmul.bf16.gmra.mxu0 %v164
    %v7755 = vpop.f32.mrf.mxu0
    %v7756 = vadd.f32 %v7743, %v7755
    %v7757 = vpop.f32.mrf.mxu0
    %7758 = vdwg.mxu0
    %7759 = vmatpush.bf16.msra.mxu0 %v5239
    %7760 = vmatpush.bf16.msra.mxu0 %v5231
    %7761 = vmatpush.bf16.msra.mxu0 %v5223
    %7762 = vmatpush.bf16.msra.mxu0 %v5215
    %7763 = vmatpush.bf16.msra.mxu0 %v5207
    %7764 = vmatpush.bf16.msra.mxu0 %v5199
    %7765 = vmatpush.bf16.msra.mxu0 %v5191
    %7766 = vmatpush.bf16.msra.mxu0 %v5183
    %7767 = vmatmul.bf16.gmra.mxu0 %v165
    %v7768 = vpop.f32.mrf.mxu0
    %v7769 = vadd.f32 %v7756, %v7768
    %v7770 = vpop.f32.mrf.mxu0
    %7771 = vdwg.mxu0
    %7772 = vmatpush.bf16.msra.mxu0 %v5303
    %7773 = vmatpush.bf16.msra.mxu0 %v5295
    %7774 = vmatpush.bf16.msra.mxu0 %v5287
    %7775 = vmatpush.bf16.msra.mxu0 %v5279
    %7776 = vmatpush.bf16.msra.mxu0 %v5271
    %7777 = vmatpush.bf16.msra.mxu0 %v5263
    %7778 = vmatpush.bf16.msra.mxu0 %v5255
    %7779 = vmatpush.bf16.msra.mxu0 %v5247
    %7780 = vmatmul.bf16.gmra.mxu0 %v166
    %v7781 = vpop.f32.mrf.mxu0
    %v7782 = vadd.f32 %v7769, %v7781
    %v7783 = vpop.f32.mrf.mxu0
    %7784 = vdwg.mxu0
    %7785 = vmatpush.bf16.msra.mxu0 %v4344
    %7786 = vmatpush.bf16.msra.mxu0 %v4336
    %7787 = vmatpush.bf16.msra.mxu0 %v4328
    %7788 = vmatpush.bf16.msra.mxu0 %v4320
    %7789 = vmatpush.bf16.msra.mxu0 %v4312
    %7790 = vmatpush.bf16.msra.mxu0 %v4304
    %7791 = vmatpush.bf16.msra.mxu0 %v4296
    %7792 = vmatpush.bf16.msra.mxu0 %v4288
    %7793 = vmatmul.bf16.gmra.mxu0 %v151
    %v7794 = vpop.f32.mrf.mxu0
    %v7795 = vadd.f32 %v1200, %v7794
    %v7796 = vpop.f32.mrf.mxu0
    %7797 = vdwg.mxu0
    %7798 = vmatpush.bf16.msra.mxu0 %v4408
    %7799 = vmatpush.bf16.msra.mxu0 %v4400
    %7800 = vmatpush.bf16.msra.mxu0 %v4392
    %7801 = vmatpush.bf16.msra.mxu0 %v4384
    %7802 = vmatpush.bf16.msra.mxu0 %v4376
    %7803 = vmatpush.bf16.msra.mxu0 %v4368
    %7804 = vmatpush.bf16.msra.mxu0 %v4360
    %7805 = vmatpush.bf16.msra.mxu0 %v4352
    %7806 = vmatmul.bf16.gmra.mxu0 %v152
    %v7807 = vpop.f32.mrf.mxu0
    %v7808 = vadd.f32 %v7795, %v7807
    %v7809 = vpop.f32.mrf.mxu0
    %7810 = vdwg.mxu0
    %7811 = vmatpush.bf16.msra.mxu0 %v4472
    %7812 = vmatpush.bf16.msra.mxu0 %v4464
    %7813 = vmatpush.bf16.msra.mxu0 %v4456
    %7814 = vmatpush.bf16.msra.mxu0 %v4448
    %7815 = vmatpush.bf16.msra.mxu0 %v4440
    %7816 = vmatpush.bf16.msra.mxu0 %v4432
    %7817 = vmatpush.bf16.msra.mxu0 %v4424
    %7818 = vmatpush.bf16.msra.mxu0 %v4416
    %7819 = vmatmul.bf16.gmra.mxu0 %v153
    %v7820 = vpop.f32.mrf.mxu0
    %v7821 = vadd.f32 %v7808, %v7820
    %v7822 = vpop.f32.mrf.mxu0
    %7823 = vdwg.mxu0
    %7824 = vmatpush.bf16.msra.mxu0 %v4536
    %7825 = vmatpush.bf16.msra.mxu0 %v4528
    %7826 = vmatpush.bf16.msra.mxu0 %v4520
    %7827 = vmatpush.bf16.msra.mxu0 %v4512
    %7828 = vmatpush.bf16.msra.mxu0 %v4504
    %7829 = vmatpush.bf16.msra.mxu0 %v4496
    %7830 = vmatpush.bf16.msra.mxu0 %v4488
    %7831 = vmatpush.bf16.msra.mxu0 %v4480
    %7832 = vmatmul.bf16.gmra.mxu0 %v154
    %v7833 = vpop.f32.mrf.mxu0
    %v7834 = vadd.f32 %v7821, %v7833
    %v7835 = vpop.f32.mrf.mxu0
    %7836 = vdwg.mxu0
    %7837 = vmatpush.bf16.msra.mxu0 %v4600
    %7838 = vmatpush.bf16.msra.mxu0 %v4592
    %7839 = vmatpush.bf16.msra.mxu0 %v4584
    %7840 = vmatpush.bf16.msra.mxu0 %v4576
    %7841 = vmatpush.bf16.msra.mxu0 %v4568
    %7842 = vmatpush.bf16.msra.mxu0 %v4560
    %7843 = vmatpush.bf16.msra.mxu0 %v4552
    %7844 = vmatpush.bf16.msra.mxu0 %v4544
    %7845 = vmatmul.bf16.gmra.mxu0 %v155
    %v7846 = vpop.f32.mrf.mxu0
    %v7847 = vadd.f32 %v7834, %v7846
    %v7848 = vpop.f32.mrf.mxu0
    %7849 = vdwg.mxu0
    %7850 = vmatpush.bf16.msra.mxu0 %v4664
    %7851 = vmatpush.bf16.msra.mxu0 %v4656
    %7852 = vmatpush.bf16.msra.mxu0 %v4648
    %7853 = vmatpush.bf16.msra.mxu0 %v4640
    %7854 = vmatpush.bf16.msra.mxu0 %v4632
    %7855 = vmatpush.bf16.msra.mxu0 %v4624
    %7856 = vmatpush.bf16.msra.mxu0 %v4616
    %7857 = vmatpush.bf16.msra.mxu0 %v4608
    %7858 = vmatmul.bf16.gmra.mxu0 %v156
    %v7859 = vpop.f32.mrf.mxu0
    %v7860 = vadd.f32 %v7847, %v7859
    %v7861 = vpop.f32.mrf.mxu0
    %7862 = vdwg.mxu0
    %7863 = vmatpush.bf16.msra.mxu0 %v4728
    %7864 = vmatpush.bf16.msra.mxu0 %v4720
    %7865 = vmatpush.bf16.msra.mxu0 %v4712
    %7866 = vmatpush.bf16.msra.mxu0 %v4704
    %7867 = vmatpush.bf16.msra.mxu0 %v4696
    %7868 = vmatpush.bf16.msra.mxu0 %v4688
    %7869 = vmatpush.bf16.msra.mxu0 %v4680
    %7870 = vmatpush.bf16.msra.mxu0 %v4672
    %7871 = vmatmul.bf16.gmra.mxu0 %v157
    %v7872 = vpop.f32.mrf.mxu0
    %v7873 = vadd.f32 %v7860, %v7872
    %v7874 = vpop.f32.mrf.mxu0
    %7875 = vdwg.mxu0
    %7876 = vmatpush.bf16.msra.mxu0 %v4792
    %7877 = vmatpush.bf16.msra.mxu0 %v4784
    %7878 = vmatpush.bf16.msra.mxu0 %v4776
    %7879 = vmatpush.bf16.msra.mxu0 %v4768
    %7880 = vmatpush.bf16.msra.mxu0 %v4760
    %7881 = vmatpush.bf16.msra.mxu0 %v4752
    %7882 = vmatpush.bf16.msra.mxu0 %v4744
    %7883 = vmatpush.bf16.msra.mxu0 %v4736
    %7884 = vmatmul.bf16.gmra.mxu0 %v158
    %v7885 = vpop.f32.mrf.mxu0
    %v7886 = vadd.f32 %v7873, %v7885
    %v7887 = vpop.f32.mrf.mxu0
    %7888 = vdwg.mxu0
    %7889 = vmatpush.bf16.msra.mxu0 %v4856
    %7890 = vmatpush.bf16.msra.mxu0 %v4848
    %7891 = vmatpush.bf16.msra.mxu0 %v4840
    %7892 = vmatpush.bf16.msra.mxu0 %v4832
    %7893 = vmatpush.bf16.msra.mxu0 %v4824
    %7894 = vmatpush.bf16.msra.mxu0 %v4816
    %7895 = vmatpush.bf16.msra.mxu0 %v4808
    %7896 = vmatpush.bf16.msra.mxu0 %v4800
    %7897 = vmatmul.bf16.gmra.mxu0 %v159
    %v7898 = vpop.f32.mrf.mxu0
    %v7899 = vadd.f32 %v7886, %v7898
    %v7900 = vpop.f32.mrf.mxu0
    %7901 = vdwg.mxu0
    %7902 = vmatpush.bf16.msra.mxu0 %v4920
    %7903 = vmatpush.bf16.msra.mxu0 %v4912
    %7904 = vmatpush.bf16.msra.mxu0 %v4904
    %7905 = vmatpush.bf16.msra.mxu0 %v4896
    %7906 = vmatpush.bf16.msra.mxu0 %v4888
    %7907 = vmatpush.bf16.msra.mxu0 %v4880
    %7908 = vmatpush.bf16.msra.mxu0 %v4872
    %7909 = vmatpush.bf16.msra.mxu0 %v4864
    %7910 = vmatmul.bf16.gmra.mxu0 %v160
    %v7911 = vpop.f32.mrf.mxu0
    %v7912 = vadd.f32 %v7899, %v7911
    %v7913 = vpop.f32.mrf.mxu0
    %7914 = vdwg.mxu0
    %7915 = vmatpush.bf16.msra.mxu0 %v4984
    %7916 = vmatpush.bf16.msra.mxu0 %v4976
    %7917 = vmatpush.bf16.msra.mxu0 %v4968
    %7918 = vmatpush.bf16.msra.mxu0 %v4960
    %7919 = vmatpush.bf16.msra.mxu0 %v4952
    %7920 = vmatpush.bf16.msra.mxu0 %v4944
    %7921 = vmatpush.bf16.msra.mxu0 %v4936
    %7922 = vmatpush.bf16.msra.mxu0 %v4928
    %7923 = vmatmul.bf16.gmra.mxu0 %v161
    %v7924 = vpop.f32.mrf.mxu0
    %v7925 = vadd.f32 %v7912, %v7924
    %v7926 = vpop.f32.mrf.mxu0
    %7927 = vdwg.mxu0
    %7928 = vmatpush.bf16.msra.mxu0 %v5048
    %7929 = vmatpush.bf16.msra.mxu0 %v5040
    %7930 = vmatpush.bf16.msra.mxu0 %v5032
    %7931 = vmatpush.bf16.msra.mxu0 %v5024
    %7932 = vmatpush.bf16.msra.mxu0 %v5016
    %7933 = vmatpush.bf16.msra.mxu0 %v5008
    %7934 = vmatpush.bf16.msra.mxu0 %v5000
    %7935 = vmatpush.bf16.msra.mxu0 %v4992
    %7936 = vmatmul.bf16.gmra.mxu0 %v162
    %v7937 = vpop.f32.mrf.mxu0
    %v7938 = vadd.f32 %v7925, %v7937
    %v7939 = vpop.f32.mrf.mxu0
    %7940 = vdwg.mxu0
    %7941 = vmatpush.bf16.msra.mxu0 %v5112
    %7942 = vmatpush.bf16.msra.mxu0 %v5104
    %7943 = vmatpush.bf16.msra.mxu0 %v5096
    %7944 = vmatpush.bf16.msra.mxu0 %v5088
    %7945 = vmatpush.bf16.msra.mxu0 %v5080
    %7946 = vmatpush.bf16.msra.mxu0 %v5072
    %7947 = vmatpush.bf16.msra.mxu0 %v5064
    %7948 = vmatpush.bf16.msra.mxu0 %v5056
    %7949 = vmatmul.bf16.gmra.mxu0 %v163
    %v7950 = vpop.f32.mrf.mxu0
    %v7951 = vadd.f32 %v7938, %v7950
    %v7952 = vpop.f32.mrf.mxu0
    %7953 = vdwg.mxu0
    %7954 = vmatpush.bf16.msra.mxu0 %v5176
    %7955 = vmatpush.bf16.msra.mxu0 %v5168
    %7956 = vmatpush.bf16.msra.mxu0 %v5160
    %7957 = vmatpush.bf16.msra.mxu0 %v5152
    %7958 = vmatpush.bf16.msra.mxu0 %v5144
    %7959 = vmatpush.bf16.msra.mxu0 %v5136
    %7960 = vmatpush.bf16.msra.mxu0 %v5128
    %7961 = vmatpush.bf16.msra.mxu0 %v5120
    %7962 = vmatmul.bf16.gmra.mxu0 %v164
    %v7963 = vpop.f32.mrf.mxu0
    %v7964 = vadd.f32 %v7951, %v7963
    %v7965 = vpop.f32.mrf.mxu0
    %7966 = vdwg.mxu0
    %7967 = vmatpush.bf16.msra.mxu0 %v5240
    %7968 = vmatpush.bf16.msra.mxu0 %v5232
    %7969 = vmatpush.bf16.msra.mxu0 %v5224
    %7970 = vmatpush.bf16.msra.mxu0 %v5216
    %7971 = vmatpush.bf16.msra.mxu0 %v5208
    %7972 = vmatpush.bf16.msra.mxu0 %v5200
    %7973 = vmatpush.bf16.msra.mxu0 %v5192
    %7974 = vmatpush.bf16.msra.mxu0 %v5184
    %7975 = vmatmul.bf16.gmra.mxu0 %v165
    %v7976 = vpop.f32.mrf.mxu0
    %v7977 = vadd.f32 %v7964, %v7976
    %v7978 = vpop.f32.mrf.mxu0
    %7979 = vdwg.mxu0
    %7980 = vmatpush.bf16.msra.mxu0 %v5304
    %7981 = vmatpush.bf16.msra.mxu0 %v5296
    %7982 = vmatpush.bf16.msra.mxu0 %v5288
    %7983 = vmatpush.bf16.msra.mxu0 %v5280
    %7984 = vmatpush.bf16.msra.mxu0 %v5272
    %7985 = vmatpush.bf16.msra.mxu0 %v5264
    %7986 = vmatpush.bf16.msra.mxu0 %v5256
    %7987 = vmatpush.bf16.msra.mxu0 %v5248
    %7988 = vmatmul.bf16.gmra.mxu0 %v166
    %v7989 = vpop.f32.mrf.mxu0
    %v7990 = vadd.f32 %v7977, %v7989
    %v7991 = vpop.f32.mrf.mxu0
    %7992 = vdwg.mxu0
    %v7993 = vmax.f32 %v6534, 0.0
    %v7994 = vmax.f32 %v6742, 0.0
    %v7995 = vmax.f32 %v6950, 0.0
    %v7996 = vmax.f32 %v7158, 0.0
    %v7997 = vmax.f32 %v7366, 0.0
    %v7998 = vmax.f32 %v7574, 0.0
    %v7999 = vmax.f32 %v7782, 0.0
    %v8000 = vmax.f32 %v7990, 0.0
    %v8001 = vpack.c.bf16 %v7993, %v7993
    %v8002 = vpack.c.bf16 %v7994, %v7994
    %v8003 = vpack.c.bf16 %v7995, %v7995
    %v8004 = vpack.c.bf16 %v7996, %v7996
    %v8005 = vpack.c.bf16 %v7997, %v7997
    %v8006 = vpack.c.bf16 %v7998, %v7998
    %v8007 = vpack.c.bf16 %v7999, %v7999
    %v8008 = vpack.c.bf16 %v8000, %v8000
    %v8009 = vld [vmem:[#allocation7] sm:$0xff]
    %v8010 = vld [vmem:[#allocation7 + $0x8] sm:$0xff]
    %v8011 = vld [vmem:[#allocation7 + $0x10] sm:$0xff]
    %v8012 = vld [vmem:[#allocation7 + $0x18] sm:$0xff]
    %v8013 = vld [vmem:[#allocation7 + $0x20] sm:$0xff]
    %v8014 = vld [vmem:[#allocation7 + $0x28] sm:$0xff]
    %v8015 = vld [vmem:[#allocation7 + $0x30] sm:$0xff]
    %v8016 = vld [vmem:[#allocation7 + $0x38] sm:$0xff]
    %v8017 = vld [vmem:[#allocation7 + $0x40] sm:$0xff]
    %v8018 = vld [vmem:[#allocation7 + $0x48] sm:$0xff]
    %v8019 = vld [vmem:[#allocation7 + $0x50] sm:$0xff]
    %v8020 = vld [vmem:[#allocation7 + $0x58] sm:$0xff]
    %v8021 = vld [vmem:[#allocation7 + $0x60] sm:$0xff]
    %v8022 = vld [vmem:[#allocation7 + $0x68] sm:$0xff]
    %v8023 = vld [vmem:[#allocation7 + $0x70] sm:$0xff]
    %v8024 = vld [vmem:[#allocation7 + $0x78] sm:$0xff]
    %v8025 = vld [vmem:[#allocation7 + $0x80] sm:$0xff]
    %v8026 = vld [vmem:[#allocation7 + $0x88] sm:$0xff]
    %v8027 = vld [vmem:[#allocation7 + $0x90] sm:$0xff]
    %v8028 = vld [vmem:[#allocation7 + $0x98] sm:$0xff]
    %v8029 = vld [vmem:[#allocation7 + $0xa0] sm:$0xff]
    %v8030 = vld [vmem:[#allocation7 + $0xa8] sm:$0xff]
    %v8031 = vld [vmem:[#allocation7 + $0xb0] sm:$0xff]
    %v8032 = vld [vmem:[#allocation7 + $0xb8] sm:$0xff]
    %v8033 = vld [vmem:[#allocation7 + $0xc0] sm:$0xff]
    %v8034 = vld [vmem:[#allocation7 + $0xc8] sm:$0xff]
    %v8035 = vld [vmem:[#allocation7 + $0xd0] sm:$0xff]
    %v8036 = vld [vmem:[#allocation7 + $0xd8] sm:$0xff]
    %v8037 = vld [vmem:[#allocation7 + $0xe0] sm:$0xff]
    %v8038 = vld [vmem:[#allocation7 + $0xe8] sm:$0xff]
    %v8039 = vld [vmem:[#allocation7 + $0xf0] sm:$0xff]
    %v8040 = vld [vmem:[#allocation7 + $0xf8] sm:$0xff]
    %v8041 = vld [vmem:[#allocation7 + $0x100] sm:$0xff]
    %v8042 = vld [vmem:[#allocation7 + $0x108] sm:$0xff]
    %v8043 = vld [vmem:[#allocation7 + $0x110] sm:$0xff]
    %v8044 = vld [vmem:[#allocation7 + $0x118] sm:$0xff]
    %v8045 = vld [vmem:[#allocation7 + $0x120] sm:$0xff]
    %v8046 = vld [vmem:[#allocation7 + $0x128] sm:$0xff]
    %v8047 = vld [vmem:[#allocation7 + $0x130] sm:$0xff]
    %v8048 = vld [vmem:[#allocation7 + $0x138] sm:$0xff]
    %v8049 = vld [vmem:[#allocation7 + $0x140] sm:$0xff]
    %v8050 = vld [vmem:[#allocation7 + $0x148] sm:$0xff]
    %v8051 = vld [vmem:[#allocation7 + $0x150] sm:$0xff]
    %v8052 = vld [vmem:[#allocation7 + $0x158] sm:$0xff]
    %v8053 = vld [vmem:[#allocation7 + $0x160] sm:$0xff]
    %v8054 = vld [vmem:[#allocation7 + $0x168] sm:$0xff]
    %v8055 = vld [vmem:[#allocation7 + $0x170] sm:$0xff]
    %v8056 = vld [vmem:[#allocation7 + $0x178] sm:$0xff]
    %v8057 = vld [vmem:[#allocation7 + $0x180] sm:$0xff]
    %v8058 = vld [vmem:[#allocation7 + $0x188] sm:$0xff]
    %v8059 = vld [vmem:[#allocation7 + $0x190] sm:$0xff]
    %v8060 = vld [vmem:[#allocation7 + $0x198] sm:$0xff]
    %v8061 = vld [vmem:[#allocation7 + $0x1a0] sm:$0xff]
    %v8062 = vld [vmem:[#allocation7 + $0x1a8] sm:$0xff]
    %v8063 = vld [vmem:[#allocation7 + $0x1b0] sm:$0xff]
    %v8064 = vld [vmem:[#allocation7 + $0x1b8] sm:$0xff]
    %v8065 = vld [vmem:[#allocation7 + $0x1c0] sm:$0xff]
    %v8066 = vld [vmem:[#allocation7 + $0x1c8] sm:$0xff]
    %v8067 = vld [vmem:[#allocation7 + $0x1d0] sm:$0xff]
    %v8068 = vld [vmem:[#allocation7 + $0x1d8] sm:$0xff]
    %v8069 = vld [vmem:[#allocation7 + $0x1e0] sm:$0xff]
    %v8070 = vld [vmem:[#allocation7 + $0x1e8] sm:$0xff]
    %v8071 = vld [vmem:[#allocation7 + $0x1f0] sm:$0xff]
    %v8072 = vld [vmem:[#allocation7 + $0x1f8] sm:$0xff]
    %v8073 = vld [vmem:[#allocation7 + $0x200] sm:$0xff]
    %v8074 = vld [vmem:[#allocation7 + $0x208] sm:$0xff]
    %v8075 = vld [vmem:[#allocation7 + $0x210] sm:$0xff]
    %v8076 = vld [vmem:[#allocation7 + $0x218] sm:$0xff]
    %v8077 = vld [vmem:[#allocation7 + $0x220] sm:$0xff]
    %v8078 = vld [vmem:[#allocation7 + $0x228] sm:$0xff]
    %v8079 = vld [vmem:[#allocation7 + $0x230] sm:$0xff]
    %v8080 = vld [vmem:[#allocation7 + $0x238] sm:$0xff]
    %v8081 = vld [vmem:[#allocation7 + $0x240] sm:$0xff]
    %v8082 = vld [vmem:[#allocation7 + $0x248] sm:$0xff]
    %v8083 = vld [vmem:[#allocation7 + $0x250] sm:$0xff]
    %v8084 = vld [vmem:[#allocation7 + $0x258] sm:$0xff]
    %v8085 = vld [vmem:[#allocation7 + $0x260] sm:$0xff]
    %v8086 = vld [vmem:[#allocation7 + $0x268] sm:$0xff]
    %v8087 = vld [vmem:[#allocation7 + $0x270] sm:$0xff]
    %v8088 = vld [vmem:[#allocation7 + $0x278] sm:$0xff]
    %v8089 = vld [vmem:[#allocation7 + $0x280] sm:$0xff]
    %v8090 = vld [vmem:[#allocation7 + $0x288] sm:$0xff]
    %v8091 = vld [vmem:[#allocation7 + $0x290] sm:$0xff]
    %v8092 = vld [vmem:[#allocation7 + $0x298] sm:$0xff]
    %v8093 = vld [vmem:[#allocation7 + $0x2a0] sm:$0xff]
    %v8094 = vld [vmem:[#allocation7 + $0x2a8] sm:$0xff]
    %v8095 = vld [vmem:[#allocation7 + $0x2b0] sm:$0xff]
    %v8096 = vld [vmem:[#allocation7 + $0x2b8] sm:$0xff]
    %v8097 = vld [vmem:[#allocation7 + $0x2c0] sm:$0xff]
    %v8098 = vld [vmem:[#allocation7 + $0x2c8] sm:$0xff]
    %v8099 = vld [vmem:[#allocation7 + $0x2d0] sm:$0xff]
    %v8100 = vld [vmem:[#allocation7 + $0x2d8] sm:$0xff]
    %v8101 = vld [vmem:[#allocation7 + $0x2e0] sm:$0xff]
    %v8102 = vld [vmem:[#allocation7 + $0x2e8] sm:$0xff]
    %v8103 = vld [vmem:[#allocation7 + $0x2f0] sm:$0xff]
    %v8104 = vld [vmem:[#allocation7 + $0x2f8] sm:$0xff]
    %v8105 = vld [vmem:[#allocation7 + $0x300] sm:$0xff]
    %v8106 = vld [vmem:[#allocation7 + $0x308] sm:$0xff]
    %v8107 = vld [vmem:[#allocation7 + $0x310] sm:$0xff]
    %v8108 = vld [vmem:[#allocation7 + $0x318] sm:$0xff]
    %v8109 = vld [vmem:[#allocation7 + $0x320] sm:$0xff]
    %v8110 = vld [vmem:[#allocation7 + $0x328] sm:$0xff]
    %v8111 = vld [vmem:[#allocation7 + $0x330] sm:$0xff]
    %v8112 = vld [vmem:[#allocation7 + $0x338] sm:$0xff]
    %v8113 = vld [vmem:[#allocation7 + $0x340] sm:$0xff]
    %v8114 = vld [vmem:[#allocation7 + $0x348] sm:$0xff]
    %v8115 = vld [vmem:[#allocation7 + $0x350] sm:$0xff]
    %v8116 = vld [vmem:[#allocation7 + $0x358] sm:$0xff]
    %v8117 = vld [vmem:[#allocation7 + $0x360] sm:$0xff]
    %v8118 = vld [vmem:[#allocation7 + $0x368] sm:$0xff]
    %v8119 = vld [vmem:[#allocation7 + $0x370] sm:$0xff]
    %v8120 = vld [vmem:[#allocation7 + $0x378] sm:$0xff]
    %v8121 = vld [vmem:[#allocation7 + $0x380] sm:$0xff]
    %v8122 = vld [vmem:[#allocation7 + $0x388] sm:$0xff]
    %v8123 = vld [vmem:[#allocation7 + $0x390] sm:$0xff]
    %v8124 = vld [vmem:[#allocation7 + $0x398] sm:$0xff]
    %v8125 = vld [vmem:[#allocation7 + $0x3a0] sm:$0xff]
    %v8126 = vld [vmem:[#allocation7 + $0x3a8] sm:$0xff]
    %v8127 = vld [vmem:[#allocation7 + $0x3b0] sm:$0xff]
    %v8128 = vld [vmem:[#allocation7 + $0x3b8] sm:$0xff]
    %v8129 = vld [vmem:[#allocation7 + $0x3c0] sm:$0xff]
    %v8130 = vld [vmem:[#allocation7 + $0x3c8] sm:$0xff]
    %v8131 = vld [vmem:[#allocation7 + $0x3d0] sm:$0xff]
    %v8132 = vld [vmem:[#allocation7 + $0x3d8] sm:$0xff]
    %v8133 = vld [vmem:[#allocation7 + $0x3e0] sm:$0xff]
    %v8134 = vld [vmem:[#allocation7 + $0x3e8] sm:$0xff]
    %v8135 = vld [vmem:[#allocation7 + $0x3f0] sm:$0xff]
    %v8136 = vld [vmem:[#allocation7 + $0x3f8] sm:$0xff]
    %v8137 = vld [vmem:[#allocation7 + $0x400] sm:$0xff]
    %v8138 = vld [vmem:[#allocation7 + $0x408] sm:$0xff]
    %v8139 = vld [vmem:[#allocation7 + $0x410] sm:$0xff]
    %v8140 = vld [vmem:[#allocation7 + $0x418] sm:$0xff]
    %v8141 = vld [vmem:[#allocation7 + $0x420] sm:$0xff]
    %v8142 = vld [vmem:[#allocation7 + $0x428] sm:$0xff]
    %v8143 = vld [vmem:[#allocation7 + $0x430] sm:$0xff]
    %v8144 = vld [vmem:[#allocation7 + $0x438] sm:$0xff]
    %v8145 = vld [vmem:[#allocation7 + $0x440] sm:$0xff]
    %v8146 = vld [vmem:[#allocation7 + $0x448] sm:$0xff]
    %v8147 = vld [vmem:[#allocation7 + $0x450] sm:$0xff]
    %v8148 = vld [vmem:[#allocation7 + $0x458] sm:$0xff]
    %v8149 = vld [vmem:[#allocation7 + $0x460] sm:$0xff]
    %v8150 = vld [vmem:[#allocation7 + $0x468] sm:$0xff]
    %v8151 = vld [vmem:[#allocation7 + $0x470] sm:$0xff]
    %v8152 = vld [vmem:[#allocation7 + $0x478] sm:$0xff]
    %v8153 = vld [vmem:[#allocation7 + $0x480] sm:$0xff]
    %v8154 = vld [vmem:[#allocation7 + $0x488] sm:$0xff]
    %v8155 = vld [vmem:[#allocation7 + $0x490] sm:$0xff]
    %v8156 = vld [vmem:[#allocation7 + $0x498] sm:$0xff]
    %v8157 = vld [vmem:[#allocation7 + $0x4a0] sm:$0xff]
    %v8158 = vld [vmem:[#allocation7 + $0x4a8] sm:$0xff]
    %v8159 = vld [vmem:[#allocation7 + $0x4b0] sm:$0xff]
    %v8160 = vld [vmem:[#allocation7 + $0x4b8] sm:$0xff]
    %v8161 = vld [vmem:[#allocation7 + $0x4c0] sm:$0xff]
    %v8162 = vld [vmem:[#allocation7 + $0x4c8] sm:$0xff]
    %v8163 = vld [vmem:[#allocation7 + $0x4d0] sm:$0xff]
    %v8164 = vld [vmem:[#allocation7 + $0x4d8] sm:$0xff]
    %v8165 = vld [vmem:[#allocation7 + $0x4e0] sm:$0xff]
    %v8166 = vld [vmem:[#allocation7 + $0x4e8] sm:$0xff]
    %v8167 = vld [vmem:[#allocation7 + $0x4f0] sm:$0xff]
    %v8168 = vld [vmem:[#allocation7 + $0x4f8] sm:$0xff]
    %v8169 = vld [vmem:[#allocation7 + $0x500] sm:$0xff]
    %v8170 = vld [vmem:[#allocation7 + $0x508] sm:$0xff]
    %v8171 = vld [vmem:[#allocation7 + $0x510] sm:$0xff]
    %v8172 = vld [vmem:[#allocation7 + $0x518] sm:$0xff]
    %v8173 = vld [vmem:[#allocation7 + $0x520] sm:$0xff]
    %v8174 = vld [vmem:[#allocation7 + $0x528] sm:$0xff]
    %v8175 = vld [vmem:[#allocation7 + $0x530] sm:$0xff]
    %v8176 = vld [vmem:[#allocation7 + $0x538] sm:$0xff]
    %v8177 = vld [vmem:[#allocation7 + $0x540] sm:$0xff]
    %v8178 = vld [vmem:[#allocation7 + $0x548] sm:$0xff]
    %v8179 = vld [vmem:[#allocation7 + $0x550] sm:$0xff]
    %v8180 = vld [vmem:[#allocation7 + $0x558] sm:$0xff]
    %v8181 = vld [vmem:[#allocation7 + $0x560] sm:$0xff]
    %v8182 = vld [vmem:[#allocation7 + $0x568] sm:$0xff]
    %v8183 = vld [vmem:[#allocation7 + $0x570] sm:$0xff]
    %v8184 = vld [vmem:[#allocation7 + $0x578] sm:$0xff]
    %v8185 = vld [vmem:[#allocation7 + $0x580] sm:$0xff]
    %v8186 = vld [vmem:[#allocation7 + $0x588] sm:$0xff]
    %v8187 = vld [vmem:[#allocation7 + $0x590] sm:$0xff]
    %v8188 = vld [vmem:[#allocation7 + $0x598] sm:$0xff]
    %v8189 = vld [vmem:[#allocation7 + $0x5a0] sm:$0xff]
    %v8190 = vld [vmem:[#allocation7 + $0x5a8] sm:$0xff]
    %v8191 = vld [vmem:[#allocation7 + $0x5b0] sm:$0xff]
    %v8192 = vld [vmem:[#allocation7 + $0x5b8] sm:$0xff]
    %v8193 = vld [vmem:[#allocation7 + $0x5c0] sm:$0xff]
    %v8194 = vld [vmem:[#allocation7 + $0x5c8] sm:$0xff]
    %v8195 = vld [vmem:[#allocation7 + $0x5d0] sm:$0xff]
    %v8196 = vld [vmem:[#allocation7 + $0x5d8] sm:$0xff]
    %v8197 = vld [vmem:[#allocation7 + $0x5e0] sm:$0xff]
    %v8198 = vld [vmem:[#allocation7 + $0x5e8] sm:$0xff]
    %v8199 = vld [vmem:[#allocation7 + $0x5f0] sm:$0xff]
    %v8200 = vld [vmem:[#allocation7 + $0x5f8] sm:$0xff]
    %v8201 = vld [vmem:[#allocation7 + $0x600] sm:$0xff]
    %v8202 = vld [vmem:[#allocation7 + $0x608] sm:$0xff]
    %v8203 = vld [vmem:[#allocation7 + $0x610] sm:$0xff]
    %v8204 = vld [vmem:[#allocation7 + $0x618] sm:$0xff]
    %v8205 = vld [vmem:[#allocation7 + $0x620] sm:$0xff]
    %v8206 = vld [vmem:[#allocation7 + $0x628] sm:$0xff]
    %v8207 = vld [vmem:[#allocation7 + $0x630] sm:$0xff]
    %v8208 = vld [vmem:[#allocation7 + $0x638] sm:$0xff]
    %v8209 = vld [vmem:[#allocation7 + $0x640] sm:$0xff]
    %v8210 = vld [vmem:[#allocation7 + $0x648] sm:$0xff]
    %v8211 = vld [vmem:[#allocation7 + $0x650] sm:$0xff]
    %v8212 = vld [vmem:[#allocation7 + $0x658] sm:$0xff]
    %v8213 = vld [vmem:[#allocation7 + $0x660] sm:$0xff]
    %v8214 = vld [vmem:[#allocation7 + $0x668] sm:$0xff]
    %v8215 = vld [vmem:[#allocation7 + $0x670] sm:$0xff]
    %v8216 = vld [vmem:[#allocation7 + $0x678] sm:$0xff]
    %v8217 = vld [vmem:[#allocation7 + $0x680] sm:$0xff]
    %v8218 = vld [vmem:[#allocation7 + $0x688] sm:$0xff]
    %v8219 = vld [vmem:[#allocation7 + $0x690] sm:$0xff]
    %v8220 = vld [vmem:[#allocation7 + $0x698] sm:$0xff]
    %v8221 = vld [vmem:[#allocation7 + $0x6a0] sm:$0xff]
    %v8222 = vld [vmem:[#allocation7 + $0x6a8] sm:$0xff]
    %v8223 = vld [vmem:[#allocation7 + $0x6b0] sm:$0xff]
    %v8224 = vld [vmem:[#allocation7 + $0x6b8] sm:$0xff]
    %v8225 = vld [vmem:[#allocation7 + $0x6c0] sm:$0xff]
    %v8226 = vld [vmem:[#allocation7 + $0x6c8] sm:$0xff]
    %v8227 = vld [vmem:[#allocation7 + $0x6d0] sm:$0xff]
    %v8228 = vld [vmem:[#allocation7 + $0x6d8] sm:$0xff]
    %v8229 = vld [vmem:[#allocation7 + $0x6e0] sm:$0xff]
    %v8230 = vld [vmem:[#allocation7 + $0x6e8] sm:$0xff]
    %v8231 = vld [vmem:[#allocation7 + $0x6f0] sm:$0xff]
    %v8232 = vld [vmem:[#allocation7 + $0x6f8] sm:$0xff]
    %v8233 = vld [vmem:[#allocation7 + $0x700] sm:$0xff]
    %v8234 = vld [vmem:[#allocation7 + $0x708] sm:$0xff]
    %v8235 = vld [vmem:[#allocation7 + $0x710] sm:$0xff]
    %v8236 = vld [vmem:[#allocation7 + $0x718] sm:$0xff]
    %v8237 = vld [vmem:[#allocation7 + $0x720] sm:$0xff]
    %v8238 = vld [vmem:[#allocation7 + $0x728] sm:$0xff]
    %v8239 = vld [vmem:[#allocation7 + $0x730] sm:$0xff]
    %v8240 = vld [vmem:[#allocation7 + $0x738] sm:$0xff]
    %v8241 = vld [vmem:[#allocation7 + $0x740] sm:$0xff]
    %v8242 = vld [vmem:[#allocation7 + $0x748] sm:$0xff]
    %v8243 = vld [vmem:[#allocation7 + $0x750] sm:$0xff]
    %v8244 = vld [vmem:[#allocation7 + $0x758] sm:$0xff]
    %v8245 = vld [vmem:[#allocation7 + $0x760] sm:$0xff]
    %v8246 = vld [vmem:[#allocation7 + $0x768] sm:$0xff]
    %v8247 = vld [vmem:[#allocation7 + $0x770] sm:$0xff]
    %v8248 = vld [vmem:[#allocation7 + $0x778] sm:$0xff]
    %v8249 = vld [vmem:[#allocation7 + $0x780] sm:$0xff]
    %v8250 = vld [vmem:[#allocation7 + $0x788] sm:$0xff]
    %v8251 = vld [vmem:[#allocation7 + $0x790] sm:$0xff]
    %v8252 = vld [vmem:[#allocation7 + $0x798] sm:$0xff]
    %v8253 = vld [vmem:[#allocation7 + $0x7a0] sm:$0xff]
    %v8254 = vld [vmem:[#allocation7 + $0x7a8] sm:$0xff]
    %v8255 = vld [vmem:[#allocation7 + $0x7b0] sm:$0xff]
    %v8256 = vld [vmem:[#allocation7 + $0x7b8] sm:$0xff]
    %v8257 = vld [vmem:[#allocation7 + $0x7c0] sm:$0xff]
    %v8258 = vld [vmem:[#allocation7 + $0x7c8] sm:$0xff]
    %v8259 = vld [vmem:[#allocation7 + $0x7d0] sm:$0xff]
    %v8260 = vld [vmem:[#allocation7 + $0x7d8] sm:$0xff]
    %v8261 = vld [vmem:[#allocation7 + $0x7e0] sm:$0xff]
    %v8262 = vld [vmem:[#allocation7 + $0x7e8] sm:$0xff]
    %v8263 = vld [vmem:[#allocation7 + $0x7f0] sm:$0xff]
    %v8264 = vld [vmem:[#allocation7 + $0x7f8] sm:$0xff]
    %v8265 = vld [vmem:[#allocation8] sm:$0xf]
    %v8267 = vperm.slane %v8265, 0
    %v8268 = vperm.slane %v8265, 1
    %v8269 = vperm.slane %v8265, 2
    %v8270 = vperm.slane %v8265, 3
    %v8531 = vunpack.c.l.b16 %v8009
    %v8532 = vunpack.c.h.b16 %v8009
    %v8533 = vunpack.c.l.b16 %v8010
    %v8534 = vunpack.c.h.b16 %v8010
    %v8535 = vunpack.c.l.b16 %v8011
    %v8536 = vunpack.c.h.b16 %v8011
    %v8537 = vunpack.c.l.b16 %v8012
    %v8538 = vunpack.c.h.b16 %v8012
    %v8539 = vunpack.c.l.b16 %v8013
    %v8540 = vunpack.c.h.b16 %v8013
    %v8541 = vunpack.c.l.b16 %v8014
    %v8542 = vunpack.c.h.b16 %v8014
    %v8543 = vunpack.c.l.b16 %v8015
    %v8544 = vunpack.c.h.b16 %v8015
    %v8545 = vunpack.c.l.b16 %v8016
    %v8546 = vunpack.c.h.b16 %v8016
    %v8547 = vunpack.c.l.b16 %v8017
    %v8548 = vunpack.c.h.b16 %v8017
    %v8549 = vunpack.c.l.b16 %v8018
    %v8550 = vunpack.c.h.b16 %v8018
    %v8551 = vunpack.c.l.b16 %v8019
    %v8552 = vunpack.c.h.b16 %v8019
    %v8553 = vunpack.c.l.b16 %v8020
    %v8554 = vunpack.c.h.b16 %v8020
    %v8555 = vunpack.c.l.b16 %v8021
    %v8556 = vunpack.c.h.b16 %v8021
    %v8557 = vunpack.c.l.b16 %v8022
    %v8558 = vunpack.c.h.b16 %v8022
    %v8559 = vunpack.c.l.b16 %v8023
    %v8560 = vunpack.c.h.b16 %v8023
    %v8561 = vunpack.c.l.b16 %v8024
    %v8562 = vunpack.c.h.b16 %v8024
    %v8563 = vunpack.c.l.b16 %v8025
    %v8564 = vunpack.c.h.b16 %v8025
    %v8565 = vunpack.c.l.b16 %v8026
    %v8566 = vunpack.c.h.b16 %v8026
    %v8567 = vunpack.c.l.b16 %v8027
    %v8568 = vunpack.c.h.b16 %v8027
    %v8569 = vunpack.c.l.b16 %v8028
    %v8570 = vunpack.c.h.b16 %v8028
    %v8571 = vunpack.c.l.b16 %v8029
    %v8572 = vunpack.c.h.b16 %v8029
    %v8573 = vunpack.c.l.b16 %v8030
    %v8574 = vunpack.c.h.b16 %v8030
    %v8575 = vunpack.c.l.b16 %v8031
    %v8576 = vunpack.c.h.b16 %v8031
    %v8577 = vunpack.c.l.b16 %v8032
    %v8578 = vunpack.c.h.b16 %v8032
    %v8579 = vunpack.c.l.b16 %v8033
    %v8580 = vunpack.c.h.b16 %v8033
    %v8581 = vunpack.c.l.b16 %v8034
    %v8582 = vunpack.c.h.b16 %v8034
    %v8583 = vunpack.c.l.b16 %v8035
    %v8584 = vunpack.c.h.b16 %v8035
    %v8585 = vunpack.c.l.b16 %v8036
    %v8586 = vunpack.c.h.b16 %v8036
    %v8587 = vunpack.c.l.b16 %v8037
    %v8588 = vunpack.c.h.b16 %v8037
    %v8589 = vunpack.c.l.b16 %v8038
    %v8590 = vunpack.c.h.b16 %v8038
    %v8591 = vunpack.c.l.b16 %v8039
    %v8592 = vunpack.c.h.b16 %v8039
    %v8593 = vunpack.c.l.b16 %v8040
    %v8594 = vunpack.c.h.b16 %v8040
    %v8595 = vunpack.c.l.b16 %v8041
    %v8596 = vunpack.c.h.b16 %v8041
    %v8597 = vunpack.c.l.b16 %v8042
    %v8598 = vunpack.c.h.b16 %v8042
    %v8599 = vunpack.c.l.b16 %v8043
    %v8600 = vunpack.c.h.b16 %v8043
    %v8601 = vunpack.c.l.b16 %v8044
    %v8602 = vunpack.c.h.b16 %v8044
    %v8603 = vunpack.c.l.b16 %v8045
    %v8604 = vunpack.c.h.b16 %v8045
    %v8605 = vunpack.c.l.b16 %v8046
    %v8606 = vunpack.c.h.b16 %v8046
    %v8607 = vunpack.c.l.b16 %v8047
    %v8608 = vunpack.c.h.b16 %v8047
    %v8609 = vunpack.c.l.b16 %v8048
    %v8610 = vunpack.c.h.b16 %v8048
    %v8611 = vunpack.c.l.b16 %v8049
    %v8612 = vunpack.c.h.b16 %v8049
    %v8613 = vunpack.c.l.b16 %v8050
    %v8614 = vunpack.c.h.b16 %v8050
    %v8615 = vunpack.c.l.b16 %v8051
    %v8616 = vunpack.c.h.b16 %v8051
    %v8617 = vunpack.c.l.b16 %v8052
    %v8618 = vunpack.c.h.b16 %v8052
    %v8619 = vunpack.c.l.b16 %v8053
    %v8620 = vunpack.c.h.b16 %v8053
    %v8621 = vunpack.c.l.b16 %v8054
    %v8622 = vunpack.c.h.b16 %v8054
    %v8623 = vunpack.c.l.b16 %v8055
    %v8624 = vunpack.c.h.b16 %v8055
    %v8625 = vunpack.c.l.b16 %v8056
    %v8626 = vunpack.c.h.b16 %v8056
    %v8627 = vunpack.c.l.b16 %v8057
    %v8628 = vunpack.c.h.b16 %v8057
    %v8629 = vunpack.c.l.b16 %v8058
    %v8630 = vunpack.c.h.b16 %v8058
    %v8631 = vunpack.c.l.b16 %v8059
    %v8632 = vunpack.c.h.b16 %v8059
    %v8633 = vunpack.c.l.b16 %v8060
    %v8634 = vunpack.c.h.b16 %v8060
    %v8635 = vunpack.c.l.b16 %v8061
    %v8636 = vunpack.c.h.b16 %v8061
    %v8637 = vunpack.c.l.b16 %v8062
    %v8638 = vunpack.c.h.b16 %v8062
    %v8639 = vunpack.c.l.b16 %v8063
    %v8640 = vunpack.c.h.b16 %v8063
    %v8641 = vunpack.c.l.b16 %v8064
    %v8642 = vunpack.c.h.b16 %v8064
    %v8643 = vunpack.c.l.b16 %v8065
    %v8644 = vunpack.c.h.b16 %v8065
    %v8645 = vunpack.c.l.b16 %v8066
    %v8646 = vunpack.c.h.b16 %v8066
    %v8647 = vunpack.c.l.b16 %v8067
    %v8648 = vunpack.c.h.b16 %v8067
    %v8649 = vunpack.c.l.b16 %v8068
    %v8650 = vunpack.c.h.b16 %v8068
    %v8651 = vunpack.c.l.b16 %v8069
    %v8652 = vunpack.c.h.b16 %v8069
    %v8653 = vunpack.c.l.b16 %v8070
    %v8654 = vunpack.c.h.b16 %v8070
    %v8655 = vunpack.c.l.b16 %v8071
    %v8656 = vunpack.c.h.b16 %v8071
    %v8657 = vunpack.c.l.b16 %v8072
    %v8658 = vunpack.c.h.b16 %v8072
    %v8659 = vunpack.c.l.b16 %v8073
    %v8660 = vunpack.c.h.b16 %v8073
    %v8661 = vunpack.c.l.b16 %v8074
    %v8662 = vunpack.c.h.b16 %v8074
    %v8663 = vunpack.c.l.b16 %v8075
    %v8664 = vunpack.c.h.b16 %v8075
    %v8665 = vunpack.c.l.b16 %v8076
    %v8666 = vunpack.c.h.b16 %v8076
    %v8667 = vunpack.c.l.b16 %v8077
    %v8668 = vunpack.c.h.b16 %v8077
    %v8669 = vunpack.c.l.b16 %v8078
    %v8670 = vunpack.c.h.b16 %v8078
    %v8671 = vunpack.c.l.b16 %v8079
    %v8672 = vunpack.c.h.b16 %v8079
    %v8673 = vunpack.c.l.b16 %v8080
    %v8674 = vunpack.c.h.b16 %v8080
    %v8675 = vunpack.c.l.b16 %v8081
    %v8676 = vunpack.c.h.b16 %v8081
    %v8677 = vunpack.c.l.b16 %v8082
    %v8678 = vunpack.c.h.b16 %v8082
    %v8679 = vunpack.c.l.b16 %v8083
    %v8680 = vunpack.c.h.b16 %v8083
    %v8681 = vunpack.c.l.b16 %v8084
    %v8682 = vunpack.c.h.b16 %v8084
    %v8683 = vunpack.c.l.b16 %v8085
    %v8684 = vunpack.c.h.b16 %v8085
    %v8685 = vunpack.c.l.b16 %v8086
    %v8686 = vunpack.c.h.b16 %v8086
    %v8687 = vunpack.c.l.b16 %v8087
    %v8688 = vunpack.c.h.b16 %v8087
    %v8689 = vunpack.c.l.b16 %v8088
    %v8690 = vunpack.c.h.b16 %v8088
    %v8691 = vunpack.c.l.b16 %v8089
    %v8692 = vunpack.c.h.b16 %v8089
    %v8693 = vunpack.c.l.b16 %v8090
    %v8694 = vunpack.c.h.b16 %v8090
    %v8695 = vunpack.c.l.b16 %v8091
    %v8696 = vunpack.c.h.b16 %v8091
    %v8697 = vunpack.c.l.b16 %v8092
    %v8698 = vunpack.c.h.b16 %v8092
    %v8699 = vunpack.c.l.b16 %v8093
    %v8700 = vunpack.c.h.b16 %v8093
    %v8701 = vunpack.c.l.b16 %v8094
    %v8702 = vunpack.c.h.b16 %v8094
    %v8703 = vunpack.c.l.b16 %v8095
    %v8704 = vunpack.c.h.b16 %v8095
    %v8705 = vunpack.c.l.b16 %v8096
    %v8706 = vunpack.c.h.b16 %v8096
    %v8707 = vunpack.c.l.b16 %v8097
    %v8708 = vunpack.c.h.b16 %v8097
    %v8709 = vunpack.c.l.b16 %v8098
    %v8710 = vunpack.c.h.b16 %v8098
    %v8711 = vunpack.c.l.b16 %v8099
    %v8712 = vunpack.c.h.b16 %v8099
    %v8713 = vunpack.c.l.b16 %v8100
    %v8714 = vunpack.c.h.b16 %v8100
    %v8715 = vunpack.c.l.b16 %v8101
    %v8716 = vunpack.c.h.b16 %v8101
    %v8717 = vunpack.c.l.b16 %v8102
    %v8718 = vunpack.c.h.b16 %v8102
    %v8719 = vunpack.c.l.b16 %v8103
    %v8720 = vunpack.c.h.b16 %v8103
    %v8721 = vunpack.c.l.b16 %v8104
    %v8722 = vunpack.c.h.b16 %v8104
    %v8723 = vunpack.c.l.b16 %v8105
    %v8724 = vunpack.c.h.b16 %v8105
    %v8725 = vunpack.c.l.b16 %v8106
    %v8726 = vunpack.c.h.b16 %v8106
    %v8727 = vunpack.c.l.b16 %v8107
    %v8728 = vunpack.c.h.b16 %v8107
    %v8729 = vunpack.c.l.b16 %v8108
    %v8730 = vunpack.c.h.b16 %v8108
    %v8731 = vunpack.c.l.b16 %v8109
    %v8732 = vunpack.c.h.b16 %v8109
    %v8733 = vunpack.c.l.b16 %v8110
    %v8734 = vunpack.c.h.b16 %v8110
    %v8735 = vunpack.c.l.b16 %v8111
    %v8736 = vunpack.c.h.b16 %v8111
    %v8737 = vunpack.c.l.b16 %v8112
    %v8738 = vunpack.c.h.b16 %v8112
    %v8739 = vunpack.c.l.b16 %v8113
    %v8740 = vunpack.c.h.b16 %v8113
    %v8741 = vunpack.c.l.b16 %v8114
    %v8742 = vunpack.c.h.b16 %v8114
    %v8743 = vunpack.c.l.b16 %v8115
    %v8744 = vunpack.c.h.b16 %v8115
    %v8745 = vunpack.c.l.b16 %v8116
    %v8746 = vunpack.c.h.b16 %v8116
    %v8747 = vunpack.c.l.b16 %v8117
    %v8748 = vunpack.c.h.b16 %v8117
    %v8749 = vunpack.c.l.b16 %v8118
    %v8750 = vunpack.c.h.b16 %v8118
    %v8751 = vunpack.c.l.b16 %v8119
    %v8752 = vunpack.c.h.b16 %v8119
    %v8753 = vunpack.c.l.b16 %v8120
    %v8754 = vunpack.c.h.b16 %v8120
    %v8755 = vunpack.c.l.b16 %v8121
    %v8756 = vunpack.c.h.b16 %v8121
    %v8757 = vunpack.c.l.b16 %v8122
    %v8758 = vunpack.c.h.b16 %v8122
    %v8759 = vunpack.c.l.b16 %v8123
    %v8760 = vunpack.c.h.b16 %v8123
    %v8761 = vunpack.c.l.b16 %v8124
    %v8762 = vunpack.c.h.b16 %v8124
    %v8763 = vunpack.c.l.b16 %v8125
    %v8764 = vunpack.c.h.b16 %v8125
    %v8765 = vunpack.c.l.b16 %v8126
    %v8766 = vunpack.c.h.b16 %v8126
    %v8767 = vunpack.c.l.b16 %v8127
    %v8768 = vunpack.c.h.b16 %v8127
    %v8769 = vunpack.c.l.b16 %v8128
    %v8770 = vunpack.c.h.b16 %v8128
    %v8771 = vunpack.c.l.b16 %v8129
    %v8772 = vunpack.c.h.b16 %v8129
    %v8773 = vunpack.c.l.b16 %v8130
    %v8774 = vunpack.c.h.b16 %v8130
    %v8775 = vunpack.c.l.b16 %v8131
    %v8776 = vunpack.c.h.b16 %v8131
    %v8777 = vunpack.c.l.b16 %v8132
    %v8778 = vunpack.c.h.b16 %v8132
    %v8779 = vunpack.c.l.b16 %v8133
    %v8780 = vunpack.c.h.b16 %v8133
    %v8781 = vunpack.c.l.b16 %v8134
    %v8782 = vunpack.c.h.b16 %v8134
    %v8783 = vunpack.c.l.b16 %v8135
    %v8784 = vunpack.c.h.b16 %v8135
    %v8785 = vunpack.c.l.b16 %v8136
    %v8786 = vunpack.c.h.b16 %v8136
    %v8787 = vunpack.c.l.b16 %v8137
    %v8788 = vunpack.c.h.b16 %v8137
    %v8789 = vunpack.c.l.b16 %v8138
    %v8790 = vunpack.c.h.b16 %v8138
    %v8791 = vunpack.c.l.b16 %v8139
    %v8792 = vunpack.c.h.b16 %v8139
    %v8793 = vunpack.c.l.b16 %v8140
    %v8794 = vunpack.c.h.b16 %v8140
    %v8795 = vunpack.c.l.b16 %v8141
    %v8796 = vunpack.c.h.b16 %v8141
    %v8797 = vunpack.c.l.b16 %v8142
    %v8798 = vunpack.c.h.b16 %v8142
    %v8799 = vunpack.c.l.b16 %v8143
    %v8800 = vunpack.c.h.b16 %v8143
    %v8801 = vunpack.c.l.b16 %v8144
    %v8802 = vunpack.c.h.b16 %v8144
    %v8803 = vunpack.c.l.b16 %v8145
    %v8804 = vunpack.c.h.b16 %v8145
    %v8805 = vunpack.c.l.b16 %v8146
    %v8806 = vunpack.c.h.b16 %v8146
    %v8807 = vunpack.c.l.b16 %v8147
    %v8808 = vunpack.c.h.b16 %v8147
    %v8809 = vunpack.c.l.b16 %v8148
    %v8810 = vunpack.c.h.b16 %v8148
    %v8811 = vunpack.c.l.b16 %v8149
    %v8812 = vunpack.c.h.b16 %v8149
    %v8813 = vunpack.c.l.b16 %v8150
    %v8814 = vunpack.c.h.b16 %v8150
    %v8815 = vunpack.c.l.b16 %v8151
    %v8816 = vunpack.c.h.b16 %v8151
    %v8817 = vunpack.c.l.b16 %v8152
    %v8818 = vunpack.c.h.b16 %v8152
    %v8819 = vunpack.c.l.b16 %v8153
    %v8820 = vunpack.c.h.b16 %v8153
    %v8821 = vunpack.c.l.b16 %v8154
    %v8822 = vunpack.c.h.b16 %v8154
    %v8823 = vunpack.c.l.b16 %v8155
    %v8824 = vunpack.c.h.b16 %v8155
    %v8825 = vunpack.c.l.b16 %v8156
    %v8826 = vunpack.c.h.b16 %v8156
    %v8827 = vunpack.c.l.b16 %v8157
    %v8828 = vunpack.c.h.b16 %v8157
    %v8829 = vunpack.c.l.b16 %v8158
    %v8830 = vunpack.c.h.b16 %v8158
    %v8831 = vunpack.c.l.b16 %v8159
    %v8832 = vunpack.c.h.b16 %v8159
    %v8833 = vunpack.c.l.b16 %v8160
    %v8834 = vunpack.c.h.b16 %v8160
    %v8835 = vunpack.c.l.b16 %v8161
    %v8836 = vunpack.c.h.b16 %v8161
    %v8837 = vunpack.c.l.b16 %v8162
    %v8838 = vunpack.c.h.b16 %v8162
    %v8839 = vunpack.c.l.b16 %v8163
    %v8840 = vunpack.c.h.b16 %v8163
    %v8841 = vunpack.c.l.b16 %v8164
    %v8842 = vunpack.c.h.b16 %v8164
    %v8843 = vunpack.c.l.b16 %v8165
    %v8844 = vunpack.c.h.b16 %v8165
    %v8845 = vunpack.c.l.b16 %v8166
    %v8846 = vunpack.c.h.b16 %v8166
    %v8847 = vunpack.c.l.b16 %v8167
    %v8848 = vunpack.c.h.b16 %v8167
    %v8849 = vunpack.c.l.b16 %v8168
    %v8850 = vunpack.c.h.b16 %v8168
    %v8851 = vunpack.c.l.b16 %v8169
    %v8852 = vunpack.c.h.b16 %v8169
    %v8853 = vunpack.c.l.b16 %v8170
    %v8854 = vunpack.c.h.b16 %v8170
    %v8855 = vunpack.c.l.b16 %v8171
    %v8856 = vunpack.c.h.b16 %v8171
    %v8857 = vunpack.c.l.b16 %v8172
    %v8858 = vunpack.c.h.b16 %v8172
    %v8859 = vunpack.c.l.b16 %v8173
    %v8860 = vunpack.c.h.b16 %v8173
    %v8861 = vunpack.c.l.b16 %v8174
    %v8862 = vunpack.c.h.b16 %v8174
    %v8863 = vunpack.c.l.b16 %v8175
    %v8864 = vunpack.c.h.b16 %v8175
    %v8865 = vunpack.c.l.b16 %v8176
    %v8866 = vunpack.c.h.b16 %v8176
    %v8867 = vunpack.c.l.b16 %v8177
    %v8868 = vunpack.c.h.b16 %v8177
    %v8869 = vunpack.c.l.b16 %v8178
    %v8870 = vunpack.c.h.b16 %v8178
    %v8871 = vunpack.c.l.b16 %v8179
    %v8872 = vunpack.c.h.b16 %v8179
    %v8873 = vunpack.c.l.b16 %v8180
    %v8874 = vunpack.c.h.b16 %v8180
    %v8875 = vunpack.c.l.b16 %v8181
    %v8876 = vunpack.c.h.b16 %v8181
    %v8877 = vunpack.c.l.b16 %v8182
    %v8878 = vunpack.c.h.b16 %v8182
    %v8879 = vunpack.c.l.b16 %v8183
    %v8880 = vunpack.c.h.b16 %v8183
    %v8881 = vunpack.c.l.b16 %v8184
    %v8882 = vunpack.c.h.b16 %v8184
    %v8883 = vunpack.c.l.b16 %v8185
    %v8884 = vunpack.c.h.b16 %v8185
    %v8885 = vunpack.c.l.b16 %v8186
    %v8886 = vunpack.c.h.b16 %v8186
    %v8887 = vunpack.c.l.b16 %v8187
    %v8888 = vunpack.c.h.b16 %v8187
    %v8889 = vunpack.c.l.b16 %v8188
    %v8890 = vunpack.c.h.b16 %v8188
    %v8891 = vunpack.c.l.b16 %v8189
    %v8892 = vunpack.c.h.b16 %v8189
    %v8893 = vunpack.c.l.b16 %v8190
    %v8894 = vunpack.c.h.b16 %v8190
    %v8895 = vunpack.c.l.b16 %v8191
    %v8896 = vunpack.c.h.b16 %v8191
    %v8897 = vunpack.c.l.b16 %v8192
    %v8898 = vunpack.c.h.b16 %v8192
    %v8899 = vunpack.c.l.b16 %v8193
    %v8900 = vunpack.c.h.b16 %v8193
    %v8901 = vunpack.c.l.b16 %v8194
    %v8902 = vunpack.c.h.b16 %v8194
    %v8903 = vunpack.c.l.b16 %v8195
    %v8904 = vunpack.c.h.b16 %v8195
    %v8905 = vunpack.c.l.b16 %v8196
    %v8906 = vunpack.c.h.b16 %v8196
    %v8907 = vunpack.c.l.b16 %v8197
    %v8908 = vunpack.c.h.b16 %v8197
    %v8909 = vunpack.c.l.b16 %v8198
    %v8910 = vunpack.c.h.b16 %v8198
    %v8911 = vunpack.c.l.b16 %v8199
    %v8912 = vunpack.c.h.b16 %v8199
    %v8913 = vunpack.c.l.b16 %v8200
    %v8914 = vunpack.c.h.b16 %v8200
    %v8915 = vunpack.c.l.b16 %v8201
    %v8916 = vunpack.c.h.b16 %v8201
    %v8917 = vunpack.c.l.b16 %v8202
    %v8918 = vunpack.c.h.b16 %v8202
    %v8919 = vunpack.c.l.b16 %v8203
    %v8920 = vunpack.c.h.b16 %v8203
    %v8921 = vunpack.c.l.b16 %v8204
    %v8922 = vunpack.c.h.b16 %v8204
    %v8923 = vunpack.c.l.b16 %v8205
    %v8924 = vunpack.c.h.b16 %v8205
    %v8925 = vunpack.c.l.b16 %v8206
    %v8926 = vunpack.c.h.b16 %v8206
    %v8927 = vunpack.c.l.b16 %v8207
    %v8928 = vunpack.c.h.b16 %v8207
    %v8929 = vunpack.c.l.b16 %v8208
    %v8930 = vunpack.c.h.b16 %v8208
    %v8931 = vunpack.c.l.b16 %v8209
    %v8932 = vunpack.c.h.b16 %v8209
    %v8933 = vunpack.c.l.b16 %v8210
    %v8934 = vunpack.c.h.b16 %v8210
    %v8935 = vunpack.c.l.b16 %v8211
    %v8936 = vunpack.c.h.b16 %v8211
    %v8937 = vunpack.c.l.b16 %v8212
    %v8938 = vunpack.c.h.b16 %v8212
    %v8939 = vunpack.c.l.b16 %v8213
    %v8940 = vunpack.c.h.b16 %v8213
    %v8941 = vunpack.c.l.b16 %v8214
    %v8942 = vunpack.c.h.b16 %v8214
    %v8943 = vunpack.c.l.b16 %v8215
    %v8944 = vunpack.c.h.b16 %v8215
    %v8945 = vunpack.c.l.b16 %v8216
    %v8946 = vunpack.c.h.b16 %v8216
    %v8947 = vunpack.c.l.b16 %v8217
    %v8948 = vunpack.c.h.b16 %v8217
    %v8949 = vunpack.c.l.b16 %v8218
    %v8950 = vunpack.c.h.b16 %v8218
    %v8951 = vunpack.c.l.b16 %v8219
    %v8952 = vunpack.c.h.b16 %v8219
    %v8953 = vunpack.c.l.b16 %v8220
    %v8954 = vunpack.c.h.b16 %v8220
    %v8955 = vunpack.c.l.b16 %v8221
    %v8956 = vunpack.c.h.b16 %v8221
    %v8957 = vunpack.c.l.b16 %v8222
    %v8958 = vunpack.c.h.b16 %v8222
    %v8959 = vunpack.c.l.b16 %v8223
    %v8960 = vunpack.c.h.b16 %v8223
    %v8961 = vunpack.c.l.b16 %v8224
    %v8962 = vunpack.c.h.b16 %v8224
    %v8963 = vunpack.c.l.b16 %v8225
    %v8964 = vunpack.c.h.b16 %v8225
    %v8965 = vunpack.c.l.b16 %v8226
    %v8966 = vunpack.c.h.b16 %v8226
    %v8967 = vunpack.c.l.b16 %v8227
    %v8968 = vunpack.c.h.b16 %v8227
    %v8969 = vunpack.c.l.b16 %v8228
    %v8970 = vunpack.c.h.b16 %v8228
    %v8971 = vunpack.c.l.b16 %v8229
    %v8972 = vunpack.c.h.b16 %v8229
    %v8973 = vunpack.c.l.b16 %v8230
    %v8974 = vunpack.c.h.b16 %v8230
    %v8975 = vunpack.c.l.b16 %v8231
    %v8976 = vunpack.c.h.b16 %v8231
    %v8977 = vunpack.c.l.b16 %v8232
    %v8978 = vunpack.c.h.b16 %v8232
    %v8979 = vunpack.c.l.b16 %v8233
    %v8980 = vunpack.c.h.b16 %v8233
    %v8981 = vunpack.c.l.b16 %v8234
    %v8982 = vunpack.c.h.b16 %v8234
    %v8983 = vunpack.c.l.b16 %v8235
    %v8984 = vunpack.c.h.b16 %v8235
    %v8985 = vunpack.c.l.b16 %v8236
    %v8986 = vunpack.c.h.b16 %v8236
    %v8987 = vunpack.c.l.b16 %v8237
    %v8988 = vunpack.c.h.b16 %v8237
    %v8989 = vunpack.c.l.b16 %v8238
    %v8990 = vunpack.c.h.b16 %v8238
    %v8991 = vunpack.c.l.b16 %v8239
    %v8992 = vunpack.c.h.b16 %v8239
    %v8993 = vunpack.c.l.b16 %v8240
    %v8994 = vunpack.c.h.b16 %v8240
    %v8995 = vunpack.c.l.b16 %v8241
    %v8996 = vunpack.c.h.b16 %v8241
    %v8997 = vunpack.c.l.b16 %v8242
    %v8998 = vunpack.c.h.b16 %v8242
    %v8999 = vunpack.c.l.b16 %v8243
    %v9000 = vunpack.c.h.b16 %v8243
    %v9001 = vunpack.c.l.b16 %v8244
    %v9002 = vunpack.c.h.b16 %v8244
    %v9003 = vunpack.c.l.b16 %v8245
    %v9004 = vunpack.c.h.b16 %v8245
    %v9005 = vunpack.c.l.b16 %v8246
    %v9006 = vunpack.c.h.b16 %v8246
    %v9007 = vunpack.c.l.b16 %v8247
    %v9008 = vunpack.c.h.b16 %v8247
    %v9009 = vunpack.c.l.b16 %v8248
    %v9010 = vunpack.c.h.b16 %v8248
    %v9011 = vunpack.c.l.b16 %v8249
    %v9012 = vunpack.c.h.b16 %v8249
    %v9013 = vunpack.c.l.b16 %v8250
    %v9014 = vunpack.c.h.b16 %v8250
    %v9015 = vunpack.c.l.b16 %v8251
    %v9016 = vunpack.c.h.b16 %v8251
    %v9017 = vunpack.c.l.b16 %v8252
    %v9018 = vunpack.c.h.b16 %v8252
    %v9019 = vunpack.c.l.b16 %v8253
    %v9020 = vunpack.c.h.b16 %v8253
    %v9021 = vunpack.c.l.b16 %v8254
    %v9022 = vunpack.c.h.b16 %v8254
    %v9023 = vunpack.c.l.b16 %v8255
    %v9024 = vunpack.c.h.b16 %v8255
    %v9025 = vunpack.c.l.b16 %v8256
    %v9026 = vunpack.c.h.b16 %v8256
    %v9027 = vunpack.c.l.b16 %v8257
    %v9028 = vunpack.c.h.b16 %v8257
    %v9029 = vunpack.c.l.b16 %v8258
    %v9030 = vunpack.c.h.b16 %v8258
    %v9031 = vunpack.c.l.b16 %v8259
    %v9032 = vunpack.c.h.b16 %v8259
    %v9033 = vunpack.c.l.b16 %v8260
    %v9034 = vunpack.c.h.b16 %v8260
    %v9035 = vunpack.c.l.b16 %v8261
    %v9036 = vunpack.c.h.b16 %v8261
    %v9037 = vunpack.c.l.b16 %v8262
    %v9038 = vunpack.c.h.b16 %v8262
    %v9039 = vunpack.c.l.b16 %v8263
    %v9040 = vunpack.c.h.b16 %v8263
    %v9041 = vunpack.c.l.b16 %v8264
    %v9042 = vunpack.c.h.b16 %v8264
    %v9043 = vpack.c.b16 %v8535, %v8531
    %v9044 = vpack.c.b16 %v8536, %v8532
    %v9045 = vpack.c.b16 %v8537, %v8533
    %v9046 = vpack.c.b16 %v8538, %v8534
    %v9047 = vpack.c.b16 %v8543, %v8539
    %v9048 = vpack.c.b16 %v8544, %v8540
    %v9049 = vpack.c.b16 %v8545, %v8541
    %v9050 = vpack.c.b16 %v8546, %v8542
    %v9051 = vpack.c.b16 %v8551, %v8547
    %v9052 = vpack.c.b16 %v8552, %v8548
    %v9053 = vpack.c.b16 %v8553, %v8549
    %v9054 = vpack.c.b16 %v8554, %v8550
    %v9055 = vpack.c.b16 %v8559, %v8555
    %v9056 = vpack.c.b16 %v8560, %v8556
    %v9057 = vpack.c.b16 %v8561, %v8557
    %v9058 = vpack.c.b16 %v8562, %v8558
    %v9059 = vpack.c.b16 %v8567, %v8563
    %v9060 = vpack.c.b16 %v8568, %v8564
    %v9061 = vpack.c.b16 %v8569, %v8565
    %v9062 = vpack.c.b16 %v8570, %v8566
    %v9063 = vpack.c.b16 %v8575, %v8571
    %v9064 = vpack.c.b16 %v8576, %v8572
    %v9065 = vpack.c.b16 %v8577, %v8573
    %v9066 = vpack.c.b16 %v8578, %v8574
    %v9067 = vpack.c.b16 %v8583, %v8579
    %v9068 = vpack.c.b16 %v8584, %v8580
    %v9069 = vpack.c.b16 %v8585, %v8581
    %v9070 = vpack.c.b16 %v8586, %v8582
    %v9071 = vpack.c.b16 %v8591, %v8587
    %v9072 = vpack.c.b16 %v8592, %v8588
    %v9073 = vpack.c.b16 %v8593, %v8589
    %v9074 = vpack.c.b16 %v8594, %v8590
    %v9075 = vpack.c.b16 %v8599, %v8595
    %v9076 = vpack.c.b16 %v8600, %v8596
    %v9077 = vpack.c.b16 %v8601, %v8597
    %v9078 = vpack.c.b16 %v8602, %v8598
    %v9079 = vpack.c.b16 %v8607, %v8603
    %v9080 = vpack.c.b16 %v8608, %v8604
    %v9081 = vpack.c.b16 %v8609, %v8605
    %v9082 = vpack.c.b16 %v8610, %v8606
    %v9083 = vpack.c.b16 %v8615, %v8611
    %v9084 = vpack.c.b16 %v8616, %v8612
    %v9085 = vpack.c.b16 %v8617, %v8613
    %v9086 = vpack.c.b16 %v8618, %v8614
    %v9087 = vpack.c.b16 %v8623, %v8619
    %v9088 = vpack.c.b16 %v8624, %v8620
    %v9089 = vpack.c.b16 %v8625, %v8621
    %v9090 = vpack.c.b16 %v8626, %v8622
    %v9091 = vpack.c.b16 %v8631, %v8627
    %v9092 = vpack.c.b16 %v8632, %v8628
    %v9093 = vpack.c.b16 %v8633, %v8629
    %v9094 = vpack.c.b16 %v8634, %v8630
    %v9095 = vpack.c.b16 %v8639, %v8635
    %v9096 = vpack.c.b16 %v8640, %v8636
    %v9097 = vpack.c.b16 %v8641, %v8637
    %v9098 = vpack.c.b16 %v8642, %v8638
    %v9099 = vpack.c.b16 %v8647, %v8643
    %v9100 = vpack.c.b16 %v8648, %v8644
    %v9101 = vpack.c.b16 %v8649, %v8645
    %v9102 = vpack.c.b16 %v8650, %v8646
    %v9103 = vpack.c.b16 %v8655, %v8651
    %v9104 = vpack.c.b16 %v8656, %v8652
    %v9105 = vpack.c.b16 %v8657, %v8653
    %v9106 = vpack.c.b16 %v8658, %v8654
    %v9107 = vpack.c.b16 %v8663, %v8659
    %v9108 = vpack.c.b16 %v8664, %v8660
    %v9109 = vpack.c.b16 %v8665, %v8661
    %v9110 = vpack.c.b16 %v8666, %v8662
    %v9111 = vpack.c.b16 %v8671, %v8667
    %v9112 = vpack.c.b16 %v8672, %v8668
    %v9113 = vpack.c.b16 %v8673, %v8669
    %v9114 = vpack.c.b16 %v8674, %v8670
    %v9115 = vpack.c.b16 %v8679, %v8675
    %v9116 = vpack.c.b16 %v8680, %v8676
    %v9117 = vpack.c.b16 %v8681, %v8677
    %v9118 = vpack.c.b16 %v8682, %v8678
    %v9119 = vpack.c.b16 %v8687, %v8683
    %v9120 = vpack.c.b16 %v8688, %v8684
    %v9121 = vpack.c.b16 %v8689, %v8685
    %v9122 = vpack.c.b16 %v8690, %v8686
    %v9123 = vpack.c.b16 %v8695, %v8691
    %v9124 = vpack.c.b16 %v8696, %v8692
    %v9125 = vpack.c.b16 %v8697, %v8693
    %v9126 = vpack.c.b16 %v8698, %v8694
    %v9127 = vpack.c.b16 %v8703, %v8699
    %v9128 = vpack.c.b16 %v8704, %v8700
    %v9129 = vpack.c.b16 %v8705, %v8701
    %v9130 = vpack.c.b16 %v8706, %v8702
    %v9131 = vpack.c.b16 %v8711, %v8707
    %v9132 = vpack.c.b16 %v8712, %v8708
    %v9133 = vpack.c.b16 %v8713, %v8709
    %v9134 = vpack.c.b16 %v8714, %v8710
    %v9135 = vpack.c.b16 %v8719, %v8715
    %v9136 = vpack.c.b16 %v8720, %v8716
    %v9137 = vpack.c.b16 %v8721, %v8717
    %v9138 = vpack.c.b16 %v8722, %v8718
    %v9139 = vpack.c.b16 %v8727, %v8723
    %v9140 = vpack.c.b16 %v8728, %v8724
    %v9141 = vpack.c.b16 %v8729, %v8725
    %v9142 = vpack.c.b16 %v8730, %v8726
    %v9143 = vpack.c.b16 %v8735, %v8731
    %v9144 = vpack.c.b16 %v8736, %v8732
    %v9145 = vpack.c.b16 %v8737, %v8733
    %v9146 = vpack.c.b16 %v8738, %v8734
    %v9147 = vpack.c.b16 %v8743, %v8739
    %v9148 = vpack.c.b16 %v8744, %v8740
    %v9149 = vpack.c.b16 %v8745, %v8741
    %v9150 = vpack.c.b16 %v8746, %v8742
    %v9151 = vpack.c.b16 %v8751, %v8747
    %v9152 = vpack.c.b16 %v8752, %v8748
    %v9153 = vpack.c.b16 %v8753, %v8749
    %v9154 = vpack.c.b16 %v8754, %v8750
    %v9155 = vpack.c.b16 %v8759, %v8755
    %v9156 = vpack.c.b16 %v8760, %v8756
    %v9157 = vpack.c.b16 %v8761, %v8757
    %v9158 = vpack.c.b16 %v8762, %v8758
    %v9159 = vpack.c.b16 %v8767, %v8763
    %v9160 = vpack.c.b16 %v8768, %v8764
    %v9161 = vpack.c.b16 %v8769, %v8765
    %v9162 = vpack.c.b16 %v8770, %v8766
    %v9163 = vpack.c.b16 %v8775, %v8771
    %v9164 = vpack.c.b16 %v8776, %v8772
    %v9165 = vpack.c.b16 %v8777, %v8773
    %v9166 = vpack.c.b16 %v8778, %v8774
    %v9167 = vpack.c.b16 %v8783, %v8779
    %v9168 = vpack.c.b16 %v8784, %v8780
    %v9169 = vpack.c.b16 %v8785, %v8781
    %v9170 = vpack.c.b16 %v8786, %v8782
    %v9171 = vpack.c.b16 %v8791, %v8787
    %v9172 = vpack.c.b16 %v8792, %v8788
    %v9173 = vpack.c.b16 %v8793, %v8789
    %v9174 = vpack.c.b16 %v8794, %v8790
    %v9175 = vpack.c.b16 %v8799, %v8795
    %v9176 = vpack.c.b16 %v8800, %v8796
    %v9177 = vpack.c.b16 %v8801, %v8797
    %v9178 = vpack.c.b16 %v8802, %v8798
    %v9179 = vpack.c.b16 %v8807, %v8803
    %v9180 = vpack.c.b16 %v8808, %v8804
    %v9181 = vpack.c.b16 %v8809, %v8805
    %v9182 = vpack.c.b16 %v8810, %v8806
    %v9183 = vpack.c.b16 %v8815, %v8811
    %v9184 = vpack.c.b16 %v8816, %v8812
    %v9185 = vpack.c.b16 %v8817, %v8813
    %v9186 = vpack.c.b16 %v8818, %v8814
    %v9187 = vpack.c.b16 %v8823, %v8819
    %v9188 = vpack.c.b16 %v8824, %v8820
    %v9189 = vpack.c.b16 %v8825, %v8821
    %v9190 = vpack.c.b16 %v8826, %v8822
    %v9191 = vpack.c.b16 %v8831, %v8827
    %v9192 = vpack.c.b16 %v8832, %v8828
    %v9193 = vpack.c.b16 %v8833, %v8829
    %v9194 = vpack.c.b16 %v8834, %v8830
    %v9195 = vpack.c.b16 %v8839, %v8835
    %v9196 = vpack.c.b16 %v8840, %v8836
    %v9197 = vpack.c.b16 %v8841, %v8837
    %v9198 = vpack.c.b16 %v8842, %v8838
    %v9199 = vpack.c.b16 %v8847, %v8843
    %v9200 = vpack.c.b16 %v8848, %v8844
    %v9201 = vpack.c.b16 %v8849, %v8845
    %v9202 = vpack.c.b16 %v8850, %v8846
    %v9203 = vpack.c.b16 %v8855, %v8851
    %v9204 = vpack.c.b16 %v8856, %v8852
    %v9205 = vpack.c.b16 %v8857, %v8853
    %v9206 = vpack.c.b16 %v8858, %v8854
    %v9207 = vpack.c.b16 %v8863, %v8859
    %v9208 = vpack.c.b16 %v8864, %v8860
    %v9209 = vpack.c.b16 %v8865, %v8861
    %v9210 = vpack.c.b16 %v8866, %v8862
    %v9211 = vpack.c.b16 %v8871, %v8867
    %v9212 = vpack.c.b16 %v8872, %v8868
    %v9213 = vpack.c.b16 %v8873, %v8869
    %v9214 = vpack.c.b16 %v8874, %v8870
    %v9215 = vpack.c.b16 %v8879, %v8875
    %v9216 = vpack.c.b16 %v8880, %v8876
    %v9217 = vpack.c.b16 %v8881, %v8877
    %v9218 = vpack.c.b16 %v8882, %v8878
    %v9219 = vpack.c.b16 %v8887, %v8883
    %v9220 = vpack.c.b16 %v8888, %v8884
    %v9221 = vpack.c.b16 %v8889, %v8885
    %v9222 = vpack.c.b16 %v8890, %v8886
    %v9223 = vpack.c.b16 %v8895, %v8891
    %v9224 = vpack.c.b16 %v8896, %v8892
    %v9225 = vpack.c.b16 %v8897, %v8893
    %v9226 = vpack.c.b16 %v8898, %v8894
    %v9227 = vpack.c.b16 %v8903, %v8899
    %v9228 = vpack.c.b16 %v8904, %v8900
    %v9229 = vpack.c.b16 %v8905, %v8901
    %v9230 = vpack.c.b16 %v8906, %v8902
    %v9231 = vpack.c.b16 %v8911, %v8907
    %v9232 = vpack.c.b16 %v8912, %v8908
    %v9233 = vpack.c.b16 %v8913, %v8909
    %v9234 = vpack.c.b16 %v8914, %v8910
    %v9235 = vpack.c.b16 %v8919, %v8915
    %v9236 = vpack.c.b16 %v8920, %v8916
    %v9237 = vpack.c.b16 %v8921, %v8917
    %v9238 = vpack.c.b16 %v8922, %v8918
    %v9239 = vpack.c.b16 %v8927, %v8923
    %v9240 = vpack.c.b16 %v8928, %v8924
    %v9241 = vpack.c.b16 %v8929, %v8925
    %v9242 = vpack.c.b16 %v8930, %v8926
    %v9243 = vpack.c.b16 %v8935, %v8931
    %v9244 = vpack.c.b16 %v8936, %v8932
    %v9245 = vpack.c.b16 %v8937, %v8933
    %v9246 = vpack.c.b16 %v8938, %v8934
    %v9247 = vpack.c.b16 %v8943, %v8939
    %v9248 = vpack.c.b16 %v8944, %v8940
    %v9249 = vpack.c.b16 %v8945, %v8941
    %v9250 = vpack.c.b16 %v8946, %v8942
    %v9251 = vpack.c.b16 %v8951, %v8947
    %v9252 = vpack.c.b16 %v8952, %v8948
    %v9253 = vpack.c.b16 %v8953, %v8949
    %v9254 = vpack.c.b16 %v8954, %v8950
    %v9255 = vpack.c.b16 %v8959, %v8955
    %v9256 = vpack.c.b16 %v8960, %v8956
    %v9257 = vpack.c.b16 %v8961, %v8957
    %v9258 = vpack.c.b16 %v8962, %v8958
    %v9259 = vpack.c.b16 %v8967, %v8963
    %v9260 = vpack.c.b16 %v8968, %v8964
    %v9261 = vpack.c.b16 %v8969, %v8965
    %v9262 = vpack.c.b16 %v8970, %v8966
    %v9263 = vpack.c.b16 %v8975, %v8971
    %v9264 = vpack.c.b16 %v8976, %v8972
    %v9265 = vpack.c.b16 %v8977, %v8973
    %v9266 = vpack.c.b16 %v8978, %v8974
    %v9267 = vpack.c.b16 %v8983, %v8979
    %v9268 = vpack.c.b16 %v8984, %v8980
    %v9269 = vpack.c.b16 %v8985, %v8981
    %v9270 = vpack.c.b16 %v8986, %v8982
    %v9271 = vpack.c.b16 %v8991, %v8987
    %v9272 = vpack.c.b16 %v8992, %v8988
    %v9273 = vpack.c.b16 %v8993, %v8989
    %v9274 = vpack.c.b16 %v8994, %v8990
    %v9275 = vpack.c.b16 %v8999, %v8995
    %v9276 = vpack.c.b16 %v9000, %v8996
    %v9277 = vpack.c.b16 %v9001, %v8997
    %v9278 = vpack.c.b16 %v9002, %v8998
    %v9279 = vpack.c.b16 %v9007, %v9003
    %v9280 = vpack.c.b16 %v9008, %v9004
    %v9281 = vpack.c.b16 %v9009, %v9005
    %v9282 = vpack.c.b16 %v9010, %v9006
    %v9283 = vpack.c.b16 %v9015, %v9011
    %v9284 = vpack.c.b16 %v9016, %v9012
    %v9285 = vpack.c.b16 %v9017, %v9013
    %v9286 = vpack.c.b16 %v9018, %v9014
    %v9287 = vpack.c.b16 %v9023, %v9019
    %v9288 = vpack.c.b16 %v9024, %v9020
    %v9289 = vpack.c.b16 %v9025, %v9021
    %v9290 = vpack.c.b16 %v9026, %v9022
    %v9291 = vpack.c.b16 %v9031, %v9027
    %v9292 = vpack.c.b16 %v9032, %v9028
    %v9293 = vpack.c.b16 %v9033, %v9029
    %v9294 = vpack.c.b16 %v9034, %v9030
    %v9295 = vpack.c.b16 %v9039, %v9035
    %v9296 = vpack.c.b16 %v9040, %v9036
    %v9297 = vpack.c.b16 %v9041, %v9037
    %v9298 = vpack.c.b16 %v9042, %v9038
    %9555 = vmatpush.bf16.msra.mxu0 %v9071
    %9556 = vmatpush.bf16.msra.mxu0 %v9067
    %9557 = vmatpush.bf16.msra.mxu0 %v9063
    %9558 = vmatpush.bf16.msra.mxu0 %v9059
    %9559 = vmatpush.bf16.msra.mxu0 %v9055
    %9560 = vmatpush.bf16.msra.mxu0 %v9051
    %9561 = vmatpush.bf16.msra.mxu0 %v9047
    %9562 = vmatpush.bf16.msra.mxu0 %v9043
    %9563 = vmatmul.bf16.gmra.mxu0 %v8001
    %v9564 = vpop.f32.mrf.mxu0
    %v9565 = vadd.f32 %v8267, %v9564
    %v9566 = vpop.f32.mrf.mxu0
    %9567 = vdwg.mxu0
    %9568 = vmatpush.bf16.msra.mxu0 %v9103
    %9569 = vmatpush.bf16.msra.mxu0 %v9099
    %9570 = vmatpush.bf16.msra.mxu0 %v9095
    %9571 = vmatpush.bf16.msra.mxu0 %v9091
    %9572 = vmatpush.bf16.msra.mxu0 %v9087
    %9573 = vmatpush.bf16.msra.mxu0 %v9083
    %9574 = vmatpush.bf16.msra.mxu0 %v9079
    %9575 = vmatpush.bf16.msra.mxu0 %v9075
    %9576 = vmatmul.bf16.gmra.mxu0 %v8002
    %v9577 = vpop.f32.mrf.mxu0
    %v9578 = vadd.f32 %v9565, %v9577
    %v9579 = vpop.f32.mrf.mxu0
    %9580 = vdwg.mxu0
    %9581 = vmatpush.bf16.msra.mxu0 %v9135
    %9582 = vmatpush.bf16.msra.mxu0 %v9131
    %9583 = vmatpush.bf16.msra.mxu0 %v9127
    %9584 = vmatpush.bf16.msra.mxu0 %v9123
    %9585 = vmatpush.bf16.msra.mxu0 %v9119
    %9586 = vmatpush.bf16.msra.mxu0 %v9115
    %9587 = vmatpush.bf16.msra.mxu0 %v9111
    %9588 = vmatpush.bf16.msra.mxu0 %v9107
    %9589 = vmatmul.bf16.gmra.mxu0 %v8003
    %v9590 = vpop.f32.mrf.mxu0
    %v9591 = vadd.f32 %v9578, %v9590
    %v9592 = vpop.f32.mrf.mxu0
    %9593 = vdwg.mxu0
    %9594 = vmatpush.bf16.msra.mxu0 %v9167
    %9595 = vmatpush.bf16.msra.mxu0 %v9163
    %9596 = vmatpush.bf16.msra.mxu0 %v9159
    %9597 = vmatpush.bf16.msra.mxu0 %v9155
    %9598 = vmatpush.bf16.msra.mxu0 %v9151
    %9599 = vmatpush.bf16.msra.mxu0 %v9147
    %9600 = vmatpush.bf16.msra.mxu0 %v9143
    %9601 = vmatpush.bf16.msra.mxu0 %v9139
    %9602 = vmatmul.bf16.gmra.mxu0 %v8004
    %v9603 = vpop.f32.mrf.mxu0
    %v9604 = vadd.f32 %v9591, %v9603
    %v9605 = vpop.f32.mrf.mxu0
    %9606 = vdwg.mxu0
    %9607 = vmatpush.bf16.msra.mxu0 %v9199
    %9608 = vmatpush.bf16.msra.mxu0 %v9195
    %9609 = vmatpush.bf16.msra.mxu0 %v9191
    %9610 = vmatpush.bf16.msra.mxu0 %v9187
    %9611 = vmatpush.bf16.msra.mxu0 %v9183
    %9612 = vmatpush.bf16.msra.mxu0 %v9179
    %9613 = vmatpush.bf16.msra.mxu0 %v9175
    %9614 = vmatpush.bf16.msra.mxu0 %v9171
    %9615 = vmatmul.bf16.gmra.mxu0 %v8005
    %v9616 = vpop.f32.mrf.mxu0
    %v9617 = vadd.f32 %v9604, %v9616
    %v9618 = vpop.f32.mrf.mxu0
    %9619 = vdwg.mxu0
    %9620 = vmatpush.bf16.msra.mxu0 %v9231
    %9621 = vmatpush.bf16.msra.mxu0 %v9227
    %9622 = vmatpush.bf16.msra.mxu0 %v9223
    %9623 = vmatpush.bf16.msra.mxu0 %v9219
    %9624 = vmatpush.bf16.msra.mxu0 %v9215
    %9625 = vmatpush.bf16.msra.mxu0 %v9211
    %9626 = vmatpush.bf16.msra.mxu0 %v9207
    %9627 = vmatpush.bf16.msra.mxu0 %v9203
    %9628 = vmatmul.bf16.gmra.mxu0 %v8006
    %v9629 = vpop.f32.mrf.mxu0
    %v9630 = vadd.f32 %v9617, %v9629
    %v9631 = vpop.f32.mrf.mxu0
    %9632 = vdwg.mxu0
    %9633 = vmatpush.bf16.msra.mxu0 %v9263
    %9634 = vmatpush.bf16.msra.mxu0 %v9259
    %9635 = vmatpush.bf16.msra.mxu0 %v9255
    %9636 = vmatpush.bf16.msra.mxu0 %v9251
    %9637 = vmatpush.bf16.msra.mxu0 %v9247
    %9638 = vmatpush.bf16.msra.mxu0 %v9243
    %9639 = vmatpush.bf16.msra.mxu0 %v9239
    %9640 = vmatpush.bf16.msra.mxu0 %v9235
    %9641 = vmatmul.bf16.gmra.mxu0 %v8007
    %v9642 = vpop.f32.mrf.mxu0
    %v9643 = vadd.f32 %v9630, %v9642
    %v9644 = vpop.f32.mrf.mxu0
    %9645 = vdwg.mxu0
    %9646 = vmatpush.bf16.msra.mxu0 %v9295
    %9647 = vmatpush.bf16.msra.mxu0 %v9291
    %9648 = vmatpush.bf16.msra.mxu0 %v9287
    %9649 = vmatpush.bf16.msra.mxu0 %v9283
    %9650 = vmatpush.bf16.msra.mxu0 %v9279
    %9651 = vmatpush.bf16.msra.mxu0 %v9275
    %9652 = vmatpush.bf16.msra.mxu0 %v9271
    %9653 = vmatpush.bf16.msra.mxu0 %v9267
    %9654 = vmatmul.bf16.gmra.mxu0 %v8008
    %v9655 = vpop.f32.mrf.mxu0
    %v9656 = vadd.f32 %v9643, %v9655
    %v9657 = vpop.f32.mrf.mxu0
    %9658 = vdwg.mxu0
    %9659 = vmatpush.bf16.msra.mxu0 %v9072
    %9660 = vmatpush.bf16.msra.mxu0 %v9068
    %9661 = vmatpush.bf16.msra.mxu0 %v9064
    %9662 = vmatpush.bf16.msra.mxu0 %v9060
    %9663 = vmatpush.bf16.msra.mxu0 %v9056
    %9664 = vmatpush.bf16.msra.mxu0 %v9052
    %9665 = vmatpush.bf16.msra.mxu0 %v9048
    %9666 = vmatpush.bf16.msra.mxu0 %v9044
    %9667 = vmatmul.bf16.gmra.mxu0 %v8001
    %v9668 = vpop.f32.mrf.mxu0
    %v9669 = vadd.f32 %v8268, %v9668
    %v9670 = vpop.f32.mrf.mxu0
    %9671 = vdwg.mxu0
    %9672 = vmatpush.bf16.msra.mxu0 %v9104
    %9673 = vmatpush.bf16.msra.mxu0 %v9100
    %9674 = vmatpush.bf16.msra.mxu0 %v9096
    %9675 = vmatpush.bf16.msra.mxu0 %v9092
    %9676 = vmatpush.bf16.msra.mxu0 %v9088
    %9677 = vmatpush.bf16.msra.mxu0 %v9084
    %9678 = vmatpush.bf16.msra.mxu0 %v9080
    %9679 = vmatpush.bf16.msra.mxu0 %v9076
    %9680 = vmatmul.bf16.gmra.mxu0 %v8002
    %v9681 = vpop.f32.mrf.mxu0
    %v9682 = vadd.f32 %v9669, %v9681
    %v9683 = vpop.f32.mrf.mxu0
    %9684 = vdwg.mxu0
    %9685 = vmatpush.bf16.msra.mxu0 %v9136
    %9686 = vmatpush.bf16.msra.mxu0 %v9132
    %9687 = vmatpush.bf16.msra.mxu0 %v9128
    %9688 = vmatpush.bf16.msra.mxu0 %v9124
    %9689 = vmatpush.bf16.msra.mxu0 %v9120
    %9690 = vmatpush.bf16.msra.mxu0 %v9116
    %9691 = vmatpush.bf16.msra.mxu0 %v9112
    %9692 = vmatpush.bf16.msra.mxu0 %v9108
    %9693 = vmatmul.bf16.gmra.mxu0 %v8003
    %v9694 = vpop.f32.mrf.mxu0
    %v9695 = vadd.f32 %v9682, %v9694
    %v9696 = vpop.f32.mrf.mxu0
    %9697 = vdwg.mxu0
    %9698 = vmatpush.bf16.msra.mxu0 %v9168
    %9699 = vmatpush.bf16.msra.mxu0 %v9164
    %9700 = vmatpush.bf16.msra.mxu0 %v9160
    %9701 = vmatpush.bf16.msra.mxu0 %v9156
    %9702 = vmatpush.bf16.msra.mxu0 %v9152
    %9703 = vmatpush.bf16.msra.mxu0 %v9148
    %9704 = vmatpush.bf16.msra.mxu0 %v9144
    %9705 = vmatpush.bf16.msra.mxu0 %v9140
    %9706 = vmatmul.bf16.gmra.mxu0 %v8004
    %v9707 = vpop.f32.mrf.mxu0
    %v9708 = vadd.f32 %v9695, %v9707
    %v9709 = vpop.f32.mrf.mxu0
    %9710 = vdwg.mxu0
    %9711 = vmatpush.bf16.msra.mxu0 %v9200
    %9712 = vmatpush.bf16.msra.mxu0 %v9196
    %9713 = vmatpush.bf16.msra.mxu0 %v9192
    %9714 = vmatpush.bf16.msra.mxu0 %v9188
    %9715 = vmatpush.bf16.msra.mxu0 %v9184
    %9716 = vmatpush.bf16.msra.mxu0 %v9180
    %9717 = vmatpush.bf16.msra.mxu0 %v9176
    %9718 = vmatpush.bf16.msra.mxu0 %v9172
    %9719 = vmatmul.bf16.gmra.mxu0 %v8005
    %v9720 = vpop.f32.mrf.mxu0
    %v9721 = vadd.f32 %v9708, %v9720
    %v9722 = vpop.f32.mrf.mxu0
    %9723 = vdwg.mxu0
    %9724 = vmatpush.bf16.msra.mxu0 %v9232
    %9725 = vmatpush.bf16.msra.mxu0 %v9228
    %9726 = vmatpush.bf16.msra.mxu0 %v9224
    %9727 = vmatpush.bf16.msra.mxu0 %v9220
    %9728 = vmatpush.bf16.msra.mxu0 %v9216
    %9729 = vmatpush.bf16.msra.mxu0 %v9212
    %9730 = vmatpush.bf16.msra.mxu0 %v9208
    %9731 = vmatpush.bf16.msra.mxu0 %v9204
    %9732 = vmatmul.bf16.gmra.mxu0 %v8006
    %v9733 = vpop.f32.mrf.mxu0
    %v9734 = vadd.f32 %v9721, %v9733
    %v9735 = vpop.f32.mrf.mxu0
    %9736 = vdwg.mxu0
    %9737 = vmatpush.bf16.msra.mxu0 %v9264
    %9738 = vmatpush.bf16.msra.mxu0 %v9260
    %9739 = vmatpush.bf16.msra.mxu0 %v9256
    %9740 = vmatpush.bf16.msra.mxu0 %v9252
    %9741 = vmatpush.bf16.msra.mxu0 %v9248
    %9742 = vmatpush.bf16.msra.mxu0 %v9244
    %9743 = vmatpush.bf16.msra.mxu0 %v9240
    %9744 = vmatpush.bf16.msra.mxu0 %v9236
    %9745 = vmatmul.bf16.gmra.mxu0 %v8007
    %v9746 = vpop.f32.mrf.mxu0
    %v9747 = vadd.f32 %v9734, %v9746
    %v9748 = vpop.f32.mrf.mxu0
    %9749 = vdwg.mxu0
    %9750 = vmatpush.bf16.msra.mxu0 %v9296
    %9751 = vmatpush.bf16.msra.mxu0 %v9292
    %9752 = vmatpush.bf16.msra.mxu0 %v9288
    %9753 = vmatpush.bf16.msra.mxu0 %v9284
    %9754 = vmatpush.bf16.msra.mxu0 %v9280
    %9755 = vmatpush.bf16.msra.mxu0 %v9276
    %9756 = vmatpush.bf16.msra.mxu0 %v9272
    %9757 = vmatpush.bf16.msra.mxu0 %v9268
    %9758 = vmatmul.bf16.gmra.mxu0 %v8008
    %v9759 = vpop.f32.mrf.mxu0
    %v9760 = vadd.f32 %v9747, %v9759
    %v9761 = vpop.f32.mrf.mxu0
    %9762 = vdwg.mxu0
    %9763 = vmatpush.bf16.msra.mxu0 %v9073
    %9764 = vmatpush.bf16.msra.mxu0 %v9069
    %9765 = vmatpush.bf16.msra.mxu0 %v9065
    %9766 = vmatpush.bf16.msra.mxu0 %v9061
    %9767 = vmatpush.bf16.msra.mxu0 %v9057
    %9768 = vmatpush.bf16.msra.mxu0 %v9053
    %9769 = vmatpush.bf16.msra.mxu0 %v9049
    %9770 = vmatpush.bf16.msra.mxu0 %v9045
    %9771 = vmatmul.bf16.gmra.mxu0 %v8001
    %v9772 = vpop.f32.mrf.mxu0
    %v9773 = vadd.f32 %v8269, %v9772
    %v9774 = vpop.f32.mrf.mxu0
    %9775 = vdwg.mxu0
    %9776 = vmatpush.bf16.msra.mxu0 %v9105
    %9777 = vmatpush.bf16.msra.mxu0 %v9101
    %9778 = vmatpush.bf16.msra.mxu0 %v9097
    %9779 = vmatpush.bf16.msra.mxu0 %v9093
    %9780 = vmatpush.bf16.msra.mxu0 %v9089
    %9781 = vmatpush.bf16.msra.mxu0 %v9085
    %9782 = vmatpush.bf16.msra.mxu0 %v9081
    %9783 = vmatpush.bf16.msra.mxu0 %v9077
    %9784 = vmatmul.bf16.gmra.mxu0 %v8002
    %v9785 = vpop.f32.mrf.mxu0
    %v9786 = vadd.f32 %v9773, %v9785
    %v9787 = vpop.f32.mrf.mxu0
    %9788 = vdwg.mxu0
    %9789 = vmatpush.bf16.msra.mxu0 %v9137
    %9790 = vmatpush.bf16.msra.mxu0 %v9133
    %9791 = vmatpush.bf16.msra.mxu0 %v9129
    %9792 = vmatpush.bf16.msra.mxu0 %v9125
    %9793 = vmatpush.bf16.msra.mxu0 %v9121
    %9794 = vmatpush.bf16.msra.mxu0 %v9117
    %9795 = vmatpush.bf16.msra.mxu0 %v9113
    %9796 = vmatpush.bf16.msra.mxu0 %v9109
    %9797 = vmatmul.bf16.gmra.mxu0 %v8003
    %v9798 = vpop.f32.mrf.mxu0
    %v9799 = vadd.f32 %v9786, %v9798
    %v9800 = vpop.f32.mrf.mxu0
    %9801 = vdwg.mxu0
    %9802 = vmatpush.bf16.msra.mxu0 %v9169
    %9803 = vmatpush.bf16.msra.mxu0 %v9165
    %9804 = vmatpush.bf16.msra.mxu0 %v9161
    %9805 = vmatpush.bf16.msra.mxu0 %v9157
    %9806 = vmatpush.bf16.msra.mxu0 %v9153
    %9807 = vmatpush.bf16.msra.mxu0 %v9149
    %9808 = vmatpush.bf16.msra.mxu0 %v9145
    %9809 = vmatpush.bf16.msra.mxu0 %v9141
    %9810 = vmatmul.bf16.gmra.mxu0 %v8004
    %v9811 = vpop.f32.mrf.mxu0
    %v9812 = vadd.f32 %v9799, %v9811
    %v9813 = vpop.f32.mrf.mxu0
    %9814 = vdwg.mxu0
    %9815 = vmatpush.bf16.msra.mxu0 %v9201
    %9816 = vmatpush.bf16.msra.mxu0 %v9197
    %9817 = vmatpush.bf16.msra.mxu0 %v9193
    %9818 = vmatpush.bf16.msra.mxu0 %v9189
    %9819 = vmatpush.bf16.msra.mxu0 %v9185
    %9820 = vmatpush.bf16.msra.mxu0 %v9181
    %9821 = vmatpush.bf16.msra.mxu0 %v9177
    %9822 = vmatpush.bf16.msra.mxu0 %v9173
    %9823 = vmatmul.bf16.gmra.mxu0 %v8005
    %v9824 = vpop.f32.mrf.mxu0
    %v9825 = vadd.f32 %v9812, %v9824
    %v9826 = vpop.f32.mrf.mxu0
    %9827 = vdwg.mxu0
    %9828 = vmatpush.bf16.msra.mxu0 %v9233
    %9829 = vmatpush.bf16.msra.mxu0 %v9229
    %9830 = vmatpush.bf16.msra.mxu0 %v9225
    %9831 = vmatpush.bf16.msra.mxu0 %v9221
    %9832 = vmatpush.bf16.msra.mxu0 %v9217
    %9833 = vmatpush.bf16.msra.mxu0 %v9213
    %9834 = vmatpush.bf16.msra.mxu0 %v9209
    %9835 = vmatpush.bf16.msra.mxu0 %v9205
    %9836 = vmatmul.bf16.gmra.mxu0 %v8006
    %v9837 = vpop.f32.mrf.mxu0
    %v9838 = vadd.f32 %v9825, %v9837
    %v9839 = vpop.f32.mrf.mxu0
    %9840 = vdwg.mxu0
    %9841 = vmatpush.bf16.msra.mxu0 %v9265
    %9842 = vmatpush.bf16.msra.mxu0 %v9261
    %9843 = vmatpush.bf16.msra.mxu0 %v9257
    %9844 = vmatpush.bf16.msra.mxu0 %v9253
    %9845 = vmatpush.bf16.msra.mxu0 %v9249
    %9846 = vmatpush.bf16.msra.mxu0 %v9245
    %9847 = vmatpush.bf16.msra.mxu0 %v9241
    %9848 = vmatpush.bf16.msra.mxu0 %v9237
    %9849 = vmatmul.bf16.gmra.mxu0 %v8007
    %v9850 = vpop.f32.mrf.mxu0
    %v9851 = vadd.f32 %v9838, %v9850
    %v9852 = vpop.f32.mrf.mxu0
    %9853 = vdwg.mxu0
    %9854 = vmatpush.bf16.msra.mxu0 %v9297
    %9855 = vmatpush.bf16.msra.mxu0 %v9293
    %9856 = vmatpush.bf16.msra.mxu0 %v9289
    %9857 = vmatpush.bf16.msra.mxu0 %v9285
    %9858 = vmatpush.bf16.msra.mxu0 %v9281
    %9859 = vmatpush.bf16.msra.mxu0 %v9277
    %9860 = vmatpush.bf16.msra.mxu0 %v9273
    %9861 = vmatpush.bf16.msra.mxu0 %v9269
    %9862 = vmatmul.bf16.gmra.mxu0 %v8008
    %v9863 = vpop.f32.mrf.mxu0
    %v9864 = vadd.f32 %v9851, %v9863
    %v9865 = vpop.f32.mrf.mxu0
    %9866 = vdwg.mxu0
    %9867 = vmatpush.bf16.msra.mxu0 %v9074
    %9868 = vmatpush.bf16.msra.mxu0 %v9070
    %9869 = vmatpush.bf16.msra.mxu0 %v9066
    %9870 = vmatpush.bf16.msra.mxu0 %v9062
    %9871 = vmatpush.bf16.msra.mxu0 %v9058
    %9872 = vmatpush.bf16.msra.mxu0 %v9054
    %9873 = vmatpush.bf16.msra.mxu0 %v9050
    %9874 = vmatpush.bf16.msra.mxu0 %v9046
    %9875 = vmatmul.bf16.gmra.mxu0 %v8001
    %v9876 = vpop.f32.mrf.mxu0
    %v9877 = vadd.f32 %v8270, %v9876
    %v9878 = vpop.f32.mrf.mxu0
    %9879 = vdwg.mxu0
    %9880 = vmatpush.bf16.msra.mxu0 %v9106
    %9881 = vmatpush.bf16.msra.mxu0 %v9102
    %9882 = vmatpush.bf16.msra.mxu0 %v9098
    %9883 = vmatpush.bf16.msra.mxu0 %v9094
    %9884 = vmatpush.bf16.msra.mxu0 %v9090
    %9885 = vmatpush.bf16.msra.mxu0 %v9086
    %9886 = vmatpush.bf16.msra.mxu0 %v9082
    %9887 = vmatpush.bf16.msra.mxu0 %v9078
    %9888 = vmatmul.bf16.gmra.mxu0 %v8002
    %v9889 = vpop.f32.mrf.mxu0
    %v9890 = vadd.f32 %v9877, %v9889
    %v9891 = vpop.f32.mrf.mxu0
    %9892 = vdwg.mxu0
    %9893 = vmatpush.bf16.msra.mxu0 %v9138
    %9894 = vmatpush.bf16.msra.mxu0 %v9134
    %9895 = vmatpush.bf16.msra.mxu0 %v9130
    %9896 = vmatpush.bf16.msra.mxu0 %v9126
    %9897 = vmatpush.bf16.msra.mxu0 %v9122
    %9898 = vmatpush.bf16.msra.mxu0 %v9118
    %9899 = vmatpush.bf16.msra.mxu0 %v9114
    %9900 = vmatpush.bf16.msra.mxu0 %v9110
    %9901 = vmatmul.bf16.gmra.mxu0 %v8003
    %v9902 = vpop.f32.mrf.mxu0
    %v9903 = vadd.f32 %v9890, %v9902
    %v9904 = vpop.f32.mrf.mxu0
    %9905 = vdwg.mxu0
    %9906 = vmatpush.bf16.msra.mxu0 %v9170
    %9907 = vmatpush.bf16.msra.mxu0 %v9166
    %9908 = vmatpush.bf16.msra.mxu0 %v9162
    %9909 = vmatpush.bf16.msra.mxu0 %v9158
    %9910 = vmatpush.bf16.msra.mxu0 %v9154
    %9911 = vmatpush.bf16.msra.mxu0 %v9150
    %9912 = vmatpush.bf16.msra.mxu0 %v9146
    %9913 = vmatpush.bf16.msra.mxu0 %v9142
    %9914 = vmatmul.bf16.gmra.mxu0 %v8004
    %v9915 = vpop.f32.mrf.mxu0
    %v9916 = vadd.f32 %v9903, %v9915
    %v9917 = vpop.f32.mrf.mxu0
    %9918 = vdwg.mxu0
    %9919 = vmatpush.bf16.msra.mxu0 %v9202
    %9920 = vmatpush.bf16.msra.mxu0 %v9198
    %9921 = vmatpush.bf16.msra.mxu0 %v9194
    %9922 = vmatpush.bf16.msra.mxu0 %v9190
    %9923 = vmatpush.bf16.msra.mxu0 %v9186
    %9924 = vmatpush.bf16.msra.mxu0 %v9182
    %9925 = vmatpush.bf16.msra.mxu0 %v9178
    %9926 = vmatpush.bf16.msra.mxu0 %v9174
    %9927 = vmatmul.bf16.gmra.mxu0 %v8005
    %v9928 = vpop.f32.mrf.mxu0
    %v9929 = vadd.f32 %v9916, %v9928
    %v9930 = vpop.f32.mrf.mxu0
    %9931 = vdwg.mxu0
    %9932 = vmatpush.bf16.msra.mxu0 %v9234
    %9933 = vmatpush.bf16.msra.mxu0 %v9230
    %9934 = vmatpush.bf16.msra.mxu0 %v9226
    %9935 = vmatpush.bf16.msra.mxu0 %v9222
    %9936 = vmatpush.bf16.msra.mxu0 %v9218
    %9937 = vmatpush.bf16.msra.mxu0 %v9214
    %9938 = vmatpush.bf16.msra.mxu0 %v9210
    %9939 = vmatpush.bf16.msra.mxu0 %v9206
    %9940 = vmatmul.bf16.gmra.mxu0 %v8006
    %v9941 = vpop.f32.mrf.mxu0
    %v9942 = vadd.f32 %v9929, %v9941
    %v9943 = vpop.f32.mrf.mxu0
    %9944 = vdwg.mxu0
    %9945 = vmatpush.bf16.msra.mxu0 %v9266
    %9946 = vmatpush.bf16.msra.mxu0 %v9262
    %9947 = vmatpush.bf16.msra.mxu0 %v9258
    %9948 = vmatpush.bf16.msra.mxu0 %v9254
    %9949 = vmatpush.bf16.msra.mxu0 %v9250
    %9950 = vmatpush.bf16.msra.mxu0 %v9246
    %9951 = vmatpush.bf16.msra.mxu0 %v9242
    %9952 = vmatpush.bf16.msra.mxu0 %v9238
    %9953 = vmatmul.bf16.gmra.mxu0 %v8007
    %v9954 = vpop.f32.mrf.mxu0
    %v9955 = vadd.f32 %v9942, %v9954
    %v9956 = vpop.f32.mrf.mxu0
    %9957 = vdwg.mxu0
    %9958 = vmatpush.bf16.msra.mxu0 %v9298
    %9959 = vmatpush.bf16.msra.mxu0 %v9294
    %9960 = vmatpush.bf16.msra.mxu0 %v9290
    %9961 = vmatpush.bf16.msra.mxu0 %v9286
    %9962 = vmatpush.bf16.msra.mxu0 %v9282
    %9963 = vmatpush.bf16.msra.mxu0 %v9278
    %9964 = vmatpush.bf16.msra.mxu0 %v9274
    %9965 = vmatpush.bf16.msra.mxu0 %v9270
    %9966 = vmatmul.bf16.gmra.mxu0 %v8008
    %v9967 = vpop.f32.mrf.mxu0
    %v9968 = vadd.f32 %v9955, %v9967
    %v9969 = vpop.f32.mrf.mxu0
    %9970 = vdwg.mxu0
    %v9971 = vmax.f32 %v9656, 0.0
    %v9972 = vmax.f32 %v9760, 0.0
    %v9973 = vmax.f32 %v9864, 0.0
    %v9974 = vmax.f32 %v9968, 0.0
    %v9975 = vpack.c.bf16 %v9971, %v9971
    %v9976 = vpack.c.bf16 %v9972, %v9972
    %v9977 = vpack.c.bf16 %v9973, %v9973
    %v9978 = vpack.c.bf16 %v9974, %v9974
    %v9979 = vld [vmem:[#allocation10] sm:$0xff]
    %v9980 = vld [vmem:[#allocation10 + $0x8] sm:$0xff]
    %v9981 = vld [vmem:[#allocation10 + $0x10] sm:$0xff]
    %v9982 = vld [vmem:[#allocation10 + $0x18] sm:$0xff]
    %v9983 = vld [vmem:[#allocation10 + $0x20] sm:$0xff]
    %v9984 = vld [vmem:[#allocation10 + $0x28] sm:$0xff]
    %v9985 = vld [vmem:[#allocation10 + $0x30] sm:$0xff]
    %v9986 = vld [vmem:[#allocation10 + $0x38] sm:$0xff]
    %v9987 = vld [vmem:[#allocation10 + $0x40] sm:$0xff]
    %v9988 = vld [vmem:[#allocation10 + $0x48] sm:$0xff]
    %v9989 = vld [vmem:[#allocation10 + $0x50] sm:$0xff]
    %v9990 = vld [vmem:[#allocation10 + $0x58] sm:$0xff]
    %v9991 = vld [vmem:[#allocation10 + $0x60] sm:$0xff]
    %v9992 = vld [vmem:[#allocation10 + $0x68] sm:$0xff]
    %v9993 = vld [vmem:[#allocation10 + $0x70] sm:$0xff]
    %v9994 = vld [vmem:[#allocation10 + $0x78] sm:$0xff]
    %v9995 = vld [vmem:[#allocation10 + $0x80] sm:$0xff]
    %v9996 = vld [vmem:[#allocation10 + $0x88] sm:$0xff]
    %v9997 = vld [vmem:[#allocation10 + $0x90] sm:$0xff]
    %v9998 = vld [vmem:[#allocation10 + $0x98] sm:$0xff]
    %v9999 = vld [vmem:[#allocation10 + $0xa0] sm:$0xff]
    %v10000 = vld [vmem:[#allocation10 + $0xa8] sm:$0xff]
    %v10001 = vld [vmem:[#allocation10 + $0xb0] sm:$0xff]
    %v10002 = vld [vmem:[#allocation10 + $0xb8] sm:$0xff]
    %v10003 = vld [vmem:[#allocation10 + $0xc0] sm:$0xff]
    %v10004 = vld [vmem:[#allocation10 + $0xc8] sm:$0xff]
    %v10005 = vld [vmem:[#allocation10 + $0xd0] sm:$0xff]
    %v10006 = vld [vmem:[#allocation10 + $0xd8] sm:$0xff]
    %v10007 = vld [vmem:[#allocation10 + $0xe0] sm:$0xff]
    %v10008 = vld [vmem:[#allocation10 + $0xe8] sm:$0xff]
    %v10009 = vld [vmem:[#allocation10 + $0xf0] sm:$0xff]
    %v10010 = vld [vmem:[#allocation10 + $0xf8] sm:$0xff]
    %v10011 = vld [vmem:[#allocation10 + $0x100] sm:$0xff]
    %v10012 = vld [vmem:[#allocation10 + $0x108] sm:$0xff]
    %v10013 = vld [vmem:[#allocation10 + $0x110] sm:$0xff]
    %v10014 = vld [vmem:[#allocation10 + $0x118] sm:$0xff]
    %v10015 = vld [vmem:[#allocation10 + $0x120] sm:$0xff]
    %v10016 = vld [vmem:[#allocation10 + $0x128] sm:$0xff]
    %v10017 = vld [vmem:[#allocation10 + $0x130] sm:$0xff]
    %v10018 = vld [vmem:[#allocation10 + $0x138] sm:$0xff]
    %v10019 = vld [vmem:[#allocation10 + $0x140] sm:$0xff]
    %v10020 = vld [vmem:[#allocation10 + $0x148] sm:$0xff]
    %v10021 = vld [vmem:[#allocation10 + $0x150] sm:$0xff]
    %v10022 = vld [vmem:[#allocation10 + $0x158] sm:$0xff]
    %v10023 = vld [vmem:[#allocation10 + $0x160] sm:$0xff]
    %v10024 = vld [vmem:[#allocation10 + $0x168] sm:$0xff]
    %v10025 = vld [vmem:[#allocation10 + $0x170] sm:$0xff]
    %v10026 = vld [vmem:[#allocation10 + $0x178] sm:$0xff]
    %v10027 = vld [vmem:[#allocation10 + $0x180] sm:$0xff]
    %v10028 = vld [vmem:[#allocation10 + $0x188] sm:$0xff]
    %v10029 = vld [vmem:[#allocation10 + $0x190] sm:$0xff]
    %v10030 = vld [vmem:[#allocation10 + $0x198] sm:$0xff]
    %v10031 = vld [vmem:[#allocation10 + $0x1a0] sm:$0xff]
    %v10032 = vld [vmem:[#allocation10 + $0x1a8] sm:$0xff]
    %v10033 = vld [vmem:[#allocation10 + $0x1b0] sm:$0xff]
    %v10034 = vld [vmem:[#allocation10 + $0x1b8] sm:$0xff]
    %v10035 = vld [vmem:[#allocation10 + $0x1c0] sm:$0xff]
    %v10036 = vld [vmem:[#allocation10 + $0x1c8] sm:$0xff]
    %v10037 = vld [vmem:[#allocation10 + $0x1d0] sm:$0xff]
    %v10038 = vld [vmem:[#allocation10 + $0x1d8] sm:$0xff]
    %v10039 = vld [vmem:[#allocation10 + $0x1e0] sm:$0xff]
    %v10040 = vld [vmem:[#allocation10 + $0x1e8] sm:$0xff]
    %v10041 = vld [vmem:[#allocation10 + $0x1f0] sm:$0xff]
    %v10042 = vld [vmem:[#allocation10 + $0x1f8] sm:$0xff]
    %v10043 = vld [vmem:[#allocation11] sm:$0x3]
    %v10045 = vperm.slane %v10043, 0
    %v10046 = vperm.slane %v10043, 1
    %v10113 = vunpack.c.l.b16 %v9979
    %v10114 = vunpack.c.h.b16 %v9979
    %v10115 = vunpack.c.l.b16 %v9980
    %v10116 = vunpack.c.h.b16 %v9980
    %v10117 = vunpack.c.l.b16 %v9981
    %v10118 = vunpack.c.h.b16 %v9981
    %v10119 = vunpack.c.l.b16 %v9982
    %v10120 = vunpack.c.h.b16 %v9982
    %v10121 = vunpack.c.l.b16 %v9983
    %v10122 = vunpack.c.h.b16 %v9983
    %v10123 = vunpack.c.l.b16 %v9984
    %v10124 = vunpack.c.h.b16 %v9984
    %v10125 = vunpack.c.l.b16 %v9985
    %v10126 = vunpack.c.h.b16 %v9985
    %v10127 = vunpack.c.l.b16 %v9986
    %v10128 = vunpack.c.h.b16 %v9986
    %v10129 = vunpack.c.l.b16 %v9987
    %v10130 = vunpack.c.h.b16 %v9987
    %v10131 = vunpack.c.l.b16 %v9988
    %v10132 = vunpack.c.h.b16 %v9988
    %v10133 = vunpack.c.l.b16 %v9989
    %v10134 = vunpack.c.h.b16 %v9989
    %v10135 = vunpack.c.l.b16 %v9990
    %v10136 = vunpack.c.h.b16 %v9990
    %v10137 = vunpack.c.l.b16 %v9991
    %v10138 = vunpack.c.h.b16 %v9991
    %v10139 = vunpack.c.l.b16 %v9992
    %v10140 = vunpack.c.h.b16 %v9992
    %v10141 = vunpack.c.l.b16 %v9993
    %v10142 = vunpack.c.h.b16 %v9993
    %v10143 = vunpack.c.l.b16 %v9994
    %v10144 = vunpack.c.h.b16 %v9994
    %v10145 = vunpack.c.l.b16 %v9995
    %v10146 = vunpack.c.h.b16 %v9995
    %v10147 = vunpack.c.l.b16 %v9996
    %v10148 = vunpack.c.h.b16 %v9996
    %v10149 = vunpack.c.l.b16 %v9997
    %v10150 = vunpack.c.h.b16 %v9997
    %v10151 = vunpack.c.l.b16 %v9998
    %v10152 = vunpack.c.h.b16 %v9998
    %v10153 = vunpack.c.l.b16 %v9999
    %v10154 = vunpack.c.h.b16 %v9999
    %v10155 = vunpack.c.l.b16 %v10000
    %v10156 = vunpack.c.h.b16 %v10000
    %v10157 = vunpack.c.l.b16 %v10001
    %v10158 = vunpack.c.h.b16 %v10001
    %v10159 = vunpack.c.l.b16 %v10002
    %v10160 = vunpack.c.h.b16 %v10002
    %v10161 = vunpack.c.l.b16 %v10003
    %v10162 = vunpack.c.h.b16 %v10003
    %v10163 = vunpack.c.l.b16 %v10004
    %v10164 = vunpack.c.h.b16 %v10004
    %v10165 = vunpack.c.l.b16 %v10005
    %v10166 = vunpack.c.h.b16 %v10005
    %v10167 = vunpack.c.l.b16 %v10006
    %v10168 = vunpack.c.h.b16 %v10006
    %v10169 = vunpack.c.l.b16 %v10007
    %v10170 = vunpack.c.h.b16 %v10007
    %v10171 = vunpack.c.l.b16 %v10008
    %v10172 = vunpack.c.h.b16 %v10008
    %v10173 = vunpack.c.l.b16 %v10009
    %v10174 = vunpack.c.h.b16 %v10009
    %v10175 = vunpack.c.l.b16 %v10010
    %v10176 = vunpack.c.h.b16 %v10010
    %v10177 = vunpack.c.l.b16 %v10011
    %v10178 = vunpack.c.h.b16 %v10011
    %v10179 = vunpack.c.l.b16 %v10012
    %v10180 = vunpack.c.h.b16 %v10012
    %v10181 = vunpack.c.l.b16 %v10013
    %v10182 = vunpack.c.h.b16 %v10013
    %v10183 = vunpack.c.l.b16 %v10014
    %v10184 = vunpack.c.h.b16 %v10014
    %v10185 = vunpack.c.l.b16 %v10015
    %v10186 = vunpack.c.h.b16 %v10015
    %v10187 = vunpack.c.l.b16 %v10016
    %v10188 = vunpack.c.h.b16 %v10016
    %v10189 = vunpack.c.l.b16 %v10017
    %v10190 = vunpack.c.h.b16 %v10017
    %v10191 = vunpack.c.l.b16 %v10018
    %v10192 = vunpack.c.h.b16 %v10018
    %v10193 = vunpack.c.l.b16 %v10019
    %v10194 = vunpack.c.h.b16 %v10019
    %v10195 = vunpack.c.l.b16 %v10020
    %v10196 = vunpack.c.h.b16 %v10020
    %v10197 = vunpack.c.l.b16 %v10021
    %v10198 = vunpack.c.h.b16 %v10021
    %v10199 = vunpack.c.l.b16 %v10022
    %v10200 = vunpack.c.h.b16 %v10022
    %v10201 = vunpack.c.l.b16 %v10023
    %v10202 = vunpack.c.h.b16 %v10023
    %v10203 = vunpack.c.l.b16 %v10024
    %v10204 = vunpack.c.h.b16 %v10024
    %v10205 = vunpack.c.l.b16 %v10025
    %v10206 = vunpack.c.h.b16 %v10025
    %v10207 = vunpack.c.l.b16 %v10026
    %v10208 = vunpack.c.h.b16 %v10026
    %v10209 = vunpack.c.l.b16 %v10027
    %v10210 = vunpack.c.h.b16 %v10027
    %v10211 = vunpack.c.l.b16 %v10028
    %v10212 = vunpack.c.h.b16 %v10028
    %v10213 = vunpack.c.l.b16 %v10029
    %v10214 = vunpack.c.h.b16 %v10029
    %v10215 = vunpack.c.l.b16 %v10030
    %v10216 = vunpack.c.h.b16 %v10030
    %v10217 = vunpack.c.l.b16 %v10031
    %v10218 = vunpack.c.h.b16 %v10031
    %v10219 = vunpack.c.l.b16 %v10032
    %v10220 = vunpack.c.h.b16 %v10032
    %v10221 = vunpack.c.l.b16 %v10033
    %v10222 = vunpack.c.h.b16 %v10033
    %v10223 = vunpack.c.l.b16 %v10034
    %v10224 = vunpack.c.h.b16 %v10034
    %v10225 = vunpack.c.l.b16 %v10035
    %v10226 = vunpack.c.h.b16 %v10035
    %v10227 = vunpack.c.l.b16 %v10036
    %v10228 = vunpack.c.h.b16 %v10036
    %v10229 = vunpack.c.l.b16 %v10037
    %v10230 = vunpack.c.h.b16 %v10037
    %v10231 = vunpack.c.l.b16 %v10038
    %v10232 = vunpack.c.h.b16 %v10038
    %v10233 = vunpack.c.l.b16 %v10039
    %v10234 = vunpack.c.h.b16 %v10039
    %v10235 = vunpack.c.l.b16 %v10040
    %v10236 = vunpack.c.h.b16 %v10040
    %v10237 = vunpack.c.l.b16 %v10041
    %v10238 = vunpack.c.h.b16 %v10041
    %v10239 = vunpack.c.l.b16 %v10042
    %v10240 = vunpack.c.h.b16 %v10042
    %v10241 = vpack.c.b16 %v10115, %v10113
    %v10242 = vpack.c.b16 %v10116, %v10114
    %v10243 = vpack.c.b16 %v10119, %v10117
    %v10244 = vpack.c.b16 %v10120, %v10118
    %v10245 = vpack.c.b16 %v10123, %v10121
    %v10246 = vpack.c.b16 %v10124, %v10122
    %v10247 = vpack.c.b16 %v10127, %v10125
    %v10248 = vpack.c.b16 %v10128, %v10126
    %v10249 = vpack.c.b16 %v10131, %v10129
    %v10250 = vpack.c.b16 %v10132, %v10130
    %v10251 = vpack.c.b16 %v10135, %v10133
    %v10252 = vpack.c.b16 %v10136, %v10134
    %v10253 = vpack.c.b16 %v10139, %v10137
    %v10254 = vpack.c.b16 %v10140, %v10138
    %v10255 = vpack.c.b16 %v10143, %v10141
    %v10256 = vpack.c.b16 %v10144, %v10142
    %v10257 = vpack.c.b16 %v10147, %v10145
    %v10258 = vpack.c.b16 %v10148, %v10146
    %v10259 = vpack.c.b16 %v10151, %v10149
    %v10260 = vpack.c.b16 %v10152, %v10150
    %v10261 = vpack.c.b16 %v10155, %v10153
    %v10262 = vpack.c.b16 %v10156, %v10154
    %v10263 = vpack.c.b16 %v10159, %v10157
    %v10264 = vpack.c.b16 %v10160, %v10158
    %v10265 = vpack.c.b16 %v10163, %v10161
    %v10266 = vpack.c.b16 %v10164, %v10162
    %v10267 = vpack.c.b16 %v10167, %v10165
    %v10268 = vpack.c.b16 %v10168, %v10166
    %v10269 = vpack.c.b16 %v10171, %v10169
    %v10270 = vpack.c.b16 %v10172, %v10170
    %v10271 = vpack.c.b16 %v10175, %v10173
    %v10272 = vpack.c.b16 %v10176, %v10174
    %v10273 = vpack.c.b16 %v10179, %v10177
    %v10274 = vpack.c.b16 %v10180, %v10178
    %v10275 = vpack.c.b16 %v10183, %v10181
    %v10276 = vpack.c.b16 %v10184, %v10182
    %v10277 = vpack.c.b16 %v10187, %v10185
    %v10278 = vpack.c.b16 %v10188, %v10186
    %v10279 = vpack.c.b16 %v10191, %v10189
    %v10280 = vpack.c.b16 %v10192, %v10190
    %v10281 = vpack.c.b16 %v10195, %v10193
    %v10282 = vpack.c.b16 %v10196, %v10194
    %v10283 = vpack.c.b16 %v10199, %v10197
    %v10284 = vpack.c.b16 %v10200, %v10198
    %v10285 = vpack.c.b16 %v10203, %v10201
    %v10286 = vpack.c.b16 %v10204, %v10202
    %v10287 = vpack.c.b16 %v10207, %v10205
    %v10288 = vpack.c.b16 %v10208, %v10206
    %v10289 = vpack.c.b16 %v10211, %v10209
    %v10290 = vpack.c.b16 %v10212, %v10210
    %v10291 = vpack.c.b16 %v10215, %v10213
    %v10292 = vpack.c.b16 %v10216, %v10214
    %v10293 = vpack.c.b16 %v10219, %v10217
    %v10294 = vpack.c.b16 %v10220, %v10218
    %v10295 = vpack.c.b16 %v10223, %v10221
    %v10296 = vpack.c.b16 %v10224, %v10222
    %v10297 = vpack.c.b16 %v10227, %v10225
    %v10298 = vpack.c.b16 %v10228, %v10226
    %v10299 = vpack.c.b16 %v10231, %v10229
    %v10300 = vpack.c.b16 %v10232, %v10230
    %v10301 = vpack.c.b16 %v10235, %v10233
    %v10302 = vpack.c.b16 %v10236, %v10234
    %v10303 = vpack.c.b16 %v10239, %v10237
    %v10304 = vpack.c.b16 %v10240, %v10238
    %10369 = vmatpush.bf16.msra.mxu0 %v10255
    %10370 = vmatpush.bf16.msra.mxu0 %v10253
    %10371 = vmatpush.bf16.msra.mxu0 %v10251
    %10372 = vmatpush.bf16.msra.mxu0 %v10249
    %10373 = vmatpush.bf16.msra.mxu0 %v10247
    %10374 = vmatpush.bf16.msra.mxu0 %v10245
    %10375 = vmatpush.bf16.msra.mxu0 %v10243
    %10376 = vmatpush.bf16.msra.mxu0 %v10241
    %10377 = vmatmul.bf16.gmra.mxu0 %v9975
    %v10378 = vpop.f32.mrf.mxu0
    %v10379 = vadd.f32 %v10045, %v10378
    %v10380 = vpop.f32.mrf.mxu0
    %10381 = vdwg.mxu0
    %10382 = vmatpush.bf16.msra.mxu0 %v10271
    %10383 = vmatpush.bf16.msra.mxu0 %v10269
    %10384 = vmatpush.bf16.msra.mxu0 %v10267
    %10385 = vmatpush.bf16.msra.mxu0 %v10265
    %10386 = vmatpush.bf16.msra.mxu0 %v10263
    %10387 = vmatpush.bf16.msra.mxu0 %v10261
    %10388 = vmatpush.bf16.msra.mxu0 %v10259
    %10389 = vmatpush.bf16.msra.mxu0 %v10257
    %10390 = vmatmul.bf16.gmra.mxu0 %v9976
    %v10391 = vpop.f32.mrf.mxu0
    %v10392 = vadd.f32 %v10379, %v10391
    %v10393 = vpop.f32.mrf.mxu0
    %10394 = vdwg.mxu0
    %10395 = vmatpush.bf16.msra.mxu0 %v10287
    %10396 = vmatpush.bf16.msra.mxu0 %v10285
    %10397 = vmatpush.bf16.msra.mxu0 %v10283
    %10398 = vmatpush.bf16.msra.mxu0 %v10281
    %10399 = vmatpush.bf16.msra.mxu0 %v10279
    %10400 = vmatpush.bf16.msra.mxu0 %v10277
    %10401 = vmatpush.bf16.msra.mxu0 %v10275
    %10402 = vmatpush.bf16.msra.mxu0 %v10273
    %10403 = vmatmul.bf16.gmra.mxu0 %v9977
    %v10404 = vpop.f32.mrf.mxu0
    %v10405 = vadd.f32 %v10392, %v10404
    %v10406 = vpop.f32.mrf.mxu0
    %10407 = vdwg.mxu0
    %10408 = vmatpush.bf16.msra.mxu0 %v10303
    %10409 = vmatpush.bf16.msra.mxu0 %v10301
    %10410 = vmatpush.bf16.msra.mxu0 %v10299
    %10411 = vmatpush.bf16.msra.mxu0 %v10297
    %10412 = vmatpush.bf16.msra.mxu0 %v10295
    %10413 = vmatpush.bf16.msra.mxu0 %v10293
    %10414 = vmatpush.bf16.msra.mxu0 %v10291
    %10415 = vmatpush.bf16.msra.mxu0 %v10289
    %10416 = vmatmul.bf16.gmra.mxu0 %v9978
    %v10417 = vpop.f32.mrf.mxu0
    %v10418 = vadd.f32 %v10405, %v10417
    %v10419 = vpop.f32.mrf.mxu0
    %10420 = vdwg.mxu0
    %10421 = vmatpush.bf16.msra.mxu0 %v10256
    %10422 = vmatpush.bf16.msra.mxu0 %v10254
    %10423 = vmatpush.bf16.msra.mxu0 %v10252
    %10424 = vmatpush.bf16.msra.mxu0 %v10250
    %10425 = vmatpush.bf16.msra.mxu0 %v10248
    %10426 = vmatpush.bf16.msra.mxu0 %v10246
    %10427 = vmatpush.bf16.msra.mxu0 %v10244
    %10428 = vmatpush.bf16.msra.mxu0 %v10242
    %10429 = vmatmul.bf16.gmra.mxu0 %v9975
    %v10430 = vpop.f32.mrf.mxu0
    %v10431 = vadd.f32 %v10046, %v10430
    %v10432 = vpop.f32.mrf.mxu0
    %10433 = vdwg.mxu0
    %10434 = vmatpush.bf16.msra.mxu0 %v10272
    %10435 = vmatpush.bf16.msra.mxu0 %v10270
    %10436 = vmatpush.bf16.msra.mxu0 %v10268
    %10437 = vmatpush.bf16.msra.mxu0 %v10266
    %10438 = vmatpush.bf16.msra.mxu0 %v10264
    %10439 = vmatpush.bf16.msra.mxu0 %v10262
    %10440 = vmatpush.bf16.msra.mxu0 %v10260
    %10441 = vmatpush.bf16.msra.mxu0 %v10258
    %10442 = vmatmul.bf16.gmra.mxu0 %v9976
    %v10443 = vpop.f32.mrf.mxu0
    %v10444 = vadd.f32 %v10431, %v10443
    %v10445 = vpop.f32.mrf.mxu0
    %10446 = vdwg.mxu0
    %10447 = vmatpush.bf16.msra.mxu0 %v10288
    %10448 = vmatpush.bf16.msra.mxu0 %v10286
    %10449 = vmatpush.bf16.msra.mxu0 %v10284
    %10450 = vmatpush.bf16.msra.mxu0 %v10282
    %10451 = vmatpush.bf16.msra.mxu0 %v10280
    %10452 = vmatpush.bf16.msra.mxu0 %v10278
    %10453 = vmatpush.bf16.msra.mxu0 %v10276
    %10454 = vmatpush.bf16.msra.mxu0 %v10274
    %10455 = vmatmul.bf16.gmra.mxu0 %v9977
    %v10456 = vpop.f32.mrf.mxu0
    %v10457 = vadd.f32 %v10444, %v10456
    %v10458 = vpop.f32.mrf.mxu0
    %10459 = vdwg.mxu0
    %10460 = vmatpush.bf16.msra.mxu0 %v10304
    %10461 = vmatpush.bf16.msra.mxu0 %v10302
    %10462 = vmatpush.bf16.msra.mxu0 %v10300
    %10463 = vmatpush.bf16.msra.mxu0 %v10298
    %10464 = vmatpush.bf16.msra.mxu0 %v10296
    %10465 = vmatpush.bf16.msra.mxu0 %v10294
    %10466 = vmatpush.bf16.msra.mxu0 %v10292
    %10467 = vmatpush.bf16.msra.mxu0 %v10290
    %10468 = vmatmul.bf16.gmra.mxu0 %v9978
    %v10469 = vpop.f32.mrf.mxu0
    %v10470 = vadd.f32 %v10457, %v10469
    %v10471 = vpop.f32.mrf.mxu0
    %10472 = vdwg.mxu0
    %v10473 = vmax.f32 %v10418, 0.0
    %v10474 = vmax.f32 %v10470, 0.0
    %v10475 = vld [vmem:[#allocation13] sm:$0x3]
    %v10477 = vperm.slane %v10475, 0
    %v10478 = vperm.slane %v10475, 1
    %v10481 = vmul.f32 %v10473, %v10477
    %v10482 = vmul.f32 %v10474, %v10478
    %v10483 = vadd.f32 %v10481, %v10482
    %10484 = vadd.xlane.f32.xlu0 %v10483
    %v10485 = vpop.xlane.xlu0 %10484
    %v10486 = vld [vmem:[#allocation2] sm:$0x1]
    %v10488 = vperm.slane %v10486, 0
    %v10490 = vadd.f32 %v10485, %v10488
    %vm10491 = vcmask 7168
    %10492 = vst.msk [vmem:[%s9] sm:$0xff] %vm10491, %v10490
    // Predicated region
    $region66: #{solubility_predictor.1} parent=1 // pred_check
      _
    $region67: #{solubility_predictor.1} parent=1 // pred_check_branch
      %10494 = sbr.rel (0) target = $region69
    $region68: #{solubility_predictor.1} parent=1 // pred_region
      _
    $region69: #{solubility_predictor.1} parent=1 // pred_fallthru
      _
    // Predicated region
    $region70: #{solubility_predictor.1} parent=1 // pred_check
      _
    $region71: #{solubility_predictor.1} parent=1 // pred_check_branch
      %10496 = sbr.rel (0) target = $region73
    $region72: #{solubility_predictor.1} parent=1 // pred_region
      _
    $region73: #{solubility_predictor.1} parent=1 // pred_fallthru
      _
    %10497 = vsyncpa [#allocation4], 1
    %10498 = vsyncpa [#allocation6], 1
    %10499 = vsyncpa [#allocation9], 1
    %10500 = vsyncpa [#allocation12], 1

</llo_original>
